<compile_context>
chip_gen: v6e
topology: v6e:2x2x1
jax: 0.10.0
libtpu: 0.0.40
codegen_flags: <defaults>
</compile_context>

<pallas_src>
import functools

import jax
import jax.numpy as jnp
from jax.experimental import pallas as pl
from jax.experimental.pallas import tpu as pltpu

BN_EPS = 1e-5
EXPANSION = 1                           # BasicBlock.expansion
LANE = 128                              # channel padding multiple (v5e/v6e/v7x)
ACC_BYTES_BUDGET = 2 * 1024 * 1024      # per-step f32 accumulator budget
VMEM_LIMIT_BYTES = 48 * 1024 * 1024     # > v5e/v6e scoped defaults, < v7x 64 MiB phys


def _round_up(a, b):
    return -(-a // b) * b


# ------------------------------------------------------------------ Pallas kernel
def _conv_kernel(ksize, relu, res_mode, *refs):
    """Direct conv (in-kernel tap loop) + folded-BN bias + residual + ReLU.

    res_mode: "none" | "identity" (bf16 residual tile) | "proj" (fused 1x1
              shortcut projection as a second MXU dot).
    """
    if res_mode == "identity":
        x_ref, w_ref, b_ref, r_ref, o_ref, acc_ref = refs
    elif res_mode == "proj":
        x_ref, w_ref, b_ref, sx_ref, sw_ref, sb_ref, o_ref, acc_ref = refs
    else:
        x_ref, w_ref, b_ref, o_ref, acc_ref = refs

    _, tile_h, w_out, cout_pad = o_ref.shape
    cin_pad = x_ref.shape[-1]
    rows = tile_h * w_out
    h0 = pl.program_id(1) * tile_h

    # ksize*ksize per-tap matmuls over shifted windows of the (spatially padded)
    # whole-image input block; weights are fully VMEM-resident; f32 accumulation.
    for t in range(ksize * ksize):
        kh, kw = divmod(t, ksize)
        xt = x_ref[0, pl.ds(h0 + kh, tile_h), pl.ds(kw, w_out), :]
        contrib = jnp.dot(xt.reshape(rows, cin_pad), w_ref[t],
                          preferred_element_type=jnp.float32)
        if t == 0:
            acc_ref[...] = contrib
        else:
            acc_ref[...] += contrib

    y = acc_ref[...] + b_ref[...]                       # folded-BN bias
    if res_mode == "identity":
        y = y + r_ref[0].reshape(rows, cout_pad).astype(jnp.float32)
    elif res_mode == "proj":
        r = jnp.dot(sx_ref[0].reshape(rows, sx_ref.shape[-1]), sw_ref[...],
                    preferred_element_type=jnp.float32)
        y = y + (r + sb_ref[...])
    if relu:
        y = jnp.maximum(y, 0.0)
    o_ref[0] = y.reshape(tile_h, w_out, cout_pad).astype(o_ref.dtype)


def _pick_tile_h(n, h_out, w_out, cout_pad):
    """Largest divisor of h_out whose f32 accumulator fits ACC_BYTES_BUDGET; then
    guarantee >= 2 grid steps overall so both v7x TensorCores get work."""
    max_rows = max(1, ACC_BYTES_BUDGET // (cout_pad * 4))
    tile_h = 1
    for t in range(1, h_out + 1):
        if h_out % t == 0 and t * w_out <= max_rows:
            tile_h = t
    if n * (h_out // tile_h) < 2:
        for t in range(h_out // 2, 0, -1):
            if h_out % t == 0:
                tile_h = t
                break
    return tile_h


def fused_conv(x, w, bias, *, ksize, relu, out_hw, residual=None, proj=None):
    """One ConvNormLayer (+ optional fused residual / shortcut projection + ReLU).

    x:    (N, Hp, Wp, Cin_pad) bf16, spatially pre-padded for `ksize`
          (ksize == 1: x is an already-gathered operand, e.g. im2col patches).
    w:    (ksize*ksize, Cin_pad, Cout_pad) bf16, BN scale pre-folded.
    bias: (1, Cout_pad) f32 folded-BN bias.
    residual: (N, H_out, W_out, Cout_pad) bf16 identity residual, or None.
    proj: {"x": (N, H_out, W_out, Cs_pad) bf16, "w": (Cs_pad, Cout_pad) bf16,
           "b": (1, Cout_pad) f32} fused 1x1 shortcut projection, or None.
    Returns (N, H_out, W_out, Cout_pad) bf16.
    """
    n, hp, wp, cin_pad = x.shape
    h_out, w_out = out_hw
    taps, wcin, cout_pad = w.shape
    assert taps == ksize * ksize and wcin == cin_pad, (w.shape, ksize, cin_pad)

    tile_h = _pick_tile_h(n, h_out, w_out, cout_pad)
    num_h = h_out // tile_h
    rows = tile_h * w_out

    args = [x, w, bias]
    in_specs = [
        # whole (padded) image per n: re-DMA'd only when n changes
        pl.BlockSpec((1, hp, wp, cin_pad), lambda i, j: (i, 0, 0, 0)),
        # weights / bias: constant index_map -> single DMA, VMEM resident
        pl.BlockSpec((taps, cin_pad, cout_pad), lambda i, j: (0, 0, 0)),
        pl.BlockSpec((1, cout_pad), lambda i, j: (0, 0)),
    ]
    res_mode = "none"
    if residual is not None:
        res_mode = "identity"
        assert residual.shape == (n, h_out, w_out, cout_pad)
        args.append(residual)
        in_specs.append(pl.BlockSpec((1, tile_h, w_out, cout_pad),
                                     lambda i, j: (i, j, 0, 0)))
    elif proj is not None:
        res_mode = "proj"
        cs_pad = proj["x"].shape[-1]
        args += [proj["x"], proj["w"], proj["b"]]
        in_specs += [
            pl.BlockSpec((1, tile_h, w_out, cs_pad), lambda i, j: (i, j, 0, 0)),
            pl.BlockSpec((cs_pad, cout_pad), lambda i, j: (0, 0)),
            pl.BlockSpec((1, cout_pad), lambda i, j: (0, 0)),
        ]

    kernel = functools.partial(_conv_kernel, ksize, relu, res_mode)
    return pl.pallas_call(
        kernel,
        out_shape=jax.ShapeDtypeStruct((n, h_out, w_out, cout_pad), jnp.bfloat16),
        grid_spec=pltpu.PrefetchScalarGridSpec(
            num_scalar_prefetch=0,
            grid=(n, num_h),
            in_specs=in_specs,
            out_specs=pl.BlockSpec((1, tile_h, w_out, cout_pad),
                                   lambda i, j: (i, j, 0, 0)),
            scratch_shapes=[pltpu.VMEM((rows, cout_pad), jnp.float32)],
        ),
        compiler_params=pltpu.CompilerParams(
            dimension_semantics=("parallel", "parallel"),
            vmem_limit_bytes=VMEM_LIMIT_BYTES,
        ),
    )(*args)


# ------------------------------------------------------------------ JAX glue
def _im2col(xp, ksize, stride, h_out, w_out):
    """(N, Hp, Wp, C) spatially padded -> (N, h_out, w_out, ksize*ksize*C).

    Only used for the stride-2 branch2a conv (2.25x the input size); stride-1 3x3
    convs are computed directly in the kernel with no patch materialization."""
    cols = []
    for kh in range(ksize):
        for kw in range(ksize):
            cols.append(xp[:, kh:kh + stride * (h_out - 1) + 1:stride,
                              kw:kw + stride * (w_out - 1) + 1:stride, :])
    return jnp.concatenate(cols, axis=-1)


# ------------------------------------------------------------------ parameters
def _fold_bn(gamma, beta, mean, var):
    scale = gamma / jnp.sqrt(var + BN_EPS)
    bias = beta - mean * scale
    return scale, bias


def init_conv_norm(key, c_in, c_out, ksize):
    kw_, kg, kb, km, kv = jax.random.split(key, 5)
    fan_in = c_in * ksize * ksize
    w = jax.random.normal(kw_, (ksize * ksize * c_in, c_out),
                          jnp.float32) / jnp.sqrt(fan_in)
    gamma = 1.0 + 0.1 * jax.random.normal(kg, (c_out,), jnp.float32)
    beta = 0.1 * jax.random.normal(kb, (c_out,), jnp.float32)
    mean = 0.1 * jax.random.normal(km, (c_out,), jnp.float32)
    var = jnp.abs(jax.random.normal(kv, (c_out,), jnp.float32)) + 0.5
    scale, bias = _fold_bn(gamma, beta, mean, var)

    cin_pad = _round_up(c_in, LANE)
    cout_pad = _round_up(c_out, LANE)
    # Fold BN scale into the conv weights (exact; done in f32 before the bf16 cast).
    w_folded = (w * scale[None, :]).reshape(ksize * ksize, c_in, c_out)
    w_padded = jnp.pad(w_folded,
                       ((0, 0), (0, cin_pad - c_in), (0, cout_pad - c_out)))
    bias_padded = jnp.pad(bias, (0, cout_pad - c_out)).reshape(1, cout_pad)
    return {
        "w": w_padded.astype(jnp.bfloat16),       # (k*k, cin_pad, cout_pad)
        "bias": bias_padded.astype(jnp.float32),  # (1, cout_pad)
        "c_out": c_out,
        "ksize": ksize,
        # unfolded f32 copies for the pure-JAX reference
        "w_f32": w, "scale_f32": scale, "bias_f32": bias,
    }


def init_basic_block(key, c_in, c_out, stride, shortcut, variant="b"):
    k2a, k2b, ks = jax.random.split(key, 3)
    p = {
        "branch2a": init_conv_norm(k2a, c_in, c_out, 3),
        "branch2b": init_conv_norm(k2b, c_out, c_out, 3),
        "stride": stride,
        "shortcut": shortcut,
    }
    if not shortcut:
        # variant 'b' projection: 1x1 conv with stride + BN (no activation)
        # TODO(synk): variant 'd' shortcut (AvgPool2d + 1x1 conv) not implemented.
        p["short"] = init_conv_norm(ks, c_in, c_out, 1)
    return p


def init_blocks(key, ch_in, ch_out, count, stage_num, variant="b"):
    """Mirrors Blocks.__init__ wiring (stride / shortcut / ch_in update)."""
    params = []
    for i in range(count):
        key, sub = jax.random.split(key)
        stride = 2 if i == 0 and stage_num != 2 else 1
        params.append(init_basic_block(sub, ch_in, ch_out, stride,
                                       shortcut=(i != 0), variant=variant))
        if i == 0:
            ch_in = ch_out * EXPANSION
    return params


# ------------------------------------------------------------------ forward
def basic_block_forward(x, p):
    """x: (N, H, W, Cin_pad) channel-padded bf16 NHWC."""
    stride = p["stride"]
    n, h, w, cin_pad = x.shape
    h_out = (h + 2 - 3) // stride + 1
    w_out = (w + 2 - 3) // stride + 1

    # branch2a: 3x3 conv stride s + BN + ReLU (one fused Pallas kernel)
    b2a = p["branch2a"]
    xp = jnp.pad(x, ((0, 0), (1, 1), (1, 1), (0, 0)))
    if stride == 1:
        y = fused_conv(xp, b2a["w"], b2a["bias"], ksize=3, relu=True,
                       out_hw=(h_out, w_out))
    else:
        # stride-2: bf16 / channel-padded im2col gather feeding the ksize=1 path.
        patches = _im2col(xp, 3, stride, h_out, w_out)
        w2a = b2a["w"].reshape(1, 9 * cin_pad, -1)
        y = fused_conv(patches, w2a, b2a["bias"], ksize=1, relu=True,
                       out_hw=(h_out, w_out))

    # branch2b: 3x3 conv stride 1 + BN + residual + ReLU (all fused in one kernel)
    b2b = p["branch2b"]
    yp = jnp.pad(y, ((0, 0), (1, 1), (1, 1), (0, 0)))
    if p["shortcut"]:
        out = fused_conv(yp, b2b["w"], b2b["bias"], ksize=3, relu=True,
                         out_hw=(h_out, w_out), residual=x)
    else:
        ps = p["short"]
        xs = x[:, ::stride, ::stride, :][:, :h_out, :w_out, :]  # 1x1 stride-s gather
        out = fused_conv(yp, b2b["w"], b2b["bias"], ksize=3, relu=True,
                         out_hw=(h_out, w_out),
                         proj={"x": xs, "w": ps["w"][0], "b": ps["bias"]})
    return out


def blocks_forward(x_nchw, params):
    x = jnp.transpose(x_nchw, (0, 2, 3, 1))              # NCHW -> NHWC
    c_in = x.shape[-1]
    cpad = _round_up(c_in, LANE)
    # Channel-pad once; activations stay lane-dense bf16 (128-multiple channels)
    # between layers, so no per-layer pad / slice / cast passes over HBM.
    x = jnp.pad(x, ((0, 0), (0, 0), (0, 0), (0, cpad - c_in))).astype(jnp.bfloat16)
    for p in params:
        x = basic_block_forward(x, p)
    c_out = params[-1]["branch2b"]["c_out"]
    x = x[..., :c_out].astype(jnp.float32)
    return jnp.transpose(x, (0, 3, 1, 2))                # NHWC -> NCHW


# ------------------------------------------------------------------ pure-JAX reference
def _ref_conv_bn(x_nhwc, p, stride, relu):
    k = p["ksize"]
    c_in = x_nhwc.shape[-1]
    c_out = p["c_out"]
    w_hwio = p["w_f32"].reshape(k, k, c_in, c_out)
    pad = (k - 1) // 2
    y = jax.lax.conv_general_dilated(
        x_nhwc, w_hwio, (stride, stride), [(pad, pad), (pad, pad)],
        dimension_numbers=("NHWC", "HWIO", "NHWC"))
    y = y * p["scale_f32"] + p["bias_f32"]
    return jnp.maximum(y, 0.0) if relu else y


def blocks_forward_ref(x_nchw, params):
    x = jnp.transpose(x_nchw, (0, 2, 3, 1))
    for p in params:
        y = _ref_conv_bn(x, p["branch2a"], p["stride"], True)
        y = _ref_conv_bn(y, p["branch2b"], 1, False)
        res = x if p["shortcut"] else _ref_conv_bn(x, p["short"], p["stride"], False)
        x = jnp.maximum(y + res, 0.0)
    return jnp.transpose(x, (0, 3, 1, 2))


# ------------------------------------------------------------------ main
if __name__ == "__main__":
    key = jax.random.PRNGKey(0)
    kx, kp = jax.random.split(key)

    ch_in, ch_out, count, stage_num = 4, 8, 2, 3   # stage_num != 2 -> first block stride 2
    x = jax.random.normal(kx, (2, ch_in, 16, 16), jnp.float32)   # NCHW like PyTorch
    params = init_blocks(kp, ch_in, ch_out, count, stage_num)

    fwd = jax.jit(lambda inp: blocks_forward(inp, params))
    out = jax.block_until_ready(fwd(x))
    ref = blocks_forward_ref(x, params)

    assert out.shape == (2, ch_out * EXPANSION, 8, 8), out.shape
    max_err = float(jnp.max(jnp.abs(out - ref)))
    # bf16 MXU inputs / bf16 inter-layer activations (f32 accumulation) vs f32 ref.
    assert jnp.allclose(out, ref, rtol=5e-2, atol=1e-1), f"max_err={max_err}"
    print("KERNEL_OK")
</pallas_src>

<mosaic_0001>
module attributes {stable_mosaic.version = 11 : i64} {
  func.func @_conv_kernel(%arg0: i32, %arg1: i32, %arg2: memref<1x8x8x1152xbf16, #tpu.memory_space<vmem>>, %arg3: memref<1x1152x128xbf16, #tpu.memory_space<vmem>>, %arg4: memref<1x128xf32, #tpu.memory_space<vmem>>, %arg5: memref<1x8x8x128xbf16, #tpu.memory_space<vmem>>, %arg6: memref<64x128xf32, #tpu.memory_space<vmem>>) attributes {dimension_semantics = [#tpu.dimension_semantics<parallel>, #tpu.dimension_semantics<parallel>], iteration_bounds = array<i64: 2, 1>, scalar_prefetch = 0 : i64, scratch_operands = 1 : i64, tpu.core_type = #tpu.core_type<tc>, window_params = [{transform_indices = @transform_0, window_bounds = array<i64: 1, 8, 8, 1152>}, {pipeline_mode = #tpu.pipeline_mode<synchronous>, transform_indices = @transform_1, window_bounds = array<i64: 1, 1152, 128>}, {pipeline_mode = #tpu.pipeline_mode<synchronous>, transform_indices = @transform_2, window_bounds = array<i64: 1, 128>}, {transform_indices = @transform_3, window_bounds = array<i64: 1, 8, 8, 128>}]} {
    %c8_i32 = arith.constant 8 : i32
    %0 = arith.muli %arg1, %c8_i32 : i32
    %c0_i32 = arith.constant 0 : i32
    %1 = arith.addi %0, %c0_i32 : i32
    %c0 = arith.constant 0 : index
    %2 = arith.index_cast %1 : i32 to index
    %c0_0 = arith.constant 0 : index
    %c0_1 = arith.constant 0 : index
    %3 = vector.load %arg2[%c0, %2, %c0_0, %c0_1] : memref<1x8x8x1152xbf16, #tpu.memory_space<vmem>>, vector<1x8x8x1152xbf16>
    %4 = vector.shape_cast %3 : vector<1x8x8x1152xbf16> to vector<8x8x1152xbf16>
    %5 = vector.shape_cast %4 : vector<8x8x1152xbf16> to vector<64x1152xbf16>
    %c0_2 = arith.constant 0 : index
    %c0_3 = arith.constant 0 : index
    %c0_4 = arith.constant 0 : index
    %6 = vector.load %arg3[%c0_2, %c0_3, %c0_4] : memref<1x1152x128xbf16, #tpu.memory_space<vmem>>, vector<1x1152x128xbf16>
    %7 = vector.shape_cast %6 : vector<1x1152x128xbf16> to vector<1152x128xbf16>
    %cst = arith.constant dense<0.000000e+00> : vector<64x128xf32>
    %8 = tpu.matmul %5, %7, %cst {dimension_numbers = #tpu.dot_dimension_numbers<[1], [0], [0], [1], [0, 0, 1, 1], [], []>} : vector<64x1152xbf16>, vector<1152x128xbf16>, vector<64x128xf32> -> vector<64x128xf32>
    %c0_5 = arith.constant 0 : index
    %c0_6 = arith.constant 0 : index
    %9 = vector.load %arg6[%c0_5, %c0_6] : memref<64x128xf32, #tpu.memory_space<vmem>>, vector<64x128xf32>
    tpu.vector_store %arg6[%c0_5, %c0_6], %8 {strides = array<i32>} : memref<64x128xf32, #tpu.memory_space<vmem>>, vector<64x128xf32>,
    %c0_7 = arith.constant 0 : index
    %c0_8 = arith.constant 0 : index
    %10 = vector.load %arg6[%c0_7, %c0_8] : memref<64x128xf32, #tpu.memory_space<vmem>>, vector<64x128xf32>
    %c0_9 = arith.constant 0 : index
    %c0_10 = arith.constant 0 : index
    %11 = vector.load %arg4[%c0_9, %c0_10] : memref<1x128xf32, #tpu.memory_space<vmem>>, vector<1x128xf32>
    %12 = vector.broadcast %11 : vector<1x128xf32> to vector<64x128xf32>
    %13 = arith.addf %10, %12 : vector<64x128xf32>
    %cst_11 = arith.constant 0.000000e+00 : f32
    %14 = vector.broadcast %cst_11 : f32 to vector<64x128xf32>
    %15 = arith.maximumf %13, %14 : vector<64x128xf32>
    %16 = vector.shape_cast %15 : vector<64x128xf32> to vector<8x8x128xf32>
    %17 = arith.truncf %16 : vector<8x8x128xf32> to vector<8x8x128xbf16>
    %c0_12 = arith.constant 0 : index
    %c0_13 = arith.constant 0 : index
    %c0_14 = arith.constant 0 : index
    %c0_15 = arith.constant 0 : index
    %18 = vector.load %arg5[%c0_12, %c0_13, %c0_14, %c0_15] : memref<1x8x8x128xbf16, #tpu.memory_space<vmem>>, vector<1x8x8x128xbf16>
    %19 = vector.shape_cast %18 : vector<1x8x8x128xbf16> to vector<8x8x128xbf16>
    %20 = vector.shape_cast %17 : vector<8x8x128xbf16> to vector<1x8x8x128xbf16>
    tpu.vector_store %arg5[%c0_12, %c0_13, %c0_14, %c0_15], %20 {strides = array<i32>} : memref<1x8x8x128xbf16, #tpu.memory_space<vmem>>, vector<1x8x8x128xbf16>,
    return
  }
  func.func @transform_0(%arg0: i32, %arg1: i32) -> (i32, i32, i32, i32) {
    %c0_i32 = arith.constant 0 : i32
    %c0_i32_0 = arith.constant 0 : i32
    %c0_i32_1 = arith.constant 0 : i32
    %c0_i32_2 = arith.constant 0 : i32
    return %arg0, %c0_i32, %c0_i32_0, %c0_i32_1 : i32, i32, i32, i32
  }
  func.func @transform_1(%arg0: i32, %arg1: i32) -> (i32, i32, i32) {
    %c0_i32 = arith.constant 0 : i32
    %c0_i32_0 = arith.constant 0 : i32
    %c0_i32_1 = arith.constant 0 : i32
    %c0_i32_2 = arith.constant 0 : i32
    return %c0_i32, %c0_i32_0, %c0_i32_1 : i32, i32, i32
  }
  func.func @transform_2(%arg0: i32, %arg1: i32) -> (i32, i32) {
    %c0_i32 = arith.constant 0 : i32
    %c0_i32_0 = arith.constant 0 : i32
    %c0_i32_1 = arith.constant 0 : i32
    return %c0_i32, %c0_i32_0 : i32, i32
  }
  func.func @transform_3(%arg0: i32, %arg1: i32) -> (i32, i32, i32, i32) {
    %c0_i32 = arith.constant 0 : i32
    %c0_i32_0 = arith.constant 0 : i32
    %c0_i32_1 = arith.constant 0 : i32
    return %arg0, %arg1, %c0_i32, %c0_i32_0 : i32, i32, i32, i32
  }
}

module attributes {stable_mosaic.version = 11 : i64} {
  func.func @_conv_kernel(%arg0: i32, %arg1: i32, %arg2: memref<1x10x10x128xbf16, #tpu.memory_space<vmem>>, %arg3: memref<9x128x128xbf16, #tpu.memory_space<vmem>>, %arg4: memref<1x128xf32, #tpu.memory_space<vmem>>, %arg5: memref<1x8x8x128xbf16, #tpu.memory_space<vmem>>, %arg6: memref<128x128xbf16, #tpu.memory_space<vmem>>, %arg7: memref<1x128xf32, #tpu.memory_space<vmem>>, %arg8: memref<1x8x8x128xbf16, #tpu.memory_space<vmem>>, %arg9: memref<64x128xf32, #tpu.memory_space<vmem>>) attributes {dimension_semantics = [#tpu.dimension_semantics<parallel>, #tpu.dimension_semantics<parallel>], iteration_bounds = array<i64: 2, 1>, scalar_prefetch = 0 : i64, scratch_operands = 1 : i64, tpu.core_type = #tpu.core_type<tc>, window_params = [{transform_indices = @transform_0, window_bounds = array<i64: 1, 10, 10, 128>}, {pipeline_mode = #tpu.pipeline_mode<synchronous>, transform_indices = @transform_1, window_bounds = array<i64: 9, 128, 128>}, {pipeline_mode = #tpu.pipeline_mode<synchronous>, transform_indices = @transform_2, window_bounds = array<i64: 1, 128>}, {transform_indices = @transform_3, window_bounds = array<i64: 1, 8, 8, 128>}, {pipeline_mode = #tpu.pipeline_mode<synchronous>, transform_indices = @transform_4, window_bounds = array<i64: 128, 128>}, {pipeline_mode = #tpu.pipeline_mode<synchronous>, transform_indices = @transform_5, window_bounds = array<i64: 1, 128>}, {transform_indices = @transform_6, window_bounds = array<i64: 1, 8, 8, 128>}]} {
    %c8_i32 = arith.constant 8 : i32
    %0 = arith.muli %arg1, %c8_i32 : i32
    %c0_i32 = arith.constant 0 : i32
    %1 = arith.addi %0, %c0_i32 : i32
    %c0 = arith.constant 0 : index
    %2 = arith.index_cast %1 : i32 to index
    %c0_0 = arith.constant 0 : index
    %c0_1 = arith.constant 0 : index
    %3 = vector.load %arg2[%c0, %2, %c0_0, %c0_1] : memref<1x10x10x128xbf16, #tpu.memory_space<vmem>>, vector<1x8x8x128xbf16>
    %4 = vector.shape_cast %3 : vector<1x8x8x128xbf16> to vector<8x8x128xbf16>
    %5 = vector.shape_cast %4 : vector<8x8x128xbf16> to vector<64x128xbf16>
    %c0_2 = arith.constant 0 : index
    %c0_3 = arith.constant 0 : index
    %c0_4 = arith.constant 0 : index
    %6 = vector.load %arg3[%c0_2, %c0_3, %c0_4] : memref<9x128x128xbf16, #tpu.memory_space<vmem>>, vector<1x128x128xbf16>
    %7 = vector.shape_cast %6 : vector<1x128x128xbf16> to vector<128x128xbf16>
    %cst = arith.constant dense<0.000000e+00> : vector<64x128xf32>
    %8 = tpu.matmul %5, %7, %cst {dimension_numbers = #tpu.dot_dimension_numbers<[1], [0], [0], [1], [0, 0, 1, 1], [], []>} : vector<64x128xbf16>, vector<128x128xbf16>, vector<64x128xf32> -> vector<64x128xf32>
    %c0_5 = arith.constant 0 : index
    %c0_6 = arith.constant 0 : index
    %9 = vector.load %arg9[%c0_5, %c0_6] : memref<64x128xf32, #tpu.memory_space<vmem>>, vector<64x128xf32>
    tpu.vector_store %arg9[%c0_5, %c0_6], %8 {strides = array<i32>} : memref<64x128xf32, #tpu.memory_space<vmem>>, vector<64x128xf32>,
    %c0_i32_7 = arith.constant 0 : i32
    %10 = arith.addi %0, %c0_i32_7 : i32
    %c0_8 = arith.constant 0 : index
    %11 = arith.index_cast %10 : i32 to index
    %c1 = arith.constant 1 : index
    %c0_9 = arith.constant 0 : index
    %12 = vector.load %arg2[%c0_8, %11, %c1, %c0_9] : memref<1x10x10x128xbf16, #tpu.memory_space<vmem>>, vector<1x8x8x128xbf16>
    %13 = vector.shape_cast %12 : vector<1x8x8x128xbf16> to vector<8x8x128xbf16>
    %14 = vector.shape_cast %13 : vector<8x8x128xbf16> to vector<64x128xbf16>
    %c1_10 = arith.constant 1 : index
    %c0_11 = arith.constant 0 : index
    %c0_12 = arith.constant 0 : index
    %15 = vector.load %arg3[%c1_10, %c0_11, %c0_12] : memref<9x128x128xbf16, #tpu.memory_space<vmem>>, vector<1x128x128xbf16>
    %16 = vector.shape_cast %15 : vector<1x128x128xbf16> to vector<128x128xbf16>
    %cst_13 = arith.constant dense<0.000000e+00> : vector<64x128xf32>
    %17 = tpu.matmul %14, %16, %cst_13 {dimension_numbers = #tpu.dot_dimension_numbers<[1], [0], [0], [1], [0, 0, 1, 1], [], []>} : vector<64x128xbf16>, vector<128x128xbf16>, vector<64x128xf32> -> vector<64x128xf32>
    %c0_14 = arith.constant 0 : index
    %c0_15 = arith.constant 0 : index
    %18 = vector.load %arg9[%c0_14, %c0_15] : memref<64x128xf32, #tpu.memory_space<vmem>>, vector<64x128xf32>
    %19 = arith.addf %18, %17 : vector<64x128xf32>
    %c0_16 = arith.constant 0 : index
    %c0_17 = arith.constant 0 : index
    %20 = vector.load %arg9[%c0_16, %c0_17] : memref<64x128xf32, #tpu.memory_space<vmem>>, vector<64x128xf32>
    tpu.vector_store %arg9[%c0_16, %c0_17], %19 {strides = array<i32>} : memref<64x128xf32, #tpu.memory_space<vmem>>, vector<64x128xf32>,
    %c0_i32_18 = arith.constant 0 : i32
    %21 = arith.addi %0, %c0_i32_18 : i32
    %c0_19 = arith.constant 0 : index
    %22 = arith.index_cast %21 : i32 to index
    %c2 = arith.constant 2 : index
    %c0_20 = arith.constant 0 : index
    %23 = vector.load %arg2[%c0_19, %22, %c2, %c0_20] : memref<1x10x10x128xbf16, #tpu.memory_space<vmem>>, vector<1x8x8x128xbf16>
    %24 = vector.shape_cast %23 : vector<1x8x8x128xbf16> to vector<8x8x128xbf16>
    %25 = vector.shape_cast %24 : vector<8x8x128xbf16> to vector<64x128xbf16>
    %c2_21 = arith.constant 2 : index
    %c0_22 = arith.constant 0 : index
    %c0_23 = arith.constant 0 : index
    %26 = vector.load %arg3[%c2_21, %c0_22, %c0_23] : memref<9x128x128xbf16, #tpu.memory_space<vmem>>, vector<1x128x128xbf16>
    %27 = vector.shape_cast %26 : vector<1x128x128xbf16> to vector<128x128xbf16>
    %cst_24 = arith.constant dense<0.000000e+00> : vector<64x128xf32>
    %28 = tpu.matmul %25, %27, %cst_24 {dimension_numbers = #tpu.dot_dimension_numbers<[1], [0], [0], [1], [0, 0, 1, 1], [], []>} : vector<64x128xbf16>, vector<128x128xbf16>, vector<64x128xf32> -> vector<64x128xf32>
    %c0_25 = arith.constant 0 : index
    %c0_26 = arith.constant 0 : index
    %29 = vector.load %arg9[%c0_25, %c0_26] : memref<64x128xf32, #tpu.memory_space<vmem>>, vector<64x128xf32>
    %30 = arith.addf %29, %28 : vector<64x128xf32>
    %c0_27 = arith.constant 0 : index
    %c0_28 = arith.constant 0 : index
    %31 = vector.load %arg9[%c0_27, %c0_28] : memref<64x128xf32, #tpu.memory_space<vmem>>, vector<64x128xf32>
    tpu.vector_store %arg9[%c0_27, %c0_28], %30 {strides = array<i32>} : memref<64x128xf32, #tpu.memory_space<vmem>>, vector<64x128xf32>,
    %c1_i32 = arith.constant 1 : i32
    %32 = arith.addi %0, %c1_i32 : i32
    %c0_29 = arith.constant 0 : index
    %33 = arith.index_cast %32 : i32 to index
    %c0_30 = arith.constant 0 : index
    %c0_31 = arith.constant 0 : index
    %34 = vector.load %arg2[%c0_29, %33, %c0_30, %c0_31] : memref<1x10x10x128xbf16, #tpu.memory_space<vmem>>, vector<1x8x8x128xbf16>
    %35 = vector.shape_cast %34 : vector<1x8x8x128xbf16> to vector<8x8x128xbf16>
    %36 = vector.shape_cast %35 : vector<8x8x128xbf16> to vector<64x128xbf16>
    %c3 = arith.constant 3 : index
    %c0_32 = arith.constant 0 : index
    %c0_33 = arith.constant 0 : index
    %37 = vector.load %arg3[%c3, %c0_32, %c0_33] : memref<9x128x128xbf16, #tpu.memory_space<vmem>>, vector<1x128x128xbf16>
    %38 = vector.shape_cast %37 : vector<1x128x128xbf16> to vector<128x128xbf16>
    %cst_34 = arith.constant dense<0.000000e+00> : vector<64x128xf32>
    %39 = tpu.matmul %36, %38, %cst_34 {dimension_numbers = #tpu.dot_dimension_numbers<[1], [0], [0], [1], [0, 0, 1, 1], [], []>} : vector<64x128xbf16>, vector<128x128xbf16>, vector<64x128xf32> -> vector<64x128xf32>
    %c0_35 = arith.constant 0 : index
    %c0_36 = arith.constant 0 : index
    %40 = vector.load %arg9[%c0_35, %c0_36] : memref<64x128xf32, #tpu.memory_space<vmem>>, vector<64x128xf32>
    %41 = arith.addf %40, %39 : vector<64x128xf32>
    %c0_37 = arith.constant 0 : index
    %c0_38 = arith.constant 0 : index
    %42 = vector.load %arg9[%c0_37, %c0_38] : memref<64x128xf32, #tpu.memory_space<vmem>>, vector<64x128xf32>
    tpu.vector_store %arg9[%c0_37, %c0_38], %41 {strides = array<i32>} : memref<64x128xf32, #tpu.memory_space<vmem>>, vector<64x128xf32>,
    %c1_i32_39 = arith.constant 1 : i32
    %43 = arith.addi %0, %c1_i32_39 : i32
    %c0_40 = arith.constant 0 : index
    %44 = arith.index_cast %43 : i32 to index
    %c1_41 = arith.constant 1 : index
    %c0_42 = arith.constant 0 : index
    %45 = vector.load %arg2[%c0_40, %44, %c1_41, %c0_42] : memref<1x10x10x128xbf16, #tpu.memory_space<vmem>>, vector<1x8x8x128xbf16>
    %46 = vector.shape_cast %45 : vector<1x8x8x128xbf16> to vector<8x8x128xbf16>
    %47 = vector.shape_cast %46 : vector<8x8x128xbf16> to vector<64x128xbf16>
    %c4 = arith.constant 4 : index
    %c0_43 = arith.constant 0 : index
    %c0_44 = arith.constant 0 : index
    %48 = vector.load %arg3[%c4, %c0_43, %c0_44] : memref<9x128x128xbf16, #tpu.memory_space<vmem>>, vector<1x128x128xbf16>
    %49 = vector.shape_cast %48 : vector<1x128x128xbf16> to vector<128x128xbf16>
    %cst_45 = arith.constant dense<0.000000e+00> : vector<64x128xf32>
    %50 = tpu.matmul %47, %49, %cst_45 {dimension_numbers = #tpu.dot_dimension_numbers<[1], [0], [0], [1], [0, 0, 1, 1], [], []>} : vector<64x128xbf16>, vector<128x128xbf16>, vector<64x128xf32> -> vector<64x128xf32>
    %c0_46 = arith.constant 0 : index
    %c0_47 = arith.constant 0 : index
    %51 = vector.load %arg9[%c0_46, %c0_47] : memref<64x128xf32, #tpu.memory_space<vmem>>, vector<64x128xf32>
    %52 = arith.addf %51, %50 : vector<64x128xf32>
    %c0_48 = arith.constant 0 : index
    %c0_49 = arith.constant 0 : index
    %53 = vector.load %arg9[%c0_48, %c0_49] : memref<64x128xf32, #tpu.memory_space<vmem>>, vector<64x128xf32>
    tpu.vector_store %arg9[%c0_48, %c0_49], %52 {strides = array<i32>} : memref<64x128xf32, #tpu.memory_space<vmem>>, vector<64x128xf32>,
    %c1_i32_50 = arith.constant 1 : i32
    %54 = arith.addi %0, %c1_i32_50 : i32
    %c0_51 = arith.constant 0 : index
    %55 = arith.index_cast %54 : i32 to index
    %c2_52 = arith.constant 2 : index
    %c0_53 = arith.constant 0 : index
    %56 = vector.load %arg2[%c0_51, %55, %c2_52, %c0_53] : memref<1x10x10x128xbf16, #tpu.memory_space<vmem>>, vector<1x8x8x128xbf16>
    %57 = vector.shape_cast %56 : vector<1x8x8x128xbf16> to vector<8x8x128xbf16>
    %58 = vector.shape_cast %57 : vector<8x8x128xbf16> to vector<64x128xbf16>
    %c5 = arith.constant 5 : index
    %c0_54 = arith.constant 0 : index
    %c0_55 = arith.constant 0 : index
    %59 = vector.load %arg3[%c5, %c0_54, %c0_55] : memref<9x128x128xbf16, #tpu.memory_space<vmem>>, vector<1x128x128xbf16>
    %60 = vector.shape_cast %59 : vector<1x128x128xbf16> to vector<128x128xbf16>
    %cst_56 = arith.constant dense<0.000000e+00> : vector<64x128xf32>
    %61 = tpu.matmul %58, %60, %cst_56 {dimension_numbers = #tpu.dot_dimension_numbers<[1], [0], [0], [1], [0, 0, 1, 1], [], []>} : vector<64x128xbf16>, vector<128x128xbf16>, vector<64x128xf32> -> vector<64x128xf32>
    %c0_57 = arith.constant 0 : index
    %c0_58 = arith.constant 0 : index
    %62 = vector.load %arg9[%c0_57, %c0_58] : memref<64x128xf32, #tpu.memory_space<vmem>>, vector<64x128xf32>
    %63 = arith.addf %62, %61 : vector<64x128xf32>
    %c0_59 = arith.constant 0 : index
    %c0_60 = arith.constant 0 : index
    %64 = vector.load %arg9[%c0_59, %c0_60] : memref<64x128xf32, #tpu.memory_space<vmem>>, vector<64x128xf32>
    tpu.vector_store %arg9[%c0_59, %c0_60], %63 {strides = array<i32>} : memref<64x128xf32, #tpu.memory_space<vmem>>, vector<64x128xf32>,
    %c2_i32 = arith.constant 2 : i32
    %65 = arith.addi %0, %c2_i32 : i32
    %c0_61 = arith.constant 0 : index
    %66 = arith.index_cast %65 : i32 to index
    %c0_62 = arith.constant 0 : index
    %c0_63 = arith.constant 0 : index
    %67 = vector.load %arg2[%c0_61, %66, %c0_62, %c0_63] : memref<1x10x10x128xbf16, #tpu.memory_space<vmem>>, vector<1x8x8x128xbf16>
    %68 = vector.shape_cast %67 : vector<1x8x8x128xbf16> to vector<8x8x128xbf16>
    %69 = vector.shape_cast %68 : vector<8x8x128xbf16> to vector<64x128xbf16>
    %c6 = arith.constant 6 : index
    %c0_64 = arith.constant 0 : index
    %c0_65 = arith.constant 0 : index
    %70 = vector.load %arg3[%c6, %c0_64, %c0_65] : memref<9x128x128xbf16, #tpu.memory_space<vmem>>, vector<1x128x128xbf16>
    %71 = vector.shape_cast %70 : vector<1x128x128xbf16> to vector<128x128xbf16>
    %cst_66 = arith.constant dense<0.000000e+00> : vector<64x128xf32>
    %72 = tpu.matmul %69, %71, %cst_66 {dimension_numbers = #tpu.dot_dimension_numbers<[1], [0], [0], [1], [0, 0, 1, 1], [], []>} : vector<64x128xbf16>, vector<128x128xbf16>, vector<64x128xf32> -> vector<64x128xf32>
    %c0_67 = arith.constant 0 : index
    %c0_68 = arith.constant 0 : index
    %73 = vector.load %arg9[%c0_67, %c0_68] : memref<64x128xf32, #tpu.memory_space<vmem>>, vector<64x128xf32>
    %74 = arith.addf %73, %72 : vector<64x128xf32>
    %c0_69 = arith.constant 0 : index
    %c0_70 = arith.constant 0 : index
    %75 = vector.load %arg9[%c0_69, %c0_70] : memref<64x128xf32, #tpu.memory_space<vmem>>, vector<64x128xf32>
    tpu.vector_store %arg9[%c0_69, %c0_70], %74 {strides = array<i32>} : memref<64x128xf32, #tpu.memory_space<vmem>>, vector<64x128xf32>,
    %c2_i32_71 = arith.constant 2 : i32
    %76 = arith.addi %0, %c2_i32_71 : i32
    %c0_72 = arith.constant 0 : index
    %77 = arith.index_cast %76 : i32 to index
    %c1_73 = arith.constant 1 : index
    %c0_74 = arith.constant 0 : index
    %78 = vector.load %arg2[%c0_72, %77, %c1_73, %c0_74] : memref<1x10x10x128xbf16, #tpu.memory_space<vmem>>, vector<1x8x8x128xbf16>
    %79 = vector.shape_cast %78 : vector<1x8x8x128xbf16> to vector<8x8x128xbf16>
    %80 = vector.shape_cast %79 : vector<8x8x128xbf16> to vector<64x128xbf16>
    %c7 = arith.constant 7 : index
    %c0_75 = arith.constant 0 : index
    %c0_76 = arith.constant 0 : index
    %81 = vector.load %arg3[%c7, %c0_75, %c0_76] : memref<9x128x128xbf16, #tpu.memory_space<vmem>>, vector<1x128x128xbf16>
    %82 = vector.shape_cast %81 : vector<1x128x128xbf16> to vector<128x128xbf16>
    %cst_77 = arith.constant dense<0.000000e+00> : vector<64x128xf32>
    %83 = tpu.matmul %80, %82, %cst_77 {dimension_numbers = #tpu.dot_dimension_numbers<[1], [0], [0], [1], [0, 0, 1, 1], [], []>} : vector<64x128xbf16>, vector<128x128xbf16>, vector<64x128xf32> -> vector<64x128xf32>
    %c0_78 = arith.constant 0 : index
    %c0_79 = arith.constant 0 : index
    %84 = vector.load %arg9[%c0_78, %c0_79] : memref<64x128xf32, #tpu.memory_space<vmem>>, vector<64x128xf32>
    %85 = arith.addf %84, %83 : vector<64x128xf32>
    %c0_80 = arith.constant 0 : index
    %c0_81 = arith.constant 0 : index
    %86 = vector.load %arg9[%c0_80, %c0_81] : memref<64x128xf32, #tpu.memory_space<vmem>>, vector<64x128xf32>
    tpu.vector_store %arg9[%c0_80, %c0_81], %85 {strides = array<i32>} : memref<64x128xf32, #tpu.memory_space<vmem>>, vector<64x128xf32>,
    %c2_i32_82 = arith.constant 2 : i32
    %87 = arith.addi %0, %c2_i32_82 : i32
    %c0_83 = arith.constant 0 : index
    %88 = arith.index_cast %87 : i32 to index
    %c2_84 = arith.constant 2 : index
    %c0_85 = arith.constant 0 : index
    %89 = vector.load %arg2[%c0_83, %88, %c2_84, %c0_85] : memref<1x10x10x128xbf16, #tpu.memory_space<vmem>>, vector<1x8x8x128xbf16>
    %90 = vector.shape_cast %89 : vector<1x8x8x128xbf16> to vector<8x8x128xbf16>
    %91 = vector.shape_cast %90 : vector<8x8x128xbf16> to vector<64x128xbf16>
    %c8 = arith.constant 8 : index
    %c0_86 = arith.constant 0 : index
    %c0_87 = arith.constant 0 : index
    %92 = vector.load %arg3[%c8, %c0_86, %c0_87] : memref<9x128x128xbf16, #tpu.memory_space<vmem>>, vector<1x128x128xbf16>
    %93 = vector.shape_cast %92 : vector<1x128x128xbf16> to vector<128x128xbf16>
    %cst_88 = arith.constant dense<0.000000e+00> : vector<64x128xf32>
    %94 = tpu.matmul %91, %93, %cst_88 {dimension_numbers = #tpu.dot_dimension_numbers<[1], [0], [0], [1], [0, 0, 1, 1], [], []>} : vector<64x128xbf16>, vector<128x128xbf16>, vector<64x128xf32> -> vector<64x128xf32>
    %c0_89 = arith.constant 0 : index
    %c0_90 = arith.constant 0 : index
    %95 = vector.load %arg9[%c0_89, %c0_90] : memref<64x128xf32, #tpu.memory_space<vmem>>, vector<64x128xf32>
    %96 = arith.addf %95, %94 : vector<64x128xf32>
    %c0_91 = arith.constant 0 : index
    %c0_92 = arith.constant 0 : index
    %97 = vector.load %arg9[%c0_91, %c0_92] : memref<64x128xf32, #tpu.memory_space<vmem>>, vector<64x128xf32>
    tpu.vector_store %arg9[%c0_91, %c0_92], %96 {strides = array<i32>} : memref<64x128xf32, #tpu.memory_space<vmem>>, vector<64x128xf32>,
    %c0_93 = arith.constant 0 : index
    %c0_94 = arith.constant 0 : index
    %98 = vector.load %arg9[%c0_93, %c0_94] : memref<64x128xf32, #tpu.memory_space<vmem>>, vector<64x128xf32>
    %c0_95 = arith.constant 0 : index
    %c0_96 = arith.constant 0 : index
    %99 = vector.load %arg4[%c0_95, %c0_96] : memref<1x128xf32, #tpu.memory_space<vmem>>, vector<1x128xf32>
    %100 = vector.broadcast %99 : vector<1x128xf32> to vector<64x128xf32>
    %101 = arith.addf %98, %100 : vector<64x128xf32>
    %c0_97 = arith.constant 0 : index
    %c0_98 = arith.constant 0 : index
    %c0_99 = arith.constant 0 : index
    %c0_100 = arith.constant 0 : index
    %102 = vector.load %arg5[%c0_97, %c0_98, %c0_99, %c0_100] : memref<1x8x8x128xbf16, #tpu.memory_space<vmem>>, vector<1x8x8x128xbf16>
    %103 = vector.shape_cast %102 : vector<1x8x8x128xbf16> to vector<8x8x128xbf16>
    %104 = vector.shape_cast %103 : vector<8x8x128xbf16> to vector<64x128xbf16>
    %c0_101 = arith.constant 0 : index
    %c0_102 = arith.constant 0 : index
    %105 = vector.load %arg6[%c0_101, %c0_102] : memref<128x128xbf16, #tpu.memory_space<vmem>>, vector<128x128xbf16>
    %cst_103 = arith.constant dense<0.000000e+00> : vector<64x128xf32>
    %106 = tpu.matmul %104, %105, %cst_103 {dimension_numbers = #tpu.dot_dimension_numbers<[1], [0], [0], [1], [0, 0, 1, 1], [], []>} : vector<64x128xbf16>, vector<128x128xbf16>, vector<64x128xf32> -> vector<64x128xf32>
    %c0_104 = arith.constant 0 : index
    %c0_105 = arith.constant 0 : index
    %107 = vector.load %arg7[%c0_104, %c0_105] : memref<1x128xf32, #tpu.memory_space<vmem>>, vector<1x128xf32>
    %108 = vector.broadcast %107 : vector<1x128xf32> to vector<64x128xf32>
    %109 = arith.addf %106, %108 : vector<64x128xf32>
    %110 = arith.addf %101, %109 : vector<64x128xf32>
    %cst_106 = arith.constant 0.000000e+00 : f32
    %111 = vector.broadcast %cst_106 : f32 to vector<64x128xf32>
    %112 = arith.maximumf %110, %111 : vector<64x128xf32>
    %113 = vector.shape_cast %112 : vector<64x128xf32> to vector<8x8x128xf32>
    %114 = arith.truncf %113 : vector<8x8x128xf32> to vector<8x8x128xbf16>
    %c0_107 = arith.constant 0 : index
    %c0_108 = arith.constant 0 : index
    %c0_109 = arith.constant 0 : index
    %c0_110 = arith.constant 0 : index
    %115 = vector.load %arg8[%c0_107, %c0_108, %c0_109, %c0_110] : memref<1x8x8x128xbf16, #tpu.memory_space<vmem>>, vector<1x8x8x128xbf16>
    %116 = vector.shape_cast %115 : vector<1x8x8x128xbf16> to vector<8x8x128xbf16>
    %117 = vector.shape_cast %114 : vector<8x8x128xbf16> to vector<1x8x8x128xbf16>
    tpu.vector_store %arg8[%c0_107, %c0_108, %c0_109, %c0_110], %117 {strides = array<i32>} : memref<1x8x8x128xbf16, #tpu.memory_space<vmem>>, vector<1x8x8x128xbf16>,
    return
  }
  func.func @transform_0(%arg0: i32, %arg1: i32) -> (i32, i32, i32, i32) {
    %c0_i32 = arith.constant 0 : i32
    %c0_i32_0 = arith.constant 0 : i32
    %c0_i32_1 = arith.constant 0 : i32
    %c0_i32_2 = arith.constant 0 : i32
    return %arg0, %c0_i32, %c0_i32_0, %c0_i32_1 : i32, i32, i32, i32
  }
  func.func @transform_1(%arg0: i32, %arg1: i32) -> (i32, i32, i32) {
    %c0_i32 = arith.constant 0 : i32
    %c0_i32_0 = arith.constant 0 : i32
    %c0_i32_1 = arith.constant 0 : i32
    %c0_i32_2 = arith.constant 0 : i32
    return %c0_i32, %c0_i32_0, %c0_i32_1 : i32, i32, i32
  }
  func.func @transform_2(%arg0: i32, %arg1: i32) -> (i32, i32) {
    %c0_i32 = arith.constant 0 : i32
    %c0_i32_0 = arith.constant 0 : i32
    %c0_i32_1 = arith.constant 0 : i32
    return %c0_i32, %c0_i32_0 : i32, i32
  }
  func.func @transform_3(%arg0: i32, %arg1: i32) -> (i32, i32, i32, i32) {
    %c0_i32 = arith.constant 0 : i32
    %c0_i32_0 = arith.constant 0 : i32
    %c0_i32_1 = arith.constant 0 : i32
    return %arg0, %arg1, %c0_i32, %c0_i32_0 : i32, i32, i32, i32
  }
  func.func @transform_4(%arg0: i32, %arg1: i32) -> (i32, i32) {
    %c0_i32 = arith.constant 0 : i32
    %c0_i32_0 = arith.constant 0 : i32
    %c0_i32_1 = arith.constant 0 : i32
    return %c0_i32, %c0_i32_0 : i32, i32
  }
  func.func @transform_5(%arg0: i32, %arg1: i32) -> (i32, i32) {
    %c0_i32 = arith.constant 0 : i32
    %c0_i32_0 = arith.constant 0 : i32
    %c0_i32_1 = arith.constant 0 : i32
    return %c0_i32, %c0_i32_0 : i32, i32
  }
  func.func @transform_6(%arg0: i32, %arg1: i32) -> (i32, i32, i32, i32) {
    %c0_i32 = arith.constant 0 : i32
    %c0_i32_0 = arith.constant 0 : i32
    %c0_i32_1 = arith.constant 0 : i32
    return %arg0, %arg1, %c0_i32, %c0_i32_0 : i32, i32, i32, i32
  }
}

module attributes {stable_mosaic.version = 11 : i64} {
  func.func @_conv_kernel(%arg0: i32, %arg1: i32, %arg2: memref<1x10x10x128xbf16, #tpu.memory_space<vmem>>, %arg3: memref<9x128x128xbf16, #tpu.memory_space<vmem>>, %arg4: memref<1x128xf32, #tpu.memory_space<vmem>>, %arg5: memref<1x8x8x128xbf16, #tpu.memory_space<vmem>>, %arg6: memref<64x128xf32, #tpu.memory_space<vmem>>) attributes {dimension_semantics = [#tpu.dimension_semantics<parallel>, #tpu.dimension_semantics<parallel>], iteration_bounds = array<i64: 2, 1>, scalar_prefetch = 0 : i64, scratch_operands = 1 : i64, tpu.core_type = #tpu.core_type<tc>, window_params = [{transform_indices = @transform_0, window_bounds = array<i64: 1, 10, 10, 128>}, {pipeline_mode = #tpu.pipeline_mode<synchronous>, transform_indices = @transform_1, window_bounds = array<i64: 9, 128, 128>}, {pipeline_mode = #tpu.pipeline_mode<synchronous>, transform_indices = @transform_2, window_bounds = array<i64: 1, 128>}, {transform_indices = @transform_3, window_bounds = array<i64: 1, 8, 8, 128>}]} {
    %c8_i32 = arith.constant 8 : i32
    %0 = arith.muli %arg1, %c8_i32 : i32
    %c0_i32 = arith.constant 0 : i32
    %1 = arith.addi %0, %c0_i32 : i32
    %c0 = arith.constant 0 : index
    %2 = arith.index_cast %1 : i32 to index
    %c0_0 = arith.constant 0 : index
    %c0_1 = arith.constant 0 : index
    %3 = vector.load %arg2[%c0, %2, %c0_0, %c0_1] : memref<1x10x10x128xbf16, #tpu.memory_space<vmem>>, vector<1x8x8x128xbf16>
    %4 = vector.shape_cast %3 : vector<1x8x8x128xbf16> to vector<8x8x128xbf16>
    %5 = vector.shape_cast %4 : vector<8x8x128xbf16> to vector<64x128xbf16>
    %c0_2 = arith.constant 0 : index
    %c0_3 = arith.constant 0 : index
    %c0_4 = arith.constant 0 : index
    %6 = vector.load %arg3[%c0_2, %c0_3, %c0_4] : memref<9x128x128xbf16, #tpu.memory_space<vmem>>, vector<1x128x128xbf16>
    %7 = vector.shape_cast %6 : vector<1x128x128xbf16> to vector<128x128xbf16>
    %cst = arith.constant dense<0.000000e+00> : vector<64x128xf32>
    %8 = tpu.matmul %5, %7, %cst {dimension_numbers = #tpu.dot_dimension_numbers<[1], [0], [0], [1], [0, 0, 1, 1], [], []>} : vector<64x128xbf16>, vector<128x128xbf16>, vector<64x128xf32> -> vector<64x128xf32>
    %c0_5 = arith.constant 0 : index
    %c0_6 = arith.constant 0 : index
    %9 = vector.load %arg6[%c0_5, %c0_6] : memref<64x128xf32, #tpu.memory_space<vmem>>, vector<64x128xf32>
    tpu.vector_store %arg6[%c0_5, %c0_6], %8 {strides = array<i32>} : memref<64x128xf32, #tpu.memory_space<vmem>>, vector<64x128xf32>,
    %c0_i32_7 = arith.constant 0 : i32
    %10 = arith.addi %0, %c0_i32_7 : i32
    %c0_8 = arith.constant 0 : index
    %11 = arith.index_cast %10 : i32 to index
    %c1 = arith.constant 1 : index
    %c0_9 = arith.constant 0 : index
    %12 = vector.load %arg2[%c0_8, %11, %c1, %c0_9] : memref<1x10x10x128xbf16, #tpu.memory_space<vmem>>, vector<1x8x8x128xbf16>
    %13 = vector.shape_cast %12 : vector<1x8x8x128xbf16> to vector<8x8x128xbf16>
    %14 = vector.shape_cast %13 : vector<8x8x128xbf16> to vector<64x128xbf16>
    %c1_10 = arith.constant 1 : index
    %c0_11 = arith.constant 0 : index
    %c0_12 = arith.constant 0 : index
    %15 = vector.load %arg3[%c1_10, %c0_11, %c0_12] : memref<9x128x128xbf16, #tpu.memory_space<vmem>>, vector<1x128x128xbf16>
    %16 = vector.shape_cast %15 : vector<1x128x128xbf16> to vector<128x128xbf16>
    %cst_13 = arith.constant dense<0.000000e+00> : vector<64x128xf32>
    %17 = tpu.matmul %14, %16, %cst_13 {dimension_numbers = #tpu.dot_dimension_numbers<[1], [0], [0], [1], [0, 0, 1, 1], [], []>} : vector<64x128xbf16>, vector<128x128xbf16>, vector<64x128xf32> -> vector<64x128xf32>
    %c0_14 = arith.constant 0 : index
    %c0_15 = arith.constant 0 : index
    %18 = vector.load %arg6[%c0_14, %c0_15] : memref<64x128xf32, #tpu.memory_space<vmem>>, vector<64x128xf32>
    %19 = arith.addf %18, %17 : vector<64x128xf32>
    %c0_16 = arith.constant 0 : index
    %c0_17 = arith.constant 0 : index
    %20 = vector.load %arg6[%c0_16, %c0_17] : memref<64x128xf32, #tpu.memory_space<vmem>>, vector<64x128xf32>
    tpu.vector_store %arg6[%c0_16, %c0_17], %19 {strides = array<i32>} : memref<64x128xf32, #tpu.memory_space<vmem>>, vector<64x128xf32>,
    %c0_i32_18 = arith.constant 0 : i32
    %21 = arith.addi %0, %c0_i32_18 : i32
    %c0_19 = arith.constant 0 : index
    %22 = arith.index_cast %21 : i32 to index
    %c2 = arith.constant 2 : index
    %c0_20 = arith.constant 0 : index
    %23 = vector.load %arg2[%c0_19, %22, %c2, %c0_20] : memref<1x10x10x128xbf16, #tpu.memory_space<vmem>>, vector<1x8x8x128xbf16>
    %24 = vector.shape_cast %23 : vector<1x8x8x128xbf16> to vector<8x8x128xbf16>
    %25 = vector.shape_cast %24 : vector<8x8x128xbf16> to vector<64x128xbf16>
    %c2_21 = arith.constant 2 : index
    %c0_22 = arith.constant 0 : index
    %c0_23 = arith.constant 0 : index
    %26 = vector.load %arg3[%c2_21, %c0_22, %c0_23] : memref<9x128x128xbf16, #tpu.memory_space<vmem>>, vector<1x128x128xbf16>
    %27 = vector.shape_cast %26 : vector<1x128x128xbf16> to vector<128x128xbf16>
    %cst_24 = arith.constant dense<0.000000e+00> : vector<64x128xf32>
    %28 = tpu.matmul %25, %27, %cst_24 {dimension_numbers = #tpu.dot_dimension_numbers<[1], [0], [0], [1], [0, 0, 1, 1], [], []>} : vector<64x128xbf16>, vector<128x128xbf16>, vector<64x128xf32> -> vector<64x128xf32>
    %c0_25 = arith.constant 0 : index
    %c0_26 = arith.constant 0 : index
    %29 = vector.load %arg6[%c0_25, %c0_26] : memref<64x128xf32, #tpu.memory_space<vmem>>, vector<64x128xf32>
    %30 = arith.addf %29, %28 : vector<64x128xf32>
    %c0_27 = arith.constant 0 : index
    %c0_28 = arith.constant 0 : index
    %31 = vector.load %arg6[%c0_27, %c0_28] : memref<64x128xf32, #tpu.memory_space<vmem>>, vector<64x128xf32>
    tpu.vector_store %arg6[%c0_27, %c0_28], %30 {strides = array<i32>} : memref<64x128xf32, #tpu.memory_space<vmem>>, vector<64x128xf32>,
    %c1_i32 = arith.constant 1 : i32
    %32 = arith.addi %0, %c1_i32 : i32
    %c0_29 = arith.constant 0 : index
    %33 = arith.index_cast %32 : i32 to index
    %c0_30 = arith.constant 0 : index
    %c0_31 = arith.constant 0 : index
    %34 = vector.load %arg2[%c0_29, %33, %c0_30, %c0_31] : memref<1x10x10x128xbf16, #tpu.memory_space<vmem>>, vector<1x8x8x128xbf16>
    %35 = vector.shape_cast %34 : vector<1x8x8x128xbf16> to vector<8x8x128xbf16>
    %36 = vector.shape_cast %35 : vector<8x8x128xbf16> to vector<64x128xbf16>
    %c3 = arith.constant 3 : index
    %c0_32 = arith.constant 0 : index
    %c0_33 = arith.constant 0 : index
    %37 = vector.load %arg3[%c3, %c0_32, %c0_33] : memref<9x128x128xbf16, #tpu.memory_space<vmem>>, vector<1x128x128xbf16>
    %38 = vector.shape_cast %37 : vector<1x128x128xbf16> to vector<128x128xbf16>
    %cst_34 = arith.constant dense<0.000000e+00> : vector<64x128xf32>
    %39 = tpu.matmul %36, %38, %cst_34 {dimension_numbers = #tpu.dot_dimension_numbers<[1], [0], [0], [1], [0, 0, 1, 1], [], []>} : vector<64x128xbf16>, vector<128x128xbf16>, vector<64x128xf32> -> vector<64x128xf32>
    %c0_35 = arith.constant 0 : index
    %c0_36 = arith.constant 0 : index
    %40 = vector.load %arg6[%c0_35, %c0_36] : memref<64x128xf32, #tpu.memory_space<vmem>>, vector<64x128xf32>
    %41 = arith.addf %40, %39 : vector<64x128xf32>
    %c0_37 = arith.constant 0 : index
    %c0_38 = arith.constant 0 : index
    %42 = vector.load %arg6[%c0_37, %c0_38] : memref<64x128xf32, #tpu.memory_space<vmem>>, vector<64x128xf32>
    tpu.vector_store %arg6[%c0_37, %c0_38], %41 {strides = array<i32>} : memref<64x128xf32, #tpu.memory_space<vmem>>, vector<64x128xf32>,
    %c1_i32_39 = arith.constant 1 : i32
    %43 = arith.addi %0, %c1_i32_39 : i32
    %c0_40 = arith.constant 0 : index
    %44 = arith.index_cast %43 : i32 to index
    %c1_41 = arith.constant 1 : index
    %c0_42 = arith.constant 0 : index
    %45 = vector.load %arg2[%c0_40, %44, %c1_41, %c0_42] : memref<1x10x10x128xbf16, #tpu.memory_space<vmem>>, vector<1x8x8x128xbf16>
    %46 = vector.shape_cast %45 : vector<1x8x8x128xbf16> to vector<8x8x128xbf16>
    %47 = vector.shape_cast %46 : vector<8x8x128xbf16> to vector<64x128xbf16>
    %c4 = arith.constant 4 : index
    %c0_43 = arith.constant 0 : index
    %c0_44 = arith.constant 0 : index
    %48 = vector.load %arg3[%c4, %c0_43, %c0_44] : memref<9x128x128xbf16, #tpu.memory_space<vmem>>, vector<1x128x128xbf16>
    %49 = vector.shape_cast %48 : vector<1x128x128xbf16> to vector<128x128xbf16>
    %cst_45 = arith.constant dense<0.000000e+00> : vector<64x128xf32>
    %50 = tpu.matmul %47, %49, %cst_45 {dimension_numbers = #tpu.dot_dimension_numbers<[1], [0], [0], [1], [0, 0, 1, 1], [], []>} : vector<64x128xbf16>, vector<128x128xbf16>, vector<64x128xf32> -> vector<64x128xf32>
    %c0_46 = arith.constant 0 : index
    %c0_47 = arith.constant 0 : index
    %51 = vector.load %arg6[%c0_46, %c0_47] : memref<64x128xf32, #tpu.memory_space<vmem>>, vector<64x128xf32>
    %52 = arith.addf %51, %50 : vector<64x128xf32>
    %c0_48 = arith.constant 0 : index
    %c0_49 = arith.constant 0 : index
    %53 = vector.load %arg6[%c0_48, %c0_49] : memref<64x128xf32, #tpu.memory_space<vmem>>, vector<64x128xf32>
    tpu.vector_store %arg6[%c0_48, %c0_49], %52 {strides = array<i32>} : memref<64x128xf32, #tpu.memory_space<vmem>>, vector<64x128xf32>,
    %c1_i32_50 = arith.constant 1 : i32
    %54 = arith.addi %0, %c1_i32_50 : i32
    %c0_51 = arith.constant 0 : index
    %55 = arith.index_cast %54 : i32 to index
    %c2_52 = arith.constant 2 : index
    %c0_53 = arith.constant 0 : index
    %56 = vector.load %arg2[%c0_51, %55, %c2_52, %c0_53] : memref<1x10x10x128xbf16, #tpu.memory_space<vmem>>, vector<1x8x8x128xbf16>
    %57 = vector.shape_cast %56 : vector<1x8x8x128xbf16> to vector<8x8x128xbf16>
    %58 = vector.shape_cast %57 : vector<8x8x128xbf16> to vector<64x128xbf16>
    %c5 = arith.constant 5 : index
    %c0_54 = arith.constant 0 : index
    %c0_55 = arith.constant 0 : index
    %59 = vector.load %arg3[%c5, %c0_54, %c0_55] : memref<9x128x128xbf16, #tpu.memory_space<vmem>>, vector<1x128x128xbf16>
    %60 = vector.shape_cast %59 : vector<1x128x128xbf16> to vector<128x128xbf16>
    %cst_56 = arith.constant dense<0.000000e+00> : vector<64x128xf32>
    %61 = tpu.matmul %58, %60, %cst_56 {dimension_numbers = #tpu.dot_dimension_numbers<[1], [0], [0], [1], [0, 0, 1, 1], [], []>} : vector<64x128xbf16>, vector<128x128xbf16>, vector<64x128xf32> -> vector<64x128xf32>
    %c0_57 = arith.constant 0 : index
    %c0_58 = arith.constant 0 : index
    %62 = vector.load %arg6[%c0_57, %c0_58] : memref<64x128xf32, #tpu.memory_space<vmem>>, vector<64x128xf32>
    %63 = arith.addf %62, %61 : vector<64x128xf32>
    %c0_59 = arith.constant 0 : index
    %c0_60 = arith.constant 0 : index
    %64 = vector.load %arg6[%c0_59, %c0_60] : memref<64x128xf32, #tpu.memory_space<vmem>>, vector<64x128xf32>
    tpu.vector_store %arg6[%c0_59, %c0_60], %63 {strides = array<i32>} : memref<64x128xf32, #tpu.memory_space<vmem>>, vector<64x128xf32>,
    %c2_i32 = arith.constant 2 : i32
    %65 = arith.addi %0, %c2_i32 : i32
    %c0_61 = arith.constant 0 : index
    %66 = arith.index_cast %65 : i32 to index
    %c0_62 = arith.constant 0 : index
    %c0_63 = arith.constant 0 : index
    %67 = vector.load %arg2[%c0_61, %66, %c0_62, %c0_63] : memref<1x10x10x128xbf16, #tpu.memory_space<vmem>>, vector<1x8x8x128xbf16>
    %68 = vector.shape_cast %67 : vector<1x8x8x128xbf16> to vector<8x8x128xbf16>
    %69 = vector.shape_cast %68 : vector<8x8x128xbf16> to vector<64x128xbf16>
    %c6 = arith.constant 6 : index
    %c0_64 = arith.constant 0 : index
    %c0_65 = arith.constant 0 : index
    %70 = vector.load %arg3[%c6, %c0_64, %c0_65] : memref<9x128x128xbf16, #tpu.memory_space<vmem>>, vector<1x128x128xbf16>
    %71 = vector.shape_cast %70 : vector<1x128x128xbf16> to vector<128x128xbf16>
    %cst_66 = arith.constant dense<0.000000e+00> : vector<64x128xf32>
    %72 = tpu.matmul %69, %71, %cst_66 {dimension_numbers = #tpu.dot_dimension_numbers<[1], [0], [0], [1], [0, 0, 1, 1], [], []>} : vector<64x128xbf16>, vector<128x128xbf16>, vector<64x128xf32> -> vector<64x128xf32>
    %c0_67 = arith.constant 0 : index
    %c0_68 = arith.constant 0 : index
    %73 = vector.load %arg6[%c0_67, %c0_68] : memref<64x128xf32, #tpu.memory_space<vmem>>, vector<64x128xf32>
    %74 = arith.addf %73, %72 : vector<64x128xf32>
    %c0_69 = arith.constant 0 : index
    %c0_70 = arith.constant 0 : index
    %75 = vector.load %arg6[%c0_69, %c0_70] : memref<64x128xf32, #tpu.memory_space<vmem>>, vector<64x128xf32>
    tpu.vector_store %arg6[%c0_69, %c0_70], %74 {strides = array<i32>} : memref<64x128xf32, #tpu.memory_space<vmem>>, vector<64x128xf32>,
    %c2_i32_71 = arith.constant 2 : i32
    %76 = arith.addi %0, %c2_i32_71 : i32
    %c0_72 = arith.constant 0 : index
    %77 = arith.index_cast %76 : i32 to index
    %c1_73 = arith.constant 1 : index
    %c0_74 = arith.constant 0 : index
    %78 = vector.load %arg2[%c0_72, %77, %c1_73, %c0_74] : memref<1x10x10x128xbf16, #tpu.memory_space<vmem>>, vector<1x8x8x128xbf16>
    %79 = vector.shape_cast %78 : vector<1x8x8x128xbf16> to vector<8x8x128xbf16>
    %80 = vector.shape_cast %79 : vector<8x8x128xbf16> to vector<64x128xbf16>
    %c7 = arith.constant 7 : index
    %c0_75 = arith.constant 0 : index
    %c0_76 = arith.constant 0 : index
    %81 = vector.load %arg3[%c7, %c0_75, %c0_76] : memref<9x128x128xbf16, #tpu.memory_space<vmem>>, vector<1x128x128xbf16>
    %82 = vector.shape_cast %81 : vector<1x128x128xbf16> to vector<128x128xbf16>
    %cst_77 = arith.constant dense<0.000000e+00> : vector<64x128xf32>
    %83 = tpu.matmul %80, %82, %cst_77 {dimension_numbers = #tpu.dot_dimension_numbers<[1], [0], [0], [1], [0, 0, 1, 1], [], []>} : vector<64x128xbf16>, vector<128x128xbf16>, vector<64x128xf32> -> vector<64x128xf32>
    %c0_78 = arith.constant 0 : index
    %c0_79 = arith.constant 0 : index
    %84 = vector.load %arg6[%c0_78, %c0_79] : memref<64x128xf32, #tpu.memory_space<vmem>>, vector<64x128xf32>
    %85 = arith.addf %84, %83 : vector<64x128xf32>
    %c0_80 = arith.constant 0 : index
    %c0_81 = arith.constant 0 : index
    %86 = vector.load %arg6[%c0_80, %c0_81] : memref<64x128xf32, #tpu.memory_space<vmem>>, vector<64x128xf32>
    tpu.vector_store %arg6[%c0_80, %c0_81], %85 {strides = array<i32>} : memref<64x128xf32, #tpu.memory_space<vmem>>, vector<64x128xf32>,
    %c2_i32_82 = arith.constant 2 : i32
    %87 = arith.addi %0, %c2_i32_82 : i32
    %c0_83 = arith.constant 0 : index
    %88 = arith.index_cast %87 : i32 to index
    %c2_84 = arith.constant 2 : index
    %c0_85 = arith.constant 0 : index
    %89 = vector.load %arg2[%c0_83, %88, %c2_84, %c0_85] : memref<1x10x10x128xbf16, #tpu.memory_space<vmem>>, vector<1x8x8x128xbf16>
    %90 = vector.shape_cast %89 : vector<1x8x8x128xbf16> to vector<8x8x128xbf16>
    %91 = vector.shape_cast %90 : vector<8x8x128xbf16> to vector<64x128xbf16>
    %c8 = arith.constant 8 : index
    %c0_86 = arith.constant 0 : index
    %c0_87 = arith.constant 0 : index
    %92 = vector.load %arg3[%c8, %c0_86, %c0_87] : memref<9x128x128xbf16, #tpu.memory_space<vmem>>, vector<1x128x128xbf16>
    %93 = vector.shape_cast %92 : vector<1x128x128xbf16> to vector<128x128xbf16>
    %cst_88 = arith.constant dense<0.000000e+00> : vector<64x128xf32>
    %94 = tpu.matmul %91, %93, %cst_88 {dimension_numbers = #tpu.dot_dimension_numbers<[1], [0], [0], [1], [0, 0, 1, 1], [], []>} : vector<64x128xbf16>, vector<128x128xbf16>, vector<64x128xf32> -> vector<64x128xf32>
    %c0_89 = arith.constant 0 : index
    %c0_90 = arith.constant 0 : index
    %95 = vector.load %arg6[%c0_89, %c0_90] : memref<64x128xf32, #tpu.memory_space<vmem>>, vector<64x128xf32>
    %96 = arith.addf %95, %94 : vector<64x128xf32>
    %c0_91 = arith.constant 0 : index
    %c0_92 = arith.constant 0 : index
    %97 = vector.load %arg6[%c0_91, %c0_92] : memref<64x128xf32, #tpu.memory_space<vmem>>, vector<64x128xf32>
    tpu.vector_store %arg6[%c0_91, %c0_92], %96 {strides = array<i32>} : memref<64x128xf32, #tpu.memory_space<vmem>>, vector<64x128xf32>,
    %c0_93 = arith.constant 0 : index
    %c0_94 = arith.constant 0 : index
    %98 = vector.load %arg6[%c0_93, %c0_94] : memref<64x128xf32, #tpu.memory_space<vmem>>, vector<64x128xf32>
    %c0_95 = arith.constant 0 : index
    %c0_96 = arith.constant 0 : index
    %99 = vector.load %arg4[%c0_95, %c0_96] : memref<1x128xf32, #tpu.memory_space<vmem>>, vector<1x128xf32>
    %100 = vector.broadcast %99 : vector<1x128xf32> to vector<64x128xf32>
    %101 = arith.addf %98, %100 : vector<64x128xf32>
    %cst_97 = arith.constant 0.000000e+00 : f32
    %102 = vector.broadcast %cst_97 : f32 to vector<64x128xf32>
    %103 = arith.maximumf %101, %102 : vector<64x128xf32>
    %104 = vector.shape_cast %103 : vector<64x128xf32> to vector<8x8x128xf32>
    %105 = arith.truncf %104 : vector<8x8x128xf32> to vector<8x8x128xbf16>
    %c0_98 = arith.constant 0 : index
    %c0_99 = arith.constant 0 : index
    %c0_100 = arith.constant 0 : index
    %c0_101 = arith.constant 0 : index
    %106 = vector.load %arg5[%c0_98, %c0_99, %c0_100, %c0_101] : memref<1x8x8x128xbf16, #tpu.memory_space<vmem>>, vector<1x8x8x128xbf16>
    %107 = vector.shape_cast %106 : vector<1x8x8x128xbf16> to vector<8x8x128xbf16>
    %108 = vector.shape_cast %105 : vector<8x8x128xbf16> to vector<1x8x8x128xbf16>
    tpu.vector_store %arg5[%c0_98, %c0_99, %c0_100, %c0_101], %108 {strides = array<i32>} : memref<1x8x8x128xbf16, #tpu.memory_space<vmem>>, vector<1x8x8x128xbf16>,
    return
  }
  func.func @transform_0(%arg0: i32, %arg1: i32) -> (i32, i32, i32, i32) {
    %c0_i32 = arith.constant 0 : i32
    %c0_i32_0 = arith.constant 0 : i32
    %c0_i32_1 = arith.constant 0 : i32
    %c0_i32_2 = arith.constant 0 : i32
    return %arg0, %c0_i32, %c0_i32_0, %c0_i32_1 : i32, i32, i32, i32
  }
  func.func @transform_1(%arg0: i32, %arg1: i32) -> (i32, i32, i32) {
    %c0_i32 = arith.constant 0 : i32
    %c0_i32_0 = arith.constant 0 : i32
    %c0_i32_1 = arith.constant 0 : i32
    %c0_i32_2 = arith.constant 0 : i32
    return %c0_i32, %c0_i32_0, %c0_i32_1 : i32, i32, i32
  }
  func.func @transform_2(%arg0: i32, %arg1: i32) -> (i32, i32) {
    %c0_i32 = arith.constant 0 : i32
    %c0_i32_0 = arith.constant 0 : i32
    %c0_i32_1 = arith.constant 0 : i32
    return %c0_i32, %c0_i32_0 : i32, i32
  }
  func.func @transform_3(%arg0: i32, %arg1: i32) -> (i32, i32, i32, i32) {
    %c0_i32 = arith.constant 0 : i32
    %c0_i32_0 = arith.constant 0 : i32
    %c0_i32_1 = arith.constant 0 : i32
    return %arg0, %arg1, %c0_i32, %c0_i32_0 : i32, i32, i32, i32
  }
}

module attributes {stable_mosaic.version = 11 : i64} {
  func.func @_conv_kernel(%arg0: i32, %arg1: i32, %arg2: memref<1x10x10x128xbf16, #tpu.memory_space<vmem>>, %arg3: memref<9x128x128xbf16, #tpu.memory_space<vmem>>, %arg4: memref<1x128xf32, #tpu.memory_space<vmem>>, %arg5: memref<1x8x8x128xbf16, #tpu.memory_space<vmem>>, %arg6: memref<1x8x8x128xbf16, #tpu.memory_space<vmem>>, %arg7: memref<64x128xf32, #tpu.memory_space<vmem>>) attributes {dimension_semantics = [#tpu.dimension_semantics<parallel>, #tpu.dimension_semantics<parallel>], iteration_bounds = array<i64: 2, 1>, scalar_prefetch = 0 : i64, scratch_operands = 1 : i64, tpu.core_type = #tpu.core_type<tc>, window_params = [{transform_indices = @transform_0, window_bounds = array<i64: 1, 10, 10, 128>}, {pipeline_mode = #tpu.pipeline_mode<synchronous>, transform_indices = @transform_1, window_bounds = array<i64: 9, 128, 128>}, {pipeline_mode = #tpu.pipeline_mode<synchronous>, transform_indices = @transform_2, window_bounds = array<i64: 1, 128>}, {transform_indices = @transform_3, window_bounds = array<i64: 1, 8, 8, 128>}, {transform_indices = @transform_4, window_bounds = array<i64: 1, 8, 8, 128>}]} {
    %c8_i32 = arith.constant 8 : i32
    %0 = arith.muli %arg1, %c8_i32 : i32
    %c0_i32 = arith.constant 0 : i32
    %1 = arith.addi %0, %c0_i32 : i32
    %c0 = arith.constant 0 : index
    %2 = arith.index_cast %1 : i32 to index
    %c0_0 = arith.constant 0 : index
    %c0_1 = arith.constant 0 : index
    %3 = vector.load %arg2[%c0, %2, %c0_0, %c0_1] : memref<1x10x10x128xbf16, #tpu.memory_space<vmem>>, vector<1x8x8x128xbf16>
    %4 = vector.shape_cast %3 : vector<1x8x8x128xbf16> to vector<8x8x128xbf16>
    %5 = vector.shape_cast %4 : vector<8x8x128xbf16> to vector<64x128xbf16>
    %c0_2 = arith.constant 0 : index
    %c0_3 = arith.constant 0 : index
    %c0_4 = arith.constant 0 : index
    %6 = vector.load %arg3[%c0_2, %c0_3, %c0_4] : memref<9x128x128xbf16, #tpu.memory_space<vmem>>, vector<1x128x128xbf16>
    %7 = vector.shape_cast %6 : vector<1x128x128xbf16> to vector<128x128xbf16>
    %cst = arith.constant dense<0.000000e+00> : vector<64x128xf32>
    %8 = tpu.matmul %5, %7, %cst {dimension_numbers = #tpu.dot_dimension_numbers<[1], [0], [0], [1], [0, 0, 1, 1], [], []>} : vector<64x128xbf16>, vector<128x128xbf16>, vector<64x128xf32> -> vector<64x128xf32>
    %c0_5 = arith.constant 0 : index
    %c0_6 = arith.constant 0 : index
    %9 = vector.load %arg7[%c0_5, %c0_6] : memref<64x128xf32, #tpu.memory_space<vmem>>, vector<64x128xf32>
    tpu.vector_store %arg7[%c0_5, %c0_6], %8 {strides = array<i32>} : memref<64x128xf32, #tpu.memory_space<vmem>>, vector<64x128xf32>,
    %c0_i32_7 = arith.constant 0 : i32
    %10 = arith.addi %0, %c0_i32_7 : i32
    %c0_8 = arith.constant 0 : index
    %11 = arith.index_cast %10 : i32 to index
    %c1 = arith.constant 1 : index
    %c0_9 = arith.constant 0 : index
    %12 = vector.load %arg2[%c0_8, %11, %c1, %c0_9] : memref<1x10x10x128xbf16, #tpu.memory_space<vmem>>, vector<1x8x8x128xbf16>
    %13 = vector.shape_cast %12 : vector<1x8x8x128xbf16> to vector<8x8x128xbf16>
    %14 = vector.shape_cast %13 : vector<8x8x128xbf16> to vector<64x128xbf16>
    %c1_10 = arith.constant 1 : index
    %c0_11 = arith.constant 0 : index
    %c0_12 = arith.constant 0 : index
    %15 = vector.load %arg3[%c1_10, %c0_11, %c0_12] : memref<9x128x128xbf16, #tpu.memory_space<vmem>>, vector<1x128x128xbf16>
    %16 = vector.shape_cast %15 : vector<1x128x128xbf16> to vector<128x128xbf16>
    %cst_13 = arith.constant dense<0.000000e+00> : vector<64x128xf32>
    %17 = tpu.matmul %14, %16, %cst_13 {dimension_numbers = #tpu.dot_dimension_numbers<[1], [0], [0], [1], [0, 0, 1, 1], [], []>} : vector<64x128xbf16>, vector<128x128xbf16>, vector<64x128xf32> -> vector<64x128xf32>
    %c0_14 = arith.constant 0 : index
    %c0_15 = arith.constant 0 : index
    %18 = vector.load %arg7[%c0_14, %c0_15] : memref<64x128xf32, #tpu.memory_space<vmem>>, vector<64x128xf32>
    %19 = arith.addf %18, %17 : vector<64x128xf32>
    %c0_16 = arith.constant 0 : index
    %c0_17 = arith.constant 0 : index
    %20 = vector.load %arg7[%c0_16, %c0_17] : memref<64x128xf32, #tpu.memory_space<vmem>>, vector<64x128xf32>
    tpu.vector_store %arg7[%c0_16, %c0_17], %19 {strides = array<i32>} : memref<64x128xf32, #tpu.memory_space<vmem>>, vector<64x128xf32>,
    %c0_i32_18 = arith.constant 0 : i32
    %21 = arith.addi %0, %c0_i32_18 : i32
    %c0_19 = arith.constant 0 : index
    %22 = arith.index_cast %21 : i32 to index
    %c2 = arith.constant 2 : index
    %c0_20 = arith.constant 0 : index
    %23 = vector.load %arg2[%c0_19, %22, %c2, %c0_20] : memref<1x10x10x128xbf16, #tpu.memory_space<vmem>>, vector<1x8x8x128xbf16>
    %24 = vector.shape_cast %23 : vector<1x8x8x128xbf16> to vector<8x8x128xbf16>
    %25 = vector.shape_cast %24 : vector<8x8x128xbf16> to vector<64x128xbf16>
    %c2_21 = arith.constant 2 : index
    %c0_22 = arith.constant 0 : index
    %c0_23 = arith.constant 0 : index
    %26 = vector.load %arg3[%c2_21, %c0_22, %c0_23] : memref<9x128x128xbf16, #tpu.memory_space<vmem>>, vector<1x128x128xbf16>
    %27 = vector.shape_cast %26 : vector<1x128x128xbf16> to vector<128x128xbf16>
    %cst_24 = arith.constant dense<0.000000e+00> : vector<64x128xf32>
    %28 = tpu.matmul %25, %27, %cst_24 {dimension_numbers = #tpu.dot_dimension_numbers<[1], [0], [0], [1], [0, 0, 1, 1], [], []>} : vector<64x128xbf16>, vector<128x128xbf16>, vector<64x128xf32> -> vector<64x128xf32>
    %c0_25 = arith.constant 0 : index
    %c0_26 = arith.constant 0 : index
    %29 = vector.load %arg7[%c0_25, %c0_26] : memref<64x128xf32, #tpu.memory_space<vmem>>, vector<64x128xf32>
    %30 = arith.addf %29, %28 : vector<64x128xf32>
    %c0_27 = arith.constant 0 : index
    %c0_28 = arith.constant 0 : index
    %31 = vector.load %arg7[%c0_27, %c0_28] : memref<64x128xf32, #tpu.memory_space<vmem>>, vector<64x128xf32>
    tpu.vector_store %arg7[%c0_27, %c0_28], %30 {strides = array<i32>} : memref<64x128xf32, #tpu.memory_space<vmem>>, vector<64x128xf32>,
    %c1_i32 = arith.constant 1 : i32
    %32 = arith.addi %0, %c1_i32 : i32
    %c0_29 = arith.constant 0 : index
    %33 = arith.index_cast %32 : i32 to index
    %c0_30 = arith.constant 0 : index
    %c0_31 = arith.constant 0 : index
    %34 = vector.load %arg2[%c0_29, %33, %c0_30, %c0_31] : memref<1x10x10x128xbf16, #tpu.memory_space<vmem>>, vector<1x8x8x128xbf16>
    %35 = vector.shape_cast %34 : vector<1x8x8x128xbf16> to vector<8x8x128xbf16>
    %36 = vector.shape_cast %35 : vector<8x8x128xbf16> to vector<64x128xbf16>
    %c3 = arith.constant 3 : index
    %c0_32 = arith.constant 0 : index
    %c0_33 = arith.constant 0 : index
    %37 = vector.load %arg3[%c3, %c0_32, %c0_33] : memref<9x128x128xbf16, #tpu.memory_space<vmem>>, vector<1x128x128xbf16>
    %38 = vector.shape_cast %37 : vector<1x128x128xbf16> to vector<128x128xbf16>
    %cst_34 = arith.constant dense<0.000000e+00> : vector<64x128xf32>
    %39 = tpu.matmul %36, %38, %cst_34 {dimension_numbers = #tpu.dot_dimension_numbers<[1], [0], [0], [1], [0, 0, 1, 1], [], []>} : vector<64x128xbf16>, vector<128x128xbf16>, vector<64x128xf32> -> vector<64x128xf32>
    %c0_35 = arith.constant 0 : index
    %c0_36 = arith.constant 0 : index
    %40 = vector.load %arg7[%c0_35, %c0_36] : memref<64x128xf32, #tpu.memory_space<vmem>>, vector<64x128xf32>
    %41 = arith.addf %40, %39 : vector<64x128xf32>
    %c0_37 = arith.constant 0 : index
    %c0_38 = arith.constant 0 : index
    %42 = vector.load %arg7[%c0_37, %c0_38] : memref<64x128xf32, #tpu.memory_space<vmem>>, vector<64x128xf32>
    tpu.vector_store %arg7[%c0_37, %c0_38], %41 {strides = array<i32>} : memref<64x128xf32, #tpu.memory_space<vmem>>, vector<64x128xf32>,
    %c1_i32_39 = arith.constant 1 : i32
    %43 = arith.addi %0, %c1_i32_39 : i32
    %c0_40 = arith.constant 0 : index
    %44 = arith.index_cast %43 : i32 to index
    %c1_41 = arith.constant 1 : index
    %c0_42 = arith.constant 0 : index
    %45 = vector.load %arg2[%c0_40, %44, %c1_41, %c0_42] : memref<1x10x10x128xbf16, #tpu.memory_space<vmem>>, vector<1x8x8x128xbf16>
    %46 = vector.shape_cast %45 : vector<1x8x8x128xbf16> to vector<8x8x128xbf16>
    %47 = vector.shape_cast %46 : vector<8x8x128xbf16> to vector<64x128xbf16>
    %c4 = arith.constant 4 : index
    %c0_43 = arith.constant 0 : index
    %c0_44 = arith.constant 0 : index
    %48 = vector.load %arg3[%c4, %c0_43, %c0_44] : memref<9x128x128xbf16, #tpu.memory_space<vmem>>, vector<1x128x128xbf16>
    %49 = vector.shape_cast %48 : vector<1x128x128xbf16> to vector<128x128xbf16>
    %cst_45 = arith.constant dense<0.000000e+00> : vector<64x128xf32>
    %50 = tpu.matmul %47, %49, %cst_45 {dimension_numbers = #tpu.dot_dimension_numbers<[1], [0], [0], [1], [0, 0, 1, 1], [], []>} : vector<64x128xbf16>, vector<128x128xbf16>, vector<64x128xf32> -> vector<64x128xf32>
    %c0_46 = arith.constant 0 : index
    %c0_47 = arith.constant 0 : index
    %51 = vector.load %arg7[%c0_46, %c0_47] : memref<64x128xf32, #tpu.memory_space<vmem>>, vector<64x128xf32>
    %52 = arith.addf %51, %50 : vector<64x128xf32>
    %c0_48 = arith.constant 0 : index
    %c0_49 = arith.constant 0 : index
    %53 = vector.load %arg7[%c0_48, %c0_49] : memref<64x128xf32, #tpu.memory_space<vmem>>, vector<64x128xf32>
    tpu.vector_store %arg7[%c0_48, %c0_49], %52 {strides = array<i32>} : memref<64x128xf32, #tpu.memory_space<vmem>>, vector<64x128xf32>,
    %c1_i32_50 = arith.constant 1 : i32
    %54 = arith.addi %0, %c1_i32_50 : i32
    %c0_51 = arith.constant 0 : index
    %55 = arith.index_cast %54 : i32 to index
    %c2_52 = arith.constant 2 : index
    %c0_53 = arith.constant 0 : index
    %56 = vector.load %arg2[%c0_51, %55, %c2_52, %c0_53] : memref<1x10x10x128xbf16, #tpu.memory_space<vmem>>, vector<1x8x8x128xbf16>
    %57 = vector.shape_cast %56 : vector<1x8x8x128xbf16> to vector<8x8x128xbf16>
    %58 = vector.shape_cast %57 : vector<8x8x128xbf16> to vector<64x128xbf16>
    %c5 = arith.constant 5 : index
    %c0_54 = arith.constant 0 : index
    %c0_55 = arith.constant 0 : index
    %59 = vector.load %arg3[%c5, %c0_54, %c0_55] : memref<9x128x128xbf16, #tpu.memory_space<vmem>>, vector<1x128x128xbf16>
    %60 = vector.shape_cast %59 : vector<1x128x128xbf16> to vector<128x128xbf16>
    %cst_56 = arith.constant dense<0.000000e+00> : vector<64x128xf32>
    %61 = tpu.matmul %58, %60, %cst_56 {dimension_numbers = #tpu.dot_dimension_numbers<[1], [0], [0], [1], [0, 0, 1, 1], [], []>} : vector<64x128xbf16>, vector<128x128xbf16>, vector<64x128xf32> -> vector<64x128xf32>
    %c0_57 = arith.constant 0 : index
    %c0_58 = arith.constant 0 : index
    %62 = vector.load %arg7[%c0_57, %c0_58] : memref<64x128xf32, #tpu.memory_space<vmem>>, vector<64x128xf32>
    %63 = arith.addf %62, %61 : vector<64x128xf32>
    %c0_59 = arith.constant 0 : index
    %c0_60 = arith.constant 0 : index
    %64 = vector.load %arg7[%c0_59, %c0_60] : memref<64x128xf32, #tpu.memory_space<vmem>>, vector<64x128xf32>
    tpu.vector_store %arg7[%c0_59, %c0_60], %63 {strides = array<i32>} : memref<64x128xf32, #tpu.memory_space<vmem>>, vector<64x128xf32>,
    %c2_i32 = arith.constant 2 : i32
    %65 = arith.addi %0, %c2_i32 : i32
    %c0_61 = arith.constant 0 : index
    %66 = arith.index_cast %65 : i32 to index
    %c0_62 = arith.constant 0 : index
    %c0_63 = arith.constant 0 : index
    %67 = vector.load %arg2[%c0_61, %66, %c0_62, %c0_63] : memref<1x10x10x128xbf16, #tpu.memory_space<vmem>>, vector<1x8x8x128xbf16>
    %68 = vector.shape_cast %67 : vector<1x8x8x128xbf16> to vector<8x8x128xbf16>
    %69 = vector.shape_cast %68 : vector<8x8x128xbf16> to vector<64x128xbf16>
    %c6 = arith.constant 6 : index
    %c0_64 = arith.constant 0 : index
    %c0_65 = arith.constant 0 : index
    %70 = vector.load %arg3[%c6, %c0_64, %c0_65] : memref<9x128x128xbf16, #tpu.memory_space<vmem>>, vector<1x128x128xbf16>
    %71 = vector.shape_cast %70 : vector<1x128x128xbf16> to vector<128x128xbf16>
    %cst_66 = arith.constant dense<0.000000e+00> : vector<64x128xf32>
    %72 = tpu.matmul %69, %71, %cst_66 {dimension_numbers = #tpu.dot_dimension_numbers<[1], [0], [0], [1], [0, 0, 1, 1], [], []>} : vector<64x128xbf16>, vector<128x128xbf16>, vector<64x128xf32> -> vector<64x128xf32>
    %c0_67 = arith.constant 0 : index
    %c0_68 = arith.constant 0 : index
    %73 = vector.load %arg7[%c0_67, %c0_68] : memref<64x128xf32, #tpu.memory_space<vmem>>, vector<64x128xf32>
    %74 = arith.addf %73, %72 : vector<64x128xf32>
    %c0_69 = arith.constant 0 : index
    %c0_70 = arith.constant 0 : index
    %75 = vector.load %arg7[%c0_69, %c0_70] : memref<64x128xf32, #tpu.memory_space<vmem>>, vector<64x128xf32>
    tpu.vector_store %arg7[%c0_69, %c0_70], %74 {strides = array<i32>} : memref<64x128xf32, #tpu.memory_space<vmem>>, vector<64x128xf32>,
    %c2_i32_71 = arith.constant 2 : i32
    %76 = arith.addi %0, %c2_i32_71 : i32
    %c0_72 = arith.constant 0 : index
    %77 = arith.index_cast %76 : i32 to index
    %c1_73 = arith.constant 1 : index
    %c0_74 = arith.constant 0 : index
    %78 = vector.load %arg2[%c0_72, %77, %c1_73, %c0_74] : memref<1x10x10x128xbf16, #tpu.memory_space<vmem>>, vector<1x8x8x128xbf16>
    %79 = vector.shape_cast %78 : vector<1x8x8x128xbf16> to vector<8x8x128xbf16>
    %80 = vector.shape_cast %79 : vector<8x8x128xbf16> to vector<64x128xbf16>
    %c7 = arith.constant 7 : index
    %c0_75 = arith.constant 0 : index
    %c0_76 = arith.constant 0 : index
    %81 = vector.load %arg3[%c7, %c0_75, %c0_76] : memref<9x128x128xbf16, #tpu.memory_space<vmem>>, vector<1x128x128xbf16>
    %82 = vector.shape_cast %81 : vector<1x128x128xbf16> to vector<128x128xbf16>
    %cst_77 = arith.constant dense<0.000000e+00> : vector<64x128xf32>
    %83 = tpu.matmul %80, %82, %cst_77 {dimension_numbers = #tpu.dot_dimension_numbers<[1], [0], [0], [1], [0, 0, 1, 1], [], []>} : vector<64x128xbf16>, vector<128x128xbf16>, vector<64x128xf32> -> vector<64x128xf32>
    %c0_78 = arith.constant 0 : index
    %c0_79 = arith.constant 0 : index
    %84 = vector.load %arg7[%c0_78, %c0_79] : memref<64x128xf32, #tpu.memory_space<vmem>>, vector<64x128xf32>
    %85 = arith.addf %84, %83 : vector<64x128xf32>
    %c0_80 = arith.constant 0 : index
    %c0_81 = arith.constant 0 : index
    %86 = vector.load %arg7[%c0_80, %c0_81] : memref<64x128xf32, #tpu.memory_space<vmem>>, vector<64x128xf32>
    tpu.vector_store %arg7[%c0_80, %c0_81], %85 {strides = array<i32>} : memref<64x128xf32, #tpu.memory_space<vmem>>, vector<64x128xf32>,
    %c2_i32_82 = arith.constant 2 : i32
    %87 = arith.addi %0, %c2_i32_82 : i32
    %c0_83 = arith.constant 0 : index
    %88 = arith.index_cast %87 : i32 to index
    %c2_84 = arith.constant 2 : index
    %c0_85 = arith.constant 0 : index
    %89 = vector.load %arg2[%c0_83, %88, %c2_84, %c0_85] : memref<1x10x10x128xbf16, #tpu.memory_space<vmem>>, vector<1x8x8x128xbf16>
    %90 = vector.shape_cast %89 : vector<1x8x8x128xbf16> to vector<8x8x128xbf16>
    %91 = vector.shape_cast %90 : vector<8x8x128xbf16> to vector<64x128xbf16>
    %c8 = arith.constant 8 : index
    %c0_86 = arith.constant 0 : index
    %c0_87 = arith.constant 0 : index
    %92 = vector.load %arg3[%c8, %c0_86, %c0_87] : memref<9x128x128xbf16, #tpu.memory_space<vmem>>, vector<1x128x128xbf16>
    %93 = vector.shape_cast %92 : vector<1x128x128xbf16> to vector<128x128xbf16>
    %cst_88 = arith.constant dense<0.000000e+00> : vector<64x128xf32>
    %94 = tpu.matmul %91, %93, %cst_88 {dimension_numbers = #tpu.dot_dimension_numbers<[1], [0], [0], [1], [0, 0, 1, 1], [], []>} : vector<64x128xbf16>, vector<128x128xbf16>, vector<64x128xf32> -> vector<64x128xf32>
    %c0_89 = arith.constant 0 : index
    %c0_90 = arith.constant 0 : index
    %95 = vector.load %arg7[%c0_89, %c0_90] : memref<64x128xf32, #tpu.memory_space<vmem>>, vector<64x128xf32>
    %96 = arith.addf %95, %94 : vector<64x128xf32>
    %c0_91 = arith.constant 0 : index
    %c0_92 = arith.constant 0 : index
    %97 = vector.load %arg7[%c0_91, %c0_92] : memref<64x128xf32, #tpu.memory_space<vmem>>, vector<64x128xf32>
    tpu.vector_store %arg7[%c0_91, %c0_92], %96 {strides = array<i32>} : memref<64x128xf32, #tpu.memory_space<vmem>>, vector<64x128xf32>,
    %c0_93 = arith.constant 0 : index
    %c0_94 = arith.constant 0 : index
    %98 = vector.load %arg7[%c0_93, %c0_94] : memref<64x128xf32, #tpu.memory_space<vmem>>, vector<64x128xf32>
    %c0_95 = arith.constant 0 : index
    %c0_96 = arith.constant 0 : index
    %99 = vector.load %arg4[%c0_95, %c0_96] : memref<1x128xf32, #tpu.memory_space<vmem>>, vector<1x128xf32>
    %100 = vector.broadcast %99 : vector<1x128xf32> to vector<64x128xf32>
    %101 = arith.addf %98, %100 : vector<64x128xf32>
    %c0_97 = arith.constant 0 : index
    %c0_98 = arith.constant 0 : index
    %c0_99 = arith.constant 0 : index
    %c0_100 = arith.constant 0 : index
    %102 = vector.load %arg5[%c0_97, %c0_98, %c0_99, %c0_100] : memref<1x8x8x128xbf16, #tpu.memory_space<vmem>>, vector<1x8x8x128xbf16>
    %103 = vector.shape_cast %102 : vector<1x8x8x128xbf16> to vector<8x8x128xbf16>
    %104 = vector.shape_cast %103 : vector<8x8x128xbf16> to vector<64x128xbf16>
    %105 = arith.extf %104 : vector<64x128xbf16> to vector<64x128xf32>
    %106 = arith.addf %101, %105 : vector<64x128xf32>
    %cst_101 = arith.constant 0.000000e+00 : f32
    %107 = vector.broadcast %cst_101 : f32 to vector<64x128xf32>
    %108 = arith.maximumf %106, %107 : vector<64x128xf32>
    %109 = vector.shape_cast %108 : vector<64x128xf32> to vector<8x8x128xf32>
    %110 = arith.truncf %109 : vector<8x8x128xf32> to vector<8x8x128xbf16>
    %c0_102 = arith.constant 0 : index
    %c0_103 = arith.constant 0 : index
    %c0_104 = arith.constant 0 : index
    %c0_105 = arith.constant 0 : index
    %111 = vector.load %arg6[%c0_102, %c0_103, %c0_104, %c0_105] : memref<1x8x8x128xbf16, #tpu.memory_space<vmem>>, vector<1x8x8x128xbf16>
    %112 = vector.shape_cast %111 : vector<1x8x8x128xbf16> to vector<8x8x128xbf16>
    %113 = vector.shape_cast %110 : vector<8x8x128xbf16> to vector<1x8x8x128xbf16>
    tpu.vector_store %arg6[%c0_102, %c0_103, %c0_104, %c0_105], %113 {strides = array<i32>} : memref<1x8x8x128xbf16, #tpu.memory_space<vmem>>, vector<1x8x8x128xbf16>,
    return
  }
  func.func @transform_0(%arg0: i32, %arg1: i32) -> (i32, i32, i32, i32) {
    %c0_i32 = arith.constant 0 : i32
    %c0_i32_0 = arith.constant 0 : i32
    %c0_i32_1 = arith.constant 0 : i32
    %c0_i32_2 = arith.constant 0 : i32
    return %arg0, %c0_i32, %c0_i32_0, %c0_i32_1 : i32, i32, i32, i32
  }
  func.func @transform_1(%arg0: i32, %arg1: i32) -> (i32, i32, i32) {
    %c0_i32 = arith.constant 0 : i32
    %c0_i32_0 = arith.constant 0 : i32
    %c0_i32_1 = arith.constant 0 : i32
    %c0_i32_2 = arith.constant 0 : i32
    return %c0_i32, %c0_i32_0, %c0_i32_1 : i32, i32, i32
  }
  func.func @transform_2(%arg0: i32, %arg1: i32) -> (i32, i32) {
    %c0_i32 = arith.constant 0 : i32
    %c0_i32_0 = arith.constant 0 : i32
    %c0_i32_1 = arith.constant 0 : i32
    return %c0_i32, %c0_i32_0 : i32, i32
  }
  func.func @transform_3(%arg0: i32, %arg1: i32) -> (i32, i32, i32, i32) {
    %c0_i32 = arith.constant 0 : i32
    %c0_i32_0 = arith.constant 0 : i32
    %c0_i32_1 = arith.constant 0 : i32
    return %arg0, %arg1, %c0_i32, %c0_i32_0 : i32, i32, i32, i32
  }
  func.func @transform_4(%arg0: i32, %arg1: i32) -> (i32, i32, i32, i32) {
    %c0_i32 = arith.constant 0 : i32
    %c0_i32_0 = arith.constant 0 : i32
    %c0_i32_1 = arith.constant 0 : i32
    return %arg0, %arg1, %c0_i32, %c0_i32_0 : i32, i32, i32, i32
  }
}

</mosaic_0001>

<llo_original>
// kernel: _lambda_.4
$region0: #{_lambda_.4}
  #allocation0 [shape = 'u32[]', space=smem, size = 0x4, offset = 0x4, fixed_abs, tag = 'smem constant byte address 0x4 - core index']
  #allocation1 [shape = 'u32[144,128]{1,0:T(1,128)}', space=vmem, size = 0x12000, scoped, tag = 'internal scratch']
  #allocation2 [shape = 'f32[64,128]{1,0:T(8,128)}', space=vmem, size = 0x8000, scoped, tag = 'scratch operand']
  %s0 = inlined_call_operand.vmem [shape: bf16[2,8,8,1152], index: 0, kind: input, shape index: {}]
  %s1 = inlined_call_operand.vmem [shape: bf16[1,1152,128], index: 1, kind: input, shape index: {}]
  %s2 = inlined_call_operand.vmem [shape: f32[1,128], index: 2, kind: input, shape index: {}]
  %s3 = inlined_call_operand.vmem [shape: bf16[2,8,8,128], index: 3, kind: output, shape index: {}]
  %s4 = sld [smem:[#allocation0]]
  $region45: #{_lambda_.4} parent=0
    _
  %s6 = ssub.s32 1, %s4
  %s7 = scalar_select 0, %s6, %s4
  loop: start=0, step=1, limit=4
  $region2: #{_lambda_.4} parent=0 // loop_pre_header
    _
  $region3: #{_lambda_.4} parent=0 // loop_header
    %s9 = sphi 0, %s13
    %p10 = scmp.ge.s32.totalorder %s9, 4
    %s16 = sphi 0, %s28
    %s17 = sphi 0, %s24
    %s18 = sphi 0, %s16
    %s19 = sphi 0, %s17
    %s20 = sphi 0, %s18
    %s21 = sphi 0, %s19
    %s31 = sphi 0, %s33
    %s34 = sphi 0, %s31
    %s35 = sphi 0, %s34
    %s51 = sphi 0, %s35
    %s55 = sphi 0, %s55
    %s57 = sphi 0, %s55
    %s58 = sphi 0, %s57
    %s72 = sphi 0, %s58
    %s76 = sphi 0, %s76
    %s78 = sphi 0, %s76
    %s79 = sphi 0, %s78
    %s93 = sphi 0, %s79
    %s101 = sphi 0, %s103
    %s104 = sphi 0, %s101
    %s105 = sphi 0, %s104
    %s121 = sphi 0, %s105
  $region4: #{_lambda_.4} parent=0 // loop_header_branch
    %12 = sbr.rel (%p10) target = $region8
  $region5: #{_lambda_.4} parent=0 // loop_body
    %s14 = ssub.s32 %s9, 1
    %s15 = ssub.s32 %s9, 2
    %s22 = sadd.s32 1, %s17
    %p23 = scmp.ge.s32.totalorder %s22, 1
    %s24 = scalar_select %p23, 0, %s22
    %s25 = sadd.s32 1, %s16
    %s26 = scalar_select %p23, %s25, %s16
    %p27 = scmp.ge.s32.totalorder %s26, 2
    %s28 = scalar_select %p27, 0, %s26
    %s29 = ssub.s32 %s16, %s28
    %p30 = scmp.eq.s32.totalorder %s29, 0
    %s32 = sadd.s32 %s31, 1
    %s33 = scalar_select %p30, %s31, %s32
    %p36 = pneg %p30
    %p37 = scmp.eq.s32.totalorder %s9, 1
    %p38 = por %p36, %p37
    %p39 = scmp.ne.s32.totalorder %s31, %s34
    %p40 = scmp.eq.s32.totalorder %s9, 0
    %p41 = por %p39, %p40
    %p42 = scmp.ne.s32.totalorder %s31, %s34
    %p43 = scmp.eq.s32.totalorder %s14, 1
    %p44 = por %p42, %p43
    %p45 = scmp.ne.s32.totalorder %s34, %s35
    %p46 = scmp.eq.s32.totalorder %s14, 0
    %p47 = por %p45, %p46
    %p48 = scmp.ne.s32.totalorder %s34, %s35
    %p49 = scmp.eq.s32.totalorder %s15, 1
    %p50 = por %p48, %p49
    %p52 = scmp.ne.s32.totalorder %s35, %s51
    %p53 = scmp.eq.s32.totalorder %s15, 0
    %p54 = por %p52, %p53
    %s56 = sadd.s32 %s55, 1
    %p59 = scmp.eq.s32.totalorder %s9, 1
    %p60 = scmp.ne.s32.totalorder %s55, %s57
    %p61 = scmp.eq.s32.totalorder %s9, 0
    %p62 = por %p60, %p61
    %p63 = scmp.ne.s32.totalorder %s55, %s57
    %p64 = scmp.eq.s32.totalorder %s14, 1
    %p65 = por %p63, %p64
    %p66 = scmp.ne.s32.totalorder %s57, %s58
    %p67 = scmp.eq.s32.totalorder %s14, 0
    %p68 = por %p66, %p67
    %p69 = scmp.ne.s32.totalorder %s57, %s58
    %p70 = scmp.eq.s32.totalorder %s15, 1
    %p71 = por %p69, %p70
    %p73 = scmp.ne.s32.totalorder %s58, %s72
    %p74 = scmp.eq.s32.totalorder %s15, 0
    %p75 = por %p73, %p74
    %s77 = sadd.s32 %s76, 1
    %p80 = scmp.eq.s32.totalorder %s9, 1
    %p81 = scmp.ne.s32.totalorder %s76, %s78
    %p82 = scmp.eq.s32.totalorder %s9, 0
    %p83 = por %p81, %p82
    %p84 = scmp.ne.s32.totalorder %s76, %s78
    %p85 = scmp.eq.s32.totalorder %s14, 1
    %p86 = por %p84, %p85
    %p87 = scmp.ne.s32.totalorder %s78, %s79
    %p88 = scmp.eq.s32.totalorder %s14, 0
    %p89 = por %p87, %p88
    %p90 = scmp.ne.s32.totalorder %s78, %s79
    %p91 = scmp.eq.s32.totalorder %s15, 1
    %p92 = por %p90, %p91
    %p94 = scmp.ne.s32.totalorder %s79, %s93
    %p95 = scmp.eq.s32.totalorder %s15, 0
    %p96 = por %p94, %p95
    %s97 = ssub.s32 %s16, %s28
    %s98 = ssub.s32 %s17, %s24
    %s99 = sor.u32 %s97, %s98
    %p100 = scmp.eq.s32.totalorder %s99, 0
    %s102 = sadd.s32 %s101, 1
    %s103 = scalar_select %p100, %s101, %s102
    %p106 = pneg %p100
    %p107 = scmp.eq.s32.totalorder %s9, 1
    %p108 = por %p106, %p107
    %p109 = scmp.ne.s32.totalorder %s101, %s104
    %p110 = scmp.eq.s32.totalorder %s9, 0
    %p111 = por %p109, %p110
    %p112 = scmp.ne.s32.totalorder %s101, %s104
    %p113 = scmp.eq.s32.totalorder %s14, 1
    %p114 = por %p112, %p113
    %p115 = scmp.ne.s32.totalorder %s104, %s105
    %p116 = scmp.eq.s32.totalorder %s14, 0
    %p117 = por %p115, %p116
    %p118 = scmp.ne.s32.totalorder %s104, %s105
    %p119 = scmp.eq.s32.totalorder %s15, 1
    %p120 = por %p118, %p119
    %p122 = scmp.ne.s32.totalorder %s105, %s121
    %p123 = scmp.eq.s32.totalorder %s15, 0
    %p124 = por %p122, %p123
    %p125 = scmp.le.s32.totalorder 1, %s9
    %p126 = scmp.lt.s32.totalorder %s9, 3
    %p127 = pnand %p125, %p126
    %p128 = pneg %p127
    // Predicated region
    $region9: #{_lambda_.4} parent=5 // pred_check
      _
    $region10: #{_lambda_.4} parent=5 // pred_check_branch
      %130 = sbr.rel (%p127) target = $region12
    $region11: #{_lambda_.4} parent=5 // pred_region
      %s131 = ssub.s32 %s9, 1
      // Predicated region
      $region13: #{_lambda_.4} parent=11 // pred_check
        %p132 = pneg %p68
      $region14: #{_lambda_.4} parent=11 // pred_check_branch
        %134 = sbr.rel (%p132) target = $region16
      $region15: #{_lambda_.4} parent=11 // pred_region
        _
      $region16: #{_lambda_.4} parent=11 // pred_fallthru
        _
      // Predicated region
      $region17: #{_lambda_.4} parent=11 // pred_check
        %p135 = pneg %p89
      $region18: #{_lambda_.4} parent=11 // pred_check_branch
        %137 = sbr.rel (%p135) target = $region20
      $region19: #{_lambda_.4} parent=11 // pred_region
        _
      $region20: #{_lambda_.4} parent=11 // pred_fallthru
        _
    $region12: #{_lambda_.4} parent=5 // pred_fallthru
      _
    %p138 = scmp.lt.s32.totalorder %s9, 2
    // Predicated region
    $region21: #{_lambda_.4} parent=5 // pred_check
      %p139 = pneg %p138
    $region22: #{_lambda_.4} parent=5 // pred_check_branch
      %141 = sbr.rel (%p139) target = $region24
    $region23: #{_lambda_.4} parent=5 // pred_region
      // Predicated region
      $region25: #{_lambda_.4} parent=23 // pred_check
        %p142 = pneg %p41
      $region26: #{_lambda_.4} parent=23 // pred_check_branch
        %144 = sbr.rel (%p142) target = $region28
      $region27: #{_lambda_.4} parent=23 // pred_region
        %p145 = scmp.lt.s32.totalorder %s16, 1
        %s146 = scalar_select %p145, %s16, 1
        %s147 = smul.addr %s146, 72
        %s148 = smul.addr %s147, 4
        %s149 = scalar_lea.vmem %s0, %s148
      $region28: #{_lambda_.4} parent=23 // pred_fallthru
        _
    $region24: #{_lambda_.4} parent=5 // pred_fallthru
      _
    %p150 = scmp.le.s32.totalorder 1, %s9
    %p151 = scmp.lt.s32.totalorder %s9, 3
    %p152 = pnand %p150, %p151
    %p153 = pneg %p152
    // Predicated region
    $region29: #{_lambda_.4} parent=5 // pred_check
      _
    $region30: #{_lambda_.4} parent=5 // pred_check_branch
      %155 = sbr.rel (%p152) target = $region32
    $region31: #{_lambda_.4} parent=5 // pred_region
      %s156 = ssub.s32 %s9, 1
      %p157 = scmp.lt.s32.totalorder %s18, 1
      %s158 = scalar_select %p157, %s18, 1
      %s159 = smul.addr %s158, 72
      %s160 = smul.addr %s159, 4
      %s161 = scalar_lea.vmem %s0, %s160
      %p162 = pneg %p47
      %p163 = pneg %p44
      %p164 = pneg %p68
      %p165 = pneg %p65
      %p166 = pneg %p89
      %p167 = pneg %p86
      %p168 = pneg %p117
      %p169 = pneg %p114
      %s170 = smul.u32 8, %s19
      %p171 = scmp.lt.s32.totalorder %s18, 1
      %s172 = scalar_select %p171, %s18, 1
      %p173 = scmp.lt.s32.totalorder %s170, 7
      %s174 = scalar_select %p173, %s170, 7
      %s175 = smul.addr %s172, 8
      %s176 = sadd.s32 %s174, %s175
      %s177 = smul.addr %s176, 4
      %s178 = scalar_lea.vmem %s3, %s177
      %p179 = scmp.lt.s32.totalorder %s18, 1
      %s180 = scalar_select %p179, %s18, 1
      %s181 = smul.addr %s180, 72
      %s182 = smul.addr %s181, 4
      %s183 = scalar_lea.vmem %s0, %s182
      %s184 = smul.u32 8, %s19
      %p185 = scmp.lt.s32.totalorder %s18, 1
      %s186 = scalar_select %p185, %s18, 1
      %p187 = scmp.lt.s32.totalorder %s184, 7
      %s188 = scalar_select %p187, %s184, 7
      %s189 = smul.addr %s186, 8
      %s190 = sadd.s32 %s188, %s189
      %s191 = smul.addr %s190, 4
      %s192 = scalar_lea.vmem %s3, %s191
      %s193 = smul.u32 8, %s19
      %s195 = smul.u32 %s19, 8
      %s196 = smul.u32 %s195, 9
      %s197 = smul.addr %s196, 4
      %s198 = scalar_lea.vmem %s183, %s197
      %v199 = vld [vmem:[%s198] sm:$0xff]
      %v200 = vld [vmem:[%s198 + $0x8] sm:$0xff]
      %v201 = vld [vmem:[%s198 + $0x10] sm:$0xff]
      %v202 = vld [vmem:[%s198 + $0x18] sm:$0xff]
      %v203 = vld [vmem:[%s198 + $0x20] sm:$0xf]
      %v204 = vld [vmem:[%s198 + $0x24] sm:$0xff]
      %v205 = vld [vmem:[%s198 + $0x2c] sm:$0xff]
      %v206 = vld [vmem:[%s198 + $0x34] sm:$0xff]
      %v207 = vld [vmem:[%s198 + $0x3c] sm:$0xff]
      %v208 = vld [vmem:[%s198 + $0x44] sm:$0xf]
      %v209 = vld [vmem:[%s198 + $0x48] sm:$0xff]
      %v210 = vld [vmem:[%s198 + $0x50] sm:$0xff]
      %v211 = vld [vmem:[%s198 + $0x58] sm:$0xff]
      %v212 = vld [vmem:[%s198 + $0x60] sm:$0xff]
      %v213 = vld [vmem:[%s198 + $0x68] sm:$0xf]
      %v214 = vld [vmem:[%s198 + $0x6c] sm:$0xff]
      %v215 = vld [vmem:[%s198 + $0x74] sm:$0xff]
      %v216 = vld [vmem:[%s198 + $0x7c] sm:$0xff]
      %v217 = vld [vmem:[%s198 + $0x84] sm:$0xff]
      %v218 = vld [vmem:[%s198 + $0x8c] sm:$0xf]
      %v219 = vld [vmem:[%s198 + $0x90] sm:$0xff]
      %v220 = vld [vmem:[%s198 + $0x98] sm:$0xff]
      %v221 = vld [vmem:[%s198 + $0xa0] sm:$0xff]
      %v222 = vld [vmem:[%s198 + $0xa8] sm:$0xff]
      %v223 = vld [vmem:[%s198 + $0xb0] sm:$0xf]
      %v224 = vld [vmem:[%s198 + $0xb4] sm:$0xff]
      %v225 = vld [vmem:[%s198 + $0xbc] sm:$0xff]
      %v226 = vld [vmem:[%s198 + $0xc4] sm:$0xff]
      %v227 = vld [vmem:[%s198 + $0xcc] sm:$0xff]
      %v228 = vld [vmem:[%s198 + $0xd4] sm:$0xf]
      %v229 = vld [vmem:[%s198 + $0xd8] sm:$0xff]
      %v230 = vld [vmem:[%s198 + $0xe0] sm:$0xff]
      %v231 = vld [vmem:[%s198 + $0xe8] sm:$0xff]
      %v232 = vld [vmem:[%s198 + $0xf0] sm:$0xff]
      %v233 = vld [vmem:[%s198 + $0xf8] sm:$0xf]
      %v234 = vld [vmem:[%s198 + $0xfc] sm:$0xff]
      %v235 = vld [vmem:[%s198 + $0x104] sm:$0xff]
      %v236 = vld [vmem:[%s198 + $0x10c] sm:$0xff]
      %v237 = vld [vmem:[%s198 + $0x114] sm:$0xff]
      %v238 = vld [vmem:[%s198 + $0x11c] sm:$0xf]
      %v239 = vld [vmem:[%s1] sm:$0xf]
      %v240 = vld [vmem:[%s1 + $0x4] sm:$0xf]
      %v241 = vld [vmem:[%s1 + $0x8] sm:$0xf]
      %v242 = vld [vmem:[%s1 + $0xc] sm:$0xf]
      %v243 = vld [vmem:[%s1 + $0x10] sm:$0xf]
      %v244 = vld [vmem:[%s1 + $0x14] sm:$0xf]
      %v245 = vld [vmem:[%s1 + $0x18] sm:$0xf]
      %v246 = vld [vmem:[%s1 + $0x1c] sm:$0xf]
      %v247 = vld [vmem:[%s1 + $0x20] sm:$0xf]
      %v248 = vld [vmem:[%s1 + $0x24] sm:$0xf]
      %v249 = vld [vmem:[%s1 + $0x28] sm:$0xf]
      %v250 = vld [vmem:[%s1 + $0x2c] sm:$0xf]
      %v251 = vld [vmem:[%s1 + $0x30] sm:$0xf]
      %v252 = vld [vmem:[%s1 + $0x34] sm:$0xf]
      %v253 = vld [vmem:[%s1 + $0x38] sm:$0xf]
      %v254 = vld [vmem:[%s1 + $0x3c] sm:$0xf]
      %v255 = vld [vmem:[%s1 + $0x40] sm:$0xf]
      %v256 = vld [vmem:[%s1 + $0x44] sm:$0xf]
      %v257 = vld [vmem:[%s1 + $0x48] sm:$0xf]
      %v258 = vld [vmem:[%s1 + $0x4c] sm:$0xf]
      %v259 = vld [vmem:[%s1 + $0x50] sm:$0xf]
      %v260 = vld [vmem:[%s1 + $0x54] sm:$0xf]
      %v261 = vld [vmem:[%s1 + $0x58] sm:$0xf]
      %v262 = vld [vmem:[%s1 + $0x5c] sm:$0xf]
      %v263 = vld [vmem:[%s1 + $0x60] sm:$0xf]
      %v264 = vld [vmem:[%s1 + $0x64] sm:$0xf]
      %v265 = vld [vmem:[%s1 + $0x68] sm:$0xf]
      %v266 = vld [vmem:[%s1 + $0x6c] sm:$0xf]
      %v267 = vld [vmem:[%s1 + $0x70] sm:$0xf]
      %v268 = vld [vmem:[%s1 + $0x74] sm:$0xf]
      %v269 = vld [vmem:[%s1 + $0x78] sm:$0xf]
      %v270 = vld [vmem:[%s1 + $0x7c] sm:$0xf]
      %v271 = vld [vmem:[%s1 + $0x80] sm:$0xf]
      %v272 = vld [vmem:[%s1 + $0x84] sm:$0xf]
      %v273 = vld [vmem:[%s1 + $0x88] sm:$0xf]
      %v274 = vld [vmem:[%s1 + $0x8c] sm:$0xf]
      %v275 = vld [vmem:[%s1 + $0x90] sm:$0xf]
      %v276 = vld [vmem:[%s1 + $0x94] sm:$0xf]
      %v277 = vld [vmem:[%s1 + $0x98] sm:$0xf]
      %v278 = vld [vmem:[%s1 + $0x9c] sm:$0xf]
      %v279 = vld [vmem:[%s1 + $0xa0] sm:$0xf]
      %v280 = vld [vmem:[%s1 + $0xa4] sm:$0xf]
      %v281 = vld [vmem:[%s1 + $0xa8] sm:$0xf]
      %v282 = vld [vmem:[%s1 + $0xac] sm:$0xf]
      %v283 = vld [vmem:[%s1 + $0xb0] sm:$0xf]
      %v284 = vld [vmem:[%s1 + $0xb4] sm:$0xf]
      %v285 = vld [vmem:[%s1 + $0xb8] sm:$0xf]
      %v286 = vld [vmem:[%s1 + $0xbc] sm:$0xf]
      %v287 = vld [vmem:[%s1 + $0xc0] sm:$0xf]
      %v288 = vld [vmem:[%s1 + $0xc4] sm:$0xf]
      %v289 = vld [vmem:[%s1 + $0xc8] sm:$0xf]
      %v290 = vld [vmem:[%s1 + $0xcc] sm:$0xf]
      %v291 = vld [vmem:[%s1 + $0xd0] sm:$0xf]
      %v292 = vld [vmem:[%s1 + $0xd4] sm:$0xf]
      %v293 = vld [vmem:[%s1 + $0xd8] sm:$0xf]
      %v294 = vld [vmem:[%s1 + $0xdc] sm:$0xf]
      %v295 = vld [vmem:[%s1 + $0xe0] sm:$0xf]
      %v296 = vld [vmem:[%s1 + $0xe4] sm:$0xf]
      %v297 = vld [vmem:[%s1 + $0xe8] sm:$0xf]
      %v298 = vld [vmem:[%s1 + $0xec] sm:$0xf]
      %v299 = vld [vmem:[%s1 + $0xf0] sm:$0xf]
      %v300 = vld [vmem:[%s1 + $0xf4] sm:$0xf]
      %v301 = vld [vmem:[%s1 + $0xf8] sm:$0xf]
      %v302 = vld [vmem:[%s1 + $0xfc] sm:$0xf]
      %v303 = vld [vmem:[%s1 + $0x100] sm:$0xf]
      %v304 = vld [vmem:[%s1 + $0x104] sm:$0xf]
      %v305 = vld [vmem:[%s1 + $0x108] sm:$0xf]
      %v306 = vld [vmem:[%s1 + $0x10c] sm:$0xf]
      %v307 = vld [vmem:[%s1 + $0x110] sm:$0xf]
      %v308 = vld [vmem:[%s1 + $0x114] sm:$0xf]
      %v309 = vld [vmem:[%s1 + $0x118] sm:$0xf]
      %v310 = vld [vmem:[%s1 + $0x11c] sm:$0xf]
      %v311 = vld [vmem:[%s1 + $0x120] sm:$0xf]
      %v312 = vld [vmem:[%s1 + $0x124] sm:$0xf]
      %v313 = vld [vmem:[%s1 + $0x128] sm:$0xf]
      %v314 = vld [vmem:[%s1 + $0x12c] sm:$0xf]
      %v315 = vld [vmem:[%s1 + $0x130] sm:$0xf]
      %v316 = vld [vmem:[%s1 + $0x134] sm:$0xf]
      %v317 = vld [vmem:[%s1 + $0x138] sm:$0xf]
      %v318 = vld [vmem:[%s1 + $0x13c] sm:$0xf]
      %v319 = vld [vmem:[%s1 + $0x140] sm:$0xf]
      %v320 = vld [vmem:[%s1 + $0x144] sm:$0xf]
      %v321 = vld [vmem:[%s1 + $0x148] sm:$0xf]
      %v322 = vld [vmem:[%s1 + $0x14c] sm:$0xf]
      %v323 = vld [vmem:[%s1 + $0x150] sm:$0xf]
      %v324 = vld [vmem:[%s1 + $0x154] sm:$0xf]
      %v325 = vld [vmem:[%s1 + $0x158] sm:$0xf]
      %v326 = vld [vmem:[%s1 + $0x15c] sm:$0xf]
      %v327 = vld [vmem:[%s1 + $0x160] sm:$0xf]
      %v328 = vld [vmem:[%s1 + $0x164] sm:$0xf]
      %v329 = vld [vmem:[%s1 + $0x168] sm:$0xf]
      %v330 = vld [vmem:[%s1 + $0x16c] sm:$0xf]
      %v331 = vld [vmem:[%s1 + $0x170] sm:$0xf]
      %v332 = vld [vmem:[%s1 + $0x174] sm:$0xf]
      %v333 = vld [vmem:[%s1 + $0x178] sm:$0xf]
      %v334 = vld [vmem:[%s1 + $0x17c] sm:$0xf]
      %v335 = vld [vmem:[%s1 + $0x180] sm:$0xf]
      %v336 = vld [vmem:[%s1 + $0x184] sm:$0xf]
      %v337 = vld [vmem:[%s1 + $0x188] sm:$0xf]
      %v338 = vld [vmem:[%s1 + $0x18c] sm:$0xf]
      %v339 = vld [vmem:[%s1 + $0x190] sm:$0xf]
      %v340 = vld [vmem:[%s1 + $0x194] sm:$0xf]
      %v341 = vld [vmem:[%s1 + $0x198] sm:$0xf]
      %v342 = vld [vmem:[%s1 + $0x19c] sm:$0xf]
      %v343 = vld [vmem:[%s1 + $0x1a0] sm:$0xf]
      %v344 = vld [vmem:[%s1 + $0x1a4] sm:$0xf]
      %v345 = vld [vmem:[%s1 + $0x1a8] sm:$0xf]
      %v346 = vld [vmem:[%s1 + $0x1ac] sm:$0xf]
      %v347 = vld [vmem:[%s1 + $0x1b0] sm:$0xf]
      %v348 = vld [vmem:[%s1 + $0x1b4] sm:$0xf]
      %v349 = vld [vmem:[%s1 + $0x1b8] sm:$0xf]
      %v350 = vld [vmem:[%s1 + $0x1bc] sm:$0xf]
      %v351 = vld [vmem:[%s1 + $0x1c0] sm:$0xf]
      %v352 = vld [vmem:[%s1 + $0x1c4] sm:$0xf]
      %v353 = vld [vmem:[%s1 + $0x1c8] sm:$0xf]
      %v354 = vld [vmem:[%s1 + $0x1cc] sm:$0xf]
      %v355 = vld [vmem:[%s1 + $0x1d0] sm:$0xf]
      %v356 = vld [vmem:[%s1 + $0x1d4] sm:$0xf]
      %v357 = vld [vmem:[%s1 + $0x1d8] sm:$0xf]
      %v358 = vld [vmem:[%s1 + $0x1dc] sm:$0xf]
      %v359 = vld [vmem:[%s1 + $0x1e0] sm:$0xf]
      %v360 = vld [vmem:[%s1 + $0x1e4] sm:$0xf]
      %v361 = vld [vmem:[%s1 + $0x1e8] sm:$0xf]
      %v362 = vld [vmem:[%s1 + $0x1ec] sm:$0xf]
      %v363 = vld [vmem:[%s1 + $0x1f0] sm:$0xf]
      %v364 = vld [vmem:[%s1 + $0x1f4] sm:$0xf]
      %v365 = vld [vmem:[%s1 + $0x1f8] sm:$0xf]
      %v366 = vld [vmem:[%s1 + $0x1fc] sm:$0xf]
      %v367 = vld [vmem:[%s1 + $0x200] sm:$0xf]
      %v368 = vld [vmem:[%s1 + $0x204] sm:$0xf]
      %v369 = vld [vmem:[%s1 + $0x208] sm:$0xf]
      %v370 = vld [vmem:[%s1 + $0x20c] sm:$0xf]
      %v371 = vld [vmem:[%s1 + $0x210] sm:$0xf]
      %v372 = vld [vmem:[%s1 + $0x214] sm:$0xf]
      %v373 = vld [vmem:[%s1 + $0x218] sm:$0xf]
      %v374 = vld [vmem:[%s1 + $0x21c] sm:$0xf]
      %v375 = vld [vmem:[%s1 + $0x220] sm:$0xf]
      %v376 = vld [vmem:[%s1 + $0x224] sm:$0xf]
      %v377 = vld [vmem:[%s1 + $0x228] sm:$0xf]
      %v378 = vld [vmem:[%s1 + $0x22c] sm:$0xf]
      %v379 = vld [vmem:[%s1 + $0x230] sm:$0xf]
      %v380 = vld [vmem:[%s1 + $0x234] sm:$0xf]
      %v381 = vld [vmem:[%s1 + $0x238] sm:$0xf]
      %v382 = vld [vmem:[%s1 + $0x23c] sm:$0xf]
      %v423 = vunpack.c.l.b16 %v199
      %v424 = vunpack.c.h.b16 %v199
      %v425 = vunpack.c.l.b16 %v200
      %v426 = vunpack.c.h.b16 %v200
      %v427 = vunpack.c.l.b16 %v201
      %v428 = vunpack.c.h.b16 %v201
      %v429 = vunpack.c.l.b16 %v202
      %v430 = vunpack.c.h.b16 %v202
      %v431 = vunpack.c.l.b16 %v203
      %v432 = vunpack.c.l.b16 %v204
      %v433 = vunpack.c.h.b16 %v204
      %v434 = vunpack.c.l.b16 %v205
      %v435 = vunpack.c.h.b16 %v205
      %v436 = vunpack.c.l.b16 %v206
      %v437 = vunpack.c.h.b16 %v206
      %v438 = vunpack.c.l.b16 %v207
      %v439 = vunpack.c.h.b16 %v207
      %v440 = vunpack.c.l.b16 %v208
      %v441 = vunpack.c.l.b16 %v209
      %v442 = vunpack.c.h.b16 %v209
      %v443 = vunpack.c.l.b16 %v210
      %v444 = vunpack.c.h.b16 %v210
      %v445 = vunpack.c.l.b16 %v211
      %v446 = vunpack.c.h.b16 %v211
      %v447 = vunpack.c.l.b16 %v212
      %v448 = vunpack.c.h.b16 %v212
      %v449 = vunpack.c.l.b16 %v213
      %v450 = vunpack.c.l.b16 %v214
      %v451 = vunpack.c.h.b16 %v214
      %v452 = vunpack.c.l.b16 %v215
      %v453 = vunpack.c.h.b16 %v215
      %v454 = vunpack.c.l.b16 %v216
      %v455 = vunpack.c.h.b16 %v216
      %v456 = vunpack.c.l.b16 %v217
      %v457 = vunpack.c.h.b16 %v217
      %v458 = vunpack.c.l.b16 %v218
      %v459 = vunpack.c.l.b16 %v219
      %v460 = vunpack.c.h.b16 %v219
      %v461 = vunpack.c.l.b16 %v220
      %v462 = vunpack.c.h.b16 %v220
      %v463 = vunpack.c.l.b16 %v221
      %v464 = vunpack.c.h.b16 %v221
      %v465 = vunpack.c.l.b16 %v222
      %v466 = vunpack.c.h.b16 %v222
      %v467 = vunpack.c.l.b16 %v223
      %v468 = vunpack.c.l.b16 %v224
      %v469 = vunpack.c.h.b16 %v224
      %v470 = vunpack.c.l.b16 %v225
      %v471 = vunpack.c.h.b16 %v225
      %v472 = vunpack.c.l.b16 %v226
      %v473 = vunpack.c.h.b16 %v226
      %v474 = vunpack.c.l.b16 %v227
      %v475 = vunpack.c.h.b16 %v227
      %v476 = vunpack.c.l.b16 %v228
      %v477 = vunpack.c.l.b16 %v229
      %v478 = vunpack.c.h.b16 %v229
      %v479 = vunpack.c.l.b16 %v230
      %v480 = vunpack.c.h.b16 %v230
      %v481 = vunpack.c.l.b16 %v231
      %v482 = vunpack.c.h.b16 %v231
      %v483 = vunpack.c.l.b16 %v232
      %v484 = vunpack.c.h.b16 %v232
      %v485 = vunpack.c.l.b16 %v233
      %v486 = vunpack.c.l.b16 %v234
      %v487 = vunpack.c.h.b16 %v234
      %v488 = vunpack.c.l.b16 %v235
      %v489 = vunpack.c.h.b16 %v235
      %v490 = vunpack.c.l.b16 %v236
      %v491 = vunpack.c.h.b16 %v236
      %v492 = vunpack.c.l.b16 %v237
      %v493 = vunpack.c.h.b16 %v237
      %v494 = vunpack.c.l.b16 %v238
      %v495 = vpack.c.b16 %v432, %v423
      %v496 = vpack.c.b16 %v433, %v424
      %v497 = vpack.c.b16 %v434, %v425
      %v498 = vpack.c.b16 %v435, %v426
      %v499 = vpack.c.b16 %v436, %v427
      %v500 = vpack.c.b16 %v437, %v428
      %v501 = vpack.c.b16 %v438, %v429
      %v502 = vpack.c.b16 %v439, %v430
      %v503 = vpack.c.b16 %v440, %v431
      %v504 = vpack.c.b16 %v450, %v441
      %v505 = vpack.c.b16 %v451, %v442
      %v506 = vpack.c.b16 %v452, %v443
      %v507 = vpack.c.b16 %v453, %v444
      %v508 = vpack.c.b16 %v454, %v445
      %v509 = vpack.c.b16 %v455, %v446
      %v510 = vpack.c.b16 %v456, %v447
      %v511 = vpack.c.b16 %v457, %v448
      %v512 = vpack.c.b16 %v458, %v449
      %v513 = vpack.c.b16 %v468, %v459
      %v514 = vpack.c.b16 %v469, %v460
      %v515 = vpack.c.b16 %v470, %v461
      %v516 = vpack.c.b16 %v471, %v462
      %v517 = vpack.c.b16 %v472, %v463
      %v518 = vpack.c.b16 %v473, %v464
      %v519 = vpack.c.b16 %v474, %v465
      %v520 = vpack.c.b16 %v475, %v466
      %v521 = vpack.c.b16 %v476, %v467
      %v522 = vpack.c.b16 %v486, %v477
      %v523 = vpack.c.b16 %v487, %v478
      %v524 = vpack.c.b16 %v488, %v479
      %v525 = vpack.c.b16 %v489, %v480
      %v526 = vpack.c.b16 %v490, %v481
      %v527 = vpack.c.b16 %v491, %v482
      %v528 = vpack.c.b16 %v492, %v483
      %v529 = vpack.c.b16 %v493, %v484
      %v530 = vpack.c.b16 %v494, %v485
      %v711 = vunpack.c.l.b16 %v239
      %v712 = vunpack.c.l.b16 %v240
      %v713 = vunpack.c.l.b16 %v241
      %v714 = vunpack.c.l.b16 %v242
      %v715 = vunpack.c.l.b16 %v243
      %v716 = vunpack.c.l.b16 %v244
      %v717 = vunpack.c.l.b16 %v245
      %v718 = vunpack.c.l.b16 %v246
      %v719 = vunpack.c.l.b16 %v247
      %v720 = vunpack.c.l.b16 %v248
      %v721 = vunpack.c.l.b16 %v249
      %v722 = vunpack.c.l.b16 %v250
      %v723 = vunpack.c.l.b16 %v251
      %v724 = vunpack.c.l.b16 %v252
      %v725 = vunpack.c.l.b16 %v253
      %v726 = vunpack.c.l.b16 %v254
      %v727 = vunpack.c.l.b16 %v255
      %v728 = vunpack.c.l.b16 %v256
      %v729 = vunpack.c.l.b16 %v257
      %v730 = vunpack.c.l.b16 %v258
      %v731 = vunpack.c.l.b16 %v259
      %v732 = vunpack.c.l.b16 %v260
      %v733 = vunpack.c.l.b16 %v261
      %v734 = vunpack.c.l.b16 %v262
      %v735 = vunpack.c.l.b16 %v263
      %v736 = vunpack.c.l.b16 %v264
      %v737 = vunpack.c.l.b16 %v265
      %v738 = vunpack.c.l.b16 %v266
      %v739 = vunpack.c.l.b16 %v267
      %v740 = vunpack.c.l.b16 %v268
      %v741 = vunpack.c.l.b16 %v269
      %v742 = vunpack.c.l.b16 %v270
      %v743 = vunpack.c.l.b16 %v271
      %v744 = vunpack.c.l.b16 %v272
      %v745 = vunpack.c.l.b16 %v273
      %v746 = vunpack.c.l.b16 %v274
      %v747 = vunpack.c.l.b16 %v275
      %v748 = vunpack.c.l.b16 %v276
      %v749 = vunpack.c.l.b16 %v277
      %v750 = vunpack.c.l.b16 %v278
      %v751 = vunpack.c.l.b16 %v279
      %v752 = vunpack.c.l.b16 %v280
      %v753 = vunpack.c.l.b16 %v281
      %v754 = vunpack.c.l.b16 %v282
      %v755 = vunpack.c.l.b16 %v283
      %v756 = vunpack.c.l.b16 %v284
      %v757 = vunpack.c.l.b16 %v285
      %v758 = vunpack.c.l.b16 %v286
      %v759 = vunpack.c.l.b16 %v287
      %v760 = vunpack.c.l.b16 %v288
      %v761 = vunpack.c.l.b16 %v289
      %v762 = vunpack.c.l.b16 %v290
      %v763 = vunpack.c.l.b16 %v291
      %v764 = vunpack.c.l.b16 %v292
      %v765 = vunpack.c.l.b16 %v293
      %v766 = vunpack.c.l.b16 %v294
      %v767 = vunpack.c.l.b16 %v295
      %v768 = vunpack.c.l.b16 %v296
      %v769 = vunpack.c.l.b16 %v297
      %v770 = vunpack.c.l.b16 %v298
      %v771 = vunpack.c.l.b16 %v299
      %v772 = vunpack.c.l.b16 %v300
      %v773 = vunpack.c.l.b16 %v301
      %v774 = vunpack.c.l.b16 %v302
      %v775 = vunpack.c.l.b16 %v303
      %v776 = vunpack.c.l.b16 %v304
      %v777 = vunpack.c.l.b16 %v305
      %v778 = vunpack.c.l.b16 %v306
      %v779 = vunpack.c.l.b16 %v307
      %v780 = vunpack.c.l.b16 %v308
      %v781 = vunpack.c.l.b16 %v309
      %v782 = vunpack.c.l.b16 %v310
      %v783 = vunpack.c.l.b16 %v311
      %v784 = vunpack.c.l.b16 %v312
      %v785 = vunpack.c.l.b16 %v313
      %v786 = vunpack.c.l.b16 %v314
      %v787 = vunpack.c.l.b16 %v315
      %v788 = vunpack.c.l.b16 %v316
      %v789 = vunpack.c.l.b16 %v317
      %v790 = vunpack.c.l.b16 %v318
      %v791 = vunpack.c.l.b16 %v319
      %v792 = vunpack.c.l.b16 %v320
      %v793 = vunpack.c.l.b16 %v321
      %v794 = vunpack.c.l.b16 %v322
      %v795 = vunpack.c.l.b16 %v323
      %v796 = vunpack.c.l.b16 %v324
      %v797 = vunpack.c.l.b16 %v325
      %v798 = vunpack.c.l.b16 %v326
      %v799 = vunpack.c.l.b16 %v327
      %v800 = vunpack.c.l.b16 %v328
      %v801 = vunpack.c.l.b16 %v329
      %v802 = vunpack.c.l.b16 %v330
      %v803 = vunpack.c.l.b16 %v331
      %v804 = vunpack.c.l.b16 %v332
      %v805 = vunpack.c.l.b16 %v333
      %v806 = vunpack.c.l.b16 %v334
      %v807 = vunpack.c.l.b16 %v335
      %v808 = vunpack.c.l.b16 %v336
      %v809 = vunpack.c.l.b16 %v337
      %v810 = vunpack.c.l.b16 %v338
      %v811 = vunpack.c.l.b16 %v339
      %v812 = vunpack.c.l.b16 %v340
      %v813 = vunpack.c.l.b16 %v341
      %v814 = vunpack.c.l.b16 %v342
      %v815 = vunpack.c.l.b16 %v343
      %v816 = vunpack.c.l.b16 %v344
      %v817 = vunpack.c.l.b16 %v345
      %v818 = vunpack.c.l.b16 %v346
      %v819 = vunpack.c.l.b16 %v347
      %v820 = vunpack.c.l.b16 %v348
      %v821 = vunpack.c.l.b16 %v349
      %v822 = vunpack.c.l.b16 %v350
      %v823 = vunpack.c.l.b16 %v351
      %v824 = vunpack.c.l.b16 %v352
      %v825 = vunpack.c.l.b16 %v353
      %v826 = vunpack.c.l.b16 %v354
      %v827 = vunpack.c.l.b16 %v355
      %v828 = vunpack.c.l.b16 %v356
      %v829 = vunpack.c.l.b16 %v357
      %v830 = vunpack.c.l.b16 %v358
      %v831 = vunpack.c.l.b16 %v359
      %v832 = vunpack.c.l.b16 %v360
      %v833 = vunpack.c.l.b16 %v361
      %v834 = vunpack.c.l.b16 %v362
      %v835 = vunpack.c.l.b16 %v363
      %v836 = vunpack.c.l.b16 %v364
      %v837 = vunpack.c.l.b16 %v365
      %v838 = vunpack.c.l.b16 %v366
      %v839 = vunpack.c.l.b16 %v367
      %v840 = vunpack.c.l.b16 %v368
      %v841 = vunpack.c.l.b16 %v369
      %v842 = vunpack.c.l.b16 %v370
      %v843 = vunpack.c.l.b16 %v371
      %v844 = vunpack.c.l.b16 %v372
      %v845 = vunpack.c.l.b16 %v373
      %v846 = vunpack.c.l.b16 %v374
      %v847 = vunpack.c.l.b16 %v375
      %v848 = vunpack.c.l.b16 %v376
      %v849 = vunpack.c.l.b16 %v377
      %v850 = vunpack.c.l.b16 %v378
      %v851 = vunpack.c.l.b16 %v379
      %v852 = vunpack.c.l.b16 %v380
      %v853 = vunpack.c.l.b16 %v381
      %v854 = vunpack.c.l.b16 %v382
      %v855 = vpack.c.b16 %v712, %v711
      %v856 = vpack.c.b16 %v714, %v713
      %v857 = vpack.c.b16 %v716, %v715
      %v858 = vpack.c.b16 %v718, %v717
      %v859 = vpack.c.b16 %v720, %v719
      %v860 = vpack.c.b16 %v722, %v721
      %v861 = vpack.c.b16 %v724, %v723
      %v862 = vpack.c.b16 %v726, %v725
      %v863 = vpack.c.b16 %v728, %v727
      %v864 = vpack.c.b16 %v730, %v729
      %v865 = vpack.c.b16 %v732, %v731
      %v866 = vpack.c.b16 %v734, %v733
      %v867 = vpack.c.b16 %v736, %v735
      %v868 = vpack.c.b16 %v738, %v737
      %v869 = vpack.c.b16 %v740, %v739
      %v870 = vpack.c.b16 %v742, %v741
      %v871 = vpack.c.b16 %v744, %v743
      %v872 = vpack.c.b16 %v746, %v745
      %v873 = vpack.c.b16 %v748, %v747
      %v874 = vpack.c.b16 %v750, %v749
      %v875 = vpack.c.b16 %v752, %v751
      %v876 = vpack.c.b16 %v754, %v753
      %v877 = vpack.c.b16 %v756, %v755
      %v878 = vpack.c.b16 %v758, %v757
      %v879 = vpack.c.b16 %v760, %v759
      %v880 = vpack.c.b16 %v762, %v761
      %v881 = vpack.c.b16 %v764, %v763
      %v882 = vpack.c.b16 %v766, %v765
      %v883 = vpack.c.b16 %v768, %v767
      %v884 = vpack.c.b16 %v770, %v769
      %v885 = vpack.c.b16 %v772, %v771
      %v886 = vpack.c.b16 %v774, %v773
      %v887 = vpack.c.b16 %v776, %v775
      %v888 = vpack.c.b16 %v778, %v777
      %v889 = vpack.c.b16 %v780, %v779
      %v890 = vpack.c.b16 %v782, %v781
      %v891 = vpack.c.b16 %v784, %v783
      %v892 = vpack.c.b16 %v786, %v785
      %v893 = vpack.c.b16 %v788, %v787
      %v894 = vpack.c.b16 %v790, %v789
      %v895 = vpack.c.b16 %v792, %v791
      %v896 = vpack.c.b16 %v794, %v793
      %v897 = vpack.c.b16 %v796, %v795
      %v898 = vpack.c.b16 %v798, %v797
      %v899 = vpack.c.b16 %v800, %v799
      %v900 = vpack.c.b16 %v802, %v801
      %v901 = vpack.c.b16 %v804, %v803
      %v902 = vpack.c.b16 %v806, %v805
      %v903 = vpack.c.b16 %v808, %v807
      %v904 = vpack.c.b16 %v810, %v809
      %v905 = vpack.c.b16 %v812, %v811
      %v906 = vpack.c.b16 %v814, %v813
      %v907 = vpack.c.b16 %v816, %v815
      %v908 = vpack.c.b16 %v818, %v817
      %v909 = vpack.c.b16 %v820, %v819
      %v910 = vpack.c.b16 %v822, %v821
      %v911 = vpack.c.b16 %v824, %v823
      %v912 = vpack.c.b16 %v826, %v825
      %v913 = vpack.c.b16 %v828, %v827
      %v914 = vpack.c.b16 %v830, %v829
      %v915 = vpack.c.b16 %v832, %v831
      %v916 = vpack.c.b16 %v834, %v833
      %v917 = vpack.c.b16 %v836, %v835
      %v918 = vpack.c.b16 %v838, %v837
      %v919 = vpack.c.b16 %v840, %v839
      %v920 = vpack.c.b16 %v842, %v841
      %v921 = vpack.c.b16 %v844, %v843
      %v922 = vpack.c.b16 %v846, %v845
      %v923 = vpack.c.b16 %v848, %v847
      %v924 = vpack.c.b16 %v850, %v849
      %v925 = vpack.c.b16 %v852, %v851
      %v926 = vpack.c.b16 %v854, %v853
      %999 = vmatprep.subr.bf16.mxu0 0
      %1000 = vmatpush1.bf16.msra.mxu0 %v862
      %1001 = vmatprep.subr.bf16.mxu0 0
      %1002 = vmatpush1.bf16.msra.mxu0 %v861
      %1003 = vmatprep.subr.bf16.mxu0 0
      %1004 = vmatpush1.bf16.msra.mxu0 %v860
      %1005 = vmatprep.subr.bf16.mxu0 0
      %1006 = vmatpush1.bf16.msra.mxu0 %v859
      %1007 = vmatprep.subr.bf16.mxu0 0
      %1008 = vmatpush1.bf16.msra.mxu0 %v858
      %1009 = vmatprep.subr.bf16.mxu0 0
      %1010 = vmatpush1.bf16.msra.mxu0 %v857
      %1011 = vmatprep.subr.bf16.mxu0 0
      %1012 = vmatpush1.bf16.msra.mxu0 %v856
      %1013 = vmatprep.subr.bf16.mxu0 0
      %1014 = vmatpush1.bf16.msra.mxu0 %v855
      %1015 = vmatprep.subr.bf16.mxu0 0
      %1016 = vmatpush2.bf16.msra.mxu0 %v870
      %1017 = vmatprep.subr.bf16.mxu0 0
      %1018 = vmatpush2.bf16.msra.mxu0 %v869
      %1019 = vmatprep.subr.bf16.mxu0 0
      %1020 = vmatpush2.bf16.msra.mxu0 %v868
      %1021 = vmatprep.subr.bf16.mxu0 0
      %1022 = vmatpush2.bf16.msra.mxu0 %v867
      %1023 = vmatprep.subr.bf16.mxu0 0
      %1024 = vmatpush2.bf16.msra.mxu0 %v866
      %1025 = vmatprep.subr.bf16.mxu0 0
      %1026 = vmatpush2.bf16.msra.mxu0 %v865
      %1027 = vmatprep.subr.bf16.mxu0 0
      %1028 = vmatpush2.bf16.msra.mxu0 %v864
      %1029 = vmatprep.subr.bf16.mxu0 0
      %1030 = vmatpush2.bf16.msra.mxu0 %v863
      %1031 = vmatprep.mubr.bf16.mxu0 %v496
      %1032 = vmatmul.mubr.bf16.gmra.mxu0 %v495
      %v1033 = vpop.f32.mrf.mxu0
      %v1034 = vadd.f32 0.0, %v1033
      %v1035 = vpop.f32.mrf.mxu0
      %v1036 = vpop.f32.mrf.mxu0
      %v1037 = vadd.f32 0.0, %v1036
      %v1038 = vpop.f32.mrf.mxu0
      %1039 = vmatprep.mubr.bf16.mxu0 %v505
      %1040 = vmatmul.mubr.bf16.gmra.mxu0 %v504
      %v1041 = vpop.f32.mrf.mxu0
      %v1042 = vadd.f32 0.0, %v1041
      %v1043 = vpop.f32.mrf.mxu0
      %v1044 = vpop.f32.mrf.mxu0
      %v1045 = vadd.f32 0.0, %v1044
      %v1046 = vpop.f32.mrf.mxu0
      %1047 = vmatprep.mubr.bf16.mxu0 %v514
      %1048 = vmatmul.mubr.bf16.gmra.mxu0 %v513
      %v1049 = vpop.f32.mrf.mxu0
      %v1050 = vadd.f32 0.0, %v1049
      %v1051 = vpop.f32.mrf.mxu0
      %v1052 = vpop.f32.mrf.mxu0
      %v1053 = vadd.f32 0.0, %v1052
      %v1054 = vpop.f32.mrf.mxu0
      %1055 = vmatprep.mubr.bf16.mxu0 %v523
      %1056 = vmatmul.mubr.bf16.gmra.mxu0 %v522
      %v1057 = vpop.f32.mrf.mxu0
      %v1058 = vadd.f32 0.0, %v1057
      %v1059 = vpop.f32.mrf.mxu0
      %v1060 = vpop.f32.mrf.mxu0
      %v1061 = vadd.f32 0.0, %v1060
      %v1062 = vpop.f32.mrf.mxu0
      %1063 = vdwg.mxu0
      %1064 = vmatprep.subr.bf16.mxu0 0
      %1065 = vmatpush1.bf16.msra.mxu0 %v878
      %1066 = vmatprep.subr.bf16.mxu0 0
      %1067 = vmatpush1.bf16.msra.mxu0 %v877
      %1068 = vmatprep.subr.bf16.mxu0 0
      %1069 = vmatpush1.bf16.msra.mxu0 %v876
      %1070 = vmatprep.subr.bf16.mxu0 0
      %1071 = vmatpush1.bf16.msra.mxu0 %v875
      %1072 = vmatprep.subr.bf16.mxu0 0
      %1073 = vmatpush1.bf16.msra.mxu0 %v874
      %1074 = vmatprep.subr.bf16.mxu0 0
      %1075 = vmatpush1.bf16.msra.mxu0 %v873
      %1076 = vmatprep.subr.bf16.mxu0 0
      %1077 = vmatpush1.bf16.msra.mxu0 %v872
      %1078 = vmatprep.subr.bf16.mxu0 0
      %1079 = vmatpush1.bf16.msra.mxu0 %v871
      %1080 = vmatprep.subr.bf16.mxu0 0
      %1081 = vmatpush2.bf16.msra.mxu0 %v886
      %1082 = vmatprep.subr.bf16.mxu0 0
      %1083 = vmatpush2.bf16.msra.mxu0 %v885
      %1084 = vmatprep.subr.bf16.mxu0 0
      %1085 = vmatpush2.bf16.msra.mxu0 %v884
      %1086 = vmatprep.subr.bf16.mxu0 0
      %1087 = vmatpush2.bf16.msra.mxu0 %v883
      %1088 = vmatprep.subr.bf16.mxu0 0
      %1089 = vmatpush2.bf16.msra.mxu0 %v882
      %1090 = vmatprep.subr.bf16.mxu0 0
      %1091 = vmatpush2.bf16.msra.mxu0 %v881
      %1092 = vmatprep.subr.bf16.mxu0 0
      %1093 = vmatpush2.bf16.msra.mxu0 %v880
      %1094 = vmatprep.subr.bf16.mxu0 0
      %1095 = vmatpush2.bf16.msra.mxu0 %v879
      %1096 = vmatprep.mubr.bf16.mxu0 %v498
      %1097 = vmatmul.mubr.bf16.gmra.mxu0 %v497
      %v1098 = vpop.f32.mrf.mxu0
      %v1099 = vadd.f32 %v1034, %v1098
      %v1100 = vpop.f32.mrf.mxu0
      %v1101 = vpop.f32.mrf.mxu0
      %v1102 = vadd.f32 %v1037, %v1101
      %v1103 = vpop.f32.mrf.mxu0
      %1104 = vmatprep.mubr.bf16.mxu0 %v507
      %1105 = vmatmul.mubr.bf16.gmra.mxu0 %v506
      %v1106 = vpop.f32.mrf.mxu0
      %v1107 = vadd.f32 %v1042, %v1106
      %v1108 = vpop.f32.mrf.mxu0
      %v1109 = vpop.f32.mrf.mxu0
      %v1110 = vadd.f32 %v1045, %v1109
      %v1111 = vpop.f32.mrf.mxu0
      %1112 = vmatprep.mubr.bf16.mxu0 %v516
      %1113 = vmatmul.mubr.bf16.gmra.mxu0 %v515
      %v1114 = vpop.f32.mrf.mxu0
      %v1115 = vadd.f32 %v1050, %v1114
      %v1116 = vpop.f32.mrf.mxu0
      %v1117 = vpop.f32.mrf.mxu0
      %v1118 = vadd.f32 %v1053, %v1117
      %v1119 = vpop.f32.mrf.mxu0
      %1120 = vmatprep.mubr.bf16.mxu0 %v525
      %1121 = vmatmul.mubr.bf16.gmra.mxu0 %v524
      %v1122 = vpop.f32.mrf.mxu0
      %v1123 = vadd.f32 %v1058, %v1122
      %v1124 = vpop.f32.mrf.mxu0
      %v1125 = vpop.f32.mrf.mxu0
      %v1126 = vadd.f32 %v1061, %v1125
      %v1127 = vpop.f32.mrf.mxu0
      %1128 = vdwg.mxu0
      %1129 = vmatprep.subr.bf16.mxu0 0
      %1130 = vmatpush1.bf16.msra.mxu0 %v894
      %1131 = vmatprep.subr.bf16.mxu0 0
      %1132 = vmatpush1.bf16.msra.mxu0 %v893
      %1133 = vmatprep.subr.bf16.mxu0 0
      %1134 = vmatpush1.bf16.msra.mxu0 %v892
      %1135 = vmatprep.subr.bf16.mxu0 0
      %1136 = vmatpush1.bf16.msra.mxu0 %v891
      %1137 = vmatprep.subr.bf16.mxu0 0
      %1138 = vmatpush1.bf16.msra.mxu0 %v890
      %1139 = vmatprep.subr.bf16.mxu0 0
      %1140 = vmatpush1.bf16.msra.mxu0 %v889
      %1141 = vmatprep.subr.bf16.mxu0 0
      %1142 = vmatpush1.bf16.msra.mxu0 %v888
      %1143 = vmatprep.subr.bf16.mxu0 0
      %1144 = vmatpush1.bf16.msra.mxu0 %v887
      %1145 = vmatprep.subr.bf16.mxu0 0
      %1146 = vmatpush2.bf16.msra.mxu0 %v902
      %1147 = vmatprep.subr.bf16.mxu0 0
      %1148 = vmatpush2.bf16.msra.mxu0 %v901
      %1149 = vmatprep.subr.bf16.mxu0 0
      %1150 = vmatpush2.bf16.msra.mxu0 %v900
      %1151 = vmatprep.subr.bf16.mxu0 0
      %1152 = vmatpush2.bf16.msra.mxu0 %v899
      %1153 = vmatprep.subr.bf16.mxu0 0
      %1154 = vmatpush2.bf16.msra.mxu0 %v898
      %1155 = vmatprep.subr.bf16.mxu0 0
      %1156 = vmatpush2.bf16.msra.mxu0 %v897
      %1157 = vmatprep.subr.bf16.mxu0 0
      %1158 = vmatpush2.bf16.msra.mxu0 %v896
      %1159 = vmatprep.subr.bf16.mxu0 0
      %1160 = vmatpush2.bf16.msra.mxu0 %v895
      %1161 = vmatprep.mubr.bf16.mxu0 %v500
      %1162 = vmatmul.mubr.bf16.gmra.mxu0 %v499
      %v1163 = vpop.f32.mrf.mxu0
      %v1164 = vadd.f32 %v1099, %v1163
      %v1165 = vpop.f32.mrf.mxu0
      %v1166 = vpop.f32.mrf.mxu0
      %v1167 = vadd.f32 %v1102, %v1166
      %v1168 = vpop.f32.mrf.mxu0
      %1169 = vmatprep.mubr.bf16.mxu0 %v509
      %1170 = vmatmul.mubr.bf16.gmra.mxu0 %v508
      %v1171 = vpop.f32.mrf.mxu0
      %v1172 = vadd.f32 %v1107, %v1171
      %v1173 = vpop.f32.mrf.mxu0
      %v1174 = vpop.f32.mrf.mxu0
      %v1175 = vadd.f32 %v1110, %v1174
      %v1176 = vpop.f32.mrf.mxu0
      %1177 = vmatprep.mubr.bf16.mxu0 %v518
      %1178 = vmatmul.mubr.bf16.gmra.mxu0 %v517
      %v1179 = vpop.f32.mrf.mxu0
      %v1180 = vadd.f32 %v1115, %v1179
      %v1181 = vpop.f32.mrf.mxu0
      %v1182 = vpop.f32.mrf.mxu0
      %v1183 = vadd.f32 %v1118, %v1182
      %v1184 = vpop.f32.mrf.mxu0
      %1185 = vmatprep.mubr.bf16.mxu0 %v527
      %1186 = vmatmul.mubr.bf16.gmra.mxu0 %v526
      %v1187 = vpop.f32.mrf.mxu0
      %v1188 = vadd.f32 %v1123, %v1187
      %v1189 = vpop.f32.mrf.mxu0
      %v1190 = vpop.f32.mrf.mxu0
      %v1191 = vadd.f32 %v1126, %v1190
      %v1192 = vpop.f32.mrf.mxu0
      %1193 = vdwg.mxu0
      %1194 = vmatprep.subr.bf16.mxu0 0
      %1195 = vmatpush1.bf16.msra.mxu0 %v910
      %1196 = vmatprep.subr.bf16.mxu0 0
      %1197 = vmatpush1.bf16.msra.mxu0 %v909
      %1198 = vmatprep.subr.bf16.mxu0 0
      %1199 = vmatpush1.bf16.msra.mxu0 %v908
      %1200 = vmatprep.subr.bf16.mxu0 0
      %1201 = vmatpush1.bf16.msra.mxu0 %v907
      %1202 = vmatprep.subr.bf16.mxu0 0
      %1203 = vmatpush1.bf16.msra.mxu0 %v906
      %1204 = vmatprep.subr.bf16.mxu0 0
      %1205 = vmatpush1.bf16.msra.mxu0 %v905
      %1206 = vmatprep.subr.bf16.mxu0 0
      %1207 = vmatpush1.bf16.msra.mxu0 %v904
      %1208 = vmatprep.subr.bf16.mxu0 0
      %1209 = vmatpush1.bf16.msra.mxu0 %v903
      %1210 = vmatprep.subr.bf16.mxu0 0
      %1211 = vmatpush2.bf16.msra.mxu0 %v918
      %1212 = vmatprep.subr.bf16.mxu0 0
      %1213 = vmatpush2.bf16.msra.mxu0 %v917
      %1214 = vmatprep.subr.bf16.mxu0 0
      %1215 = vmatpush2.bf16.msra.mxu0 %v916
      %1216 = vmatprep.subr.bf16.mxu0 0
      %1217 = vmatpush2.bf16.msra.mxu0 %v915
      %1218 = vmatprep.subr.bf16.mxu0 0
      %1219 = vmatpush2.bf16.msra.mxu0 %v914
      %1220 = vmatprep.subr.bf16.mxu0 0
      %1221 = vmatpush2.bf16.msra.mxu0 %v913
      %1222 = vmatprep.subr.bf16.mxu0 0
      %1223 = vmatpush2.bf16.msra.mxu0 %v912
      %1224 = vmatprep.subr.bf16.mxu0 0
      %1225 = vmatpush2.bf16.msra.mxu0 %v911
      %1226 = vmatprep.mubr.bf16.mxu0 %v502
      %1227 = vmatmul.mubr.bf16.gmra.mxu0 %v501
      %v1228 = vpop.f32.mrf.mxu0
      %v1229 = vadd.f32 %v1164, %v1228
      %v1230 = vpop.f32.mrf.mxu0
      %v1231 = vpop.f32.mrf.mxu0
      %v1232 = vadd.f32 %v1167, %v1231
      %v1233 = vpop.f32.mrf.mxu0
      %1234 = vmatprep.mubr.bf16.mxu0 %v511
      %1235 = vmatmul.mubr.bf16.gmra.mxu0 %v510
      %v1236 = vpop.f32.mrf.mxu0
      %v1237 = vadd.f32 %v1172, %v1236
      %v1238 = vpop.f32.mrf.mxu0
      %v1239 = vpop.f32.mrf.mxu0
      %v1240 = vadd.f32 %v1175, %v1239
      %v1241 = vpop.f32.mrf.mxu0
      %1242 = vmatprep.mubr.bf16.mxu0 %v520
      %1243 = vmatmul.mubr.bf16.gmra.mxu0 %v519
      %v1244 = vpop.f32.mrf.mxu0
      %v1245 = vadd.f32 %v1180, %v1244
      %v1246 = vpop.f32.mrf.mxu0
      %v1247 = vpop.f32.mrf.mxu0
      %v1248 = vadd.f32 %v1183, %v1247
      %v1249 = vpop.f32.mrf.mxu0
      %1250 = vmatprep.mubr.bf16.mxu0 %v529
      %1251 = vmatmul.mubr.bf16.gmra.mxu0 %v528
      %v1252 = vpop.f32.mrf.mxu0
      %v1253 = vadd.f32 %v1188, %v1252
      %v1254 = vpop.f32.mrf.mxu0
      %v1255 = vpop.f32.mrf.mxu0
      %v1256 = vadd.f32 %v1191, %v1255
      %v1257 = vpop.f32.mrf.mxu0
      %1258 = vdwg.mxu0
      %1259 = vmatprep.subr.bf16.mxu0 0
      %1260 = vmatpush1.bf16.msra.mxu0 %v926
      %1261 = vmatprep.subr.bf16.mxu0 0
      %1262 = vmatpush1.bf16.msra.mxu0 %v925
      %1263 = vmatprep.subr.bf16.mxu0 0
      %1264 = vmatpush1.bf16.msra.mxu0 %v924
      %1265 = vmatprep.subr.bf16.mxu0 0
      %1266 = vmatpush1.bf16.msra.mxu0 %v923
      %1267 = vmatprep.subr.bf16.mxu0 0
      %1268 = vmatpush1.bf16.msra.mxu0 %v922
      %1269 = vmatprep.subr.bf16.mxu0 0
      %1270 = vmatpush1.bf16.msra.mxu0 %v921
      %1271 = vmatprep.subr.bf16.mxu0 0
      %1272 = vmatpush1.bf16.msra.mxu0 %v920
      %1273 = vmatprep.subr.bf16.mxu0 0
      %1274 = vmatpush1.bf16.msra.mxu0 %v919
      %1275 = vmatprep.subr.bf16.mxu0 0
      %1276 = vmatpush2.bf16.msra.mxu0 0
      %1277 = vmatprep.subr.bf16.mxu0 0
      %1278 = vmatpush2.bf16.msra.mxu0 0
      %1279 = vmatprep.subr.bf16.mxu0 0
      %1280 = vmatpush2.bf16.msra.mxu0 0
      %1281 = vmatprep.subr.bf16.mxu0 0
      %1282 = vmatpush2.bf16.msra.mxu0 0
      %1283 = vmatprep.subr.bf16.mxu0 0
      %1284 = vmatpush2.bf16.msra.mxu0 0
      %1285 = vmatprep.subr.bf16.mxu0 0
      %1286 = vmatpush2.bf16.msra.mxu0 0
      %1287 = vmatprep.subr.bf16.mxu0 0
      %1288 = vmatpush2.bf16.msra.mxu0 0
      %1289 = vmatprep.subr.bf16.mxu0 0
      %1290 = vmatpush2.bf16.msra.mxu0 0
      %1291 = vmatprep.mubr.bf16.mxu0 0
      %1292 = vmatmul.mubr.bf16.gmra.mxu0 %v503
      %v1293 = vpop.f32.mrf.mxu0
      %v1294 = vadd.f32 %v1229, %v1293
      %v1295 = vpop.f32.mrf.mxu0
      %v1296 = vpop.f32.mrf.mxu0
      %v1297 = vadd.f32 %v1232, %v1296
      %v1298 = vpop.f32.mrf.mxu0
      %1299 = vmatprep.mubr.bf16.mxu0 0
      %1300 = vmatmul.mubr.bf16.gmra.mxu0 %v512
      %v1301 = vpop.f32.mrf.mxu0
      %v1302 = vadd.f32 %v1237, %v1301
      %v1303 = vpop.f32.mrf.mxu0
      %v1304 = vpop.f32.mrf.mxu0
      %v1305 = vadd.f32 %v1240, %v1304
      %v1306 = vpop.f32.mrf.mxu0
      %1307 = vmatprep.mubr.bf16.mxu0 0
      %1308 = vmatmul.mubr.bf16.gmra.mxu0 %v521
      %v1309 = vpop.f32.mrf.mxu0
      %v1310 = vadd.f32 %v1245, %v1309
      %v1311 = vpop.f32.mrf.mxu0
      %v1312 = vpop.f32.mrf.mxu0
      %v1313 = vadd.f32 %v1248, %v1312
      %v1314 = vpop.f32.mrf.mxu0
      %1315 = vmatprep.mubr.bf16.mxu0 0
      %1316 = vmatmul.mubr.bf16.gmra.mxu0 %v530
      %v1317 = vpop.f32.mrf.mxu0
      %v1318 = vadd.f32 %v1253, %v1317
      %v1319 = vpop.f32.mrf.mxu0
      %v1320 = vpop.f32.mrf.mxu0
      %v1321 = vadd.f32 %v1256, %v1320
      %v1322 = vpop.f32.mrf.mxu0
      %1323 = vdwg.mxu0
      %1324 = vst [vmem:[#allocation2] sm:$0xff] %v1294
      %1325 = vst [vmem:[#allocation2 + $0x8] sm:$0xff] %v1297
      %1326 = vst [vmem:[#allocation2 + $0x10] sm:$0xff] %v1302
      %1327 = vst [vmem:[#allocation2 + $0x18] sm:$0xff] %v1305
      %1328 = vst [vmem:[#allocation2 + $0x20] sm:$0xff] %v1310
      %1329 = vst [vmem:[#allocation2 + $0x28] sm:$0xff] %v1313
      %1330 = vst [vmem:[#allocation2 + $0x30] sm:$0xff] %v1318
      %1331 = vst [vmem:[#allocation2 + $0x38] sm:$0xff] %v1321
      %v1332 = vld [vmem:[#allocation2] sm:$0xff]
      %v1333 = vld [vmem:[#allocation2 + $0x8] sm:$0xff]
      %v1334 = vld [vmem:[#allocation2 + $0x10] sm:$0xff]
      %v1335 = vld [vmem:[#allocation2 + $0x18] sm:$0xff]
      %v1336 = vld [vmem:[#allocation2 + $0x20] sm:$0xff]
      %v1337 = vld [vmem:[#allocation2 + $0x28] sm:$0xff]
      %v1338 = vld [vmem:[#allocation2 + $0x30] sm:$0xff]
      %v1339 = vld [vmem:[#allocation2 + $0x38] sm:$0xff]
      %v1340 = vld [vmem:[%s2] sm:$0x1]
      %v1342 = vlaneseq
      %v1343 = vshrl.u32 %v1342, 7
      %v1344 = vsub.s32 0, %v1343
      %v1345 = vrot.slane %v1340, %v1344
      %v1347 = vadd.f32 %v1332, %v1345
      %v1348 = vadd.f32 %v1333, %v1345
      %v1349 = vadd.f32 %v1334, %v1345
      %v1350 = vadd.f32 %v1335, %v1345
      %v1351 = vadd.f32 %v1336, %v1345
      %v1352 = vadd.f32 %v1337, %v1345
      %v1353 = vadd.f32 %v1338, %v1345
      %v1354 = vadd.f32 %v1339, %v1345
      %v1355 = vmax.f32 %v1347, 0.0
      %v1356 = vmax.f32 %v1348, 0.0
      %v1357 = vmax.f32 %v1349, 0.0
      %v1358 = vmax.f32 %v1350, 0.0
      %v1359 = vmax.f32 %v1351, 0.0
      %v1360 = vmax.f32 %v1352, 0.0
      %v1361 = vmax.f32 %v1353, 0.0
      %v1362 = vmax.f32 %v1354, 0.0
      %v1363 = vpack.c.bf16 %v1355, %v1355
      %v1364 = vpack.c.bf16 %v1356, %v1356
      %v1365 = vpack.c.bf16 %v1357, %v1357
      %v1366 = vpack.c.bf16 %v1358, %v1358
      %v1367 = vpack.c.bf16 %v1359, %v1359
      %v1368 = vpack.c.bf16 %v1360, %v1360
      %v1369 = vpack.c.bf16 %v1361, %v1361
      %v1370 = vpack.c.bf16 %v1362, %v1362
      %1371 = vst [vmem:[%s192] sm:$0xf] %v1363
      %1372 = vst [vmem:[%s192 + $0x4] sm:$0xf] %v1364
      %1373 = vst [vmem:[%s192 + $0x8] sm:$0xf] %v1365
      %1374 = vst [vmem:[%s192 + $0xc] sm:$0xf] %v1366
      %1375 = vst [vmem:[%s192 + $0x10] sm:$0xf] %v1367
      %1376 = vst [vmem:[%s192 + $0x14] sm:$0xf] %v1368
      %1377 = vst [vmem:[%s192 + $0x18] sm:$0xf] %v1369
      %1378 = vst [vmem:[%s192 + $0x1c] sm:$0xf] %v1370
      %s1379 = smul.u32 8, %s19
      %p1380 = scmp.lt.s32.totalorder %s18, 1
      %s1381 = scalar_select %p1380, %s18, 1
      %p1382 = scmp.lt.s32.totalorder %s1379, 7
      %s1383 = scalar_select %p1382, %s1379, 7
      %s1384 = smul.addr %s1381, 8
      %s1385 = sadd.s32 %s1383, %s1384
      %s1386 = smul.addr %s1385, 4
      %s1387 = scalar_lea.vmem %s3, %s1386
      // Predicated region
      $region33: #{_lambda_.4} parent=31 // pred_check
        %p1388 = pneg %p114
      $region34: #{_lambda_.4} parent=31 // pred_check_branch
        %1390 = sbr.rel (%p1388) target = $region36
      $region35: #{_lambda_.4} parent=31 // pred_region
        %s1391 = smul.u32 8, %s19
      $region36: #{_lambda_.4} parent=31 // pred_fallthru
        _
    $region32: #{_lambda_.4} parent=5 // pred_fallthru
      _
    %p1392 = scmp.le.s32.totalorder 2, %s9
    // Predicated region
    $region37: #{_lambda_.4} parent=5 // pred_check
      %p1393 = pneg %p1392
    $region38: #{_lambda_.4} parent=5 // pred_check_branch
      %1395 = sbr.rel (%p1393) target = $region40
    $region39: #{_lambda_.4} parent=5 // pred_region
      %s1396 = ssub.s32 %s9, 2
      // Predicated region
      $region41: #{_lambda_.4} parent=39 // pred_check
        %p1397 = pneg %p120
      $region42: #{_lambda_.4} parent=39 // pred_check_branch
        %1399 = sbr.rel (%p1397) target = $region44
      $region43: #{_lambda_.4} parent=39 // pred_region
        %s1400 = smul.u32 8, %s21
        %p1401 = scmp.lt.s32.totalorder %s20, 1
        %s1402 = scalar_select %p1401, %s20, 1
        %p1403 = scmp.lt.s32.totalorder %s1400, 7
        %s1404 = scalar_select %p1403, %s1400, 7
        %s1405 = smul.addr %s1402, 8
        %s1406 = sadd.s32 %s1404, %s1405
        %s1407 = smul.addr %s1406, 4
        %s1408 = scalar_lea.vmem %s3, %s1407
      $region44: #{_lambda_.4} parent=39 // pred_fallthru
        _
    $region40: #{_lambda_.4} parent=5 // pred_fallthru
      _
  $region6: #{_lambda_.4} parent=0 // loop_footer
    %s13 = sadd.s32 1, %s9
  $region7: #{_lambda_.4} parent=0 // loop_footer_branch
    %8 = sbr.rel target = $region3
  $region8: #{_lambda_.4} parent=0 // loop_exit
    _

// kernel: _lambda_.5
$region0: #{_lambda_.5}
  #allocation0 [shape = 'u32[]', space=smem, size = 0x4, offset = 0x4, fixed_abs, tag = 'smem constant byte address 0x4 - core index']
  #allocation1 [shape = 'u32[144,128]{1,0:T(1,128)}', space=vmem, size = 0x12000, scoped, tag = 'internal scratch']
  #allocation2 [shape = 'f32[64,128]{1,0:T(8,128)}', space=vmem, size = 0x8000, scoped, tag = 'scratch operand']
  %s0 = inlined_call_operand.vmem [shape: bf16[2,10,10,128], index: 0, kind: input, shape index: {}]
  %s1 = inlined_call_operand.vmem [shape: bf16[9,128,128], index: 1, kind: input, shape index: {}]
  %s2 = inlined_call_operand.vmem [shape: f32[1,128], index: 2, kind: input, shape index: {}]
  %s3 = inlined_call_operand.vmem [shape: bf16[2,8,8,128], index: 3, kind: input, shape index: {}]
  %s4 = inlined_call_operand.vmem [shape: bf16[128,128], index: 4, kind: input, shape index: {}]
  %s5 = inlined_call_operand.vmem [shape: f32[1,128], index: 5, kind: input, shape index: {}]
  %s6 = inlined_call_operand.vmem [shape: bf16[2,8,8,128], index: 6, kind: output, shape index: {}]
  %s7 = sld [smem:[#allocation0]]
  $region57: #{_lambda_.5} parent=0
    _
  %s9 = ssub.s32 1, %s7
  %s10 = scalar_select 0, %s9, %s7
  loop: start=0, step=1, limit=4
  $region2: #{_lambda_.5} parent=0 // loop_pre_header
    _
  $region3: #{_lambda_.5} parent=0 // loop_header
    %s12 = sphi 0, %s16
    %p13 = scmp.ge.s32.totalorder %s12, 4
    %s19 = sphi 0, %s31
    %s20 = sphi 0, %s27
    %s21 = sphi 0, %s19
    %s22 = sphi 0, %s20
    %s23 = sphi 0, %s21
    %s24 = sphi 0, %s22
    %s34 = sphi 0, %s36
    %s37 = sphi 0, %s34
    %s38 = sphi 0, %s37
    %s54 = sphi 0, %s38
    %s58 = sphi 0, %s58
    %s60 = sphi 0, %s58
    %s61 = sphi 0, %s60
    %s75 = sphi 0, %s61
    %s79 = sphi 0, %s79
    %s81 = sphi 0, %s79
    %s82 = sphi 0, %s81
    %s96 = sphi 0, %s82
    %s104 = sphi 0, %s106
    %s107 = sphi 0, %s104
    %s108 = sphi 0, %s107
    %s124 = sphi 0, %s108
    %s128 = sphi 0, %s128
    %s130 = sphi 0, %s128
    %s131 = sphi 0, %s130
    %s145 = sphi 0, %s131
    %s149 = sphi 0, %s149
    %s151 = sphi 0, %s149
    %s152 = sphi 0, %s151
    %s166 = sphi 0, %s152
    %s174 = sphi 0, %s176
    %s177 = sphi 0, %s174
    %s178 = sphi 0, %s177
    %s194 = sphi 0, %s178
  $region4: #{_lambda_.5} parent=0 // loop_header_branch
    %15 = sbr.rel (%p13) target = $region8
  $region5: #{_lambda_.5} parent=0 // loop_body
    %s17 = ssub.s32 %s12, 1
    %s18 = ssub.s32 %s12, 2
    %s25 = sadd.s32 1, %s20
    %p26 = scmp.ge.s32.totalorder %s25, 1
    %s27 = scalar_select %p26, 0, %s25
    %s28 = sadd.s32 1, %s19
    %s29 = scalar_select %p26, %s28, %s19
    %p30 = scmp.ge.s32.totalorder %s29, 2
    %s31 = scalar_select %p30, 0, %s29
    %s32 = ssub.s32 %s19, %s31
    %p33 = scmp.eq.s32.totalorder %s32, 0
    %s35 = sadd.s32 %s34, 1
    %s36 = scalar_select %p33, %s34, %s35
    %p39 = pneg %p33
    %p40 = scmp.eq.s32.totalorder %s12, 1
    %p41 = por %p39, %p40
    %p42 = scmp.ne.s32.totalorder %s34, %s37
    %p43 = scmp.eq.s32.totalorder %s12, 0
    %p44 = por %p42, %p43
    %p45 = scmp.ne.s32.totalorder %s34, %s37
    %p46 = scmp.eq.s32.totalorder %s17, 1
    %p47 = por %p45, %p46
    %p48 = scmp.ne.s32.totalorder %s37, %s38
    %p49 = scmp.eq.s32.totalorder %s17, 0
    %p50 = por %p48, %p49
    %p51 = scmp.ne.s32.totalorder %s37, %s38
    %p52 = scmp.eq.s32.totalorder %s18, 1
    %p53 = por %p51, %p52
    %p55 = scmp.ne.s32.totalorder %s38, %s54
    %p56 = scmp.eq.s32.totalorder %s18, 0
    %p57 = por %p55, %p56
    %s59 = sadd.s32 %s58, 1
    %p62 = scmp.eq.s32.totalorder %s12, 1
    %p63 = scmp.ne.s32.totalorder %s58, %s60
    %p64 = scmp.eq.s32.totalorder %s12, 0
    %p65 = por %p63, %p64
    %p66 = scmp.ne.s32.totalorder %s58, %s60
    %p67 = scmp.eq.s32.totalorder %s17, 1
    %p68 = por %p66, %p67
    %p69 = scmp.ne.s32.totalorder %s60, %s61
    %p70 = scmp.eq.s32.totalorder %s17, 0
    %p71 = por %p69, %p70
    %p72 = scmp.ne.s32.totalorder %s60, %s61
    %p73 = scmp.eq.s32.totalorder %s18, 1
    %p74 = por %p72, %p73
    %p76 = scmp.ne.s32.totalorder %s61, %s75
    %p77 = scmp.eq.s32.totalorder %s18, 0
    %p78 = por %p76, %p77
    %s80 = sadd.s32 %s79, 1
    %p83 = scmp.eq.s32.totalorder %s12, 1
    %p84 = scmp.ne.s32.totalorder %s79, %s81
    %p85 = scmp.eq.s32.totalorder %s12, 0
    %p86 = por %p84, %p85
    %p87 = scmp.ne.s32.totalorder %s79, %s81
    %p88 = scmp.eq.s32.totalorder %s17, 1
    %p89 = por %p87, %p88
    %p90 = scmp.ne.s32.totalorder %s81, %s82
    %p91 = scmp.eq.s32.totalorder %s17, 0
    %p92 = por %p90, %p91
    %p93 = scmp.ne.s32.totalorder %s81, %s82
    %p94 = scmp.eq.s32.totalorder %s18, 1
    %p95 = por %p93, %p94
    %p97 = scmp.ne.s32.totalorder %s82, %s96
    %p98 = scmp.eq.s32.totalorder %s18, 0
    %p99 = por %p97, %p98
    %s100 = ssub.s32 %s19, %s31
    %s101 = ssub.s32 %s20, %s27
    %s102 = sor.u32 %s100, %s101
    %p103 = scmp.eq.s32.totalorder %s102, 0
    %s105 = sadd.s32 %s104, 1
    %s106 = scalar_select %p103, %s104, %s105
    %p109 = pneg %p103
    %p110 = scmp.eq.s32.totalorder %s12, 1
    %p111 = por %p109, %p110
    %p112 = scmp.ne.s32.totalorder %s104, %s107
    %p113 = scmp.eq.s32.totalorder %s12, 0
    %p114 = por %p112, %p113
    %p115 = scmp.ne.s32.totalorder %s104, %s107
    %p116 = scmp.eq.s32.totalorder %s17, 1
    %p117 = por %p115, %p116
    %p118 = scmp.ne.s32.totalorder %s107, %s108
    %p119 = scmp.eq.s32.totalorder %s17, 0
    %p120 = por %p118, %p119
    %p121 = scmp.ne.s32.totalorder %s107, %s108
    %p122 = scmp.eq.s32.totalorder %s18, 1
    %p123 = por %p121, %p122
    %p125 = scmp.ne.s32.totalorder %s108, %s124
    %p126 = scmp.eq.s32.totalorder %s18, 0
    %p127 = por %p125, %p126
    %s129 = sadd.s32 %s128, 1
    %p132 = scmp.eq.s32.totalorder %s12, 1
    %p133 = scmp.ne.s32.totalorder %s128, %s130
    %p134 = scmp.eq.s32.totalorder %s12, 0
    %p135 = por %p133, %p134
    %p136 = scmp.ne.s32.totalorder %s128, %s130
    %p137 = scmp.eq.s32.totalorder %s17, 1
    %p138 = por %p136, %p137
    %p139 = scmp.ne.s32.totalorder %s130, %s131
    %p140 = scmp.eq.s32.totalorder %s17, 0
    %p141 = por %p139, %p140
    %p142 = scmp.ne.s32.totalorder %s130, %s131
    %p143 = scmp.eq.s32.totalorder %s18, 1
    %p144 = por %p142, %p143
    %p146 = scmp.ne.s32.totalorder %s131, %s145
    %p147 = scmp.eq.s32.totalorder %s18, 0
    %p148 = por %p146, %p147
    %s150 = sadd.s32 %s149, 1
    %p153 = scmp.eq.s32.totalorder %s12, 1
    %p154 = scmp.ne.s32.totalorder %s149, %s151
    %p155 = scmp.eq.s32.totalorder %s12, 0
    %p156 = por %p154, %p155
    %p157 = scmp.ne.s32.totalorder %s149, %s151
    %p158 = scmp.eq.s32.totalorder %s17, 1
    %p159 = por %p157, %p158
    %p160 = scmp.ne.s32.totalorder %s151, %s152
    %p161 = scmp.eq.s32.totalorder %s17, 0
    %p162 = por %p160, %p161
    %p163 = scmp.ne.s32.totalorder %s151, %s152
    %p164 = scmp.eq.s32.totalorder %s18, 1
    %p165 = por %p163, %p164
    %p167 = scmp.ne.s32.totalorder %s152, %s166
    %p168 = scmp.eq.s32.totalorder %s18, 0
    %p169 = por %p167, %p168
    %s170 = ssub.s32 %s19, %s31
    %s171 = ssub.s32 %s20, %s27
    %s172 = sor.u32 %s170, %s171
    %p173 = scmp.eq.s32.totalorder %s172, 0
    %s175 = sadd.s32 %s174, 1
    %s176 = scalar_select %p173, %s174, %s175
    %p179 = pneg %p173
    %p180 = scmp.eq.s32.totalorder %s12, 1
    %p181 = por %p179, %p180
    %p182 = scmp.ne.s32.totalorder %s174, %s177
    %p183 = scmp.eq.s32.totalorder %s12, 0
    %p184 = por %p182, %p183
    %p185 = scmp.ne.s32.totalorder %s174, %s177
    %p186 = scmp.eq.s32.totalorder %s17, 1
    %p187 = por %p185, %p186
    %p188 = scmp.ne.s32.totalorder %s177, %s178
    %p189 = scmp.eq.s32.totalorder %s17, 0
    %p190 = por %p188, %p189
    %p191 = scmp.ne.s32.totalorder %s177, %s178
    %p192 = scmp.eq.s32.totalorder %s18, 1
    %p193 = por %p191, %p192
    %p195 = scmp.ne.s32.totalorder %s178, %s194
    %p196 = scmp.eq.s32.totalorder %s18, 0
    %p197 = por %p195, %p196
    %p198 = scmp.le.s32.totalorder 1, %s12
    %p199 = scmp.lt.s32.totalorder %s12, 3
    %p200 = pnand %p198, %p199
    %p201 = pneg %p200
    // Predicated region
    $region9: #{_lambda_.5} parent=5 // pred_check
      _
    $region10: #{_lambda_.5} parent=5 // pred_check_branch
      %203 = sbr.rel (%p200) target = $region12
    $region11: #{_lambda_.5} parent=5 // pred_region
      %s204 = ssub.s32 %s12, 1
      // Predicated region
      $region13: #{_lambda_.5} parent=11 // pred_check
        %p205 = pneg %p71
      $region14: #{_lambda_.5} parent=11 // pred_check_branch
        %207 = sbr.rel (%p205) target = $region16
      $region15: #{_lambda_.5} parent=11 // pred_region
        _
      $region16: #{_lambda_.5} parent=11 // pred_fallthru
        _
      // Predicated region
      $region17: #{_lambda_.5} parent=11 // pred_check
        %p208 = pneg %p92
      $region18: #{_lambda_.5} parent=11 // pred_check_branch
        %210 = sbr.rel (%p208) target = $region20
      $region19: #{_lambda_.5} parent=11 // pred_region
        _
      $region20: #{_lambda_.5} parent=11 // pred_fallthru
        _
      // Predicated region
      $region21: #{_lambda_.5} parent=11 // pred_check
        %p211 = pneg %p141
      $region22: #{_lambda_.5} parent=11 // pred_check_branch
        %213 = sbr.rel (%p211) target = $region24
      $region23: #{_lambda_.5} parent=11 // pred_region
        _
      $region24: #{_lambda_.5} parent=11 // pred_fallthru
        _
      // Predicated region
      $region25: #{_lambda_.5} parent=11 // pred_check
        %p214 = pneg %p162
      $region26: #{_lambda_.5} parent=11 // pred_check_branch
        %216 = sbr.rel (%p214) target = $region28
      $region27: #{_lambda_.5} parent=11 // pred_region
        _
      $region28: #{_lambda_.5} parent=11 // pred_fallthru
        _
    $region12: #{_lambda_.5} parent=5 // pred_fallthru
      _
    %p217 = scmp.lt.s32.totalorder %s12, 2
    // Predicated region
    $region29: #{_lambda_.5} parent=5 // pred_check
      %p218 = pneg %p217
    $region30: #{_lambda_.5} parent=5 // pred_check_branch
      %220 = sbr.rel (%p218) target = $region32
    $region31: #{_lambda_.5} parent=5 // pred_region
      // Predicated region
      $region33: #{_lambda_.5} parent=31 // pred_check
        %p221 = pneg %p44
      $region34: #{_lambda_.5} parent=31 // pred_check_branch
        %223 = sbr.rel (%p221) target = $region36
      $region35: #{_lambda_.5} parent=31 // pred_region
        %p224 = scmp.lt.s32.totalorder %s19, 1
        %s225 = scalar_select %p224, %s19, 1
        %s226 = smul.addr %s225, 20
        %s227 = smul.addr %s226, 4
        %s228 = scalar_lea.vmem %s0, %s227
      $region36: #{_lambda_.5} parent=31 // pred_fallthru
        _
      // Predicated region
      $region37: #{_lambda_.5} parent=31 // pred_check
        %p229 = pneg %p114
      $region38: #{_lambda_.5} parent=31 // pred_check_branch
        %231 = sbr.rel (%p229) target = $region40
      $region39: #{_lambda_.5} parent=31 // pred_region
        %s232 = smul.u32 8, %s20
        %p233 = scmp.lt.s32.totalorder %s19, 1
        %s234 = scalar_select %p233, %s19, 1
        %p235 = scmp.lt.s32.totalorder %s232, 7
        %s236 = scalar_select %p235, %s232, 7
        %s237 = smul.addr %s234, 8
        %s238 = sadd.s32 %s236, %s237
        %s239 = smul.addr %s238, 4
        %s240 = scalar_lea.vmem %s3, %s239
        %s241 = smul.u32 8, %s20
      $region40: #{_lambda_.5} parent=31 // pred_fallthru
        _
    $region32: #{_lambda_.5} parent=5 // pred_fallthru
      _
    %p242 = scmp.le.s32.totalorder 1, %s12
    %p243 = scmp.lt.s32.totalorder %s12, 3
    %p244 = pnand %p242, %p243
    %p245 = pneg %p244
    // Predicated region
    $region41: #{_lambda_.5} parent=5 // pred_check
      _
    $region42: #{_lambda_.5} parent=5 // pred_check_branch
      %247 = sbr.rel (%p244) target = $region44
    $region43: #{_lambda_.5} parent=5 // pred_region
      %s248 = ssub.s32 %s12, 1
      %p249 = scmp.lt.s32.totalorder %s21, 1
      %s250 = scalar_select %p249, %s21, 1
      %s251 = smul.addr %s250, 20
      %s252 = smul.addr %s251, 4
      %s253 = scalar_lea.vmem %s0, %s252
      %p254 = pneg %p50
      %p255 = pneg %p47
      %p256 = pneg %p71
      %p257 = pneg %p68
      %p258 = pneg %p92
      %p259 = pneg %p89
      %s260 = smul.u32 8, %s22
      %p261 = scmp.lt.s32.totalorder %s21, 1
      %s262 = scalar_select %p261, %s21, 1
      %p263 = scmp.lt.s32.totalorder %s260, 7
      %s264 = scalar_select %p263, %s260, 7
      %s265 = smul.addr %s262, 8
      %s266 = sadd.s32 %s264, %s265
      %s267 = smul.addr %s266, 4
      %s268 = scalar_lea.vmem %s3, %s267
      %p269 = pneg %p120
      %p270 = pneg %p117
      %p271 = pneg %p141
      %p272 = pneg %p138
      %p273 = pneg %p162
      %p274 = pneg %p159
      %p275 = pneg %p190
      %p276 = pneg %p187
      %s277 = smul.u32 8, %s22
      %p278 = scmp.lt.s32.totalorder %s21, 1
      %s279 = scalar_select %p278, %s21, 1
      %p280 = scmp.lt.s32.totalorder %s277, 7
      %s281 = scalar_select %p280, %s277, 7
      %s282 = smul.addr %s279, 8
      %s283 = sadd.s32 %s281, %s282
      %s284 = smul.addr %s283, 4
      %s285 = scalar_lea.vmem %s6, %s284
      %p286 = scmp.lt.s32.totalorder %s21, 1
      %s287 = scalar_select %p286, %s21, 1
      %s288 = smul.addr %s287, 20
      %s289 = smul.addr %s288, 4
      %s290 = scalar_lea.vmem %s0, %s289
      %s291 = smul.u32 8, %s22
      %p292 = scmp.lt.s32.totalorder %s21, 1
      %s293 = scalar_select %p292, %s21, 1
      %p294 = scmp.lt.s32.totalorder %s291, 7
      %s295 = scalar_select %p294, %s291, 7
      %s296 = smul.addr %s293, 8
      %s297 = sadd.s32 %s295, %s296
      %s298 = smul.addr %s297, 4
      %s299 = scalar_lea.vmem %s3, %s298
      %s300 = smul.u32 8, %s22
      %s301 = smul.u32 8, %s22
      %p302 = scmp.lt.s32.totalorder %s21, 1
      %s303 = scalar_select %p302, %s21, 1
      %p304 = scmp.lt.s32.totalorder %s301, 7
      %s305 = scalar_select %p304, %s301, 7
      %s306 = smul.addr %s303, 8
      %s307 = sadd.s32 %s305, %s306
      %s308 = smul.addr %s307, 4
      %s309 = scalar_lea.vmem %s6, %s308
      %s310 = smul.u32 8, %s22
      %s312 = smul.u32 %s22, 8
      %s313 = smul.u32 %s312, 2
      %s314 = smul.addr %s313, 4
      %s315 = scalar_lea.vmem %s290, %s314
      %v316 = vld [vmem:[%s315] sm:$0xf]
      %v317 = vld [vmem:[%s315 + $0x8] sm:$0xf]
      %v318 = vld [vmem:[%s315 + $0x10] sm:$0xf]
      %v319 = vld [vmem:[%s315 + $0x18] sm:$0xf]
      %v320 = vld [vmem:[%s315 + $0x20] sm:$0xf]
      %v321 = vld [vmem:[%s315 + $0x28] sm:$0xf]
      %v322 = vld [vmem:[%s315 + $0x30] sm:$0xf]
      %v323 = vld [vmem:[%s315 + $0x38] sm:$0xf]
      %v324 = vld [vmem:[%s1] sm:$0xf]
      %v325 = vld [vmem:[%s1 + $0x4] sm:$0xf]
      %v326 = vld [vmem:[%s1 + $0x8] sm:$0xf]
      %v327 = vld [vmem:[%s1 + $0xc] sm:$0xf]
      %v328 = vld [vmem:[%s1 + $0x10] sm:$0xf]
      %v329 = vld [vmem:[%s1 + $0x14] sm:$0xf]
      %v330 = vld [vmem:[%s1 + $0x18] sm:$0xf]
      %v331 = vld [vmem:[%s1 + $0x1c] sm:$0xf]
      %v332 = vld [vmem:[%s1 + $0x20] sm:$0xf]
      %v333 = vld [vmem:[%s1 + $0x24] sm:$0xf]
      %v334 = vld [vmem:[%s1 + $0x28] sm:$0xf]
      %v335 = vld [vmem:[%s1 + $0x2c] sm:$0xf]
      %v336 = vld [vmem:[%s1 + $0x30] sm:$0xf]
      %v337 = vld [vmem:[%s1 + $0x34] sm:$0xf]
      %v338 = vld [vmem:[%s1 + $0x38] sm:$0xf]
      %v339 = vld [vmem:[%s1 + $0x3c] sm:$0xf]
      %v348 = vunpack.c.l.b16 %v316
      %v349 = vunpack.c.l.b16 %v317
      %v350 = vunpack.c.l.b16 %v318
      %v351 = vunpack.c.l.b16 %v319
      %v352 = vunpack.c.l.b16 %v320
      %v353 = vunpack.c.l.b16 %v321
      %v354 = vunpack.c.l.b16 %v322
      %v355 = vunpack.c.l.b16 %v323
      %v356 = vpack.c.b16 %v349, %v348
      %v357 = vpack.c.b16 %v351, %v350
      %v358 = vpack.c.b16 %v353, %v352
      %v359 = vpack.c.b16 %v355, %v354
      %v380 = vunpack.c.l.b16 %v324
      %v381 = vunpack.c.l.b16 %v325
      %v382 = vunpack.c.l.b16 %v326
      %v383 = vunpack.c.l.b16 %v327
      %v384 = vunpack.c.l.b16 %v328
      %v385 = vunpack.c.l.b16 %v329
      %v386 = vunpack.c.l.b16 %v330
      %v387 = vunpack.c.l.b16 %v331
      %v388 = vunpack.c.l.b16 %v332
      %v389 = vunpack.c.l.b16 %v333
      %v390 = vunpack.c.l.b16 %v334
      %v391 = vunpack.c.l.b16 %v335
      %v392 = vunpack.c.l.b16 %v336
      %v393 = vunpack.c.l.b16 %v337
      %v394 = vunpack.c.l.b16 %v338
      %v395 = vunpack.c.l.b16 %v339
      %v396 = vpack.c.b16 %v381, %v380
      %v397 = vpack.c.b16 %v383, %v382
      %v398 = vpack.c.b16 %v385, %v384
      %v399 = vpack.c.b16 %v387, %v386
      %v400 = vpack.c.b16 %v389, %v388
      %v401 = vpack.c.b16 %v391, %v390
      %v402 = vpack.c.b16 %v393, %v392
      %v403 = vpack.c.b16 %v395, %v394
      %412 = vmatprep.subr.bf16.mxu0 0
      %413 = vmatpush1.bf16.msra.mxu0 %v403
      %414 = vmatprep.subr.bf16.mxu0 0
      %415 = vmatpush1.bf16.msra.mxu0 %v402
      %416 = vmatprep.subr.bf16.mxu0 0
      %417 = vmatpush1.bf16.msra.mxu0 %v401
      %418 = vmatprep.subr.bf16.mxu0 0
      %419 = vmatpush1.bf16.msra.mxu0 %v400
      %420 = vmatprep.subr.bf16.mxu0 0
      %421 = vmatpush1.bf16.msra.mxu0 %v399
      %422 = vmatprep.subr.bf16.mxu0 0
      %423 = vmatpush1.bf16.msra.mxu0 %v398
      %424 = vmatprep.subr.bf16.mxu0 0
      %425 = vmatpush1.bf16.msra.mxu0 %v397
      %426 = vmatprep.subr.bf16.mxu0 0
      %427 = vmatpush1.bf16.msra.mxu0 %v396
      %428 = vmatprep.subr.bf16.mxu0 0
      %429 = vmatpush2.bf16.msra.mxu0 0
      %430 = vmatprep.subr.bf16.mxu0 0
      %431 = vmatpush2.bf16.msra.mxu0 0
      %432 = vmatprep.subr.bf16.mxu0 0
      %433 = vmatpush2.bf16.msra.mxu0 0
      %434 = vmatprep.subr.bf16.mxu0 0
      %435 = vmatpush2.bf16.msra.mxu0 0
      %436 = vmatprep.subr.bf16.mxu0 0
      %437 = vmatpush2.bf16.msra.mxu0 0
      %438 = vmatprep.subr.bf16.mxu0 0
      %439 = vmatpush2.bf16.msra.mxu0 0
      %440 = vmatprep.subr.bf16.mxu0 0
      %441 = vmatpush2.bf16.msra.mxu0 0
      %442 = vmatprep.subr.bf16.mxu0 0
      %443 = vmatpush2.bf16.msra.mxu0 0
      %444 = vmatprep.mubr.bf16.mxu0 0
      %445 = vmatmul.mubr.bf16.gmra.mxu0 %v356
      %v446 = vpop.f32.mrf.mxu0
      %v447 = vadd.f32 0.0, %v446
      %v448 = vpop.f32.mrf.mxu0
      %v449 = vpop.f32.mrf.mxu0
      %v450 = vadd.f32 0.0, %v449
      %v451 = vpop.f32.mrf.mxu0
      %452 = vmatprep.mubr.bf16.mxu0 0
      %453 = vmatmul.mubr.bf16.gmra.mxu0 %v357
      %v454 = vpop.f32.mrf.mxu0
      %v455 = vadd.f32 0.0, %v454
      %v456 = vpop.f32.mrf.mxu0
      %v457 = vpop.f32.mrf.mxu0
      %v458 = vadd.f32 0.0, %v457
      %v459 = vpop.f32.mrf.mxu0
      %460 = vmatprep.mubr.bf16.mxu0 0
      %461 = vmatmul.mubr.bf16.gmra.mxu0 %v358
      %v462 = vpop.f32.mrf.mxu0
      %v463 = vadd.f32 0.0, %v462
      %v464 = vpop.f32.mrf.mxu0
      %v465 = vpop.f32.mrf.mxu0
      %v466 = vadd.f32 0.0, %v465
      %v467 = vpop.f32.mrf.mxu0
      %468 = vmatprep.mubr.bf16.mxu0 0
      %469 = vmatmul.mubr.bf16.gmra.mxu0 %v359
      %v470 = vpop.f32.mrf.mxu0
      %v471 = vadd.f32 0.0, %v470
      %v472 = vpop.f32.mrf.mxu0
      %v473 = vpop.f32.mrf.mxu0
      %v474 = vadd.f32 0.0, %v473
      %v475 = vpop.f32.mrf.mxu0
      %476 = vdwg.mxu0
      %477 = vst [vmem:[#allocation2] sm:$0xff] %v447
      %478 = vst [vmem:[#allocation2 + $0x8] sm:$0xff] %v450
      %479 = vst [vmem:[#allocation2 + $0x10] sm:$0xff] %v455
      %480 = vst [vmem:[#allocation2 + $0x18] sm:$0xff] %v458
      %481 = vst [vmem:[#allocation2 + $0x20] sm:$0xff] %v463
      %482 = vst [vmem:[#allocation2 + $0x28] sm:$0xff] %v466
      %483 = vst [vmem:[#allocation2 + $0x30] sm:$0xff] %v471
      %484 = vst [vmem:[#allocation2 + $0x38] sm:$0xff] %v474
      %v485 = vld [vmem:[%s315] sm:$0xf]
      %v486 = vld [vmem:[%s315 + $0x4] sm:$0x1]
      %v487 = vld [vmem:[%s315 + $0x8] sm:$0xf]
      %v488 = vld [vmem:[%s315 + $0xc] sm:$0x1]
      %v489 = vld [vmem:[%s315 + $0x10] sm:$0xf]
      %v490 = vld [vmem:[%s315 + $0x14] sm:$0x1]
      %v491 = vld [vmem:[%s315 + $0x18] sm:$0xf]
      %v492 = vld [vmem:[%s315 + $0x1c] sm:$0x1]
      %v493 = vld [vmem:[%s315 + $0x20] sm:$0xf]
      %v494 = vld [vmem:[%s315 + $0x24] sm:$0x1]
      %v495 = vld [vmem:[%s315 + $0x28] sm:$0xf]
      %v496 = vld [vmem:[%s315 + $0x2c] sm:$0x1]
      %v497 = vld [vmem:[%s315 + $0x30] sm:$0xf]
      %v498 = vld [vmem:[%s315 + $0x34] sm:$0x1]
      %v499 = vld [vmem:[%s315 + $0x38] sm:$0xf]
      %v500 = vld [vmem:[%s315 + $0x3c] sm:$0x1]
      %vm501 = vsmask.f32 3328
      %vm502 = vsmask.f32 7440
      %vm503 = vmor %vm501, %vm502
      %v505 = vshrl.u32 %v485, 16
      %v507 = vrot.slane %v505, 4
      %v508 = vshll.u32 %v485, 16
      %v510 = vrot.slane %v508, 5
      %v511 = vor.u32 %v507, %v510
      %v512 = vrot.slane %v511, 4
      %v514 = vshll.u32 %v486, 16
      %v516 = vrot.slane %v514, 5
      %v517 = vsel %vm503, %v512, %v516
      %v519 = vshrl.u32 %v487, 16
      %v521 = vrot.slane %v519, 4
      %v522 = vshll.u32 %v487, 16
      %v524 = vrot.slane %v522, 5
      %v525 = vor.u32 %v521, %v524
      %v526 = vrot.slane %v525, 4
      %v528 = vshll.u32 %v488, 16
      %v530 = vrot.slane %v528, 5
      %v531 = vsel %vm503, %v526, %v530
      %v533 = vshrl.u32 %v489, 16
      %v535 = vrot.slane %v533, 4
      %v536 = vshll.u32 %v489, 16
      %v538 = vrot.slane %v536, 5
      %v539 = vor.u32 %v535, %v538
      %v540 = vrot.slane %v539, 4
      %v542 = vshll.u32 %v490, 16
      %v544 = vrot.slane %v542, 5
      %v545 = vsel %vm503, %v540, %v544
      %v547 = vshrl.u32 %v491, 16
      %v549 = vrot.slane %v547, 4
      %v550 = vshll.u32 %v491, 16
      %v552 = vrot.slane %v550, 5
      %v553 = vor.u32 %v549, %v552
      %v554 = vrot.slane %v553, 4
      %v556 = vshll.u32 %v492, 16
      %v558 = vrot.slane %v556, 5
      %v559 = vsel %vm503, %v554, %v558
      %v561 = vshrl.u32 %v493, 16
      %v563 = vrot.slane %v561, 4
      %v564 = vshll.u32 %v493, 16
      %v566 = vrot.slane %v564, 5
      %v567 = vor.u32 %v563, %v566
      %v568 = vrot.slane %v567, 4
      %v570 = vshll.u32 %v494, 16
      %v572 = vrot.slane %v570, 5
      %v573 = vsel %vm503, %v568, %v572
      %v575 = vshrl.u32 %v495, 16
      %v577 = vrot.slane %v575, 4
      %v578 = vshll.u32 %v495, 16
      %v580 = vrot.slane %v578, 5
      %v581 = vor.u32 %v577, %v580
      %v582 = vrot.slane %v581, 4
      %v584 = vshll.u32 %v496, 16
      %v586 = vrot.slane %v584, 5
      %v587 = vsel %vm503, %v582, %v586
      %v589 = vshrl.u32 %v497, 16
      %v591 = vrot.slane %v589, 4
      %v592 = vshll.u32 %v497, 16
      %v594 = vrot.slane %v592, 5
      %v595 = vor.u32 %v591, %v594
      %v596 = vrot.slane %v595, 4
      %v598 = vshll.u32 %v498, 16
      %v600 = vrot.slane %v598, 5
      %v601 = vsel %vm503, %v596, %v600
      %v603 = vshrl.u32 %v499, 16
      %v605 = vrot.slane %v603, 4
      %v606 = vshll.u32 %v499, 16
      %v608 = vrot.slane %v606, 5
      %v609 = vor.u32 %v605, %v608
      %v610 = vrot.slane %v609, 4
      %v612 = vshll.u32 %v500, 16
      %v614 = vrot.slane %v612, 5
      %v615 = vsel %vm503, %v610, %v614
      %s616 = scalar_lea.vmem %s1, 64
      %v617 = vld [vmem:[%s616] sm:$0xf]
      %v618 = vld [vmem:[%s616 + $0x4] sm:$0xf]
      %v619 = vld [vmem:[%s616 + $0x8] sm:$0xf]
      %v620 = vld [vmem:[%s616 + $0xc] sm:$0xf]
      %v621 = vld [vmem:[%s616 + $0x10] sm:$0xf]
      %v622 = vld [vmem:[%s616 + $0x14] sm:$0xf]
      %v623 = vld [vmem:[%s616 + $0x18] sm:$0xf]
      %v624 = vld [vmem:[%s616 + $0x1c] sm:$0xf]
      %v625 = vld [vmem:[%s616 + $0x20] sm:$0xf]
      %v626 = vld [vmem:[%s616 + $0x24] sm:$0xf]
      %v627 = vld [vmem:[%s616 + $0x28] sm:$0xf]
      %v628 = vld [vmem:[%s616 + $0x2c] sm:$0xf]
      %v629 = vld [vmem:[%s616 + $0x30] sm:$0xf]
      %v630 = vld [vmem:[%s616 + $0x34] sm:$0xf]
      %v631 = vld [vmem:[%s616 + $0x38] sm:$0xf]
      %v632 = vld [vmem:[%s616 + $0x3c] sm:$0xf]
      %v633 = vunpack.c.l.b16 %v517
      %v634 = vunpack.c.l.b16 %v531
      %v635 = vunpack.c.l.b16 %v545
      %v636 = vunpack.c.l.b16 %v559
      %v637 = vunpack.c.l.b16 %v573
      %v638 = vunpack.c.l.b16 %v587
      %v639 = vunpack.c.l.b16 %v601
      %v640 = vunpack.c.l.b16 %v615
      %v641 = vpack.c.b16 %v634, %v633
      %v642 = vpack.c.b16 %v636, %v635
      %v643 = vpack.c.b16 %v638, %v637
      %v644 = vpack.c.b16 %v640, %v639
      %v665 = vunpack.c.l.b16 %v617
      %v666 = vunpack.c.l.b16 %v618
      %v667 = vunpack.c.l.b16 %v619
      %v668 = vunpack.c.l.b16 %v620
      %v669 = vunpack.c.l.b16 %v621
      %v670 = vunpack.c.l.b16 %v622
      %v671 = vunpack.c.l.b16 %v623
      %v672 = vunpack.c.l.b16 %v624
      %v673 = vunpack.c.l.b16 %v625
      %v674 = vunpack.c.l.b16 %v626
      %v675 = vunpack.c.l.b16 %v627
      %v676 = vunpack.c.l.b16 %v628
      %v677 = vunpack.c.l.b16 %v629
      %v678 = vunpack.c.l.b16 %v630
      %v679 = vunpack.c.l.b16 %v631
      %v680 = vunpack.c.l.b16 %v632
      %v681 = vpack.c.b16 %v666, %v665
      %v682 = vpack.c.b16 %v668, %v667
      %v683 = vpack.c.b16 %v670, %v669
      %v684 = vpack.c.b16 %v672, %v671
      %v685 = vpack.c.b16 %v674, %v673
      %v686 = vpack.c.b16 %v676, %v675
      %v687 = vpack.c.b16 %v678, %v677
      %v688 = vpack.c.b16 %v680, %v679
      %697 = vmatprep.subr.bf16.mxu0 0
      %698 = vmatpush1.bf16.msra.mxu0 %v688
      %699 = vmatprep.subr.bf16.mxu0 0
      %700 = vmatpush1.bf16.msra.mxu0 %v687
      %701 = vmatprep.subr.bf16.mxu0 0
      %702 = vmatpush1.bf16.msra.mxu0 %v686
      %703 = vmatprep.subr.bf16.mxu0 0
      %704 = vmatpush1.bf16.msra.mxu0 %v685
      %705 = vmatprep.subr.bf16.mxu0 0
      %706 = vmatpush1.bf16.msra.mxu0 %v684
      %707 = vmatprep.subr.bf16.mxu0 0
      %708 = vmatpush1.bf16.msra.mxu0 %v683
      %709 = vmatprep.subr.bf16.mxu0 0
      %710 = vmatpush1.bf16.msra.mxu0 %v682
      %711 = vmatprep.subr.bf16.mxu0 0
      %712 = vmatpush1.bf16.msra.mxu0 %v681
      %713 = vmatprep.subr.bf16.mxu0 0
      %714 = vmatpush2.bf16.msra.mxu0 0
      %715 = vmatprep.subr.bf16.mxu0 0
      %716 = vmatpush2.bf16.msra.mxu0 0
      %717 = vmatprep.subr.bf16.mxu0 0
      %718 = vmatpush2.bf16.msra.mxu0 0
      %719 = vmatprep.subr.bf16.mxu0 0
      %720 = vmatpush2.bf16.msra.mxu0 0
      %721 = vmatprep.subr.bf16.mxu0 0
      %722 = vmatpush2.bf16.msra.mxu0 0
      %723 = vmatprep.subr.bf16.mxu0 0
      %724 = vmatpush2.bf16.msra.mxu0 0
      %725 = vmatprep.subr.bf16.mxu0 0
      %726 = vmatpush2.bf16.msra.mxu0 0
      %727 = vmatprep.subr.bf16.mxu0 0
      %728 = vmatpush2.bf16.msra.mxu0 0
      %729 = vmatprep.mubr.bf16.mxu0 0
      %730 = vmatmul.mubr.bf16.gmra.mxu0 %v641
      %v731 = vpop.f32.mrf.mxu0
      %v732 = vadd.f32 0.0, %v731
      %v733 = vpop.f32.mrf.mxu0
      %v734 = vpop.f32.mrf.mxu0
      %v735 = vadd.f32 0.0, %v734
      %v736 = vpop.f32.mrf.mxu0
      %737 = vmatprep.mubr.bf16.mxu0 0
      %738 = vmatmul.mubr.bf16.gmra.mxu0 %v642
      %v739 = vpop.f32.mrf.mxu0
      %v740 = vadd.f32 0.0, %v739
      %v741 = vpop.f32.mrf.mxu0
      %v742 = vpop.f32.mrf.mxu0
      %v743 = vadd.f32 0.0, %v742
      %v744 = vpop.f32.mrf.mxu0
      %745 = vmatprep.mubr.bf16.mxu0 0
      %746 = vmatmul.mubr.bf16.gmra.mxu0 %v643
      %v747 = vpop.f32.mrf.mxu0
      %v748 = vadd.f32 0.0, %v747
      %v749 = vpop.f32.mrf.mxu0
      %v750 = vpop.f32.mrf.mxu0
      %v751 = vadd.f32 0.0, %v750
      %v752 = vpop.f32.mrf.mxu0
      %753 = vmatprep.mubr.bf16.mxu0 0
      %754 = vmatmul.mubr.bf16.gmra.mxu0 %v644
      %v755 = vpop.f32.mrf.mxu0
      %v756 = vadd.f32 0.0, %v755
      %v757 = vpop.f32.mrf.mxu0
      %v758 = vpop.f32.mrf.mxu0
      %v759 = vadd.f32 0.0, %v758
      %v760 = vpop.f32.mrf.mxu0
      %761 = vdwg.mxu0
      %v762 = vld [vmem:[#allocation2] sm:$0xff]
      %v763 = vld [vmem:[#allocation2 + $0x8] sm:$0xff]
      %v764 = vld [vmem:[#allocation2 + $0x10] sm:$0xff]
      %v765 = vld [vmem:[#allocation2 + $0x18] sm:$0xff]
      %v766 = vld [vmem:[#allocation2 + $0x20] sm:$0xff]
      %v767 = vld [vmem:[#allocation2 + $0x28] sm:$0xff]
      %v768 = vld [vmem:[#allocation2 + $0x30] sm:$0xff]
      %v769 = vld [vmem:[#allocation2 + $0x38] sm:$0xff]
      %v770 = vadd.f32 %v762, %v732
      %v771 = vadd.f32 %v763, %v735
      %v772 = vadd.f32 %v764, %v740
      %v773 = vadd.f32 %v765, %v743
      %v774 = vadd.f32 %v766, %v748
      %v775 = vadd.f32 %v767, %v751
      %v776 = vadd.f32 %v768, %v756
      %v777 = vadd.f32 %v769, %v759
      %778 = vst [vmem:[#allocation2] sm:$0xff] %v770
      %779 = vst [vmem:[#allocation2 + $0x8] sm:$0xff] %v771
      %780 = vst [vmem:[#allocation2 + $0x10] sm:$0xff] %v772
      %781 = vst [vmem:[#allocation2 + $0x18] sm:$0xff] %v773
      %782 = vst [vmem:[#allocation2 + $0x20] sm:$0xff] %v774
      %783 = vst [vmem:[#allocation2 + $0x28] sm:$0xff] %v775
      %784 = vst [vmem:[#allocation2 + $0x30] sm:$0xff] %v776
      %785 = vst [vmem:[#allocation2 + $0x38] sm:$0xff] %v777
      %v786 = vld [vmem:[%s315] sm:$0xe]
      %v787 = vld [vmem:[%s315 + $0x4] sm:$0x1]
      %v788 = vld [vmem:[%s315 + $0x8] sm:$0xe]
      %v789 = vld [vmem:[%s315 + $0xc] sm:$0x1]
      %v790 = vld [vmem:[%s315 + $0x10] sm:$0xe]
      %v791 = vld [vmem:[%s315 + $0x14] sm:$0x1]
      %v792 = vld [vmem:[%s315 + $0x18] sm:$0xe]
      %v793 = vld [vmem:[%s315 + $0x1c] sm:$0x1]
      %v794 = vld [vmem:[%s315 + $0x20] sm:$0xe]
      %v795 = vld [vmem:[%s315 + $0x24] sm:$0x1]
      %v796 = vld [vmem:[%s315 + $0x28] sm:$0xe]
      %v797 = vld [vmem:[%s315 + $0x2c] sm:$0x1]
      %v798 = vld [vmem:[%s315 + $0x30] sm:$0xe]
      %v799 = vld [vmem:[%s315 + $0x34] sm:$0x1]
      %v800 = vld [vmem:[%s315 + $0x38] sm:$0xe]
      %v801 = vld [vmem:[%s315 + $0x3c] sm:$0x1]
      %vm818 = vcmask 1042432
      %vm819 = vcmask 1046532
      %vm820 = vmor %vm818, %vm819
      %v821 = vrot.slane %v786, 5
      %v822 = vrot.slane %v821, 4
      %v823 = vrot.slane %v787, 5
      %v824 = vsel %vm820, %v822, %v823
      %v825 = vrot.slane %v788, 5
      %v826 = vrot.slane %v825, 4
      %v827 = vrot.slane %v789, 5
      %v828 = vsel %vm820, %v826, %v827
      %v829 = vrot.slane %v790, 5
      %v830 = vrot.slane %v829, 4
      %v831 = vrot.slane %v791, 5
      %v832 = vsel %vm820, %v830, %v831
      %v833 = vrot.slane %v792, 5
      %v834 = vrot.slane %v833, 4
      %v835 = vrot.slane %v793, 5
      %v836 = vsel %vm820, %v834, %v835
      %v837 = vrot.slane %v794, 5
      %v838 = vrot.slane %v837, 4
      %v839 = vrot.slane %v795, 5
      %v840 = vsel %vm820, %v838, %v839
      %v841 = vrot.slane %v796, 5
      %v842 = vrot.slane %v841, 4
      %v843 = vrot.slane %v797, 5
      %v844 = vsel %vm820, %v842, %v843
      %v845 = vrot.slane %v798, 5
      %v846 = vrot.slane %v845, 4
      %v847 = vrot.slane %v799, 5
      %v848 = vsel %vm820, %v846, %v847
      %v849 = vrot.slane %v800, 5
      %v850 = vrot.slane %v849, 4
      %v851 = vrot.slane %v801, 5
      %v852 = vsel %vm820, %v850, %v851
      %s853 = scalar_lea.vmem %s1, 128
      %v854 = vld [vmem:[%s853] sm:$0xf]
      %v855 = vld [vmem:[%s853 + $0x4] sm:$0xf]
      %v856 = vld [vmem:[%s853 + $0x8] sm:$0xf]
      %v857 = vld [vmem:[%s853 + $0xc] sm:$0xf]
      %v858 = vld [vmem:[%s853 + $0x10] sm:$0xf]
      %v859 = vld [vmem:[%s853 + $0x14] sm:$0xf]
      %v860 = vld [vmem:[%s853 + $0x18] sm:$0xf]
      %v861 = vld [vmem:[%s853 + $0x1c] sm:$0xf]
      %v862 = vld [vmem:[%s853 + $0x20] sm:$0xf]
      %v863 = vld [vmem:[%s853 + $0x24] sm:$0xf]
      %v864 = vld [vmem:[%s853 + $0x28] sm:$0xf]
      %v865 = vld [vmem:[%s853 + $0x2c] sm:$0xf]
      %v866 = vld [vmem:[%s853 + $0x30] sm:$0xf]
      %v867 = vld [vmem:[%s853 + $0x34] sm:$0xf]
      %v868 = vld [vmem:[%s853 + $0x38] sm:$0xf]
      %v869 = vld [vmem:[%s853 + $0x3c] sm:$0xf]
      %v870 = vunpack.c.l.b16 %v824
      %v871 = vunpack.c.l.b16 %v828
      %v872 = vunpack.c.l.b16 %v832
      %v873 = vunpack.c.l.b16 %v836
      %v874 = vunpack.c.l.b16 %v840
      %v875 = vunpack.c.l.b16 %v844
      %v876 = vunpack.c.l.b16 %v848
      %v877 = vunpack.c.l.b16 %v852
      %v878 = vpack.c.b16 %v871, %v870
      %v879 = vpack.c.b16 %v873, %v872
      %v880 = vpack.c.b16 %v875, %v874
      %v881 = vpack.c.b16 %v877, %v876
      %v902 = vunpack.c.l.b16 %v854
      %v903 = vunpack.c.l.b16 %v855
      %v904 = vunpack.c.l.b16 %v856
      %v905 = vunpack.c.l.b16 %v857
      %v906 = vunpack.c.l.b16 %v858
      %v907 = vunpack.c.l.b16 %v859
      %v908 = vunpack.c.l.b16 %v860
      %v909 = vunpack.c.l.b16 %v861
      %v910 = vunpack.c.l.b16 %v862
      %v911 = vunpack.c.l.b16 %v863
      %v912 = vunpack.c.l.b16 %v864
      %v913 = vunpack.c.l.b16 %v865
      %v914 = vunpack.c.l.b16 %v866
      %v915 = vunpack.c.l.b16 %v867
      %v916 = vunpack.c.l.b16 %v868
      %v917 = vunpack.c.l.b16 %v869
      %v918 = vpack.c.b16 %v903, %v902
      %v919 = vpack.c.b16 %v905, %v904
      %v920 = vpack.c.b16 %v907, %v906
      %v921 = vpack.c.b16 %v909, %v908
      %v922 = vpack.c.b16 %v911, %v910
      %v923 = vpack.c.b16 %v913, %v912
      %v924 = vpack.c.b16 %v915, %v914
      %v925 = vpack.c.b16 %v917, %v916
      %934 = vmatprep.subr.bf16.mxu0 0
      %935 = vmatpush1.bf16.msra.mxu0 %v925
      %936 = vmatprep.subr.bf16.mxu0 0
      %937 = vmatpush1.bf16.msra.mxu0 %v924
      %938 = vmatprep.subr.bf16.mxu0 0
      %939 = vmatpush1.bf16.msra.mxu0 %v923
      %940 = vmatprep.subr.bf16.mxu0 0
      %941 = vmatpush1.bf16.msra.mxu0 %v922
      %942 = vmatprep.subr.bf16.mxu0 0
      %943 = vmatpush1.bf16.msra.mxu0 %v921
      %944 = vmatprep.subr.bf16.mxu0 0
      %945 = vmatpush1.bf16.msra.mxu0 %v920
      %946 = vmatprep.subr.bf16.mxu0 0
      %947 = vmatpush1.bf16.msra.mxu0 %v919
      %948 = vmatprep.subr.bf16.mxu0 0
      %949 = vmatpush1.bf16.msra.mxu0 %v918
      %950 = vmatprep.subr.bf16.mxu0 0
      %951 = vmatpush2.bf16.msra.mxu0 0
      %952 = vmatprep.subr.bf16.mxu0 0
      %953 = vmatpush2.bf16.msra.mxu0 0
      %954 = vmatprep.subr.bf16.mxu0 0
      %955 = vmatpush2.bf16.msra.mxu0 0
      %956 = vmatprep.subr.bf16.mxu0 0
      %957 = vmatpush2.bf16.msra.mxu0 0
      %958 = vmatprep.subr.bf16.mxu0 0
      %959 = vmatpush2.bf16.msra.mxu0 0
      %960 = vmatprep.subr.bf16.mxu0 0
      %961 = vmatpush2.bf16.msra.mxu0 0
      %962 = vmatprep.subr.bf16.mxu0 0
      %963 = vmatpush2.bf16.msra.mxu0 0
      %964 = vmatprep.subr.bf16.mxu0 0
      %965 = vmatpush2.bf16.msra.mxu0 0
      %966 = vmatprep.mubr.bf16.mxu0 0
      %967 = vmatmul.mubr.bf16.gmra.mxu0 %v878
      %v968 = vpop.f32.mrf.mxu0
      %v969 = vadd.f32 0.0, %v968
      %v970 = vpop.f32.mrf.mxu0
      %v971 = vpop.f32.mrf.mxu0
      %v972 = vadd.f32 0.0, %v971
      %v973 = vpop.f32.mrf.mxu0
      %974 = vmatprep.mubr.bf16.mxu0 0
      %975 = vmatmul.mubr.bf16.gmra.mxu0 %v879
      %v976 = vpop.f32.mrf.mxu0
      %v977 = vadd.f32 0.0, %v976
      %v978 = vpop.f32.mrf.mxu0
      %v979 = vpop.f32.mrf.mxu0
      %v980 = vadd.f32 0.0, %v979
      %v981 = vpop.f32.mrf.mxu0
      %982 = vmatprep.mubr.bf16.mxu0 0
      %983 = vmatmul.mubr.bf16.gmra.mxu0 %v880
      %v984 = vpop.f32.mrf.mxu0
      %v985 = vadd.f32 0.0, %v984
      %v986 = vpop.f32.mrf.mxu0
      %v987 = vpop.f32.mrf.mxu0
      %v988 = vadd.f32 0.0, %v987
      %v989 = vpop.f32.mrf.mxu0
      %990 = vmatprep.mubr.bf16.mxu0 0
      %991 = vmatmul.mubr.bf16.gmra.mxu0 %v881
      %v992 = vpop.f32.mrf.mxu0
      %v993 = vadd.f32 0.0, %v992
      %v994 = vpop.f32.mrf.mxu0
      %v995 = vpop.f32.mrf.mxu0
      %v996 = vadd.f32 0.0, %v995
      %v997 = vpop.f32.mrf.mxu0
      %998 = vdwg.mxu0
      %v999 = vld [vmem:[#allocation2] sm:$0xff]
      %v1000 = vld [vmem:[#allocation2 + $0x8] sm:$0xff]
      %v1001 = vld [vmem:[#allocation2 + $0x10] sm:$0xff]
      %v1002 = vld [vmem:[#allocation2 + $0x18] sm:$0xff]
      %v1003 = vld [vmem:[#allocation2 + $0x20] sm:$0xff]
      %v1004 = vld [vmem:[#allocation2 + $0x28] sm:$0xff]
      %v1005 = vld [vmem:[#allocation2 + $0x30] sm:$0xff]
      %v1006 = vld [vmem:[#allocation2 + $0x38] sm:$0xff]
      %v1007 = vadd.f32 %v999, %v969
      %v1008 = vadd.f32 %v1000, %v972
      %v1009 = vadd.f32 %v1001, %v977
      %v1010 = vadd.f32 %v1002, %v980
      %v1011 = vadd.f32 %v1003, %v985
      %v1012 = vadd.f32 %v1004, %v988
      %v1013 = vadd.f32 %v1005, %v993
      %v1014 = vadd.f32 %v1006, %v996
      %1015 = vst [vmem:[#allocation2] sm:$0xff] %v1007
      %1016 = vst [vmem:[#allocation2 + $0x8] sm:$0xff] %v1008
      %1017 = vst [vmem:[#allocation2 + $0x10] sm:$0xff] %v1009
      %1018 = vst [vmem:[#allocation2 + $0x18] sm:$0xff] %v1010
      %1019 = vst [vmem:[#allocation2 + $0x20] sm:$0xff] %v1011
      %1020 = vst [vmem:[#allocation2 + $0x28] sm:$0xff] %v1012
      %1021 = vst [vmem:[#allocation2 + $0x30] sm:$0xff] %v1013
      %1022 = vst [vmem:[#allocation2 + $0x38] sm:$0xff] %v1014
      %s1023 = sadd.s32 %s312, 1
      %s1024 = smul.u32 %s1023, 2
      %s1025 = smul.addr %s1024, 4
      %s1026 = scalar_lea.vmem %s290, %s1025
      %v1027 = vld [vmem:[%s1026] sm:$0xf]
      %v1028 = vld [vmem:[%s1026 + $0x8] sm:$0xf]
      %v1029 = vld [vmem:[%s1026 + $0x10] sm:$0xf]
      %v1030 = vld [vmem:[%s1026 + $0x18] sm:$0xf]
      %v1031 = vld [vmem:[%s1026 + $0x20] sm:$0xf]
      %v1032 = vld [vmem:[%s1026 + $0x28] sm:$0xf]
      %v1033 = vld [vmem:[%s1026 + $0x30] sm:$0xf]
      %v1034 = vld [vmem:[%s1026 + $0x38] sm:$0xf]
      %s1035 = scalar_lea.vmem %s1, 192
      %v1036 = vld [vmem:[%s1035] sm:$0xf]
      %v1037 = vld [vmem:[%s1035 + $0x4] sm:$0xf]
      %v1038 = vld [vmem:[%s1035 + $0x8] sm:$0xf]
      %v1039 = vld [vmem:[%s1035 + $0xc] sm:$0xf]
      %v1040 = vld [vmem:[%s1035 + $0x10] sm:$0xf]
      %v1041 = vld [vmem:[%s1035 + $0x14] sm:$0xf]
      %v1042 = vld [vmem:[%s1035 + $0x18] sm:$0xf]
      %v1043 = vld [vmem:[%s1035 + $0x1c] sm:$0xf]
      %v1044 = vld [vmem:[%s1035 + $0x20] sm:$0xf]
      %v1045 = vld [vmem:[%s1035 + $0x24] sm:$0xf]
      %v1046 = vld [vmem:[%s1035 + $0x28] sm:$0xf]
      %v1047 = vld [vmem:[%s1035 + $0x2c] sm:$0xf]
      %v1048 = vld [vmem:[%s1035 + $0x30] sm:$0xf]
      %v1049 = vld [vmem:[%s1035 + $0x34] sm:$0xf]
      %v1050 = vld [vmem:[%s1035 + $0x38] sm:$0xf]
      %v1051 = vld [vmem:[%s1035 + $0x3c] sm:$0xf]
      %v1060 = vunpack.c.l.b16 %v1027
      %v1061 = vunpack.c.l.b16 %v1028
      %v1062 = vunpack.c.l.b16 %v1029
      %v1063 = vunpack.c.l.b16 %v1030
      %v1064 = vunpack.c.l.b16 %v1031
      %v1065 = vunpack.c.l.b16 %v1032
      %v1066 = vunpack.c.l.b16 %v1033
      %v1067 = vunpack.c.l.b16 %v1034
      %v1068 = vpack.c.b16 %v1061, %v1060
      %v1069 = vpack.c.b16 %v1063, %v1062
      %v1070 = vpack.c.b16 %v1065, %v1064
      %v1071 = vpack.c.b16 %v1067, %v1066
      %v1092 = vunpack.c.l.b16 %v1036
      %v1093 = vunpack.c.l.b16 %v1037
      %v1094 = vunpack.c.l.b16 %v1038
      %v1095 = vunpack.c.l.b16 %v1039
      %v1096 = vunpack.c.l.b16 %v1040
      %v1097 = vunpack.c.l.b16 %v1041
      %v1098 = vunpack.c.l.b16 %v1042
      %v1099 = vunpack.c.l.b16 %v1043
      %v1100 = vunpack.c.l.b16 %v1044
      %v1101 = vunpack.c.l.b16 %v1045
      %v1102 = vunpack.c.l.b16 %v1046
      %v1103 = vunpack.c.l.b16 %v1047
      %v1104 = vunpack.c.l.b16 %v1048
      %v1105 = vunpack.c.l.b16 %v1049
      %v1106 = vunpack.c.l.b16 %v1050
      %v1107 = vunpack.c.l.b16 %v1051
      %v1108 = vpack.c.b16 %v1093, %v1092
      %v1109 = vpack.c.b16 %v1095, %v1094
      %v1110 = vpack.c.b16 %v1097, %v1096
      %v1111 = vpack.c.b16 %v1099, %v1098
      %v1112 = vpack.c.b16 %v1101, %v1100
      %v1113 = vpack.c.b16 %v1103, %v1102
      %v1114 = vpack.c.b16 %v1105, %v1104
      %v1115 = vpack.c.b16 %v1107, %v1106
      %1124 = vmatprep.subr.bf16.mxu0 0
      %1125 = vmatpush1.bf16.msra.mxu0 %v1115
      %1126 = vmatprep.subr.bf16.mxu0 0
      %1127 = vmatpush1.bf16.msra.mxu0 %v1114
      %1128 = vmatprep.subr.bf16.mxu0 0
      %1129 = vmatpush1.bf16.msra.mxu0 %v1113
      %1130 = vmatprep.subr.bf16.mxu0 0
      %1131 = vmatpush1.bf16.msra.mxu0 %v1112
      %1132 = vmatprep.subr.bf16.mxu0 0
      %1133 = vmatpush1.bf16.msra.mxu0 %v1111
      %1134 = vmatprep.subr.bf16.mxu0 0
      %1135 = vmatpush1.bf16.msra.mxu0 %v1110
      %1136 = vmatprep.subr.bf16.mxu0 0
      %1137 = vmatpush1.bf16.msra.mxu0 %v1109
      %1138 = vmatprep.subr.bf16.mxu0 0
      %1139 = vmatpush1.bf16.msra.mxu0 %v1108
      %1140 = vmatprep.subr.bf16.mxu0 0
      %1141 = vmatpush2.bf16.msra.mxu0 0
      %1142 = vmatprep.subr.bf16.mxu0 0
      %1143 = vmatpush2.bf16.msra.mxu0 0
      %1144 = vmatprep.subr.bf16.mxu0 0
      %1145 = vmatpush2.bf16.msra.mxu0 0
      %1146 = vmatprep.subr.bf16.mxu0 0
      %1147 = vmatpush2.bf16.msra.mxu0 0
      %1148 = vmatprep.subr.bf16.mxu0 0
      %1149 = vmatpush2.bf16.msra.mxu0 0
      %1150 = vmatprep.subr.bf16.mxu0 0
      %1151 = vmatpush2.bf16.msra.mxu0 0
      %1152 = vmatprep.subr.bf16.mxu0 0
      %1153 = vmatpush2.bf16.msra.mxu0 0
      %1154 = vmatprep.subr.bf16.mxu0 0
      %1155 = vmatpush2.bf16.msra.mxu0 0
      %1156 = vmatprep.mubr.bf16.mxu0 0
      %1157 = vmatmul.mubr.bf16.gmra.mxu0 %v1068
      %v1158 = vpop.f32.mrf.mxu0
      %v1159 = vadd.f32 0.0, %v1158
      %v1160 = vpop.f32.mrf.mxu0
      %v1161 = vpop.f32.mrf.mxu0
      %v1162 = vadd.f32 0.0, %v1161
      %v1163 = vpop.f32.mrf.mxu0
      %1164 = vmatprep.mubr.bf16.mxu0 0
      %1165 = vmatmul.mubr.bf16.gmra.mxu0 %v1069
      %v1166 = vpop.f32.mrf.mxu0
      %v1167 = vadd.f32 0.0, %v1166
      %v1168 = vpop.f32.mrf.mxu0
      %v1169 = vpop.f32.mrf.mxu0
      %v1170 = vadd.f32 0.0, %v1169
      %v1171 = vpop.f32.mrf.mxu0
      %1172 = vmatprep.mubr.bf16.mxu0 0
      %1173 = vmatmul.mubr.bf16.gmra.mxu0 %v1070
      %v1174 = vpop.f32.mrf.mxu0
      %v1175 = vadd.f32 0.0, %v1174
      %v1176 = vpop.f32.mrf.mxu0
      %v1177 = vpop.f32.mrf.mxu0
      %v1178 = vadd.f32 0.0, %v1177
      %v1179 = vpop.f32.mrf.mxu0
      %1180 = vmatprep.mubr.bf16.mxu0 0
      %1181 = vmatmul.mubr.bf16.gmra.mxu0 %v1071
      %v1182 = vpop.f32.mrf.mxu0
      %v1183 = vadd.f32 0.0, %v1182
      %v1184 = vpop.f32.mrf.mxu0
      %v1185 = vpop.f32.mrf.mxu0
      %v1186 = vadd.f32 0.0, %v1185
      %v1187 = vpop.f32.mrf.mxu0
      %1188 = vdwg.mxu0
      %v1189 = vld [vmem:[#allocation2] sm:$0xff]
      %v1190 = vld [vmem:[#allocation2 + $0x8] sm:$0xff]
      %v1191 = vld [vmem:[#allocation2 + $0x10] sm:$0xff]
      %v1192 = vld [vmem:[#allocation2 + $0x18] sm:$0xff]
      %v1193 = vld [vmem:[#allocation2 + $0x20] sm:$0xff]
      %v1194 = vld [vmem:[#allocation2 + $0x28] sm:$0xff]
      %v1195 = vld [vmem:[#allocation2 + $0x30] sm:$0xff]
      %v1196 = vld [vmem:[#allocation2 + $0x38] sm:$0xff]
      %v1197 = vadd.f32 %v1189, %v1159
      %v1198 = vadd.f32 %v1190, %v1162
      %v1199 = vadd.f32 %v1191, %v1167
      %v1200 = vadd.f32 %v1192, %v1170
      %v1201 = vadd.f32 %v1193, %v1175
      %v1202 = vadd.f32 %v1194, %v1178
      %v1203 = vadd.f32 %v1195, %v1183
      %v1204 = vadd.f32 %v1196, %v1186
      %1205 = vst [vmem:[#allocation2] sm:$0xff] %v1197
      %1206 = vst [vmem:[#allocation2 + $0x8] sm:$0xff] %v1198
      %1207 = vst [vmem:[#allocation2 + $0x10] sm:$0xff] %v1199
      %1208 = vst [vmem:[#allocation2 + $0x18] sm:$0xff] %v1200
      %1209 = vst [vmem:[#allocation2 + $0x20] sm:$0xff] %v1201
      %1210 = vst [vmem:[#allocation2 + $0x28] sm:$0xff] %v1202
      %1211 = vst [vmem:[#allocation2 + $0x30] sm:$0xff] %v1203
      %1212 = vst [vmem:[#allocation2 + $0x38] sm:$0xff] %v1204
      %v1213 = vld [vmem:[%s1026] sm:$0xf]
      %v1214 = vld [vmem:[%s1026 + $0x4] sm:$0x1]
      %v1215 = vld [vmem:[%s1026 + $0x8] sm:$0xf]
      %v1216 = vld [vmem:[%s1026 + $0xc] sm:$0x1]
      %v1217 = vld [vmem:[%s1026 + $0x10] sm:$0xf]
      %v1218 = vld [vmem:[%s1026 + $0x14] sm:$0x1]
      %v1219 = vld [vmem:[%s1026 + $0x18] sm:$0xf]
      %v1220 = vld [vmem:[%s1026 + $0x1c] sm:$0x1]
      %v1221 = vld [vmem:[%s1026 + $0x20] sm:$0xf]
      %v1222 = vld [vmem:[%s1026 + $0x24] sm:$0x1]
      %v1223 = vld [vmem:[%s1026 + $0x28] sm:$0xf]
      %v1224 = vld [vmem:[%s1026 + $0x2c] sm:$0x1]
      %v1225 = vld [vmem:[%s1026 + $0x30] sm:$0xf]
      %v1226 = vld [vmem:[%s1026 + $0x34] sm:$0x1]
      %v1227 = vld [vmem:[%s1026 + $0x38] sm:$0xf]
      %v1228 = vld [vmem:[%s1026 + $0x3c] sm:$0x1]
      %v1230 = vshrl.u32 %v1213, 16
      %v1232 = vrot.slane %v1230, 4
      %v1233 = vshll.u32 %v1213, 16
      %v1235 = vrot.slane %v1233, 5
      %v1236 = vor.u32 %v1232, %v1235
      %v1237 = vrot.slane %v1236, 4
      %v1239 = vshll.u32 %v1214, 16
      %v1241 = vrot.slane %v1239, 5
      %v1242 = vsel %vm503, %v1237, %v1241
      %v1244 = vshrl.u32 %v1215, 16
      %v1246 = vrot.slane %v1244, 4
      %v1247 = vshll.u32 %v1215, 16
      %v1249 = vrot.slane %v1247, 5
      %v1250 = vor.u32 %v1246, %v1249
      %v1251 = vrot.slane %v1250, 4
      %v1253 = vshll.u32 %v1216, 16
      %v1255 = vrot.slane %v1253, 5
      %v1256 = vsel %vm503, %v1251, %v1255
      %v1258 = vshrl.u32 %v1217, 16
      %v1260 = vrot.slane %v1258, 4
      %v1261 = vshll.u32 %v1217, 16
      %v1263 = vrot.slane %v1261, 5
      %v1264 = vor.u32 %v1260, %v1263
      %v1265 = vrot.slane %v1264, 4
      %v1267 = vshll.u32 %v1218, 16
      %v1269 = vrot.slane %v1267, 5
      %v1270 = vsel %vm503, %v1265, %v1269
      %v1272 = vshrl.u32 %v1219, 16
      %v1274 = vrot.slane %v1272, 4
      %v1275 = vshll.u32 %v1219, 16
      %v1277 = vrot.slane %v1275, 5
      %v1278 = vor.u32 %v1274, %v1277
      %v1279 = vrot.slane %v1278, 4
      %v1281 = vshll.u32 %v1220, 16
      %v1283 = vrot.slane %v1281, 5
      %v1284 = vsel %vm503, %v1279, %v1283
      %v1286 = vshrl.u32 %v1221, 16
      %v1288 = vrot.slane %v1286, 4
      %v1289 = vshll.u32 %v1221, 16
      %v1291 = vrot.slane %v1289, 5
      %v1292 = vor.u32 %v1288, %v1291
      %v1293 = vrot.slane %v1292, 4
      %v1295 = vshll.u32 %v1222, 16
      %v1297 = vrot.slane %v1295, 5
      %v1298 = vsel %vm503, %v1293, %v1297
      %v1300 = vshrl.u32 %v1223, 16
      %v1302 = vrot.slane %v1300, 4
      %v1303 = vshll.u32 %v1223, 16
      %v1305 = vrot.slane %v1303, 5
      %v1306 = vor.u32 %v1302, %v1305
      %v1307 = vrot.slane %v1306, 4
      %v1309 = vshll.u32 %v1224, 16
      %v1311 = vrot.slane %v1309, 5
      %v1312 = vsel %vm503, %v1307, %v1311
      %v1314 = vshrl.u32 %v1225, 16
      %v1316 = vrot.slane %v1314, 4
      %v1317 = vshll.u32 %v1225, 16
      %v1319 = vrot.slane %v1317, 5
      %v1320 = vor.u32 %v1316, %v1319
      %v1321 = vrot.slane %v1320, 4
      %v1323 = vshll.u32 %v1226, 16
      %v1325 = vrot.slane %v1323, 5
      %v1326 = vsel %vm503, %v1321, %v1325
      %v1328 = vshrl.u32 %v1227, 16
      %v1330 = vrot.slane %v1328, 4
      %v1331 = vshll.u32 %v1227, 16
      %v1333 = vrot.slane %v1331, 5
      %v1334 = vor.u32 %v1330, %v1333
      %v1335 = vrot.slane %v1334, 4
      %v1337 = vshll.u32 %v1228, 16
      %v1339 = vrot.slane %v1337, 5
      %v1340 = vsel %vm503, %v1335, %v1339
      %s1341 = scalar_lea.vmem %s1, 256
      %v1342 = vld [vmem:[%s1341] sm:$0xf]
      %v1343 = vld [vmem:[%s1341 + $0x4] sm:$0xf]
      %v1344 = vld [vmem:[%s1341 + $0x8] sm:$0xf]
      %v1345 = vld [vmem:[%s1341 + $0xc] sm:$0xf]
      %v1346 = vld [vmem:[%s1341 + $0x10] sm:$0xf]
      %v1347 = vld [vmem:[%s1341 + $0x14] sm:$0xf]
      %v1348 = vld [vmem:[%s1341 + $0x18] sm:$0xf]
      %v1349 = vld [vmem:[%s1341 + $0x1c] sm:$0xf]
      %v1350 = vld [vmem:[%s1341 + $0x20] sm:$0xf]
      %v1351 = vld [vmem:[%s1341 + $0x24] sm:$0xf]
      %v1352 = vld [vmem:[%s1341 + $0x28] sm:$0xf]
      %v1353 = vld [vmem:[%s1341 + $0x2c] sm:$0xf]
      %v1354 = vld [vmem:[%s1341 + $0x30] sm:$0xf]
      %v1355 = vld [vmem:[%s1341 + $0x34] sm:$0xf]
      %v1356 = vld [vmem:[%s1341 + $0x38] sm:$0xf]
      %v1357 = vld [vmem:[%s1341 + $0x3c] sm:$0xf]
      %v1358 = vunpack.c.l.b16 %v1242
      %v1359 = vunpack.c.l.b16 %v1256
      %v1360 = vunpack.c.l.b16 %v1270
      %v1361 = vunpack.c.l.b16 %v1284
      %v1362 = vunpack.c.l.b16 %v1298
      %v1363 = vunpack.c.l.b16 %v1312
      %v1364 = vunpack.c.l.b16 %v1326
      %v1365 = vunpack.c.l.b16 %v1340
      %v1366 = vpack.c.b16 %v1359, %v1358
      %v1367 = vpack.c.b16 %v1361, %v1360
      %v1368 = vpack.c.b16 %v1363, %v1362
      %v1369 = vpack.c.b16 %v1365, %v1364
      %v1390 = vunpack.c.l.b16 %v1342
      %v1391 = vunpack.c.l.b16 %v1343
      %v1392 = vunpack.c.l.b16 %v1344
      %v1393 = vunpack.c.l.b16 %v1345
      %v1394 = vunpack.c.l.b16 %v1346
      %v1395 = vunpack.c.l.b16 %v1347
      %v1396 = vunpack.c.l.b16 %v1348
      %v1397 = vunpack.c.l.b16 %v1349
      %v1398 = vunpack.c.l.b16 %v1350
      %v1399 = vunpack.c.l.b16 %v1351
      %v1400 = vunpack.c.l.b16 %v1352
      %v1401 = vunpack.c.l.b16 %v1353
      %v1402 = vunpack.c.l.b16 %v1354
      %v1403 = vunpack.c.l.b16 %v1355
      %v1404 = vunpack.c.l.b16 %v1356
      %v1405 = vunpack.c.l.b16 %v1357
      %v1406 = vpack.c.b16 %v1391, %v1390
      %v1407 = vpack.c.b16 %v1393, %v1392
      %v1408 = vpack.c.b16 %v1395, %v1394
      %v1409 = vpack.c.b16 %v1397, %v1396
      %v1410 = vpack.c.b16 %v1399, %v1398
      %v1411 = vpack.c.b16 %v1401, %v1400
      %v1412 = vpack.c.b16 %v1403, %v1402
      %v1413 = vpack.c.b16 %v1405, %v1404
      %1422 = vmatprep.subr.bf16.mxu0 0
      %1423 = vmatpush1.bf16.msra.mxu0 %v1413
      %1424 = vmatprep.subr.bf16.mxu0 0
      %1425 = vmatpush1.bf16.msra.mxu0 %v1412
      %1426 = vmatprep.subr.bf16.mxu0 0
      %1427 = vmatpush1.bf16.msra.mxu0 %v1411
      %1428 = vmatprep.subr.bf16.mxu0 0
      %1429 = vmatpush1.bf16.msra.mxu0 %v1410
      %1430 = vmatprep.subr.bf16.mxu0 0
      %1431 = vmatpush1.bf16.msra.mxu0 %v1409
      %1432 = vmatprep.subr.bf16.mxu0 0
      %1433 = vmatpush1.bf16.msra.mxu0 %v1408
      %1434 = vmatprep.subr.bf16.mxu0 0
      %1435 = vmatpush1.bf16.msra.mxu0 %v1407
      %1436 = vmatprep.subr.bf16.mxu0 0
      %1437 = vmatpush1.bf16.msra.mxu0 %v1406
      %1438 = vmatprep.subr.bf16.mxu0 0
      %1439 = vmatpush2.bf16.msra.mxu0 0
      %1440 = vmatprep.subr.bf16.mxu0 0
      %1441 = vmatpush2.bf16.msra.mxu0 0
      %1442 = vmatprep.subr.bf16.mxu0 0
      %1443 = vmatpush2.bf16.msra.mxu0 0
      %1444 = vmatprep.subr.bf16.mxu0 0
      %1445 = vmatpush2.bf16.msra.mxu0 0
      %1446 = vmatprep.subr.bf16.mxu0 0
      %1447 = vmatpush2.bf16.msra.mxu0 0
      %1448 = vmatprep.subr.bf16.mxu0 0
      %1449 = vmatpush2.bf16.msra.mxu0 0
      %1450 = vmatprep.subr.bf16.mxu0 0
      %1451 = vmatpush2.bf16.msra.mxu0 0
      %1452 = vmatprep.subr.bf16.mxu0 0
      %1453 = vmatpush2.bf16.msra.mxu0 0
      %1454 = vmatprep.mubr.bf16.mxu0 0
      %1455 = vmatmul.mubr.bf16.gmra.mxu0 %v1366
      %v1456 = vpop.f32.mrf.mxu0
      %v1457 = vadd.f32 0.0, %v1456
      %v1458 = vpop.f32.mrf.mxu0
      %v1459 = vpop.f32.mrf.mxu0
      %v1460 = vadd.f32 0.0, %v1459
      %v1461 = vpop.f32.mrf.mxu0
      %1462 = vmatprep.mubr.bf16.mxu0 0
      %1463 = vmatmul.mubr.bf16.gmra.mxu0 %v1367
      %v1464 = vpop.f32.mrf.mxu0
      %v1465 = vadd.f32 0.0, %v1464
      %v1466 = vpop.f32.mrf.mxu0
      %v1467 = vpop.f32.mrf.mxu0
      %v1468 = vadd.f32 0.0, %v1467
      %v1469 = vpop.f32.mrf.mxu0
      %1470 = vmatprep.mubr.bf16.mxu0 0
      %1471 = vmatmul.mubr.bf16.gmra.mxu0 %v1368
      %v1472 = vpop.f32.mrf.mxu0
      %v1473 = vadd.f32 0.0, %v1472
      %v1474 = vpop.f32.mrf.mxu0
      %v1475 = vpop.f32.mrf.mxu0
      %v1476 = vadd.f32 0.0, %v1475
      %v1477 = vpop.f32.mrf.mxu0
      %1478 = vmatprep.mubr.bf16.mxu0 0
      %1479 = vmatmul.mubr.bf16.gmra.mxu0 %v1369
      %v1480 = vpop.f32.mrf.mxu0
      %v1481 = vadd.f32 0.0, %v1480
      %v1482 = vpop.f32.mrf.mxu0
      %v1483 = vpop.f32.mrf.mxu0
      %v1484 = vadd.f32 0.0, %v1483
      %v1485 = vpop.f32.mrf.mxu0
      %1486 = vdwg.mxu0
      %v1487 = vld [vmem:[#allocation2] sm:$0xff]
      %v1488 = vld [vmem:[#allocation2 + $0x8] sm:$0xff]
      %v1489 = vld [vmem:[#allocation2 + $0x10] sm:$0xff]
      %v1490 = vld [vmem:[#allocation2 + $0x18] sm:$0xff]
      %v1491 = vld [vmem:[#allocation2 + $0x20] sm:$0xff]
      %v1492 = vld [vmem:[#allocation2 + $0x28] sm:$0xff]
      %v1493 = vld [vmem:[#allocation2 + $0x30] sm:$0xff]
      %v1494 = vld [vmem:[#allocation2 + $0x38] sm:$0xff]
      %v1495 = vadd.f32 %v1487, %v1457
      %v1496 = vadd.f32 %v1488, %v1460
      %v1497 = vadd.f32 %v1489, %v1465
      %v1498 = vadd.f32 %v1490, %v1468
      %v1499 = vadd.f32 %v1491, %v1473
      %v1500 = vadd.f32 %v1492, %v1476
      %v1501 = vadd.f32 %v1493, %v1481
      %v1502 = vadd.f32 %v1494, %v1484
      %1503 = vst [vmem:[#allocation2] sm:$0xff] %v1495
      %1504 = vst [vmem:[#allocation2 + $0x8] sm:$0xff] %v1496
      %1505 = vst [vmem:[#allocation2 + $0x10] sm:$0xff] %v1497
      %1506 = vst [vmem:[#allocation2 + $0x18] sm:$0xff] %v1498
      %1507 = vst [vmem:[#allocation2 + $0x20] sm:$0xff] %v1499
      %1508 = vst [vmem:[#allocation2 + $0x28] sm:$0xff] %v1500
      %1509 = vst [vmem:[#allocation2 + $0x30] sm:$0xff] %v1501
      %1510 = vst [vmem:[#allocation2 + $0x38] sm:$0xff] %v1502
      %v1511 = vld [vmem:[%s1026] sm:$0xe]
      %v1512 = vld [vmem:[%s1026 + $0x4] sm:$0x1]
      %v1513 = vld [vmem:[%s1026 + $0x8] sm:$0xe]
      %v1514 = vld [vmem:[%s1026 + $0xc] sm:$0x1]
      %v1515 = vld [vmem:[%s1026 + $0x10] sm:$0xe]
      %v1516 = vld [vmem:[%s1026 + $0x14] sm:$0x1]
      %v1517 = vld [vmem:[%s1026 + $0x18] sm:$0xe]
      %v1518 = vld [vmem:[%s1026 + $0x1c] sm:$0x1]
      %v1519 = vld [vmem:[%s1026 + $0x20] sm:$0xe]
      %v1520 = vld [vmem:[%s1026 + $0x24] sm:$0x1]
      %v1521 = vld [vmem:[%s1026 + $0x28] sm:$0xe]
      %v1522 = vld [vmem:[%s1026 + $0x2c] sm:$0x1]
      %v1523 = vld [vmem:[%s1026 + $0x30] sm:$0xe]
      %v1524 = vld [vmem:[%s1026 + $0x34] sm:$0x1]
      %v1525 = vld [vmem:[%s1026 + $0x38] sm:$0xe]
      %v1526 = vld [vmem:[%s1026 + $0x3c] sm:$0x1]
      %v1543 = vrot.slane %v1511, 5
      %v1544 = vrot.slane %v1543, 4
      %v1545 = vrot.slane %v1512, 5
      %v1546 = vsel %vm820, %v1544, %v1545
      %v1547 = vrot.slane %v1513, 5
      %v1548 = vrot.slane %v1547, 4
      %v1549 = vrot.slane %v1514, 5
      %v1550 = vsel %vm820, %v1548, %v1549
      %v1551 = vrot.slane %v1515, 5
      %v1552 = vrot.slane %v1551, 4
      %v1553 = vrot.slane %v1516, 5
      %v1554 = vsel %vm820, %v1552, %v1553
      %v1555 = vrot.slane %v1517, 5
      %v1556 = vrot.slane %v1555, 4
      %v1557 = vrot.slane %v1518, 5
      %v1558 = vsel %vm820, %v1556, %v1557
      %v1559 = vrot.slane %v1519, 5
      %v1560 = vrot.slane %v1559, 4
      %v1561 = vrot.slane %v1520, 5
      %v1562 = vsel %vm820, %v1560, %v1561
      %v1563 = vrot.slane %v1521, 5
      %v1564 = vrot.slane %v1563, 4
      %v1565 = vrot.slane %v1522, 5
      %v1566 = vsel %vm820, %v1564, %v1565
      %v1567 = vrot.slane %v1523, 5
      %v1568 = vrot.slane %v1567, 4
      %v1569 = vrot.slane %v1524, 5
      %v1570 = vsel %vm820, %v1568, %v1569
      %v1571 = vrot.slane %v1525, 5
      %v1572 = vrot.slane %v1571, 4
      %v1573 = vrot.slane %v1526, 5
      %v1574 = vsel %vm820, %v1572, %v1573
      %s1575 = scalar_lea.vmem %s1, 320
      %v1576 = vld [vmem:[%s1575] sm:$0xf]
      %v1577 = vld [vmem:[%s1575 + $0x4] sm:$0xf]
      %v1578 = vld [vmem:[%s1575 + $0x8] sm:$0xf]
      %v1579 = vld [vmem:[%s1575 + $0xc] sm:$0xf]
      %v1580 = vld [vmem:[%s1575 + $0x10] sm:$0xf]
      %v1581 = vld [vmem:[%s1575 + $0x14] sm:$0xf]
      %v1582 = vld [vmem:[%s1575 + $0x18] sm:$0xf]
      %v1583 = vld [vmem:[%s1575 + $0x1c] sm:$0xf]
      %v1584 = vld [vmem:[%s1575 + $0x20] sm:$0xf]
      %v1585 = vld [vmem:[%s1575 + $0x24] sm:$0xf]
      %v1586 = vld [vmem:[%s1575 + $0x28] sm:$0xf]
      %v1587 = vld [vmem:[%s1575 + $0x2c] sm:$0xf]
      %v1588 = vld [vmem:[%s1575 + $0x30] sm:$0xf]
      %v1589 = vld [vmem:[%s1575 + $0x34] sm:$0xf]
      %v1590 = vld [vmem:[%s1575 + $0x38] sm:$0xf]
      %v1591 = vld [vmem:[%s1575 + $0x3c] sm:$0xf]
      %v1592 = vunpack.c.l.b16 %v1546
      %v1593 = vunpack.c.l.b16 %v1550
      %v1594 = vunpack.c.l.b16 %v1554
      %v1595 = vunpack.c.l.b16 %v1558
      %v1596 = vunpack.c.l.b16 %v1562
      %v1597 = vunpack.c.l.b16 %v1566
      %v1598 = vunpack.c.l.b16 %v1570
      %v1599 = vunpack.c.l.b16 %v1574
      %v1600 = vpack.c.b16 %v1593, %v1592
      %v1601 = vpack.c.b16 %v1595, %v1594
      %v1602 = vpack.c.b16 %v1597, %v1596
      %v1603 = vpack.c.b16 %v1599, %v1598
      %v1624 = vunpack.c.l.b16 %v1576
      %v1625 = vunpack.c.l.b16 %v1577
      %v1626 = vunpack.c.l.b16 %v1578
      %v1627 = vunpack.c.l.b16 %v1579
      %v1628 = vunpack.c.l.b16 %v1580
      %v1629 = vunpack.c.l.b16 %v1581
      %v1630 = vunpack.c.l.b16 %v1582
      %v1631 = vunpack.c.l.b16 %v1583
      %v1632 = vunpack.c.l.b16 %v1584
      %v1633 = vunpack.c.l.b16 %v1585
      %v1634 = vunpack.c.l.b16 %v1586
      %v1635 = vunpack.c.l.b16 %v1587
      %v1636 = vunpack.c.l.b16 %v1588
      %v1637 = vunpack.c.l.b16 %v1589
      %v1638 = vunpack.c.l.b16 %v1590
      %v1639 = vunpack.c.l.b16 %v1591
      %v1640 = vpack.c.b16 %v1625, %v1624
      %v1641 = vpack.c.b16 %v1627, %v1626
      %v1642 = vpack.c.b16 %v1629, %v1628
      %v1643 = vpack.c.b16 %v1631, %v1630
      %v1644 = vpack.c.b16 %v1633, %v1632
      %v1645 = vpack.c.b16 %v1635, %v1634
      %v1646 = vpack.c.b16 %v1637, %v1636
      %v1647 = vpack.c.b16 %v1639, %v1638
      %1656 = vmatprep.subr.bf16.mxu0 0
      %1657 = vmatpush1.bf16.msra.mxu0 %v1647
      %1658 = vmatprep.subr.bf16.mxu0 0
      %1659 = vmatpush1.bf16.msra.mxu0 %v1646
      %1660 = vmatprep.subr.bf16.mxu0 0
      %1661 = vmatpush1.bf16.msra.mxu0 %v1645
      %1662 = vmatprep.subr.bf16.mxu0 0
      %1663 = vmatpush1.bf16.msra.mxu0 %v1644
      %1664 = vmatprep.subr.bf16.mxu0 0
      %1665 = vmatpush1.bf16.msra.mxu0 %v1643
      %1666 = vmatprep.subr.bf16.mxu0 0
      %1667 = vmatpush1.bf16.msra.mxu0 %v1642
      %1668 = vmatprep.subr.bf16.mxu0 0
      %1669 = vmatpush1.bf16.msra.mxu0 %v1641
      %1670 = vmatprep.subr.bf16.mxu0 0
      %1671 = vmatpush1.bf16.msra.mxu0 %v1640
      %1672 = vmatprep.subr.bf16.mxu0 0
      %1673 = vmatpush2.bf16.msra.mxu0 0
      %1674 = vmatprep.subr.bf16.mxu0 0
      %1675 = vmatpush2.bf16.msra.mxu0 0
      %1676 = vmatprep.subr.bf16.mxu0 0
      %1677 = vmatpush2.bf16.msra.mxu0 0
      %1678 = vmatprep.subr.bf16.mxu0 0
      %1679 = vmatpush2.bf16.msra.mxu0 0
      %1680 = vmatprep.subr.bf16.mxu0 0
      %1681 = vmatpush2.bf16.msra.mxu0 0
      %1682 = vmatprep.subr.bf16.mxu0 0
      %1683 = vmatpush2.bf16.msra.mxu0 0
      %1684 = vmatprep.subr.bf16.mxu0 0
      %1685 = vmatpush2.bf16.msra.mxu0 0
      %1686 = vmatprep.subr.bf16.mxu0 0
      %1687 = vmatpush2.bf16.msra.mxu0 0
      %1688 = vmatprep.mubr.bf16.mxu0 0
      %1689 = vmatmul.mubr.bf16.gmra.mxu0 %v1600
      %v1690 = vpop.f32.mrf.mxu0
      %v1691 = vadd.f32 0.0, %v1690
      %v1692 = vpop.f32.mrf.mxu0
      %v1693 = vpop.f32.mrf.mxu0
      %v1694 = vadd.f32 0.0, %v1693
      %v1695 = vpop.f32.mrf.mxu0
      %1696 = vmatprep.mubr.bf16.mxu0 0
      %1697 = vmatmul.mubr.bf16.gmra.mxu0 %v1601
      %v1698 = vpop.f32.mrf.mxu0
      %v1699 = vadd.f32 0.0, %v1698
      %v1700 = vpop.f32.mrf.mxu0
      %v1701 = vpop.f32.mrf.mxu0
      %v1702 = vadd.f32 0.0, %v1701
      %v1703 = vpop.f32.mrf.mxu0
      %1704 = vmatprep.mubr.bf16.mxu0 0
      %1705 = vmatmul.mubr.bf16.gmra.mxu0 %v1602
      %v1706 = vpop.f32.mrf.mxu0
      %v1707 = vadd.f32 0.0, %v1706
      %v1708 = vpop.f32.mrf.mxu0
      %v1709 = vpop.f32.mrf.mxu0
      %v1710 = vadd.f32 0.0, %v1709
      %v1711 = vpop.f32.mrf.mxu0
      %1712 = vmatprep.mubr.bf16.mxu0 0
      %1713 = vmatmul.mubr.bf16.gmra.mxu0 %v1603
      %v1714 = vpop.f32.mrf.mxu0
      %v1715 = vadd.f32 0.0, %v1714
      %v1716 = vpop.f32.mrf.mxu0
      %v1717 = vpop.f32.mrf.mxu0
      %v1718 = vadd.f32 0.0, %v1717
      %v1719 = vpop.f32.mrf.mxu0
      %1720 = vdwg.mxu0
      %v1721 = vld [vmem:[#allocation2] sm:$0xff]
      %v1722 = vld [vmem:[#allocation2 + $0x8] sm:$0xff]
      %v1723 = vld [vmem:[#allocation2 + $0x10] sm:$0xff]
      %v1724 = vld [vmem:[#allocation2 + $0x18] sm:$0xff]
      %v1725 = vld [vmem:[#allocation2 + $0x20] sm:$0xff]
      %v1726 = vld [vmem:[#allocation2 + $0x28] sm:$0xff]
      %v1727 = vld [vmem:[#allocation2 + $0x30] sm:$0xff]
      %v1728 = vld [vmem:[#allocation2 + $0x38] sm:$0xff]
      %v1729 = vadd.f32 %v1721, %v1691
      %v1730 = vadd.f32 %v1722, %v1694
      %v1731 = vadd.f32 %v1723, %v1699
      %v1732 = vadd.f32 %v1724, %v1702
      %v1733 = vadd.f32 %v1725, %v1707
      %v1734 = vadd.f32 %v1726, %v1710
      %v1735 = vadd.f32 %v1727, %v1715
      %v1736 = vadd.f32 %v1728, %v1718
      %1737 = vst [vmem:[#allocation2] sm:$0xff] %v1729
      %1738 = vst [vmem:[#allocation2 + $0x8] sm:$0xff] %v1730
      %1739 = vst [vmem:[#allocation2 + $0x10] sm:$0xff] %v1731
      %1740 = vst [vmem:[#allocation2 + $0x18] sm:$0xff] %v1732
      %1741 = vst [vmem:[#allocation2 + $0x20] sm:$0xff] %v1733
      %1742 = vst [vmem:[#allocation2 + $0x28] sm:$0xff] %v1734
      %1743 = vst [vmem:[#allocation2 + $0x30] sm:$0xff] %v1735
      %1744 = vst [vmem:[#allocation2 + $0x38] sm:$0xff] %v1736
      %s1745 = sadd.s32 %s312, 2
      %s1746 = smul.u32 %s1745, 2
      %s1747 = smul.addr %s1746, 4
      %s1748 = scalar_lea.vmem %s290, %s1747
      %v1749 = vld [vmem:[%s1748] sm:$0xf]
      %v1750 = vld [vmem:[%s1748 + $0x8] sm:$0xf]
      %v1751 = vld [vmem:[%s1748 + $0x10] sm:$0xf]
      %v1752 = vld [vmem:[%s1748 + $0x18] sm:$0xf]
      %v1753 = vld [vmem:[%s1748 + $0x20] sm:$0xf]
      %v1754 = vld [vmem:[%s1748 + $0x28] sm:$0xf]
      %v1755 = vld [vmem:[%s1748 + $0x30] sm:$0xf]
      %v1756 = vld [vmem:[%s1748 + $0x38] sm:$0xf]
      %s1757 = scalar_lea.vmem %s1, 384
      %v1758 = vld [vmem:[%s1757] sm:$0xf]
      %v1759 = vld [vmem:[%s1757 + $0x4] sm:$0xf]
      %v1760 = vld [vmem:[%s1757 + $0x8] sm:$0xf]
      %v1761 = vld [vmem:[%s1757 + $0xc] sm:$0xf]
      %v1762 = vld [vmem:[%s1757 + $0x10] sm:$0xf]
      %v1763 = vld [vmem:[%s1757 + $0x14] sm:$0xf]
      %v1764 = vld [vmem:[%s1757 + $0x18] sm:$0xf]
      %v1765 = vld [vmem:[%s1757 + $0x1c] sm:$0xf]
      %v1766 = vld [vmem:[%s1757 + $0x20] sm:$0xf]
      %v1767 = vld [vmem:[%s1757 + $0x24] sm:$0xf]
      %v1768 = vld [vmem:[%s1757 + $0x28] sm:$0xf]
      %v1769 = vld [vmem:[%s1757 + $0x2c] sm:$0xf]
      %v1770 = vld [vmem:[%s1757 + $0x30] sm:$0xf]
      %v1771 = vld [vmem:[%s1757 + $0x34] sm:$0xf]
      %v1772 = vld [vmem:[%s1757 + $0x38] sm:$0xf]
      %v1773 = vld [vmem:[%s1757 + $0x3c] sm:$0xf]
      %v1782 = vunpack.c.l.b16 %v1749
      %v1783 = vunpack.c.l.b16 %v1750
      %v1784 = vunpack.c.l.b16 %v1751
      %v1785 = vunpack.c.l.b16 %v1752
      %v1786 = vunpack.c.l.b16 %v1753
      %v1787 = vunpack.c.l.b16 %v1754
      %v1788 = vunpack.c.l.b16 %v1755
      %v1789 = vunpack.c.l.b16 %v1756
      %v1790 = vpack.c.b16 %v1783, %v1782
      %v1791 = vpack.c.b16 %v1785, %v1784
      %v1792 = vpack.c.b16 %v1787, %v1786
      %v1793 = vpack.c.b16 %v1789, %v1788
      %v1814 = vunpack.c.l.b16 %v1758
      %v1815 = vunpack.c.l.b16 %v1759
      %v1816 = vunpack.c.l.b16 %v1760
      %v1817 = vunpack.c.l.b16 %v1761
      %v1818 = vunpack.c.l.b16 %v1762
      %v1819 = vunpack.c.l.b16 %v1763
      %v1820 = vunpack.c.l.b16 %v1764
      %v1821 = vunpack.c.l.b16 %v1765
      %v1822 = vunpack.c.l.b16 %v1766
      %v1823 = vunpack.c.l.b16 %v1767
      %v1824 = vunpack.c.l.b16 %v1768
      %v1825 = vunpack.c.l.b16 %v1769
      %v1826 = vunpack.c.l.b16 %v1770
      %v1827 = vunpack.c.l.b16 %v1771
      %v1828 = vunpack.c.l.b16 %v1772
      %v1829 = vunpack.c.l.b16 %v1773
      %v1830 = vpack.c.b16 %v1815, %v1814
      %v1831 = vpack.c.b16 %v1817, %v1816
      %v1832 = vpack.c.b16 %v1819, %v1818
      %v1833 = vpack.c.b16 %v1821, %v1820
      %v1834 = vpack.c.b16 %v1823, %v1822
      %v1835 = vpack.c.b16 %v1825, %v1824
      %v1836 = vpack.c.b16 %v1827, %v1826
      %v1837 = vpack.c.b16 %v1829, %v1828
      %1846 = vmatprep.subr.bf16.mxu0 0
      %1847 = vmatpush1.bf16.msra.mxu0 %v1837
      %1848 = vmatprep.subr.bf16.mxu0 0
      %1849 = vmatpush1.bf16.msra.mxu0 %v1836
      %1850 = vmatprep.subr.bf16.mxu0 0
      %1851 = vmatpush1.bf16.msra.mxu0 %v1835
      %1852 = vmatprep.subr.bf16.mxu0 0
      %1853 = vmatpush1.bf16.msra.mxu0 %v1834
      %1854 = vmatprep.subr.bf16.mxu0 0
      %1855 = vmatpush1.bf16.msra.mxu0 %v1833
      %1856 = vmatprep.subr.bf16.mxu0 0
      %1857 = vmatpush1.bf16.msra.mxu0 %v1832
      %1858 = vmatprep.subr.bf16.mxu0 0
      %1859 = vmatpush1.bf16.msra.mxu0 %v1831
      %1860 = vmatprep.subr.bf16.mxu0 0
      %1861 = vmatpush1.bf16.msra.mxu0 %v1830
      %1862 = vmatprep.subr.bf16.mxu0 0
      %1863 = vmatpush2.bf16.msra.mxu0 0
      %1864 = vmatprep.subr.bf16.mxu0 0
      %1865 = vmatpush2.bf16.msra.mxu0 0
      %1866 = vmatprep.subr.bf16.mxu0 0
      %1867 = vmatpush2.bf16.msra.mxu0 0
      %1868 = vmatprep.subr.bf16.mxu0 0
      %1869 = vmatpush2.bf16.msra.mxu0 0
      %1870 = vmatprep.subr.bf16.mxu0 0
      %1871 = vmatpush2.bf16.msra.mxu0 0
      %1872 = vmatprep.subr.bf16.mxu0 0
      %1873 = vmatpush2.bf16.msra.mxu0 0
      %1874 = vmatprep.subr.bf16.mxu0 0
      %1875 = vmatpush2.bf16.msra.mxu0 0
      %1876 = vmatprep.subr.bf16.mxu0 0
      %1877 = vmatpush2.bf16.msra.mxu0 0
      %1878 = vmatprep.mubr.bf16.mxu0 0
      %1879 = vmatmul.mubr.bf16.gmra.mxu0 %v1790
      %v1880 = vpop.f32.mrf.mxu0
      %v1881 = vadd.f32 0.0, %v1880
      %v1882 = vpop.f32.mrf.mxu0
      %v1883 = vpop.f32.mrf.mxu0
      %v1884 = vadd.f32 0.0, %v1883
      %v1885 = vpop.f32.mrf.mxu0
      %1886 = vmatprep.mubr.bf16.mxu0 0
      %1887 = vmatmul.mubr.bf16.gmra.mxu0 %v1791
      %v1888 = vpop.f32.mrf.mxu0
      %v1889 = vadd.f32 0.0, %v1888
      %v1890 = vpop.f32.mrf.mxu0
      %v1891 = vpop.f32.mrf.mxu0
      %v1892 = vadd.f32 0.0, %v1891
      %v1893 = vpop.f32.mrf.mxu0
      %1894 = vmatprep.mubr.bf16.mxu0 0
      %1895 = vmatmul.mubr.bf16.gmra.mxu0 %v1792
      %v1896 = vpop.f32.mrf.mxu0
      %v1897 = vadd.f32 0.0, %v1896
      %v1898 = vpop.f32.mrf.mxu0
      %v1899 = vpop.f32.mrf.mxu0
      %v1900 = vadd.f32 0.0, %v1899
      %v1901 = vpop.f32.mrf.mxu0
      %1902 = vmatprep.mubr.bf16.mxu0 0
      %1903 = vmatmul.mubr.bf16.gmra.mxu0 %v1793
      %v1904 = vpop.f32.mrf.mxu0
      %v1905 = vadd.f32 0.0, %v1904
      %v1906 = vpop.f32.mrf.mxu0
      %v1907 = vpop.f32.mrf.mxu0
      %v1908 = vadd.f32 0.0, %v1907
      %v1909 = vpop.f32.mrf.mxu0
      %1910 = vdwg.mxu0
      %v1911 = vld [vmem:[#allocation2] sm:$0xff]
      %v1912 = vld [vmem:[#allocation2 + $0x8] sm:$0xff]
      %v1913 = vld [vmem:[#allocation2 + $0x10] sm:$0xff]
      %v1914 = vld [vmem:[#allocation2 + $0x18] sm:$0xff]
      %v1915 = vld [vmem:[#allocation2 + $0x20] sm:$0xff]
      %v1916 = vld [vmem:[#allocation2 + $0x28] sm:$0xff]
      %v1917 = vld [vmem:[#allocation2 + $0x30] sm:$0xff]
      %v1918 = vld [vmem:[#allocation2 + $0x38] sm:$0xff]
      %v1919 = vadd.f32 %v1911, %v1881
      %v1920 = vadd.f32 %v1912, %v1884
      %v1921 = vadd.f32 %v1913, %v1889
      %v1922 = vadd.f32 %v1914, %v1892
      %v1923 = vadd.f32 %v1915, %v1897
      %v1924 = vadd.f32 %v1916, %v1900
      %v1925 = vadd.f32 %v1917, %v1905
      %v1926 = vadd.f32 %v1918, %v1908
      %1927 = vst [vmem:[#allocation2] sm:$0xff] %v1919
      %1928 = vst [vmem:[#allocation2 + $0x8] sm:$0xff] %v1920
      %1929 = vst [vmem:[#allocation2 + $0x10] sm:$0xff] %v1921
      %1930 = vst [vmem:[#allocation2 + $0x18] sm:$0xff] %v1922
      %1931 = vst [vmem:[#allocation2 + $0x20] sm:$0xff] %v1923
      %1932 = vst [vmem:[#allocation2 + $0x28] sm:$0xff] %v1924
      %1933 = vst [vmem:[#allocation2 + $0x30] sm:$0xff] %v1925
      %1934 = vst [vmem:[#allocation2 + $0x38] sm:$0xff] %v1926
      %v1935 = vld [vmem:[%s1748] sm:$0xf]
      %v1936 = vld [vmem:[%s1748 + $0x4] sm:$0x1]
      %v1937 = vld [vmem:[%s1748 + $0x8] sm:$0xf]
      %v1938 = vld [vmem:[%s1748 + $0xc] sm:$0x1]
      %v1939 = vld [vmem:[%s1748 + $0x10] sm:$0xf]
      %v1940 = vld [vmem:[%s1748 + $0x14] sm:$0x1]
      %v1941 = vld [vmem:[%s1748 + $0x18] sm:$0xf]
      %v1942 = vld [vmem:[%s1748 + $0x1c] sm:$0x1]
      %v1943 = vld [vmem:[%s1748 + $0x20] sm:$0xf]
      %v1944 = vld [vmem:[%s1748 + $0x24] sm:$0x1]
      %v1945 = vld [vmem:[%s1748 + $0x28] sm:$0xf]
      %v1946 = vld [vmem:[%s1748 + $0x2c] sm:$0x1]
      %v1947 = vld [vmem:[%s1748 + $0x30] sm:$0xf]
      %v1948 = vld [vmem:[%s1748 + $0x34] sm:$0x1]
      %v1949 = vld [vmem:[%s1748 + $0x38] sm:$0xf]
      %v1950 = vld [vmem:[%s1748 + $0x3c] sm:$0x1]
      %v1952 = vshrl.u32 %v1935, 16
      %v1954 = vrot.slane %v1952, 4
      %v1955 = vshll.u32 %v1935, 16
      %v1957 = vrot.slane %v1955, 5
      %v1958 = vor.u32 %v1954, %v1957
      %v1959 = vrot.slane %v1958, 4
      %v1961 = vshll.u32 %v1936, 16
      %v1963 = vrot.slane %v1961, 5
      %v1964 = vsel %vm503, %v1959, %v1963
      %v1966 = vshrl.u32 %v1937, 16
      %v1968 = vrot.slane %v1966, 4
      %v1969 = vshll.u32 %v1937, 16
      %v1971 = vrot.slane %v1969, 5
      %v1972 = vor.u32 %v1968, %v1971
      %v1973 = vrot.slane %v1972, 4
      %v1975 = vshll.u32 %v1938, 16
      %v1977 = vrot.slane %v1975, 5
      %v1978 = vsel %vm503, %v1973, %v1977
      %v1980 = vshrl.u32 %v1939, 16
      %v1982 = vrot.slane %v1980, 4
      %v1983 = vshll.u32 %v1939, 16
      %v1985 = vrot.slane %v1983, 5
      %v1986 = vor.u32 %v1982, %v1985
      %v1987 = vrot.slane %v1986, 4
      %v1989 = vshll.u32 %v1940, 16
      %v1991 = vrot.slane %v1989, 5
      %v1992 = vsel %vm503, %v1987, %v1991
      %v1994 = vshrl.u32 %v1941, 16
      %v1996 = vrot.slane %v1994, 4
      %v1997 = vshll.u32 %v1941, 16
      %v1999 = vrot.slane %v1997, 5
      %v2000 = vor.u32 %v1996, %v1999
      %v2001 = vrot.slane %v2000, 4
      %v2003 = vshll.u32 %v1942, 16
      %v2005 = vrot.slane %v2003, 5
      %v2006 = vsel %vm503, %v2001, %v2005
      %v2008 = vshrl.u32 %v1943, 16
      %v2010 = vrot.slane %v2008, 4
      %v2011 = vshll.u32 %v1943, 16
      %v2013 = vrot.slane %v2011, 5
      %v2014 = vor.u32 %v2010, %v2013
      %v2015 = vrot.slane %v2014, 4
      %v2017 = vshll.u32 %v1944, 16
      %v2019 = vrot.slane %v2017, 5
      %v2020 = vsel %vm503, %v2015, %v2019
      %v2022 = vshrl.u32 %v1945, 16
      %v2024 = vrot.slane %v2022, 4
      %v2025 = vshll.u32 %v1945, 16
      %v2027 = vrot.slane %v2025, 5
      %v2028 = vor.u32 %v2024, %v2027
      %v2029 = vrot.slane %v2028, 4
      %v2031 = vshll.u32 %v1946, 16
      %v2033 = vrot.slane %v2031, 5
      %v2034 = vsel %vm503, %v2029, %v2033
      %v2036 = vshrl.u32 %v1947, 16
      %v2038 = vrot.slane %v2036, 4
      %v2039 = vshll.u32 %v1947, 16
      %v2041 = vrot.slane %v2039, 5
      %v2042 = vor.u32 %v2038, %v2041
      %v2043 = vrot.slane %v2042, 4
      %v2045 = vshll.u32 %v1948, 16
      %v2047 = vrot.slane %v2045, 5
      %v2048 = vsel %vm503, %v2043, %v2047
      %v2050 = vshrl.u32 %v1949, 16
      %v2052 = vrot.slane %v2050, 4
      %v2053 = vshll.u32 %v1949, 16
      %v2055 = vrot.slane %v2053, 5
      %v2056 = vor.u32 %v2052, %v2055
      %v2057 = vrot.slane %v2056, 4
      %v2059 = vshll.u32 %v1950, 16
      %v2061 = vrot.slane %v2059, 5
      %v2062 = vsel %vm503, %v2057, %v2061
      %s2063 = scalar_lea.vmem %s1, 448
      %v2064 = vld [vmem:[%s2063] sm:$0xf]
      %v2065 = vld [vmem:[%s2063 + $0x4] sm:$0xf]
      %v2066 = vld [vmem:[%s2063 + $0x8] sm:$0xf]
      %v2067 = vld [vmem:[%s2063 + $0xc] sm:$0xf]
      %v2068 = vld [vmem:[%s2063 + $0x10] sm:$0xf]
      %v2069 = vld [vmem:[%s2063 + $0x14] sm:$0xf]
      %v2070 = vld [vmem:[%s2063 + $0x18] sm:$0xf]
      %v2071 = vld [vmem:[%s2063 + $0x1c] sm:$0xf]
      %v2072 = vld [vmem:[%s2063 + $0x20] sm:$0xf]
      %v2073 = vld [vmem:[%s2063 + $0x24] sm:$0xf]
      %v2074 = vld [vmem:[%s2063 + $0x28] sm:$0xf]
      %v2075 = vld [vmem:[%s2063 + $0x2c] sm:$0xf]
      %v2076 = vld [vmem:[%s2063 + $0x30] sm:$0xf]
      %v2077 = vld [vmem:[%s2063 + $0x34] sm:$0xf]
      %v2078 = vld [vmem:[%s2063 + $0x38] sm:$0xf]
      %v2079 = vld [vmem:[%s2063 + $0x3c] sm:$0xf]
      %v2080 = vunpack.c.l.b16 %v1964
      %v2081 = vunpack.c.l.b16 %v1978
      %v2082 = vunpack.c.l.b16 %v1992
      %v2083 = vunpack.c.l.b16 %v2006
      %v2084 = vunpack.c.l.b16 %v2020
      %v2085 = vunpack.c.l.b16 %v2034
      %v2086 = vunpack.c.l.b16 %v2048
      %v2087 = vunpack.c.l.b16 %v2062
      %v2088 = vpack.c.b16 %v2081, %v2080
      %v2089 = vpack.c.b16 %v2083, %v2082
      %v2090 = vpack.c.b16 %v2085, %v2084
      %v2091 = vpack.c.b16 %v2087, %v2086
      %v2112 = vunpack.c.l.b16 %v2064
      %v2113 = vunpack.c.l.b16 %v2065
      %v2114 = vunpack.c.l.b16 %v2066
      %v2115 = vunpack.c.l.b16 %v2067
      %v2116 = vunpack.c.l.b16 %v2068
      %v2117 = vunpack.c.l.b16 %v2069
      %v2118 = vunpack.c.l.b16 %v2070
      %v2119 = vunpack.c.l.b16 %v2071
      %v2120 = vunpack.c.l.b16 %v2072
      %v2121 = vunpack.c.l.b16 %v2073
      %v2122 = vunpack.c.l.b16 %v2074
      %v2123 = vunpack.c.l.b16 %v2075
      %v2124 = vunpack.c.l.b16 %v2076
      %v2125 = vunpack.c.l.b16 %v2077
      %v2126 = vunpack.c.l.b16 %v2078
      %v2127 = vunpack.c.l.b16 %v2079
      %v2128 = vpack.c.b16 %v2113, %v2112
      %v2129 = vpack.c.b16 %v2115, %v2114
      %v2130 = vpack.c.b16 %v2117, %v2116
      %v2131 = vpack.c.b16 %v2119, %v2118
      %v2132 = vpack.c.b16 %v2121, %v2120
      %v2133 = vpack.c.b16 %v2123, %v2122
      %v2134 = vpack.c.b16 %v2125, %v2124
      %v2135 = vpack.c.b16 %v2127, %v2126
      %2144 = vmatprep.subr.bf16.mxu0 0
      %2145 = vmatpush1.bf16.msra.mxu0 %v2135
      %2146 = vmatprep.subr.bf16.mxu0 0
      %2147 = vmatpush1.bf16.msra.mxu0 %v2134
      %2148 = vmatprep.subr.bf16.mxu0 0
      %2149 = vmatpush1.bf16.msra.mxu0 %v2133
      %2150 = vmatprep.subr.bf16.mxu0 0
      %2151 = vmatpush1.bf16.msra.mxu0 %v2132
      %2152 = vmatprep.subr.bf16.mxu0 0
      %2153 = vmatpush1.bf16.msra.mxu0 %v2131
      %2154 = vmatprep.subr.bf16.mxu0 0
      %2155 = vmatpush1.bf16.msra.mxu0 %v2130
      %2156 = vmatprep.subr.bf16.mxu0 0
      %2157 = vmatpush1.bf16.msra.mxu0 %v2129
      %2158 = vmatprep.subr.bf16.mxu0 0
      %2159 = vmatpush1.bf16.msra.mxu0 %v2128
      %2160 = vmatprep.subr.bf16.mxu0 0
      %2161 = vmatpush2.bf16.msra.mxu0 0
      %2162 = vmatprep.subr.bf16.mxu0 0
      %2163 = vmatpush2.bf16.msra.mxu0 0
      %2164 = vmatprep.subr.bf16.mxu0 0
      %2165 = vmatpush2.bf16.msra.mxu0 0
      %2166 = vmatprep.subr.bf16.mxu0 0
      %2167 = vmatpush2.bf16.msra.mxu0 0
      %2168 = vmatprep.subr.bf16.mxu0 0
      %2169 = vmatpush2.bf16.msra.mxu0 0
      %2170 = vmatprep.subr.bf16.mxu0 0
      %2171 = vmatpush2.bf16.msra.mxu0 0
      %2172 = vmatprep.subr.bf16.mxu0 0
      %2173 = vmatpush2.bf16.msra.mxu0 0
      %2174 = vmatprep.subr.bf16.mxu0 0
      %2175 = vmatpush2.bf16.msra.mxu0 0
      %2176 = vmatprep.mubr.bf16.mxu0 0
      %2177 = vmatmul.mubr.bf16.gmra.mxu0 %v2088
      %v2178 = vpop.f32.mrf.mxu0
      %v2179 = vadd.f32 0.0, %v2178
      %v2180 = vpop.f32.mrf.mxu0
      %v2181 = vpop.f32.mrf.mxu0
      %v2182 = vadd.f32 0.0, %v2181
      %v2183 = vpop.f32.mrf.mxu0
      %2184 = vmatprep.mubr.bf16.mxu0 0
      %2185 = vmatmul.mubr.bf16.gmra.mxu0 %v2089
      %v2186 = vpop.f32.mrf.mxu0
      %v2187 = vadd.f32 0.0, %v2186
      %v2188 = vpop.f32.mrf.mxu0
      %v2189 = vpop.f32.mrf.mxu0
      %v2190 = vadd.f32 0.0, %v2189
      %v2191 = vpop.f32.mrf.mxu0
      %2192 = vmatprep.mubr.bf16.mxu0 0
      %2193 = vmatmul.mubr.bf16.gmra.mxu0 %v2090
      %v2194 = vpop.f32.mrf.mxu0
      %v2195 = vadd.f32 0.0, %v2194
      %v2196 = vpop.f32.mrf.mxu0
      %v2197 = vpop.f32.mrf.mxu0
      %v2198 = vadd.f32 0.0, %v2197
      %v2199 = vpop.f32.mrf.mxu0
      %2200 = vmatprep.mubr.bf16.mxu0 0
      %2201 = vmatmul.mubr.bf16.gmra.mxu0 %v2091
      %v2202 = vpop.f32.mrf.mxu0
      %v2203 = vadd.f32 0.0, %v2202
      %v2204 = vpop.f32.mrf.mxu0
      %v2205 = vpop.f32.mrf.mxu0
      %v2206 = vadd.f32 0.0, %v2205
      %v2207 = vpop.f32.mrf.mxu0
      %2208 = vdwg.mxu0
      %v2209 = vld [vmem:[#allocation2] sm:$0xff]
      %v2210 = vld [vmem:[#allocation2 + $0x8] sm:$0xff]
      %v2211 = vld [vmem:[#allocation2 + $0x10] sm:$0xff]
      %v2212 = vld [vmem:[#allocation2 + $0x18] sm:$0xff]
      %v2213 = vld [vmem:[#allocation2 + $0x20] sm:$0xff]
      %v2214 = vld [vmem:[#allocation2 + $0x28] sm:$0xff]
      %v2215 = vld [vmem:[#allocation2 + $0x30] sm:$0xff]
      %v2216 = vld [vmem:[#allocation2 + $0x38] sm:$0xff]
      %v2217 = vadd.f32 %v2209, %v2179
      %v2218 = vadd.f32 %v2210, %v2182
      %v2219 = vadd.f32 %v2211, %v2187
      %v2220 = vadd.f32 %v2212, %v2190
      %v2221 = vadd.f32 %v2213, %v2195
      %v2222 = vadd.f32 %v2214, %v2198
      %v2223 = vadd.f32 %v2215, %v2203
      %v2224 = vadd.f32 %v2216, %v2206
      %2225 = vst [vmem:[#allocation2] sm:$0xff] %v2217
      %2226 = vst [vmem:[#allocation2 + $0x8] sm:$0xff] %v2218
      %2227 = vst [vmem:[#allocation2 + $0x10] sm:$0xff] %v2219
      %2228 = vst [vmem:[#allocation2 + $0x18] sm:$0xff] %v2220
      %2229 = vst [vmem:[#allocation2 + $0x20] sm:$0xff] %v2221
      %2230 = vst [vmem:[#allocation2 + $0x28] sm:$0xff] %v2222
      %2231 = vst [vmem:[#allocation2 + $0x30] sm:$0xff] %v2223
      %2232 = vst [vmem:[#allocation2 + $0x38] sm:$0xff] %v2224
      %v2233 = vld [vmem:[%s1748] sm:$0xe]
      %v2234 = vld [vmem:[%s1748 + $0x4] sm:$0x1]
      %v2235 = vld [vmem:[%s1748 + $0x8] sm:$0xe]
      %v2236 = vld [vmem:[%s1748 + $0xc] sm:$0x1]
      %v2237 = vld [vmem:[%s1748 + $0x10] sm:$0xe]
      %v2238 = vld [vmem:[%s1748 + $0x14] sm:$0x1]
      %v2239 = vld [vmem:[%s1748 + $0x18] sm:$0xe]
      %v2240 = vld [vmem:[%s1748 + $0x1c] sm:$0x1]
      %v2241 = vld [vmem:[%s1748 + $0x20] sm:$0xe]
      %v2242 = vld [vmem:[%s1748 + $0x24] sm:$0x1]
      %v2243 = vld [vmem:[%s1748 + $0x28] sm:$0xe]
      %v2244 = vld [vmem:[%s1748 + $0x2c] sm:$0x1]
      %v2245 = vld [vmem:[%s1748 + $0x30] sm:$0xe]
      %v2246 = vld [vmem:[%s1748 + $0x34] sm:$0x1]
      %v2247 = vld [vmem:[%s1748 + $0x38] sm:$0xe]
      %v2248 = vld [vmem:[%s1748 + $0x3c] sm:$0x1]
      %v2265 = vrot.slane %v2233, 5
      %v2266 = vrot.slane %v2265, 4
      %v2267 = vrot.slane %v2234, 5
      %v2268 = vsel %vm820, %v2266, %v2267
      %v2269 = vrot.slane %v2235, 5
      %v2270 = vrot.slane %v2269, 4
      %v2271 = vrot.slane %v2236, 5
      %v2272 = vsel %vm820, %v2270, %v2271
      %v2273 = vrot.slane %v2237, 5
      %v2274 = vrot.slane %v2273, 4
      %v2275 = vrot.slane %v2238, 5
      %v2276 = vsel %vm820, %v2274, %v2275
      %v2277 = vrot.slane %v2239, 5
      %v2278 = vrot.slane %v2277, 4
      %v2279 = vrot.slane %v2240, 5
      %v2280 = vsel %vm820, %v2278, %v2279
      %v2281 = vrot.slane %v2241, 5
      %v2282 = vrot.slane %v2281, 4
      %v2283 = vrot.slane %v2242, 5
      %v2284 = vsel %vm820, %v2282, %v2283
      %v2285 = vrot.slane %v2243, 5
      %v2286 = vrot.slane %v2285, 4
      %v2287 = vrot.slane %v2244, 5
      %v2288 = vsel %vm820, %v2286, %v2287
      %v2289 = vrot.slane %v2245, 5
      %v2290 = vrot.slane %v2289, 4
      %v2291 = vrot.slane %v2246, 5
      %v2292 = vsel %vm820, %v2290, %v2291
      %v2293 = vrot.slane %v2247, 5
      %v2294 = vrot.slane %v2293, 4
      %v2295 = vrot.slane %v2248, 5
      %v2296 = vsel %vm820, %v2294, %v2295
      %s2297 = scalar_lea.vmem %s1, 512
      %v2298 = vld [vmem:[%s2297] sm:$0xf]
      %v2299 = vld [vmem:[%s2297 + $0x4] sm:$0xf]
      %v2300 = vld [vmem:[%s2297 + $0x8] sm:$0xf]
      %v2301 = vld [vmem:[%s2297 + $0xc] sm:$0xf]
      %v2302 = vld [vmem:[%s2297 + $0x10] sm:$0xf]
      %v2303 = vld [vmem:[%s2297 + $0x14] sm:$0xf]
      %v2304 = vld [vmem:[%s2297 + $0x18] sm:$0xf]
      %v2305 = vld [vmem:[%s2297 + $0x1c] sm:$0xf]
      %v2306 = vld [vmem:[%s2297 + $0x20] sm:$0xf]
      %v2307 = vld [vmem:[%s2297 + $0x24] sm:$0xf]
      %v2308 = vld [vmem:[%s2297 + $0x28] sm:$0xf]
      %v2309 = vld [vmem:[%s2297 + $0x2c] sm:$0xf]
      %v2310 = vld [vmem:[%s2297 + $0x30] sm:$0xf]
      %v2311 = vld [vmem:[%s2297 + $0x34] sm:$0xf]
      %v2312 = vld [vmem:[%s2297 + $0x38] sm:$0xf]
      %v2313 = vld [vmem:[%s2297 + $0x3c] sm:$0xf]
      %v2314 = vunpack.c.l.b16 %v2268
      %v2315 = vunpack.c.l.b16 %v2272
      %v2316 = vunpack.c.l.b16 %v2276
      %v2317 = vunpack.c.l.b16 %v2280
      %v2318 = vunpack.c.l.b16 %v2284
      %v2319 = vunpack.c.l.b16 %v2288
      %v2320 = vunpack.c.l.b16 %v2292
      %v2321 = vunpack.c.l.b16 %v2296
      %v2322 = vpack.c.b16 %v2315, %v2314
      %v2323 = vpack.c.b16 %v2317, %v2316
      %v2324 = vpack.c.b16 %v2319, %v2318
      %v2325 = vpack.c.b16 %v2321, %v2320
      %v2346 = vunpack.c.l.b16 %v2298
      %v2347 = vunpack.c.l.b16 %v2299
      %v2348 = vunpack.c.l.b16 %v2300
      %v2349 = vunpack.c.l.b16 %v2301
      %v2350 = vunpack.c.l.b16 %v2302
      %v2351 = vunpack.c.l.b16 %v2303
      %v2352 = vunpack.c.l.b16 %v2304
      %v2353 = vunpack.c.l.b16 %v2305
      %v2354 = vunpack.c.l.b16 %v2306
      %v2355 = vunpack.c.l.b16 %v2307
      %v2356 = vunpack.c.l.b16 %v2308
      %v2357 = vunpack.c.l.b16 %v2309
      %v2358 = vunpack.c.l.b16 %v2310
      %v2359 = vunpack.c.l.b16 %v2311
      %v2360 = vunpack.c.l.b16 %v2312
      %v2361 = vunpack.c.l.b16 %v2313
      %v2362 = vpack.c.b16 %v2347, %v2346
      %v2363 = vpack.c.b16 %v2349, %v2348
      %v2364 = vpack.c.b16 %v2351, %v2350
      %v2365 = vpack.c.b16 %v2353, %v2352
      %v2366 = vpack.c.b16 %v2355, %v2354
      %v2367 = vpack.c.b16 %v2357, %v2356
      %v2368 = vpack.c.b16 %v2359, %v2358
      %v2369 = vpack.c.b16 %v2361, %v2360
      %2378 = vmatprep.subr.bf16.mxu0 0
      %2379 = vmatpush1.bf16.msra.mxu0 %v2369
      %2380 = vmatprep.subr.bf16.mxu0 0
      %2381 = vmatpush1.bf16.msra.mxu0 %v2368
      %2382 = vmatprep.subr.bf16.mxu0 0
      %2383 = vmatpush1.bf16.msra.mxu0 %v2367
      %2384 = vmatprep.subr.bf16.mxu0 0
      %2385 = vmatpush1.bf16.msra.mxu0 %v2366
      %2386 = vmatprep.subr.bf16.mxu0 0
      %2387 = vmatpush1.bf16.msra.mxu0 %v2365
      %2388 = vmatprep.subr.bf16.mxu0 0
      %2389 = vmatpush1.bf16.msra.mxu0 %v2364
      %2390 = vmatprep.subr.bf16.mxu0 0
      %2391 = vmatpush1.bf16.msra.mxu0 %v2363
      %2392 = vmatprep.subr.bf16.mxu0 0
      %2393 = vmatpush1.bf16.msra.mxu0 %v2362
      %2394 = vmatprep.subr.bf16.mxu0 0
      %2395 = vmatpush2.bf16.msra.mxu0 0
      %2396 = vmatprep.subr.bf16.mxu0 0
      %2397 = vmatpush2.bf16.msra.mxu0 0
      %2398 = vmatprep.subr.bf16.mxu0 0
      %2399 = vmatpush2.bf16.msra.mxu0 0
      %2400 = vmatprep.subr.bf16.mxu0 0
      %2401 = vmatpush2.bf16.msra.mxu0 0
      %2402 = vmatprep.subr.bf16.mxu0 0
      %2403 = vmatpush2.bf16.msra.mxu0 0
      %2404 = vmatprep.subr.bf16.mxu0 0
      %2405 = vmatpush2.bf16.msra.mxu0 0
      %2406 = vmatprep.subr.bf16.mxu0 0
      %2407 = vmatpush2.bf16.msra.mxu0 0
      %2408 = vmatprep.subr.bf16.mxu0 0
      %2409 = vmatpush2.bf16.msra.mxu0 0
      %2410 = vmatprep.mubr.bf16.mxu0 0
      %2411 = vmatmul.mubr.bf16.gmra.mxu0 %v2322
      %v2412 = vpop.f32.mrf.mxu0
      %v2413 = vadd.f32 0.0, %v2412
      %v2414 = vpop.f32.mrf.mxu0
      %v2415 = vpop.f32.mrf.mxu0
      %v2416 = vadd.f32 0.0, %v2415
      %v2417 = vpop.f32.mrf.mxu0
      %2418 = vmatprep.mubr.bf16.mxu0 0
      %2419 = vmatmul.mubr.bf16.gmra.mxu0 %v2323
      %v2420 = vpop.f32.mrf.mxu0
      %v2421 = vadd.f32 0.0, %v2420
      %v2422 = vpop.f32.mrf.mxu0
      %v2423 = vpop.f32.mrf.mxu0
      %v2424 = vadd.f32 0.0, %v2423
      %v2425 = vpop.f32.mrf.mxu0
      %2426 = vmatprep.mubr.bf16.mxu0 0
      %2427 = vmatmul.mubr.bf16.gmra.mxu0 %v2324
      %v2428 = vpop.f32.mrf.mxu0
      %v2429 = vadd.f32 0.0, %v2428
      %v2430 = vpop.f32.mrf.mxu0
      %v2431 = vpop.f32.mrf.mxu0
      %v2432 = vadd.f32 0.0, %v2431
      %v2433 = vpop.f32.mrf.mxu0
      %2434 = vmatprep.mubr.bf16.mxu0 0
      %2435 = vmatmul.mubr.bf16.gmra.mxu0 %v2325
      %v2436 = vpop.f32.mrf.mxu0
      %v2437 = vadd.f32 0.0, %v2436
      %v2438 = vpop.f32.mrf.mxu0
      %v2439 = vpop.f32.mrf.mxu0
      %v2440 = vadd.f32 0.0, %v2439
      %v2441 = vpop.f32.mrf.mxu0
      %2442 = vdwg.mxu0
      %v2443 = vld [vmem:[#allocation2] sm:$0xff]
      %v2444 = vld [vmem:[#allocation2 + $0x8] sm:$0xff]
      %v2445 = vld [vmem:[#allocation2 + $0x10] sm:$0xff]
      %v2446 = vld [vmem:[#allocation2 + $0x18] sm:$0xff]
      %v2447 = vld [vmem:[#allocation2 + $0x20] sm:$0xff]
      %v2448 = vld [vmem:[#allocation2 + $0x28] sm:$0xff]
      %v2449 = vld [vmem:[#allocation2 + $0x30] sm:$0xff]
      %v2450 = vld [vmem:[#allocation2 + $0x38] sm:$0xff]
      %v2451 = vadd.f32 %v2443, %v2413
      %v2452 = vadd.f32 %v2444, %v2416
      %v2453 = vadd.f32 %v2445, %v2421
      %v2454 = vadd.f32 %v2446, %v2424
      %v2455 = vadd.f32 %v2447, %v2429
      %v2456 = vadd.f32 %v2448, %v2432
      %v2457 = vadd.f32 %v2449, %v2437
      %v2458 = vadd.f32 %v2450, %v2440
      %2459 = vst [vmem:[#allocation2] sm:$0xff] %v2451
      %2460 = vst [vmem:[#allocation2 + $0x8] sm:$0xff] %v2452
      %2461 = vst [vmem:[#allocation2 + $0x10] sm:$0xff] %v2453
      %2462 = vst [vmem:[#allocation2 + $0x18] sm:$0xff] %v2454
      %2463 = vst [vmem:[#allocation2 + $0x20] sm:$0xff] %v2455
      %2464 = vst [vmem:[#allocation2 + $0x28] sm:$0xff] %v2456
      %2465 = vst [vmem:[#allocation2 + $0x30] sm:$0xff] %v2457
      %2466 = vst [vmem:[#allocation2 + $0x38] sm:$0xff] %v2458
      %v2467 = vld [vmem:[#allocation2] sm:$0xff]
      %v2468 = vld [vmem:[#allocation2 + $0x8] sm:$0xff]
      %v2469 = vld [vmem:[#allocation2 + $0x10] sm:$0xff]
      %v2470 = vld [vmem:[#allocation2 + $0x18] sm:$0xff]
      %v2471 = vld [vmem:[#allocation2 + $0x20] sm:$0xff]
      %v2472 = vld [vmem:[#allocation2 + $0x28] sm:$0xff]
      %v2473 = vld [vmem:[#allocation2 + $0x30] sm:$0xff]
      %v2474 = vld [vmem:[#allocation2 + $0x38] sm:$0xff]
      %v2475 = vld [vmem:[%s2] sm:$0x1]
      %v2477 = vlaneseq
      %v2478 = vshrl.u32 %v2477, 7
      %v2479 = vsub.s32 0, %v2478
      %v2480 = vrot.slane %v2475, %v2479
      %v2482 = vadd.f32 %v2467, %v2480
      %v2483 = vadd.f32 %v2468, %v2480
      %v2484 = vadd.f32 %v2469, %v2480
      %v2485 = vadd.f32 %v2470, %v2480
      %v2486 = vadd.f32 %v2471, %v2480
      %v2487 = vadd.f32 %v2472, %v2480
      %v2488 = vadd.f32 %v2473, %v2480
      %v2489 = vadd.f32 %v2474, %v2480
      %v2490 = vld [vmem:[%s299] sm:$0xf]
      %v2491 = vld [vmem:[%s299 + $0x4] sm:$0xf]
      %v2492 = vld [vmem:[%s299 + $0x8] sm:$0xf]
      %v2493 = vld [vmem:[%s299 + $0xc] sm:$0xf]
      %v2494 = vld [vmem:[%s299 + $0x10] sm:$0xf]
      %v2495 = vld [vmem:[%s299 + $0x14] sm:$0xf]
      %v2496 = vld [vmem:[%s299 + $0x18] sm:$0xf]
      %v2497 = vld [vmem:[%s299 + $0x1c] sm:$0xf]
      %v2498 = vld [vmem:[%s4] sm:$0xf]
      %v2499 = vld [vmem:[%s4 + $0x4] sm:$0xf]
      %v2500 = vld [vmem:[%s4 + $0x8] sm:$0xf]
      %v2501 = vld [vmem:[%s4 + $0xc] sm:$0xf]
      %v2502 = vld [vmem:[%s4 + $0x10] sm:$0xf]
      %v2503 = vld [vmem:[%s4 + $0x14] sm:$0xf]
      %v2504 = vld [vmem:[%s4 + $0x18] sm:$0xf]
      %v2505 = vld [vmem:[%s4 + $0x1c] sm:$0xf]
      %v2506 = vld [vmem:[%s4 + $0x20] sm:$0xf]
      %v2507 = vld [vmem:[%s4 + $0x24] sm:$0xf]
      %v2508 = vld [vmem:[%s4 + $0x28] sm:$0xf]
      %v2509 = vld [vmem:[%s4 + $0x2c] sm:$0xf]
      %v2510 = vld [vmem:[%s4 + $0x30] sm:$0xf]
      %v2511 = vld [vmem:[%s4 + $0x34] sm:$0xf]
      %v2512 = vld [vmem:[%s4 + $0x38] sm:$0xf]
      %v2513 = vld [vmem:[%s4 + $0x3c] sm:$0xf]
      %v2514 = vld [vmem:[%s5] sm:$0x1]
      %v2516 = vlaneseq
      %v2517 = vshrl.u32 %v2516, 7
      %v2518 = vsub.s32 0, %v2517
      %v2519 = vrot.slane %v2514, %v2518
      %v2529 = vunpack.c.l.b16 %v2490
      %v2530 = vunpack.c.l.b16 %v2491
      %v2531 = vunpack.c.l.b16 %v2492
      %v2532 = vunpack.c.l.b16 %v2493
      %v2533 = vunpack.c.l.b16 %v2494
      %v2534 = vunpack.c.l.b16 %v2495
      %v2535 = vunpack.c.l.b16 %v2496
      %v2536 = vunpack.c.l.b16 %v2497
      %v2537 = vpack.c.b16 %v2530, %v2529
      %v2538 = vpack.c.b16 %v2532, %v2531
      %v2539 = vpack.c.b16 %v2534, %v2533
      %v2540 = vpack.c.b16 %v2536, %v2535
      %v2561 = vunpack.c.l.b16 %v2498
      %v2562 = vunpack.c.l.b16 %v2499
      %v2563 = vunpack.c.l.b16 %v2500
      %v2564 = vunpack.c.l.b16 %v2501
      %v2565 = vunpack.c.l.b16 %v2502
      %v2566 = vunpack.c.l.b16 %v2503
      %v2567 = vunpack.c.l.b16 %v2504
      %v2568 = vunpack.c.l.b16 %v2505
      %v2569 = vunpack.c.l.b16 %v2506
      %v2570 = vunpack.c.l.b16 %v2507
      %v2571 = vunpack.c.l.b16 %v2508
      %v2572 = vunpack.c.l.b16 %v2509
      %v2573 = vunpack.c.l.b16 %v2510
      %v2574 = vunpack.c.l.b16 %v2511
      %v2575 = vunpack.c.l.b16 %v2512
      %v2576 = vunpack.c.l.b16 %v2513
      %v2577 = vpack.c.b16 %v2562, %v2561
      %v2578 = vpack.c.b16 %v2564, %v2563
      %v2579 = vpack.c.b16 %v2566, %v2565
      %v2580 = vpack.c.b16 %v2568, %v2567
      %v2581 = vpack.c.b16 %v2570, %v2569
      %v2582 = vpack.c.b16 %v2572, %v2571
      %v2583 = vpack.c.b16 %v2574, %v2573
      %v2584 = vpack.c.b16 %v2576, %v2575
      %2593 = vmatprep.subr.bf16.mxu0 0
      %2594 = vmatpush1.bf16.msra.mxu0 %v2584
      %2595 = vmatprep.subr.bf16.mxu0 0
      %2596 = vmatpush1.bf16.msra.mxu0 %v2583
      %2597 = vmatprep.subr.bf16.mxu0 0
      %2598 = vmatpush1.bf16.msra.mxu0 %v2582
      %2599 = vmatprep.subr.bf16.mxu0 0
      %2600 = vmatpush1.bf16.msra.mxu0 %v2581
      %2601 = vmatprep.subr.bf16.mxu0 0
      %2602 = vmatpush1.bf16.msra.mxu0 %v2580
      %2603 = vmatprep.subr.bf16.mxu0 0
      %2604 = vmatpush1.bf16.msra.mxu0 %v2579
      %2605 = vmatprep.subr.bf16.mxu0 0
      %2606 = vmatpush1.bf16.msra.mxu0 %v2578
      %2607 = vmatprep.subr.bf16.mxu0 0
      %2608 = vmatpush1.bf16.msra.mxu0 %v2577
      %2609 = vmatprep.subr.bf16.mxu0 0
      %2610 = vmatpush2.bf16.msra.mxu0 0
      %2611 = vmatprep.subr.bf16.mxu0 0
      %2612 = vmatpush2.bf16.msra.mxu0 0
      %2613 = vmatprep.subr.bf16.mxu0 0
      %2614 = vmatpush2.bf16.msra.mxu0 0
      %2615 = vmatprep.subr.bf16.mxu0 0
      %2616 = vmatpush2.bf16.msra.mxu0 0
      %2617 = vmatprep.subr.bf16.mxu0 0
      %2618 = vmatpush2.bf16.msra.mxu0 0
      %2619 = vmatprep.subr.bf16.mxu0 0
      %2620 = vmatpush2.bf16.msra.mxu0 0
      %2621 = vmatprep.subr.bf16.mxu0 0
      %2622 = vmatpush2.bf16.msra.mxu0 0
      %2623 = vmatprep.subr.bf16.mxu0 0
      %2624 = vmatpush2.bf16.msra.mxu0 0
      %2625 = vmatprep.mubr.bf16.mxu0 0
      %2626 = vmatmul.mubr.bf16.gmra.mxu0 %v2537
      %v2627 = vpop.f32.mrf.mxu0
      %v2628 = vadd.f32 %v2519, %v2627
      %v2629 = vpop.f32.mrf.mxu0
      %v2630 = vpop.f32.mrf.mxu0
      %v2631 = vadd.f32 %v2519, %v2630
      %v2632 = vpop.f32.mrf.mxu0
      %2633 = vmatprep.mubr.bf16.mxu0 0
      %2634 = vmatmul.mubr.bf16.gmra.mxu0 %v2538
      %v2635 = vpop.f32.mrf.mxu0
      %v2636 = vadd.f32 %v2519, %v2635
      %v2637 = vpop.f32.mrf.mxu0
      %v2638 = vpop.f32.mrf.mxu0
      %v2639 = vadd.f32 %v2519, %v2638
      %v2640 = vpop.f32.mrf.mxu0
      %2641 = vmatprep.mubr.bf16.mxu0 0
      %2642 = vmatmul.mubr.bf16.gmra.mxu0 %v2539
      %v2643 = vpop.f32.mrf.mxu0
      %v2644 = vadd.f32 %v2519, %v2643
      %v2645 = vpop.f32.mrf.mxu0
      %v2646 = vpop.f32.mrf.mxu0
      %v2647 = vadd.f32 %v2519, %v2646
      %v2648 = vpop.f32.mrf.mxu0
      %2649 = vmatprep.mubr.bf16.mxu0 0
      %2650 = vmatmul.mubr.bf16.gmra.mxu0 %v2540
      %v2651 = vpop.f32.mrf.mxu0
      %v2652 = vadd.f32 %v2519, %v2651
      %v2653 = vpop.f32.mrf.mxu0
      %v2654 = vpop.f32.mrf.mxu0
      %v2655 = vadd.f32 %v2519, %v2654
      %v2656 = vpop.f32.mrf.mxu0
      %2657 = vdwg.mxu0
      %v2658 = vadd.f32 %v2482, %v2628
      %v2659 = vadd.f32 %v2483, %v2631
      %v2660 = vadd.f32 %v2484, %v2636
      %v2661 = vadd.f32 %v2485, %v2639
      %v2662 = vadd.f32 %v2486, %v2644
      %v2663 = vadd.f32 %v2487, %v2647
      %v2664 = vadd.f32 %v2488, %v2652
      %v2665 = vadd.f32 %v2489, %v2655
      %v2666 = vmax.f32 %v2658, 0.0
      %v2667 = vmax.f32 %v2659, 0.0
      %v2668 = vmax.f32 %v2660, 0.0
      %v2669 = vmax.f32 %v2661, 0.0
      %v2670 = vmax.f32 %v2662, 0.0
      %v2671 = vmax.f32 %v2663, 0.0
      %v2672 = vmax.f32 %v2664, 0.0
      %v2673 = vmax.f32 %v2665, 0.0
      %v2674 = vpack.c.bf16 %v2666, %v2666
      %v2675 = vpack.c.bf16 %v2667, %v2667
      %v2676 = vpack.c.bf16 %v2668, %v2668
      %v2677 = vpack.c.bf16 %v2669, %v2669
      %v2678 = vpack.c.bf16 %v2670, %v2670
      %v2679 = vpack.c.bf16 %v2671, %v2671
      %v2680 = vpack.c.bf16 %v2672, %v2672
      %v2681 = vpack.c.bf16 %v2673, %v2673
      %2682 = vst [vmem:[%s309] sm:$0xf] %v2674
      %2683 = vst [vmem:[%s309 + $0x4] sm:$0xf] %v2675
      %2684 = vst [vmem:[%s309 + $0x8] sm:$0xf] %v2676
      %2685 = vst [vmem:[%s309 + $0xc] sm:$0xf] %v2677
      %2686 = vst [vmem:[%s309 + $0x10] sm:$0xf] %v2678
      %2687 = vst [vmem:[%s309 + $0x14] sm:$0xf] %v2679
      %2688 = vst [vmem:[%s309 + $0x18] sm:$0xf] %v2680
      %2689 = vst [vmem:[%s309 + $0x1c] sm:$0xf] %v2681
      %s2690 = smul.u32 8, %s22
      %p2691 = scmp.lt.s32.totalorder %s21, 1
      %s2692 = scalar_select %p2691, %s21, 1
      %p2693 = scmp.lt.s32.totalorder %s2690, 7
      %s2694 = scalar_select %p2693, %s2690, 7
      %s2695 = smul.addr %s2692, 8
      %s2696 = sadd.s32 %s2694, %s2695
      %s2697 = smul.addr %s2696, 4
      %s2698 = scalar_lea.vmem %s6, %s2697
      // Predicated region
      $region45: #{_lambda_.5} parent=43 // pred_check
        %p2699 = pneg %p187
      $region46: #{_lambda_.5} parent=43 // pred_check_branch
        %2701 = sbr.rel (%p2699) target = $region48
      $region47: #{_lambda_.5} parent=43 // pred_region
        %s2702 = smul.u32 8, %s22
      $region48: #{_lambda_.5} parent=43 // pred_fallthru
        _
    $region44: #{_lambda_.5} parent=5 // pred_fallthru
      _
    %p2703 = scmp.le.s32.totalorder 2, %s12
    // Predicated region
    $region49: #{_lambda_.5} parent=5 // pred_check
      %p2704 = pneg %p2703
    $region50: #{_lambda_.5} parent=5 // pred_check_branch
      %2706 = sbr.rel (%p2704) target = $region52
    $region51: #{_lambda_.5} parent=5 // pred_region
      %s2707 = ssub.s32 %s12, 2
      // Predicated region
      $region53: #{_lambda_.5} parent=51 // pred_check
        %p2708 = pneg %p193
      $region54: #{_lambda_.5} parent=51 // pred_check_branch
        %2710 = sbr.rel (%p2708) target = $region56
      $region55: #{_lambda_.5} parent=51 // pred_region
        %s2711 = smul.u32 8, %s24
        %p2712 = scmp.lt.s32.totalorder %s23, 1
        %s2713 = scalar_select %p2712, %s23, 1
        %p2714 = scmp.lt.s32.totalorder %s2711, 7
        %s2715 = scalar_select %p2714, %s2711, 7
        %s2716 = smul.addr %s2713, 8
        %s2717 = sadd.s32 %s2715, %s2716
        %s2718 = smul.addr %s2717, 4
        %s2719 = scalar_lea.vmem %s6, %s2718
      $region56: #{_lambda_.5} parent=51 // pred_fallthru
        _
    $region52: #{_lambda_.5} parent=5 // pred_fallthru
      _
  $region6: #{_lambda_.5} parent=0 // loop_footer
    %s16 = sadd.s32 1, %s12
  $region7: #{_lambda_.5} parent=0 // loop_footer_branch
    %11 = sbr.rel target = $region3
  $region8: #{_lambda_.5} parent=0 // loop_exit
    _

// kernel: _lambda_.6
$region0: #{_lambda_.6}
  #allocation0 [shape = 'u32[]', space=smem, size = 0x4, offset = 0x4, fixed_abs, tag = 'smem constant byte address 0x4 - core index']
  #allocation1 [shape = 'u32[144,128]{1,0:T(1,128)}', space=vmem, size = 0x12000, scoped, tag = 'internal scratch']
  #allocation2 [shape = 'f32[64,128]{1,0:T(8,128)}', space=vmem, size = 0x8000, scoped, tag = 'scratch operand']
  %s0 = inlined_call_operand.vmem [shape: bf16[2,10,10,128], index: 0, kind: input, shape index: {}]
  %s1 = inlined_call_operand.vmem [shape: bf16[9,128,128], index: 1, kind: input, shape index: {}]
  %s2 = inlined_call_operand.vmem [shape: f32[1,128], index: 2, kind: input, shape index: {}]
  %s3 = inlined_call_operand.vmem [shape: bf16[2,8,8,128], index: 3, kind: output, shape index: {}]
  %s4 = sld [smem:[#allocation0]]
  $region45: #{_lambda_.6} parent=0
    _
  %s6 = ssub.s32 1, %s4
  %s7 = scalar_select 0, %s6, %s4
  loop: start=0, step=1, limit=4
  $region2: #{_lambda_.6} parent=0 // loop_pre_header
    _
  $region3: #{_lambda_.6} parent=0 // loop_header
    %s9 = sphi 0, %s13
    %p10 = scmp.ge.s32.totalorder %s9, 4
    %s16 = sphi 0, %s28
    %s17 = sphi 0, %s24
    %s18 = sphi 0, %s16
    %s19 = sphi 0, %s17
    %s20 = sphi 0, %s18
    %s21 = sphi 0, %s19
    %s31 = sphi 0, %s33
    %s34 = sphi 0, %s31
    %s35 = sphi 0, %s34
    %s51 = sphi 0, %s35
    %s55 = sphi 0, %s55
    %s57 = sphi 0, %s55
    %s58 = sphi 0, %s57
    %s72 = sphi 0, %s58
    %s76 = sphi 0, %s76
    %s78 = sphi 0, %s76
    %s79 = sphi 0, %s78
    %s93 = sphi 0, %s79
    %s101 = sphi 0, %s103
    %s104 = sphi 0, %s101
    %s105 = sphi 0, %s104
    %s121 = sphi 0, %s105
  $region4: #{_lambda_.6} parent=0 // loop_header_branch
    %12 = sbr.rel (%p10) target = $region8
  $region5: #{_lambda_.6} parent=0 // loop_body
    %s14 = ssub.s32 %s9, 1
    %s15 = ssub.s32 %s9, 2
    %s22 = sadd.s32 1, %s17
    %p23 = scmp.ge.s32.totalorder %s22, 1
    %s24 = scalar_select %p23, 0, %s22
    %s25 = sadd.s32 1, %s16
    %s26 = scalar_select %p23, %s25, %s16
    %p27 = scmp.ge.s32.totalorder %s26, 2
    %s28 = scalar_select %p27, 0, %s26
    %s29 = ssub.s32 %s16, %s28
    %p30 = scmp.eq.s32.totalorder %s29, 0
    %s32 = sadd.s32 %s31, 1
    %s33 = scalar_select %p30, %s31, %s32
    %p36 = pneg %p30
    %p37 = scmp.eq.s32.totalorder %s9, 1
    %p38 = por %p36, %p37
    %p39 = scmp.ne.s32.totalorder %s31, %s34
    %p40 = scmp.eq.s32.totalorder %s9, 0
    %p41 = por %p39, %p40
    %p42 = scmp.ne.s32.totalorder %s31, %s34
    %p43 = scmp.eq.s32.totalorder %s14, 1
    %p44 = por %p42, %p43
    %p45 = scmp.ne.s32.totalorder %s34, %s35
    %p46 = scmp.eq.s32.totalorder %s14, 0
    %p47 = por %p45, %p46
    %p48 = scmp.ne.s32.totalorder %s34, %s35
    %p49 = scmp.eq.s32.totalorder %s15, 1
    %p50 = por %p48, %p49
    %p52 = scmp.ne.s32.totalorder %s35, %s51
    %p53 = scmp.eq.s32.totalorder %s15, 0
    %p54 = por %p52, %p53
    %s56 = sadd.s32 %s55, 1
    %p59 = scmp.eq.s32.totalorder %s9, 1
    %p60 = scmp.ne.s32.totalorder %s55, %s57
    %p61 = scmp.eq.s32.totalorder %s9, 0
    %p62 = por %p60, %p61
    %p63 = scmp.ne.s32.totalorder %s55, %s57
    %p64 = scmp.eq.s32.totalorder %s14, 1
    %p65 = por %p63, %p64
    %p66 = scmp.ne.s32.totalorder %s57, %s58
    %p67 = scmp.eq.s32.totalorder %s14, 0
    %p68 = por %p66, %p67
    %p69 = scmp.ne.s32.totalorder %s57, %s58
    %p70 = scmp.eq.s32.totalorder %s15, 1
    %p71 = por %p69, %p70
    %p73 = scmp.ne.s32.totalorder %s58, %s72
    %p74 = scmp.eq.s32.totalorder %s15, 0
    %p75 = por %p73, %p74
    %s77 = sadd.s32 %s76, 1
    %p80 = scmp.eq.s32.totalorder %s9, 1
    %p81 = scmp.ne.s32.totalorder %s76, %s78
    %p82 = scmp.eq.s32.totalorder %s9, 0
    %p83 = por %p81, %p82
    %p84 = scmp.ne.s32.totalorder %s76, %s78
    %p85 = scmp.eq.s32.totalorder %s14, 1
    %p86 = por %p84, %p85
    %p87 = scmp.ne.s32.totalorder %s78, %s79
    %p88 = scmp.eq.s32.totalorder %s14, 0
    %p89 = por %p87, %p88
    %p90 = scmp.ne.s32.totalorder %s78, %s79
    %p91 = scmp.eq.s32.totalorder %s15, 1
    %p92 = por %p90, %p91
    %p94 = scmp.ne.s32.totalorder %s79, %s93
    %p95 = scmp.eq.s32.totalorder %s15, 0
    %p96 = por %p94, %p95
    %s97 = ssub.s32 %s16, %s28
    %s98 = ssub.s32 %s17, %s24
    %s99 = sor.u32 %s97, %s98
    %p100 = scmp.eq.s32.totalorder %s99, 0
    %s102 = sadd.s32 %s101, 1
    %s103 = scalar_select %p100, %s101, %s102
    %p106 = pneg %p100
    %p107 = scmp.eq.s32.totalorder %s9, 1
    %p108 = por %p106, %p107
    %p109 = scmp.ne.s32.totalorder %s101, %s104
    %p110 = scmp.eq.s32.totalorder %s9, 0
    %p111 = por %p109, %p110
    %p112 = scmp.ne.s32.totalorder %s101, %s104
    %p113 = scmp.eq.s32.totalorder %s14, 1
    %p114 = por %p112, %p113
    %p115 = scmp.ne.s32.totalorder %s104, %s105
    %p116 = scmp.eq.s32.totalorder %s14, 0
    %p117 = por %p115, %p116
    %p118 = scmp.ne.s32.totalorder %s104, %s105
    %p119 = scmp.eq.s32.totalorder %s15, 1
    %p120 = por %p118, %p119
    %p122 = scmp.ne.s32.totalorder %s105, %s121
    %p123 = scmp.eq.s32.totalorder %s15, 0
    %p124 = por %p122, %p123
    %p125 = scmp.le.s32.totalorder 1, %s9
    %p126 = scmp.lt.s32.totalorder %s9, 3
    %p127 = pnand %p125, %p126
    %p128 = pneg %p127
    // Predicated region
    $region9: #{_lambda_.6} parent=5 // pred_check
      _
    $region10: #{_lambda_.6} parent=5 // pred_check_branch
      %130 = sbr.rel (%p127) target = $region12
    $region11: #{_lambda_.6} parent=5 // pred_region
      %s131 = ssub.s32 %s9, 1
      // Predicated region
      $region13: #{_lambda_.6} parent=11 // pred_check
        %p132 = pneg %p68
      $region14: #{_lambda_.6} parent=11 // pred_check_branch
        %134 = sbr.rel (%p132) target = $region16
      $region15: #{_lambda_.6} parent=11 // pred_region
        _
      $region16: #{_lambda_.6} parent=11 // pred_fallthru
        _
      // Predicated region
      $region17: #{_lambda_.6} parent=11 // pred_check
        %p135 = pneg %p89
      $region18: #{_lambda_.6} parent=11 // pred_check_branch
        %137 = sbr.rel (%p135) target = $region20
      $region19: #{_lambda_.6} parent=11 // pred_region
        _
      $region20: #{_lambda_.6} parent=11 // pred_fallthru
        _
    $region12: #{_lambda_.6} parent=5 // pred_fallthru
      _
    %p138 = scmp.lt.s32.totalorder %s9, 2
    // Predicated region
    $region21: #{_lambda_.6} parent=5 // pred_check
      %p139 = pneg %p138
    $region22: #{_lambda_.6} parent=5 // pred_check_branch
      %141 = sbr.rel (%p139) target = $region24
    $region23: #{_lambda_.6} parent=5 // pred_region
      // Predicated region
      $region25: #{_lambda_.6} parent=23 // pred_check
        %p142 = pneg %p41
      $region26: #{_lambda_.6} parent=23 // pred_check_branch
        %144 = sbr.rel (%p142) target = $region28
      $region27: #{_lambda_.6} parent=23 // pred_region
        %p145 = scmp.lt.s32.totalorder %s16, 1
        %s146 = scalar_select %p145, %s16, 1
        %s147 = smul.addr %s146, 20
        %s148 = smul.addr %s147, 4
        %s149 = scalar_lea.vmem %s0, %s148
      $region28: #{_lambda_.6} parent=23 // pred_fallthru
        _
    $region24: #{_lambda_.6} parent=5 // pred_fallthru
      _
    %p150 = scmp.le.s32.totalorder 1, %s9
    %p151 = scmp.lt.s32.totalorder %s9, 3
    %p152 = pnand %p150, %p151
    %p153 = pneg %p152
    // Predicated region
    $region29: #{_lambda_.6} parent=5 // pred_check
      _
    $region30: #{_lambda_.6} parent=5 // pred_check_branch
      %155 = sbr.rel (%p152) target = $region32
    $region31: #{_lambda_.6} parent=5 // pred_region
      %s156 = ssub.s32 %s9, 1
      %p157 = scmp.lt.s32.totalorder %s18, 1
      %s158 = scalar_select %p157, %s18, 1
      %s159 = smul.addr %s158, 20
      %s160 = smul.addr %s159, 4
      %s161 = scalar_lea.vmem %s0, %s160
      %p162 = pneg %p47
      %p163 = pneg %p44
      %p164 = pneg %p68
      %p165 = pneg %p65
      %p166 = pneg %p89
      %p167 = pneg %p86
      %p168 = pneg %p117
      %p169 = pneg %p114
      %s170 = smul.u32 8, %s19
      %p171 = scmp.lt.s32.totalorder %s18, 1
      %s172 = scalar_select %p171, %s18, 1
      %p173 = scmp.lt.s32.totalorder %s170, 7
      %s174 = scalar_select %p173, %s170, 7
      %s175 = smul.addr %s172, 8
      %s176 = sadd.s32 %s174, %s175
      %s177 = smul.addr %s176, 4
      %s178 = scalar_lea.vmem %s3, %s177
      %p179 = scmp.lt.s32.totalorder %s18, 1
      %s180 = scalar_select %p179, %s18, 1
      %s181 = smul.addr %s180, 20
      %s182 = smul.addr %s181, 4
      %s183 = scalar_lea.vmem %s0, %s182
      %s184 = smul.u32 8, %s19
      %p185 = scmp.lt.s32.totalorder %s18, 1
      %s186 = scalar_select %p185, %s18, 1
      %p187 = scmp.lt.s32.totalorder %s184, 7
      %s188 = scalar_select %p187, %s184, 7
      %s189 = smul.addr %s186, 8
      %s190 = sadd.s32 %s188, %s189
      %s191 = smul.addr %s190, 4
      %s192 = scalar_lea.vmem %s3, %s191
      %s193 = smul.u32 8, %s19
      %s195 = smul.u32 %s19, 8
      %s196 = smul.u32 %s195, 2
      %s197 = smul.addr %s196, 4
      %s198 = scalar_lea.vmem %s183, %s197
      %v199 = vld [vmem:[%s198] sm:$0xf]
      %v200 = vld [vmem:[%s198 + $0x8] sm:$0xf]
      %v201 = vld [vmem:[%s198 + $0x10] sm:$0xf]
      %v202 = vld [vmem:[%s198 + $0x18] sm:$0xf]
      %v203 = vld [vmem:[%s198 + $0x20] sm:$0xf]
      %v204 = vld [vmem:[%s198 + $0x28] sm:$0xf]
      %v205 = vld [vmem:[%s198 + $0x30] sm:$0xf]
      %v206 = vld [vmem:[%s198 + $0x38] sm:$0xf]
      %v207 = vld [vmem:[%s1] sm:$0xf]
      %v208 = vld [vmem:[%s1 + $0x4] sm:$0xf]
      %v209 = vld [vmem:[%s1 + $0x8] sm:$0xf]
      %v210 = vld [vmem:[%s1 + $0xc] sm:$0xf]
      %v211 = vld [vmem:[%s1 + $0x10] sm:$0xf]
      %v212 = vld [vmem:[%s1 + $0x14] sm:$0xf]
      %v213 = vld [vmem:[%s1 + $0x18] sm:$0xf]
      %v214 = vld [vmem:[%s1 + $0x1c] sm:$0xf]
      %v215 = vld [vmem:[%s1 + $0x20] sm:$0xf]
      %v216 = vld [vmem:[%s1 + $0x24] sm:$0xf]
      %v217 = vld [vmem:[%s1 + $0x28] sm:$0xf]
      %v218 = vld [vmem:[%s1 + $0x2c] sm:$0xf]
      %v219 = vld [vmem:[%s1 + $0x30] sm:$0xf]
      %v220 = vld [vmem:[%s1 + $0x34] sm:$0xf]
      %v221 = vld [vmem:[%s1 + $0x38] sm:$0xf]
      %v222 = vld [vmem:[%s1 + $0x3c] sm:$0xf]
      %v231 = vunpack.c.l.b16 %v199
      %v232 = vunpack.c.l.b16 %v200
      %v233 = vunpack.c.l.b16 %v201
      %v234 = vunpack.c.l.b16 %v202
      %v235 = vunpack.c.l.b16 %v203
      %v236 = vunpack.c.l.b16 %v204
      %v237 = vunpack.c.l.b16 %v205
      %v238 = vunpack.c.l.b16 %v206
      %v239 = vpack.c.b16 %v232, %v231
      %v240 = vpack.c.b16 %v234, %v233
      %v241 = vpack.c.b16 %v236, %v235
      %v242 = vpack.c.b16 %v238, %v237
      %v263 = vunpack.c.l.b16 %v207
      %v264 = vunpack.c.l.b16 %v208
      %v265 = vunpack.c.l.b16 %v209
      %v266 = vunpack.c.l.b16 %v210
      %v267 = vunpack.c.l.b16 %v211
      %v268 = vunpack.c.l.b16 %v212
      %v269 = vunpack.c.l.b16 %v213
      %v270 = vunpack.c.l.b16 %v214
      %v271 = vunpack.c.l.b16 %v215
      %v272 = vunpack.c.l.b16 %v216
      %v273 = vunpack.c.l.b16 %v217
      %v274 = vunpack.c.l.b16 %v218
      %v275 = vunpack.c.l.b16 %v219
      %v276 = vunpack.c.l.b16 %v220
      %v277 = vunpack.c.l.b16 %v221
      %v278 = vunpack.c.l.b16 %v222
      %v279 = vpack.c.b16 %v264, %v263
      %v280 = vpack.c.b16 %v266, %v265
      %v281 = vpack.c.b16 %v268, %v267
      %v282 = vpack.c.b16 %v270, %v269
      %v283 = vpack.c.b16 %v272, %v271
      %v284 = vpack.c.b16 %v274, %v273
      %v285 = vpack.c.b16 %v276, %v275
      %v286 = vpack.c.b16 %v278, %v277
      %295 = vmatprep.subr.bf16.mxu0 0
      %296 = vmatpush1.bf16.msra.mxu0 %v286
      %297 = vmatprep.subr.bf16.mxu0 0
      %298 = vmatpush1.bf16.msra.mxu0 %v285
      %299 = vmatprep.subr.bf16.mxu0 0
      %300 = vmatpush1.bf16.msra.mxu0 %v284
      %301 = vmatprep.subr.bf16.mxu0 0
      %302 = vmatpush1.bf16.msra.mxu0 %v283
      %303 = vmatprep.subr.bf16.mxu0 0
      %304 = vmatpush1.bf16.msra.mxu0 %v282
      %305 = vmatprep.subr.bf16.mxu0 0
      %306 = vmatpush1.bf16.msra.mxu0 %v281
      %307 = vmatprep.subr.bf16.mxu0 0
      %308 = vmatpush1.bf16.msra.mxu0 %v280
      %309 = vmatprep.subr.bf16.mxu0 0
      %310 = vmatpush1.bf16.msra.mxu0 %v279
      %311 = vmatprep.subr.bf16.mxu0 0
      %312 = vmatpush2.bf16.msra.mxu0 0
      %313 = vmatprep.subr.bf16.mxu0 0
      %314 = vmatpush2.bf16.msra.mxu0 0
      %315 = vmatprep.subr.bf16.mxu0 0
      %316 = vmatpush2.bf16.msra.mxu0 0
      %317 = vmatprep.subr.bf16.mxu0 0
      %318 = vmatpush2.bf16.msra.mxu0 0
      %319 = vmatprep.subr.bf16.mxu0 0
      %320 = vmatpush2.bf16.msra.mxu0 0
      %321 = vmatprep.subr.bf16.mxu0 0
      %322 = vmatpush2.bf16.msra.mxu0 0
      %323 = vmatprep.subr.bf16.mxu0 0
      %324 = vmatpush2.bf16.msra.mxu0 0
      %325 = vmatprep.subr.bf16.mxu0 0
      %326 = vmatpush2.bf16.msra.mxu0 0
      %327 = vmatprep.mubr.bf16.mxu0 0
      %328 = vmatmul.mubr.bf16.gmra.mxu0 %v239
      %v329 = vpop.f32.mrf.mxu0
      %v330 = vadd.f32 0.0, %v329
      %v331 = vpop.f32.mrf.mxu0
      %v332 = vpop.f32.mrf.mxu0
      %v333 = vadd.f32 0.0, %v332
      %v334 = vpop.f32.mrf.mxu0
      %335 = vmatprep.mubr.bf16.mxu0 0
      %336 = vmatmul.mubr.bf16.gmra.mxu0 %v240
      %v337 = vpop.f32.mrf.mxu0
      %v338 = vadd.f32 0.0, %v337
      %v339 = vpop.f32.mrf.mxu0
      %v340 = vpop.f32.mrf.mxu0
      %v341 = vadd.f32 0.0, %v340
      %v342 = vpop.f32.mrf.mxu0
      %343 = vmatprep.mubr.bf16.mxu0 0
      %344 = vmatmul.mubr.bf16.gmra.mxu0 %v241
      %v345 = vpop.f32.mrf.mxu0
      %v346 = vadd.f32 0.0, %v345
      %v347 = vpop.f32.mrf.mxu0
      %v348 = vpop.f32.mrf.mxu0
      %v349 = vadd.f32 0.0, %v348
      %v350 = vpop.f32.mrf.mxu0
      %351 = vmatprep.mubr.bf16.mxu0 0
      %352 = vmatmul.mubr.bf16.gmra.mxu0 %v242
      %v353 = vpop.f32.mrf.mxu0
      %v354 = vadd.f32 0.0, %v353
      %v355 = vpop.f32.mrf.mxu0
      %v356 = vpop.f32.mrf.mxu0
      %v357 = vadd.f32 0.0, %v356
      %v358 = vpop.f32.mrf.mxu0
      %359 = vdwg.mxu0
      %360 = vst [vmem:[#allocation2] sm:$0xff] %v330
      %361 = vst [vmem:[#allocation2 + $0x8] sm:$0xff] %v333
      %362 = vst [vmem:[#allocation2 + $0x10] sm:$0xff] %v338
      %363 = vst [vmem:[#allocation2 + $0x18] sm:$0xff] %v341
      %364 = vst [vmem:[#allocation2 + $0x20] sm:$0xff] %v346
      %365 = vst [vmem:[#allocation2 + $0x28] sm:$0xff] %v349
      %366 = vst [vmem:[#allocation2 + $0x30] sm:$0xff] %v354
      %367 = vst [vmem:[#allocation2 + $0x38] sm:$0xff] %v357
      %v368 = vld [vmem:[%s198] sm:$0xf]
      %v369 = vld [vmem:[%s198 + $0x4] sm:$0x1]
      %v370 = vld [vmem:[%s198 + $0x8] sm:$0xf]
      %v371 = vld [vmem:[%s198 + $0xc] sm:$0x1]
      %v372 = vld [vmem:[%s198 + $0x10] sm:$0xf]
      %v373 = vld [vmem:[%s198 + $0x14] sm:$0x1]
      %v374 = vld [vmem:[%s198 + $0x18] sm:$0xf]
      %v375 = vld [vmem:[%s198 + $0x1c] sm:$0x1]
      %v376 = vld [vmem:[%s198 + $0x20] sm:$0xf]
      %v377 = vld [vmem:[%s198 + $0x24] sm:$0x1]
      %v378 = vld [vmem:[%s198 + $0x28] sm:$0xf]
      %v379 = vld [vmem:[%s198 + $0x2c] sm:$0x1]
      %v380 = vld [vmem:[%s198 + $0x30] sm:$0xf]
      %v381 = vld [vmem:[%s198 + $0x34] sm:$0x1]
      %v382 = vld [vmem:[%s198 + $0x38] sm:$0xf]
      %v383 = vld [vmem:[%s198 + $0x3c] sm:$0x1]
      %vm384 = vsmask.f32 3328
      %vm385 = vsmask.f32 7440
      %vm386 = vmor %vm384, %vm385
      %v388 = vshrl.u32 %v368, 16
      %v390 = vrot.slane %v388, 4
      %v391 = vshll.u32 %v368, 16
      %v393 = vrot.slane %v391, 5
      %v394 = vor.u32 %v390, %v393
      %v395 = vrot.slane %v394, 4
      %v397 = vshll.u32 %v369, 16
      %v399 = vrot.slane %v397, 5
      %v400 = vsel %vm386, %v395, %v399
      %v402 = vshrl.u32 %v370, 16
      %v404 = vrot.slane %v402, 4
      %v405 = vshll.u32 %v370, 16
      %v407 = vrot.slane %v405, 5
      %v408 = vor.u32 %v404, %v407
      %v409 = vrot.slane %v408, 4
      %v411 = vshll.u32 %v371, 16
      %v413 = vrot.slane %v411, 5
      %v414 = vsel %vm386, %v409, %v413
      %v416 = vshrl.u32 %v372, 16
      %v418 = vrot.slane %v416, 4
      %v419 = vshll.u32 %v372, 16
      %v421 = vrot.slane %v419, 5
      %v422 = vor.u32 %v418, %v421
      %v423 = vrot.slane %v422, 4
      %v425 = vshll.u32 %v373, 16
      %v427 = vrot.slane %v425, 5
      %v428 = vsel %vm386, %v423, %v427
      %v430 = vshrl.u32 %v374, 16
      %v432 = vrot.slane %v430, 4
      %v433 = vshll.u32 %v374, 16
      %v435 = vrot.slane %v433, 5
      %v436 = vor.u32 %v432, %v435
      %v437 = vrot.slane %v436, 4
      %v439 = vshll.u32 %v375, 16
      %v441 = vrot.slane %v439, 5
      %v442 = vsel %vm386, %v437, %v441
      %v444 = vshrl.u32 %v376, 16
      %v446 = vrot.slane %v444, 4
      %v447 = vshll.u32 %v376, 16
      %v449 = vrot.slane %v447, 5
      %v450 = vor.u32 %v446, %v449
      %v451 = vrot.slane %v450, 4
      %v453 = vshll.u32 %v377, 16
      %v455 = vrot.slane %v453, 5
      %v456 = vsel %vm386, %v451, %v455
      %v458 = vshrl.u32 %v378, 16
      %v460 = vrot.slane %v458, 4
      %v461 = vshll.u32 %v378, 16
      %v463 = vrot.slane %v461, 5
      %v464 = vor.u32 %v460, %v463
      %v465 = vrot.slane %v464, 4
      %v467 = vshll.u32 %v379, 16
      %v469 = vrot.slane %v467, 5
      %v470 = vsel %vm386, %v465, %v469
      %v472 = vshrl.u32 %v380, 16
      %v474 = vrot.slane %v472, 4
      %v475 = vshll.u32 %v380, 16
      %v477 = vrot.slane %v475, 5
      %v478 = vor.u32 %v474, %v477
      %v479 = vrot.slane %v478, 4
      %v481 = vshll.u32 %v381, 16
      %v483 = vrot.slane %v481, 5
      %v484 = vsel %vm386, %v479, %v483
      %v486 = vshrl.u32 %v382, 16
      %v488 = vrot.slane %v486, 4
      %v489 = vshll.u32 %v382, 16
      %v491 = vrot.slane %v489, 5
      %v492 = vor.u32 %v488, %v491
      %v493 = vrot.slane %v492, 4
      %v495 = vshll.u32 %v383, 16
      %v497 = vrot.slane %v495, 5
      %v498 = vsel %vm386, %v493, %v497
      %s499 = scalar_lea.vmem %s1, 64
      %v500 = vld [vmem:[%s499] sm:$0xf]
      %v501 = vld [vmem:[%s499 + $0x4] sm:$0xf]
      %v502 = vld [vmem:[%s499 + $0x8] sm:$0xf]
      %v503 = vld [vmem:[%s499 + $0xc] sm:$0xf]
      %v504 = vld [vmem:[%s499 + $0x10] sm:$0xf]
      %v505 = vld [vmem:[%s499 + $0x14] sm:$0xf]
      %v506 = vld [vmem:[%s499 + $0x18] sm:$0xf]
      %v507 = vld [vmem:[%s499 + $0x1c] sm:$0xf]
      %v508 = vld [vmem:[%s499 + $0x20] sm:$0xf]
      %v509 = vld [vmem:[%s499 + $0x24] sm:$0xf]
      %v510 = vld [vmem:[%s499 + $0x28] sm:$0xf]
      %v511 = vld [vmem:[%s499 + $0x2c] sm:$0xf]
      %v512 = vld [vmem:[%s499 + $0x30] sm:$0xf]
      %v513 = vld [vmem:[%s499 + $0x34] sm:$0xf]
      %v514 = vld [vmem:[%s499 + $0x38] sm:$0xf]
      %v515 = vld [vmem:[%s499 + $0x3c] sm:$0xf]
      %v516 = vunpack.c.l.b16 %v400
      %v517 = vunpack.c.l.b16 %v414
      %v518 = vunpack.c.l.b16 %v428
      %v519 = vunpack.c.l.b16 %v442
      %v520 = vunpack.c.l.b16 %v456
      %v521 = vunpack.c.l.b16 %v470
      %v522 = vunpack.c.l.b16 %v484
      %v523 = vunpack.c.l.b16 %v498
      %v524 = vpack.c.b16 %v517, %v516
      %v525 = vpack.c.b16 %v519, %v518
      %v526 = vpack.c.b16 %v521, %v520
      %v527 = vpack.c.b16 %v523, %v522
      %v548 = vunpack.c.l.b16 %v500
      %v549 = vunpack.c.l.b16 %v501
      %v550 = vunpack.c.l.b16 %v502
      %v551 = vunpack.c.l.b16 %v503
      %v552 = vunpack.c.l.b16 %v504
      %v553 = vunpack.c.l.b16 %v505
      %v554 = vunpack.c.l.b16 %v506
      %v555 = vunpack.c.l.b16 %v507
      %v556 = vunpack.c.l.b16 %v508
      %v557 = vunpack.c.l.b16 %v509
      %v558 = vunpack.c.l.b16 %v510
      %v559 = vunpack.c.l.b16 %v511
      %v560 = vunpack.c.l.b16 %v512
      %v561 = vunpack.c.l.b16 %v513
      %v562 = vunpack.c.l.b16 %v514
      %v563 = vunpack.c.l.b16 %v515
      %v564 = vpack.c.b16 %v549, %v548
      %v565 = vpack.c.b16 %v551, %v550
      %v566 = vpack.c.b16 %v553, %v552
      %v567 = vpack.c.b16 %v555, %v554
      %v568 = vpack.c.b16 %v557, %v556
      %v569 = vpack.c.b16 %v559, %v558
      %v570 = vpack.c.b16 %v561, %v560
      %v571 = vpack.c.b16 %v563, %v562
      %580 = vmatprep.subr.bf16.mxu0 0
      %581 = vmatpush1.bf16.msra.mxu0 %v571
      %582 = vmatprep.subr.bf16.mxu0 0
      %583 = vmatpush1.bf16.msra.mxu0 %v570
      %584 = vmatprep.subr.bf16.mxu0 0
      %585 = vmatpush1.bf16.msra.mxu0 %v569
      %586 = vmatprep.subr.bf16.mxu0 0
      %587 = vmatpush1.bf16.msra.mxu0 %v568
      %588 = vmatprep.subr.bf16.mxu0 0
      %589 = vmatpush1.bf16.msra.mxu0 %v567
      %590 = vmatprep.subr.bf16.mxu0 0
      %591 = vmatpush1.bf16.msra.mxu0 %v566
      %592 = vmatprep.subr.bf16.mxu0 0
      %593 = vmatpush1.bf16.msra.mxu0 %v565
      %594 = vmatprep.subr.bf16.mxu0 0
      %595 = vmatpush1.bf16.msra.mxu0 %v564
      %596 = vmatprep.subr.bf16.mxu0 0
      %597 = vmatpush2.bf16.msra.mxu0 0
      %598 = vmatprep.subr.bf16.mxu0 0
      %599 = vmatpush2.bf16.msra.mxu0 0
      %600 = vmatprep.subr.bf16.mxu0 0
      %601 = vmatpush2.bf16.msra.mxu0 0
      %602 = vmatprep.subr.bf16.mxu0 0
      %603 = vmatpush2.bf16.msra.mxu0 0
      %604 = vmatprep.subr.bf16.mxu0 0
      %605 = vmatpush2.bf16.msra.mxu0 0
      %606 = vmatprep.subr.bf16.mxu0 0
      %607 = vmatpush2.bf16.msra.mxu0 0
      %608 = vmatprep.subr.bf16.mxu0 0
      %609 = vmatpush2.bf16.msra.mxu0 0
      %610 = vmatprep.subr.bf16.mxu0 0
      %611 = vmatpush2.bf16.msra.mxu0 0
      %612 = vmatprep.mubr.bf16.mxu0 0
      %613 = vmatmul.mubr.bf16.gmra.mxu0 %v524
      %v614 = vpop.f32.mrf.mxu0
      %v615 = vadd.f32 0.0, %v614
      %v616 = vpop.f32.mrf.mxu0
      %v617 = vpop.f32.mrf.mxu0
      %v618 = vadd.f32 0.0, %v617
      %v619 = vpop.f32.mrf.mxu0
      %620 = vmatprep.mubr.bf16.mxu0 0
      %621 = vmatmul.mubr.bf16.gmra.mxu0 %v525
      %v622 = vpop.f32.mrf.mxu0
      %v623 = vadd.f32 0.0, %v622
      %v624 = vpop.f32.mrf.mxu0
      %v625 = vpop.f32.mrf.mxu0
      %v626 = vadd.f32 0.0, %v625
      %v627 = vpop.f32.mrf.mxu0
      %628 = vmatprep.mubr.bf16.mxu0 0
      %629 = vmatmul.mubr.bf16.gmra.mxu0 %v526
      %v630 = vpop.f32.mrf.mxu0
      %v631 = vadd.f32 0.0, %v630
      %v632 = vpop.f32.mrf.mxu0
      %v633 = vpop.f32.mrf.mxu0
      %v634 = vadd.f32 0.0, %v633
      %v635 = vpop.f32.mrf.mxu0
      %636 = vmatprep.mubr.bf16.mxu0 0
      %637 = vmatmul.mubr.bf16.gmra.mxu0 %v527
      %v638 = vpop.f32.mrf.mxu0
      %v639 = vadd.f32 0.0, %v638
      %v640 = vpop.f32.mrf.mxu0
      %v641 = vpop.f32.mrf.mxu0
      %v642 = vadd.f32 0.0, %v641
      %v643 = vpop.f32.mrf.mxu0
      %644 = vdwg.mxu0
      %v645 = vld [vmem:[#allocation2] sm:$0xff]
      %v646 = vld [vmem:[#allocation2 + $0x8] sm:$0xff]
      %v647 = vld [vmem:[#allocation2 + $0x10] sm:$0xff]
      %v648 = vld [vmem:[#allocation2 + $0x18] sm:$0xff]
      %v649 = vld [vmem:[#allocation2 + $0x20] sm:$0xff]
      %v650 = vld [vmem:[#allocation2 + $0x28] sm:$0xff]
      %v651 = vld [vmem:[#allocation2 + $0x30] sm:$0xff]
      %v652 = vld [vmem:[#allocation2 + $0x38] sm:$0xff]
      %v653 = vadd.f32 %v645, %v615
      %v654 = vadd.f32 %v646, %v618
      %v655 = vadd.f32 %v647, %v623
      %v656 = vadd.f32 %v648, %v626
      %v657 = vadd.f32 %v649, %v631
      %v658 = vadd.f32 %v650, %v634
      %v659 = vadd.f32 %v651, %v639
      %v660 = vadd.f32 %v652, %v642
      %661 = vst [vmem:[#allocation2] sm:$0xff] %v653
      %662 = vst [vmem:[#allocation2 + $0x8] sm:$0xff] %v654
      %663 = vst [vmem:[#allocation2 + $0x10] sm:$0xff] %v655
      %664 = vst [vmem:[#allocation2 + $0x18] sm:$0xff] %v656
      %665 = vst [vmem:[#allocation2 + $0x20] sm:$0xff] %v657
      %666 = vst [vmem:[#allocation2 + $0x28] sm:$0xff] %v658
      %667 = vst [vmem:[#allocation2 + $0x30] sm:$0xff] %v659
      %668 = vst [vmem:[#allocation2 + $0x38] sm:$0xff] %v660
      %v669 = vld [vmem:[%s198] sm:$0xe]
      %v670 = vld [vmem:[%s198 + $0x4] sm:$0x1]
      %v671 = vld [vmem:[%s198 + $0x8] sm:$0xe]
      %v672 = vld [vmem:[%s198 + $0xc] sm:$0x1]
      %v673 = vld [vmem:[%s198 + $0x10] sm:$0xe]
      %v674 = vld [vmem:[%s198 + $0x14] sm:$0x1]
      %v675 = vld [vmem:[%s198 + $0x18] sm:$0xe]
      %v676 = vld [vmem:[%s198 + $0x1c] sm:$0x1]
      %v677 = vld [vmem:[%s198 + $0x20] sm:$0xe]
      %v678 = vld [vmem:[%s198 + $0x24] sm:$0x1]
      %v679 = vld [vmem:[%s198 + $0x28] sm:$0xe]
      %v680 = vld [vmem:[%s198 + $0x2c] sm:$0x1]
      %v681 = vld [vmem:[%s198 + $0x30] sm:$0xe]
      %v682 = vld [vmem:[%s198 + $0x34] sm:$0x1]
      %v683 = vld [vmem:[%s198 + $0x38] sm:$0xe]
      %v684 = vld [vmem:[%s198 + $0x3c] sm:$0x1]
      %vm701 = vcmask 1042432
      %vm702 = vcmask 1046532
      %vm703 = vmor %vm701, %vm702
      %v704 = vrot.slane %v669, 5
      %v705 = vrot.slane %v704, 4
      %v706 = vrot.slane %v670, 5
      %v707 = vsel %vm703, %v705, %v706
      %v708 = vrot.slane %v671, 5
      %v709 = vrot.slane %v708, 4
      %v710 = vrot.slane %v672, 5
      %v711 = vsel %vm703, %v709, %v710
      %v712 = vrot.slane %v673, 5
      %v713 = vrot.slane %v712, 4
      %v714 = vrot.slane %v674, 5
      %v715 = vsel %vm703, %v713, %v714
      %v716 = vrot.slane %v675, 5
      %v717 = vrot.slane %v716, 4
      %v718 = vrot.slane %v676, 5
      %v719 = vsel %vm703, %v717, %v718
      %v720 = vrot.slane %v677, 5
      %v721 = vrot.slane %v720, 4
      %v722 = vrot.slane %v678, 5
      %v723 = vsel %vm703, %v721, %v722
      %v724 = vrot.slane %v679, 5
      %v725 = vrot.slane %v724, 4
      %v726 = vrot.slane %v680, 5
      %v727 = vsel %vm703, %v725, %v726
      %v728 = vrot.slane %v681, 5
      %v729 = vrot.slane %v728, 4
      %v730 = vrot.slane %v682, 5
      %v731 = vsel %vm703, %v729, %v730
      %v732 = vrot.slane %v683, 5
      %v733 = vrot.slane %v732, 4
      %v734 = vrot.slane %v684, 5
      %v735 = vsel %vm703, %v733, %v734
      %s736 = scalar_lea.vmem %s1, 128
      %v737 = vld [vmem:[%s736] sm:$0xf]
      %v738 = vld [vmem:[%s736 + $0x4] sm:$0xf]
      %v739 = vld [vmem:[%s736 + $0x8] sm:$0xf]
      %v740 = vld [vmem:[%s736 + $0xc] sm:$0xf]
      %v741 = vld [vmem:[%s736 + $0x10] sm:$0xf]
      %v742 = vld [vmem:[%s736 + $0x14] sm:$0xf]
      %v743 = vld [vmem:[%s736 + $0x18] sm:$0xf]
      %v744 = vld [vmem:[%s736 + $0x1c] sm:$0xf]
      %v745 = vld [vmem:[%s736 + $0x20] sm:$0xf]
      %v746 = vld [vmem:[%s736 + $0x24] sm:$0xf]
      %v747 = vld [vmem:[%s736 + $0x28] sm:$0xf]
      %v748 = vld [vmem:[%s736 + $0x2c] sm:$0xf]
      %v749 = vld [vmem:[%s736 + $0x30] sm:$0xf]
      %v750 = vld [vmem:[%s736 + $0x34] sm:$0xf]
      %v751 = vld [vmem:[%s736 + $0x38] sm:$0xf]
      %v752 = vld [vmem:[%s736 + $0x3c] sm:$0xf]
      %v753 = vunpack.c.l.b16 %v707
      %v754 = vunpack.c.l.b16 %v711
      %v755 = vunpack.c.l.b16 %v715
      %v756 = vunpack.c.l.b16 %v719
      %v757 = vunpack.c.l.b16 %v723
      %v758 = vunpack.c.l.b16 %v727
      %v759 = vunpack.c.l.b16 %v731
      %v760 = vunpack.c.l.b16 %v735
      %v761 = vpack.c.b16 %v754, %v753
      %v762 = vpack.c.b16 %v756, %v755
      %v763 = vpack.c.b16 %v758, %v757
      %v764 = vpack.c.b16 %v760, %v759
      %v785 = vunpack.c.l.b16 %v737
      %v786 = vunpack.c.l.b16 %v738
      %v787 = vunpack.c.l.b16 %v739
      %v788 = vunpack.c.l.b16 %v740
      %v789 = vunpack.c.l.b16 %v741
      %v790 = vunpack.c.l.b16 %v742
      %v791 = vunpack.c.l.b16 %v743
      %v792 = vunpack.c.l.b16 %v744
      %v793 = vunpack.c.l.b16 %v745
      %v794 = vunpack.c.l.b16 %v746
      %v795 = vunpack.c.l.b16 %v747
      %v796 = vunpack.c.l.b16 %v748
      %v797 = vunpack.c.l.b16 %v749
      %v798 = vunpack.c.l.b16 %v750
      %v799 = vunpack.c.l.b16 %v751
      %v800 = vunpack.c.l.b16 %v752
      %v801 = vpack.c.b16 %v786, %v785
      %v802 = vpack.c.b16 %v788, %v787
      %v803 = vpack.c.b16 %v790, %v789
      %v804 = vpack.c.b16 %v792, %v791
      %v805 = vpack.c.b16 %v794, %v793
      %v806 = vpack.c.b16 %v796, %v795
      %v807 = vpack.c.b16 %v798, %v797
      %v808 = vpack.c.b16 %v800, %v799
      %817 = vmatprep.subr.bf16.mxu0 0
      %818 = vmatpush1.bf16.msra.mxu0 %v808
      %819 = vmatprep.subr.bf16.mxu0 0
      %820 = vmatpush1.bf16.msra.mxu0 %v807
      %821 = vmatprep.subr.bf16.mxu0 0
      %822 = vmatpush1.bf16.msra.mxu0 %v806
      %823 = vmatprep.subr.bf16.mxu0 0
      %824 = vmatpush1.bf16.msra.mxu0 %v805
      %825 = vmatprep.subr.bf16.mxu0 0
      %826 = vmatpush1.bf16.msra.mxu0 %v804
      %827 = vmatprep.subr.bf16.mxu0 0
      %828 = vmatpush1.bf16.msra.mxu0 %v803
      %829 = vmatprep.subr.bf16.mxu0 0
      %830 = vmatpush1.bf16.msra.mxu0 %v802
      %831 = vmatprep.subr.bf16.mxu0 0
      %832 = vmatpush1.bf16.msra.mxu0 %v801
      %833 = vmatprep.subr.bf16.mxu0 0
      %834 = vmatpush2.bf16.msra.mxu0 0
      %835 = vmatprep.subr.bf16.mxu0 0
      %836 = vmatpush2.bf16.msra.mxu0 0
      %837 = vmatprep.subr.bf16.mxu0 0
      %838 = vmatpush2.bf16.msra.mxu0 0
      %839 = vmatprep.subr.bf16.mxu0 0
      %840 = vmatpush2.bf16.msra.mxu0 0
      %841 = vmatprep.subr.bf16.mxu0 0
      %842 = vmatpush2.bf16.msra.mxu0 0
      %843 = vmatprep.subr.bf16.mxu0 0
      %844 = vmatpush2.bf16.msra.mxu0 0
      %845 = vmatprep.subr.bf16.mxu0 0
      %846 = vmatpush2.bf16.msra.mxu0 0
      %847 = vmatprep.subr.bf16.mxu0 0
      %848 = vmatpush2.bf16.msra.mxu0 0
      %849 = vmatprep.mubr.bf16.mxu0 0
      %850 = vmatmul.mubr.bf16.gmra.mxu0 %v761
      %v851 = vpop.f32.mrf.mxu0
      %v852 = vadd.f32 0.0, %v851
      %v853 = vpop.f32.mrf.mxu0
      %v854 = vpop.f32.mrf.mxu0
      %v855 = vadd.f32 0.0, %v854
      %v856 = vpop.f32.mrf.mxu0
      %857 = vmatprep.mubr.bf16.mxu0 0
      %858 = vmatmul.mubr.bf16.gmra.mxu0 %v762
      %v859 = vpop.f32.mrf.mxu0
      %v860 = vadd.f32 0.0, %v859
      %v861 = vpop.f32.mrf.mxu0
      %v862 = vpop.f32.mrf.mxu0
      %v863 = vadd.f32 0.0, %v862
      %v864 = vpop.f32.mrf.mxu0
      %865 = vmatprep.mubr.bf16.mxu0 0
      %866 = vmatmul.mubr.bf16.gmra.mxu0 %v763
      %v867 = vpop.f32.mrf.mxu0
      %v868 = vadd.f32 0.0, %v867
      %v869 = vpop.f32.mrf.mxu0
      %v870 = vpop.f32.mrf.mxu0
      %v871 = vadd.f32 0.0, %v870
      %v872 = vpop.f32.mrf.mxu0
      %873 = vmatprep.mubr.bf16.mxu0 0
      %874 = vmatmul.mubr.bf16.gmra.mxu0 %v764
      %v875 = vpop.f32.mrf.mxu0
      %v876 = vadd.f32 0.0, %v875
      %v877 = vpop.f32.mrf.mxu0
      %v878 = vpop.f32.mrf.mxu0
      %v879 = vadd.f32 0.0, %v878
      %v880 = vpop.f32.mrf.mxu0
      %881 = vdwg.mxu0
      %v882 = vld [vmem:[#allocation2] sm:$0xff]
      %v883 = vld [vmem:[#allocation2 + $0x8] sm:$0xff]
      %v884 = vld [vmem:[#allocation2 + $0x10] sm:$0xff]
      %v885 = vld [vmem:[#allocation2 + $0x18] sm:$0xff]
      %v886 = vld [vmem:[#allocation2 + $0x20] sm:$0xff]
      %v887 = vld [vmem:[#allocation2 + $0x28] sm:$0xff]
      %v888 = vld [vmem:[#allocation2 + $0x30] sm:$0xff]
      %v889 = vld [vmem:[#allocation2 + $0x38] sm:$0xff]
      %v890 = vadd.f32 %v882, %v852
      %v891 = vadd.f32 %v883, %v855
      %v892 = vadd.f32 %v884, %v860
      %v893 = vadd.f32 %v885, %v863
      %v894 = vadd.f32 %v886, %v868
      %v895 = vadd.f32 %v887, %v871
      %v896 = vadd.f32 %v888, %v876
      %v897 = vadd.f32 %v889, %v879
      %898 = vst [vmem:[#allocation2] sm:$0xff] %v890
      %899 = vst [vmem:[#allocation2 + $0x8] sm:$0xff] %v891
      %900 = vst [vmem:[#allocation2 + $0x10] sm:$0xff] %v892
      %901 = vst [vmem:[#allocation2 + $0x18] sm:$0xff] %v893
      %902 = vst [vmem:[#allocation2 + $0x20] sm:$0xff] %v894
      %903 = vst [vmem:[#allocation2 + $0x28] sm:$0xff] %v895
      %904 = vst [vmem:[#allocation2 + $0x30] sm:$0xff] %v896
      %905 = vst [vmem:[#allocation2 + $0x38] sm:$0xff] %v897
      %s906 = sadd.s32 %s195, 1
      %s907 = smul.u32 %s906, 2
      %s908 = smul.addr %s907, 4
      %s909 = scalar_lea.vmem %s183, %s908
      %v910 = vld [vmem:[%s909] sm:$0xf]
      %v911 = vld [vmem:[%s909 + $0x8] sm:$0xf]
      %v912 = vld [vmem:[%s909 + $0x10] sm:$0xf]
      %v913 = vld [vmem:[%s909 + $0x18] sm:$0xf]
      %v914 = vld [vmem:[%s909 + $0x20] sm:$0xf]
      %v915 = vld [vmem:[%s909 + $0x28] sm:$0xf]
      %v916 = vld [vmem:[%s909 + $0x30] sm:$0xf]
      %v917 = vld [vmem:[%s909 + $0x38] sm:$0xf]
      %s918 = scalar_lea.vmem %s1, 192
      %v919 = vld [vmem:[%s918] sm:$0xf]
      %v920 = vld [vmem:[%s918 + $0x4] sm:$0xf]
      %v921 = vld [vmem:[%s918 + $0x8] sm:$0xf]
      %v922 = vld [vmem:[%s918 + $0xc] sm:$0xf]
      %v923 = vld [vmem:[%s918 + $0x10] sm:$0xf]
      %v924 = vld [vmem:[%s918 + $0x14] sm:$0xf]
      %v925 = vld [vmem:[%s918 + $0x18] sm:$0xf]
      %v926 = vld [vmem:[%s918 + $0x1c] sm:$0xf]
      %v927 = vld [vmem:[%s918 + $0x20] sm:$0xf]
      %v928 = vld [vmem:[%s918 + $0x24] sm:$0xf]
      %v929 = vld [vmem:[%s918 + $0x28] sm:$0xf]
      %v930 = vld [vmem:[%s918 + $0x2c] sm:$0xf]
      %v931 = vld [vmem:[%s918 + $0x30] sm:$0xf]
      %v932 = vld [vmem:[%s918 + $0x34] sm:$0xf]
      %v933 = vld [vmem:[%s918 + $0x38] sm:$0xf]
      %v934 = vld [vmem:[%s918 + $0x3c] sm:$0xf]
      %v943 = vunpack.c.l.b16 %v910
      %v944 = vunpack.c.l.b16 %v911
      %v945 = vunpack.c.l.b16 %v912
      %v946 = vunpack.c.l.b16 %v913
      %v947 = vunpack.c.l.b16 %v914
      %v948 = vunpack.c.l.b16 %v915
      %v949 = vunpack.c.l.b16 %v916
      %v950 = vunpack.c.l.b16 %v917
      %v951 = vpack.c.b16 %v944, %v943
      %v952 = vpack.c.b16 %v946, %v945
      %v953 = vpack.c.b16 %v948, %v947
      %v954 = vpack.c.b16 %v950, %v949
      %v975 = vunpack.c.l.b16 %v919
      %v976 = vunpack.c.l.b16 %v920
      %v977 = vunpack.c.l.b16 %v921
      %v978 = vunpack.c.l.b16 %v922
      %v979 = vunpack.c.l.b16 %v923
      %v980 = vunpack.c.l.b16 %v924
      %v981 = vunpack.c.l.b16 %v925
      %v982 = vunpack.c.l.b16 %v926
      %v983 = vunpack.c.l.b16 %v927
      %v984 = vunpack.c.l.b16 %v928
      %v985 = vunpack.c.l.b16 %v929
      %v986 = vunpack.c.l.b16 %v930
      %v987 = vunpack.c.l.b16 %v931
      %v988 = vunpack.c.l.b16 %v932
      %v989 = vunpack.c.l.b16 %v933
      %v990 = vunpack.c.l.b16 %v934
      %v991 = vpack.c.b16 %v976, %v975
      %v992 = vpack.c.b16 %v978, %v977
      %v993 = vpack.c.b16 %v980, %v979
      %v994 = vpack.c.b16 %v982, %v981
      %v995 = vpack.c.b16 %v984, %v983
      %v996 = vpack.c.b16 %v986, %v985
      %v997 = vpack.c.b16 %v988, %v987
      %v998 = vpack.c.b16 %v990, %v989
      %1007 = vmatprep.subr.bf16.mxu0 0
      %1008 = vmatpush1.bf16.msra.mxu0 %v998
      %1009 = vmatprep.subr.bf16.mxu0 0
      %1010 = vmatpush1.bf16.msra.mxu0 %v997
      %1011 = vmatprep.subr.bf16.mxu0 0
      %1012 = vmatpush1.bf16.msra.mxu0 %v996
      %1013 = vmatprep.subr.bf16.mxu0 0
      %1014 = vmatpush1.bf16.msra.mxu0 %v995
      %1015 = vmatprep.subr.bf16.mxu0 0
      %1016 = vmatpush1.bf16.msra.mxu0 %v994
      %1017 = vmatprep.subr.bf16.mxu0 0
      %1018 = vmatpush1.bf16.msra.mxu0 %v993
      %1019 = vmatprep.subr.bf16.mxu0 0
      %1020 = vmatpush1.bf16.msra.mxu0 %v992
      %1021 = vmatprep.subr.bf16.mxu0 0
      %1022 = vmatpush1.bf16.msra.mxu0 %v991
      %1023 = vmatprep.subr.bf16.mxu0 0
      %1024 = vmatpush2.bf16.msra.mxu0 0
      %1025 = vmatprep.subr.bf16.mxu0 0
      %1026 = vmatpush2.bf16.msra.mxu0 0
      %1027 = vmatprep.subr.bf16.mxu0 0
      %1028 = vmatpush2.bf16.msra.mxu0 0
      %1029 = vmatprep.subr.bf16.mxu0 0
      %1030 = vmatpush2.bf16.msra.mxu0 0
      %1031 = vmatprep.subr.bf16.mxu0 0
      %1032 = vmatpush2.bf16.msra.mxu0 0
      %1033 = vmatprep.subr.bf16.mxu0 0
      %1034 = vmatpush2.bf16.msra.mxu0 0
      %1035 = vmatprep.subr.bf16.mxu0 0
      %1036 = vmatpush2.bf16.msra.mxu0 0
      %1037 = vmatprep.subr.bf16.mxu0 0
      %1038 = vmatpush2.bf16.msra.mxu0 0
      %1039 = vmatprep.mubr.bf16.mxu0 0
      %1040 = vmatmul.mubr.bf16.gmra.mxu0 %v951
      %v1041 = vpop.f32.mrf.mxu0
      %v1042 = vadd.f32 0.0, %v1041
      %v1043 = vpop.f32.mrf.mxu0
      %v1044 = vpop.f32.mrf.mxu0
      %v1045 = vadd.f32 0.0, %v1044
      %v1046 = vpop.f32.mrf.mxu0
      %1047 = vmatprep.mubr.bf16.mxu0 0
      %1048 = vmatmul.mubr.bf16.gmra.mxu0 %v952
      %v1049 = vpop.f32.mrf.mxu0
      %v1050 = vadd.f32 0.0, %v1049
      %v1051 = vpop.f32.mrf.mxu0
      %v1052 = vpop.f32.mrf.mxu0
      %v1053 = vadd.f32 0.0, %v1052
      %v1054 = vpop.f32.mrf.mxu0
      %1055 = vmatprep.mubr.bf16.mxu0 0
      %1056 = vmatmul.mubr.bf16.gmra.mxu0 %v953
      %v1057 = vpop.f32.mrf.mxu0
      %v1058 = vadd.f32 0.0, %v1057
      %v1059 = vpop.f32.mrf.mxu0
      %v1060 = vpop.f32.mrf.mxu0
      %v1061 = vadd.f32 0.0, %v1060
      %v1062 = vpop.f32.mrf.mxu0
      %1063 = vmatprep.mubr.bf16.mxu0 0
      %1064 = vmatmul.mubr.bf16.gmra.mxu0 %v954
      %v1065 = vpop.f32.mrf.mxu0
      %v1066 = vadd.f32 0.0, %v1065
      %v1067 = vpop.f32.mrf.mxu0
      %v1068 = vpop.f32.mrf.mxu0
      %v1069 = vadd.f32 0.0, %v1068
      %v1070 = vpop.f32.mrf.mxu0
      %1071 = vdwg.mxu0
      %v1072 = vld [vmem:[#allocation2] sm:$0xff]
      %v1073 = vld [vmem:[#allocation2 + $0x8] sm:$0xff]
      %v1074 = vld [vmem:[#allocation2 + $0x10] sm:$0xff]
      %v1075 = vld [vmem:[#allocation2 + $0x18] sm:$0xff]
      %v1076 = vld [vmem:[#allocation2 + $0x20] sm:$0xff]
      %v1077 = vld [vmem:[#allocation2 + $0x28] sm:$0xff]
      %v1078 = vld [vmem:[#allocation2 + $0x30] sm:$0xff]
      %v1079 = vld [vmem:[#allocation2 + $0x38] sm:$0xff]
      %v1080 = vadd.f32 %v1072, %v1042
      %v1081 = vadd.f32 %v1073, %v1045
      %v1082 = vadd.f32 %v1074, %v1050
      %v1083 = vadd.f32 %v1075, %v1053
      %v1084 = vadd.f32 %v1076, %v1058
      %v1085 = vadd.f32 %v1077, %v1061
      %v1086 = vadd.f32 %v1078, %v1066
      %v1087 = vadd.f32 %v1079, %v1069
      %1088 = vst [vmem:[#allocation2] sm:$0xff] %v1080
      %1089 = vst [vmem:[#allocation2 + $0x8] sm:$0xff] %v1081
      %1090 = vst [vmem:[#allocation2 + $0x10] sm:$0xff] %v1082
      %1091 = vst [vmem:[#allocation2 + $0x18] sm:$0xff] %v1083
      %1092 = vst [vmem:[#allocation2 + $0x20] sm:$0xff] %v1084
      %1093 = vst [vmem:[#allocation2 + $0x28] sm:$0xff] %v1085
      %1094 = vst [vmem:[#allocation2 + $0x30] sm:$0xff] %v1086
      %1095 = vst [vmem:[#allocation2 + $0x38] sm:$0xff] %v1087
      %v1096 = vld [vmem:[%s909] sm:$0xf]
      %v1097 = vld [vmem:[%s909 + $0x4] sm:$0x1]
      %v1098 = vld [vmem:[%s909 + $0x8] sm:$0xf]
      %v1099 = vld [vmem:[%s909 + $0xc] sm:$0x1]
      %v1100 = vld [vmem:[%s909 + $0x10] sm:$0xf]
      %v1101 = vld [vmem:[%s909 + $0x14] sm:$0x1]
      %v1102 = vld [vmem:[%s909 + $0x18] sm:$0xf]
      %v1103 = vld [vmem:[%s909 + $0x1c] sm:$0x1]
      %v1104 = vld [vmem:[%s909 + $0x20] sm:$0xf]
      %v1105 = vld [vmem:[%s909 + $0x24] sm:$0x1]
      %v1106 = vld [vmem:[%s909 + $0x28] sm:$0xf]
      %v1107 = vld [vmem:[%s909 + $0x2c] sm:$0x1]
      %v1108 = vld [vmem:[%s909 + $0x30] sm:$0xf]
      %v1109 = vld [vmem:[%s909 + $0x34] sm:$0x1]
      %v1110 = vld [vmem:[%s909 + $0x38] sm:$0xf]
      %v1111 = vld [vmem:[%s909 + $0x3c] sm:$0x1]
      %v1113 = vshrl.u32 %v1096, 16
      %v1115 = vrot.slane %v1113, 4
      %v1116 = vshll.u32 %v1096, 16
      %v1118 = vrot.slane %v1116, 5
      %v1119 = vor.u32 %v1115, %v1118
      %v1120 = vrot.slane %v1119, 4
      %v1122 = vshll.u32 %v1097, 16
      %v1124 = vrot.slane %v1122, 5
      %v1125 = vsel %vm386, %v1120, %v1124
      %v1127 = vshrl.u32 %v1098, 16
      %v1129 = vrot.slane %v1127, 4
      %v1130 = vshll.u32 %v1098, 16
      %v1132 = vrot.slane %v1130, 5
      %v1133 = vor.u32 %v1129, %v1132
      %v1134 = vrot.slane %v1133, 4
      %v1136 = vshll.u32 %v1099, 16
      %v1138 = vrot.slane %v1136, 5
      %v1139 = vsel %vm386, %v1134, %v1138
      %v1141 = vshrl.u32 %v1100, 16
      %v1143 = vrot.slane %v1141, 4
      %v1144 = vshll.u32 %v1100, 16
      %v1146 = vrot.slane %v1144, 5
      %v1147 = vor.u32 %v1143, %v1146
      %v1148 = vrot.slane %v1147, 4
      %v1150 = vshll.u32 %v1101, 16
      %v1152 = vrot.slane %v1150, 5
      %v1153 = vsel %vm386, %v1148, %v1152
      %v1155 = vshrl.u32 %v1102, 16
      %v1157 = vrot.slane %v1155, 4
      %v1158 = vshll.u32 %v1102, 16
      %v1160 = vrot.slane %v1158, 5
      %v1161 = vor.u32 %v1157, %v1160
      %v1162 = vrot.slane %v1161, 4
      %v1164 = vshll.u32 %v1103, 16
      %v1166 = vrot.slane %v1164, 5
      %v1167 = vsel %vm386, %v1162, %v1166
      %v1169 = vshrl.u32 %v1104, 16
      %v1171 = vrot.slane %v1169, 4
      %v1172 = vshll.u32 %v1104, 16
      %v1174 = vrot.slane %v1172, 5
      %v1175 = vor.u32 %v1171, %v1174
      %v1176 = vrot.slane %v1175, 4
      %v1178 = vshll.u32 %v1105, 16
      %v1180 = vrot.slane %v1178, 5
      %v1181 = vsel %vm386, %v1176, %v1180
      %v1183 = vshrl.u32 %v1106, 16
      %v1185 = vrot.slane %v1183, 4
      %v1186 = vshll.u32 %v1106, 16
      %v1188 = vrot.slane %v1186, 5
      %v1189 = vor.u32 %v1185, %v1188
      %v1190 = vrot.slane %v1189, 4
      %v1192 = vshll.u32 %v1107, 16
      %v1194 = vrot.slane %v1192, 5
      %v1195 = vsel %vm386, %v1190, %v1194
      %v1197 = vshrl.u32 %v1108, 16
      %v1199 = vrot.slane %v1197, 4
      %v1200 = vshll.u32 %v1108, 16
      %v1202 = vrot.slane %v1200, 5
      %v1203 = vor.u32 %v1199, %v1202
      %v1204 = vrot.slane %v1203, 4
      %v1206 = vshll.u32 %v1109, 16
      %v1208 = vrot.slane %v1206, 5
      %v1209 = vsel %vm386, %v1204, %v1208
      %v1211 = vshrl.u32 %v1110, 16
      %v1213 = vrot.slane %v1211, 4
      %v1214 = vshll.u32 %v1110, 16
      %v1216 = vrot.slane %v1214, 5
      %v1217 = vor.u32 %v1213, %v1216
      %v1218 = vrot.slane %v1217, 4
      %v1220 = vshll.u32 %v1111, 16
      %v1222 = vrot.slane %v1220, 5
      %v1223 = vsel %vm386, %v1218, %v1222
      %s1224 = scalar_lea.vmem %s1, 256
      %v1225 = vld [vmem:[%s1224] sm:$0xf]
      %v1226 = vld [vmem:[%s1224 + $0x4] sm:$0xf]
      %v1227 = vld [vmem:[%s1224 + $0x8] sm:$0xf]
      %v1228 = vld [vmem:[%s1224 + $0xc] sm:$0xf]
      %v1229 = vld [vmem:[%s1224 + $0x10] sm:$0xf]
      %v1230 = vld [vmem:[%s1224 + $0x14] sm:$0xf]
      %v1231 = vld [vmem:[%s1224 + $0x18] sm:$0xf]
      %v1232 = vld [vmem:[%s1224 + $0x1c] sm:$0xf]
      %v1233 = vld [vmem:[%s1224 + $0x20] sm:$0xf]
      %v1234 = vld [vmem:[%s1224 + $0x24] sm:$0xf]
      %v1235 = vld [vmem:[%s1224 + $0x28] sm:$0xf]
      %v1236 = vld [vmem:[%s1224 + $0x2c] sm:$0xf]
      %v1237 = vld [vmem:[%s1224 + $0x30] sm:$0xf]
      %v1238 = vld [vmem:[%s1224 + $0x34] sm:$0xf]
      %v1239 = vld [vmem:[%s1224 + $0x38] sm:$0xf]
      %v1240 = vld [vmem:[%s1224 + $0x3c] sm:$0xf]
      %v1241 = vunpack.c.l.b16 %v1125
      %v1242 = vunpack.c.l.b16 %v1139
      %v1243 = vunpack.c.l.b16 %v1153
      %v1244 = vunpack.c.l.b16 %v1167
      %v1245 = vunpack.c.l.b16 %v1181
      %v1246 = vunpack.c.l.b16 %v1195
      %v1247 = vunpack.c.l.b16 %v1209
      %v1248 = vunpack.c.l.b16 %v1223
      %v1249 = vpack.c.b16 %v1242, %v1241
      %v1250 = vpack.c.b16 %v1244, %v1243
      %v1251 = vpack.c.b16 %v1246, %v1245
      %v1252 = vpack.c.b16 %v1248, %v1247
      %v1273 = vunpack.c.l.b16 %v1225
      %v1274 = vunpack.c.l.b16 %v1226
      %v1275 = vunpack.c.l.b16 %v1227
      %v1276 = vunpack.c.l.b16 %v1228
      %v1277 = vunpack.c.l.b16 %v1229
      %v1278 = vunpack.c.l.b16 %v1230
      %v1279 = vunpack.c.l.b16 %v1231
      %v1280 = vunpack.c.l.b16 %v1232
      %v1281 = vunpack.c.l.b16 %v1233
      %v1282 = vunpack.c.l.b16 %v1234
      %v1283 = vunpack.c.l.b16 %v1235
      %v1284 = vunpack.c.l.b16 %v1236
      %v1285 = vunpack.c.l.b16 %v1237
      %v1286 = vunpack.c.l.b16 %v1238
      %v1287 = vunpack.c.l.b16 %v1239
      %v1288 = vunpack.c.l.b16 %v1240
      %v1289 = vpack.c.b16 %v1274, %v1273
      %v1290 = vpack.c.b16 %v1276, %v1275
      %v1291 = vpack.c.b16 %v1278, %v1277
      %v1292 = vpack.c.b16 %v1280, %v1279
      %v1293 = vpack.c.b16 %v1282, %v1281
      %v1294 = vpack.c.b16 %v1284, %v1283
      %v1295 = vpack.c.b16 %v1286, %v1285
      %v1296 = vpack.c.b16 %v1288, %v1287
      %1305 = vmatprep.subr.bf16.mxu0 0
      %1306 = vmatpush1.bf16.msra.mxu0 %v1296
      %1307 = vmatprep.subr.bf16.mxu0 0
      %1308 = vmatpush1.bf16.msra.mxu0 %v1295
      %1309 = vmatprep.subr.bf16.mxu0 0
      %1310 = vmatpush1.bf16.msra.mxu0 %v1294
      %1311 = vmatprep.subr.bf16.mxu0 0
      %1312 = vmatpush1.bf16.msra.mxu0 %v1293
      %1313 = vmatprep.subr.bf16.mxu0 0
      %1314 = vmatpush1.bf16.msra.mxu0 %v1292
      %1315 = vmatprep.subr.bf16.mxu0 0
      %1316 = vmatpush1.bf16.msra.mxu0 %v1291
      %1317 = vmatprep.subr.bf16.mxu0 0
      %1318 = vmatpush1.bf16.msra.mxu0 %v1290
      %1319 = vmatprep.subr.bf16.mxu0 0
      %1320 = vmatpush1.bf16.msra.mxu0 %v1289
      %1321 = vmatprep.subr.bf16.mxu0 0
      %1322 = vmatpush2.bf16.msra.mxu0 0
      %1323 = vmatprep.subr.bf16.mxu0 0
      %1324 = vmatpush2.bf16.msra.mxu0 0
      %1325 = vmatprep.subr.bf16.mxu0 0
      %1326 = vmatpush2.bf16.msra.mxu0 0
      %1327 = vmatprep.subr.bf16.mxu0 0
      %1328 = vmatpush2.bf16.msra.mxu0 0
      %1329 = vmatprep.subr.bf16.mxu0 0
      %1330 = vmatpush2.bf16.msra.mxu0 0
      %1331 = vmatprep.subr.bf16.mxu0 0
      %1332 = vmatpush2.bf16.msra.mxu0 0
      %1333 = vmatprep.subr.bf16.mxu0 0
      %1334 = vmatpush2.bf16.msra.mxu0 0
      %1335 = vmatprep.subr.bf16.mxu0 0
      %1336 = vmatpush2.bf16.msra.mxu0 0
      %1337 = vmatprep.mubr.bf16.mxu0 0
      %1338 = vmatmul.mubr.bf16.gmra.mxu0 %v1249
      %v1339 = vpop.f32.mrf.mxu0
      %v1340 = vadd.f32 0.0, %v1339
      %v1341 = vpop.f32.mrf.mxu0
      %v1342 = vpop.f32.mrf.mxu0
      %v1343 = vadd.f32 0.0, %v1342
      %v1344 = vpop.f32.mrf.mxu0
      %1345 = vmatprep.mubr.bf16.mxu0 0
      %1346 = vmatmul.mubr.bf16.gmra.mxu0 %v1250
      %v1347 = vpop.f32.mrf.mxu0
      %v1348 = vadd.f32 0.0, %v1347
      %v1349 = vpop.f32.mrf.mxu0
      %v1350 = vpop.f32.mrf.mxu0
      %v1351 = vadd.f32 0.0, %v1350
      %v1352 = vpop.f32.mrf.mxu0
      %1353 = vmatprep.mubr.bf16.mxu0 0
      %1354 = vmatmul.mubr.bf16.gmra.mxu0 %v1251
      %v1355 = vpop.f32.mrf.mxu0
      %v1356 = vadd.f32 0.0, %v1355
      %v1357 = vpop.f32.mrf.mxu0
      %v1358 = vpop.f32.mrf.mxu0
      %v1359 = vadd.f32 0.0, %v1358
      %v1360 = vpop.f32.mrf.mxu0
      %1361 = vmatprep.mubr.bf16.mxu0 0
      %1362 = vmatmul.mubr.bf16.gmra.mxu0 %v1252
      %v1363 = vpop.f32.mrf.mxu0
      %v1364 = vadd.f32 0.0, %v1363
      %v1365 = vpop.f32.mrf.mxu0
      %v1366 = vpop.f32.mrf.mxu0
      %v1367 = vadd.f32 0.0, %v1366
      %v1368 = vpop.f32.mrf.mxu0
      %1369 = vdwg.mxu0
      %v1370 = vld [vmem:[#allocation2] sm:$0xff]
      %v1371 = vld [vmem:[#allocation2 + $0x8] sm:$0xff]
      %v1372 = vld [vmem:[#allocation2 + $0x10] sm:$0xff]
      %v1373 = vld [vmem:[#allocation2 + $0x18] sm:$0xff]
      %v1374 = vld [vmem:[#allocation2 + $0x20] sm:$0xff]
      %v1375 = vld [vmem:[#allocation2 + $0x28] sm:$0xff]
      %v1376 = vld [vmem:[#allocation2 + $0x30] sm:$0xff]
      %v1377 = vld [vmem:[#allocation2 + $0x38] sm:$0xff]
      %v1378 = vadd.f32 %v1370, %v1340
      %v1379 = vadd.f32 %v1371, %v1343
      %v1380 = vadd.f32 %v1372, %v1348
      %v1381 = vadd.f32 %v1373, %v1351
      %v1382 = vadd.f32 %v1374, %v1356
      %v1383 = vadd.f32 %v1375, %v1359
      %v1384 = vadd.f32 %v1376, %v1364
      %v1385 = vadd.f32 %v1377, %v1367
      %1386 = vst [vmem:[#allocation2] sm:$0xff] %v1378
      %1387 = vst [vmem:[#allocation2 + $0x8] sm:$0xff] %v1379
      %1388 = vst [vmem:[#allocation2 + $0x10] sm:$0xff] %v1380
      %1389 = vst [vmem:[#allocation2 + $0x18] sm:$0xff] %v1381
      %1390 = vst [vmem:[#allocation2 + $0x20] sm:$0xff] %v1382
      %1391 = vst [vmem:[#allocation2 + $0x28] sm:$0xff] %v1383
      %1392 = vst [vmem:[#allocation2 + $0x30] sm:$0xff] %v1384
      %1393 = vst [vmem:[#allocation2 + $0x38] sm:$0xff] %v1385
      %v1394 = vld [vmem:[%s909] sm:$0xe]
      %v1395 = vld [vmem:[%s909 + $0x4] sm:$0x1]
      %v1396 = vld [vmem:[%s909 + $0x8] sm:$0xe]
      %v1397 = vld [vmem:[%s909 + $0xc] sm:$0x1]
      %v1398 = vld [vmem:[%s909 + $0x10] sm:$0xe]
      %v1399 = vld [vmem:[%s909 + $0x14] sm:$0x1]
      %v1400 = vld [vmem:[%s909 + $0x18] sm:$0xe]
      %v1401 = vld [vmem:[%s909 + $0x1c] sm:$0x1]
      %v1402 = vld [vmem:[%s909 + $0x20] sm:$0xe]
      %v1403 = vld [vmem:[%s909 + $0x24] sm:$0x1]
      %v1404 = vld [vmem:[%s909 + $0x28] sm:$0xe]
      %v1405 = vld [vmem:[%s909 + $0x2c] sm:$0x1]
      %v1406 = vld [vmem:[%s909 + $0x30] sm:$0xe]
      %v1407 = vld [vmem:[%s909 + $0x34] sm:$0x1]
      %v1408 = vld [vmem:[%s909 + $0x38] sm:$0xe]
      %v1409 = vld [vmem:[%s909 + $0x3c] sm:$0x1]
      %v1426 = vrot.slane %v1394, 5
      %v1427 = vrot.slane %v1426, 4
      %v1428 = vrot.slane %v1395, 5
      %v1429 = vsel %vm703, %v1427, %v1428
      %v1430 = vrot.slane %v1396, 5
      %v1431 = vrot.slane %v1430, 4
      %v1432 = vrot.slane %v1397, 5
      %v1433 = vsel %vm703, %v1431, %v1432
      %v1434 = vrot.slane %v1398, 5
      %v1435 = vrot.slane %v1434, 4
      %v1436 = vrot.slane %v1399, 5
      %v1437 = vsel %vm703, %v1435, %v1436
      %v1438 = vrot.slane %v1400, 5
      %v1439 = vrot.slane %v1438, 4
      %v1440 = vrot.slane %v1401, 5
      %v1441 = vsel %vm703, %v1439, %v1440
      %v1442 = vrot.slane %v1402, 5
      %v1443 = vrot.slane %v1442, 4
      %v1444 = vrot.slane %v1403, 5
      %v1445 = vsel %vm703, %v1443, %v1444
      %v1446 = vrot.slane %v1404, 5
      %v1447 = vrot.slane %v1446, 4
      %v1448 = vrot.slane %v1405, 5
      %v1449 = vsel %vm703, %v1447, %v1448
      %v1450 = vrot.slane %v1406, 5
      %v1451 = vrot.slane %v1450, 4
      %v1452 = vrot.slane %v1407, 5
      %v1453 = vsel %vm703, %v1451, %v1452
      %v1454 = vrot.slane %v1408, 5
      %v1455 = vrot.slane %v1454, 4
      %v1456 = vrot.slane %v1409, 5
      %v1457 = vsel %vm703, %v1455, %v1456
      %s1458 = scalar_lea.vmem %s1, 320
      %v1459 = vld [vmem:[%s1458] sm:$0xf]
      %v1460 = vld [vmem:[%s1458 + $0x4] sm:$0xf]
      %v1461 = vld [vmem:[%s1458 + $0x8] sm:$0xf]
      %v1462 = vld [vmem:[%s1458 + $0xc] sm:$0xf]
      %v1463 = vld [vmem:[%s1458 + $0x10] sm:$0xf]
      %v1464 = vld [vmem:[%s1458 + $0x14] sm:$0xf]
      %v1465 = vld [vmem:[%s1458 + $0x18] sm:$0xf]
      %v1466 = vld [vmem:[%s1458 + $0x1c] sm:$0xf]
      %v1467 = vld [vmem:[%s1458 + $0x20] sm:$0xf]
      %v1468 = vld [vmem:[%s1458 + $0x24] sm:$0xf]
      %v1469 = vld [vmem:[%s1458 + $0x28] sm:$0xf]
      %v1470 = vld [vmem:[%s1458 + $0x2c] sm:$0xf]
      %v1471 = vld [vmem:[%s1458 + $0x30] sm:$0xf]
      %v1472 = vld [vmem:[%s1458 + $0x34] sm:$0xf]
      %v1473 = vld [vmem:[%s1458 + $0x38] sm:$0xf]
      %v1474 = vld [vmem:[%s1458 + $0x3c] sm:$0xf]
      %v1475 = vunpack.c.l.b16 %v1429
      %v1476 = vunpack.c.l.b16 %v1433
      %v1477 = vunpack.c.l.b16 %v1437
      %v1478 = vunpack.c.l.b16 %v1441
      %v1479 = vunpack.c.l.b16 %v1445
      %v1480 = vunpack.c.l.b16 %v1449
      %v1481 = vunpack.c.l.b16 %v1453
      %v1482 = vunpack.c.l.b16 %v1457
      %v1483 = vpack.c.b16 %v1476, %v1475
      %v1484 = vpack.c.b16 %v1478, %v1477
      %v1485 = vpack.c.b16 %v1480, %v1479
      %v1486 = vpack.c.b16 %v1482, %v1481
      %v1507 = vunpack.c.l.b16 %v1459
      %v1508 = vunpack.c.l.b16 %v1460
      %v1509 = vunpack.c.l.b16 %v1461
      %v1510 = vunpack.c.l.b16 %v1462
      %v1511 = vunpack.c.l.b16 %v1463
      %v1512 = vunpack.c.l.b16 %v1464
      %v1513 = vunpack.c.l.b16 %v1465
      %v1514 = vunpack.c.l.b16 %v1466
      %v1515 = vunpack.c.l.b16 %v1467
      %v1516 = vunpack.c.l.b16 %v1468
      %v1517 = vunpack.c.l.b16 %v1469
      %v1518 = vunpack.c.l.b16 %v1470
      %v1519 = vunpack.c.l.b16 %v1471
      %v1520 = vunpack.c.l.b16 %v1472
      %v1521 = vunpack.c.l.b16 %v1473
      %v1522 = vunpack.c.l.b16 %v1474
      %v1523 = vpack.c.b16 %v1508, %v1507
      %v1524 = vpack.c.b16 %v1510, %v1509
      %v1525 = vpack.c.b16 %v1512, %v1511
      %v1526 = vpack.c.b16 %v1514, %v1513
      %v1527 = vpack.c.b16 %v1516, %v1515
      %v1528 = vpack.c.b16 %v1518, %v1517
      %v1529 = vpack.c.b16 %v1520, %v1519
      %v1530 = vpack.c.b16 %v1522, %v1521
      %1539 = vmatprep.subr.bf16.mxu0 0
      %1540 = vmatpush1.bf16.msra.mxu0 %v1530
      %1541 = vmatprep.subr.bf16.mxu0 0
      %1542 = vmatpush1.bf16.msra.mxu0 %v1529
      %1543 = vmatprep.subr.bf16.mxu0 0
      %1544 = vmatpush1.bf16.msra.mxu0 %v1528
      %1545 = vmatprep.subr.bf16.mxu0 0
      %1546 = vmatpush1.bf16.msra.mxu0 %v1527
      %1547 = vmatprep.subr.bf16.mxu0 0
      %1548 = vmatpush1.bf16.msra.mxu0 %v1526
      %1549 = vmatprep.subr.bf16.mxu0 0
      %1550 = vmatpush1.bf16.msra.mxu0 %v1525
      %1551 = vmatprep.subr.bf16.mxu0 0
      %1552 = vmatpush1.bf16.msra.mxu0 %v1524
      %1553 = vmatprep.subr.bf16.mxu0 0
      %1554 = vmatpush1.bf16.msra.mxu0 %v1523
      %1555 = vmatprep.subr.bf16.mxu0 0
      %1556 = vmatpush2.bf16.msra.mxu0 0
      %1557 = vmatprep.subr.bf16.mxu0 0
      %1558 = vmatpush2.bf16.msra.mxu0 0
      %1559 = vmatprep.subr.bf16.mxu0 0
      %1560 = vmatpush2.bf16.msra.mxu0 0
      %1561 = vmatprep.subr.bf16.mxu0 0
      %1562 = vmatpush2.bf16.msra.mxu0 0
      %1563 = vmatprep.subr.bf16.mxu0 0
      %1564 = vmatpush2.bf16.msra.mxu0 0
      %1565 = vmatprep.subr.bf16.mxu0 0
      %1566 = vmatpush2.bf16.msra.mxu0 0
      %1567 = vmatprep.subr.bf16.mxu0 0
      %1568 = vmatpush2.bf16.msra.mxu0 0
      %1569 = vmatprep.subr.bf16.mxu0 0
      %1570 = vmatpush2.bf16.msra.mxu0 0
      %1571 = vmatprep.mubr.bf16.mxu0 0
      %1572 = vmatmul.mubr.bf16.gmra.mxu0 %v1483
      %v1573 = vpop.f32.mrf.mxu0
      %v1574 = vadd.f32 0.0, %v1573
      %v1575 = vpop.f32.mrf.mxu0
      %v1576 = vpop.f32.mrf.mxu0
      %v1577 = vadd.f32 0.0, %v1576
      %v1578 = vpop.f32.mrf.mxu0
      %1579 = vmatprep.mubr.bf16.mxu0 0
      %1580 = vmatmul.mubr.bf16.gmra.mxu0 %v1484
      %v1581 = vpop.f32.mrf.mxu0
      %v1582 = vadd.f32 0.0, %v1581
      %v1583 = vpop.f32.mrf.mxu0
      %v1584 = vpop.f32.mrf.mxu0
      %v1585 = vadd.f32 0.0, %v1584
      %v1586 = vpop.f32.mrf.mxu0
      %1587 = vmatprep.mubr.bf16.mxu0 0
      %1588 = vmatmul.mubr.bf16.gmra.mxu0 %v1485
      %v1589 = vpop.f32.mrf.mxu0
      %v1590 = vadd.f32 0.0, %v1589
      %v1591 = vpop.f32.mrf.mxu0
      %v1592 = vpop.f32.mrf.mxu0
      %v1593 = vadd.f32 0.0, %v1592
      %v1594 = vpop.f32.mrf.mxu0
      %1595 = vmatprep.mubr.bf16.mxu0 0
      %1596 = vmatmul.mubr.bf16.gmra.mxu0 %v1486
      %v1597 = vpop.f32.mrf.mxu0
      %v1598 = vadd.f32 0.0, %v1597
      %v1599 = vpop.f32.mrf.mxu0
      %v1600 = vpop.f32.mrf.mxu0
      %v1601 = vadd.f32 0.0, %v1600
      %v1602 = vpop.f32.mrf.mxu0
      %1603 = vdwg.mxu0
      %v1604 = vld [vmem:[#allocation2] sm:$0xff]
      %v1605 = vld [vmem:[#allocation2 + $0x8] sm:$0xff]
      %v1606 = vld [vmem:[#allocation2 + $0x10] sm:$0xff]
      %v1607 = vld [vmem:[#allocation2 + $0x18] sm:$0xff]
      %v1608 = vld [vmem:[#allocation2 + $0x20] sm:$0xff]
      %v1609 = vld [vmem:[#allocation2 + $0x28] sm:$0xff]
      %v1610 = vld [vmem:[#allocation2 + $0x30] sm:$0xff]
      %v1611 = vld [vmem:[#allocation2 + $0x38] sm:$0xff]
      %v1612 = vadd.f32 %v1604, %v1574
      %v1613 = vadd.f32 %v1605, %v1577
      %v1614 = vadd.f32 %v1606, %v1582
      %v1615 = vadd.f32 %v1607, %v1585
      %v1616 = vadd.f32 %v1608, %v1590
      %v1617 = vadd.f32 %v1609, %v1593
      %v1618 = vadd.f32 %v1610, %v1598
      %v1619 = vadd.f32 %v1611, %v1601
      %1620 = vst [vmem:[#allocation2] sm:$0xff] %v1612
      %1621 = vst [vmem:[#allocation2 + $0x8] sm:$0xff] %v1613
      %1622 = vst [vmem:[#allocation2 + $0x10] sm:$0xff] %v1614
      %1623 = vst [vmem:[#allocation2 + $0x18] sm:$0xff] %v1615
      %1624 = vst [vmem:[#allocation2 + $0x20] sm:$0xff] %v1616
      %1625 = vst [vmem:[#allocation2 + $0x28] sm:$0xff] %v1617
      %1626 = vst [vmem:[#allocation2 + $0x30] sm:$0xff] %v1618
      %1627 = vst [vmem:[#allocation2 + $0x38] sm:$0xff] %v1619
      %s1628 = sadd.s32 %s195, 2
      %s1629 = smul.u32 %s1628, 2
      %s1630 = smul.addr %s1629, 4
      %s1631 = scalar_lea.vmem %s183, %s1630
      %v1632 = vld [vmem:[%s1631] sm:$0xf]
      %v1633 = vld [vmem:[%s1631 + $0x8] sm:$0xf]
      %v1634 = vld [vmem:[%s1631 + $0x10] sm:$0xf]
      %v1635 = vld [vmem:[%s1631 + $0x18] sm:$0xf]
      %v1636 = vld [vmem:[%s1631 + $0x20] sm:$0xf]
      %v1637 = vld [vmem:[%s1631 + $0x28] sm:$0xf]
      %v1638 = vld [vmem:[%s1631 + $0x30] sm:$0xf]
      %v1639 = vld [vmem:[%s1631 + $0x38] sm:$0xf]
      %s1640 = scalar_lea.vmem %s1, 384
      %v1641 = vld [vmem:[%s1640] sm:$0xf]
      %v1642 = vld [vmem:[%s1640 + $0x4] sm:$0xf]
      %v1643 = vld [vmem:[%s1640 + $0x8] sm:$0xf]
      %v1644 = vld [vmem:[%s1640 + $0xc] sm:$0xf]
      %v1645 = vld [vmem:[%s1640 + $0x10] sm:$0xf]
      %v1646 = vld [vmem:[%s1640 + $0x14] sm:$0xf]
      %v1647 = vld [vmem:[%s1640 + $0x18] sm:$0xf]
      %v1648 = vld [vmem:[%s1640 + $0x1c] sm:$0xf]
      %v1649 = vld [vmem:[%s1640 + $0x20] sm:$0xf]
      %v1650 = vld [vmem:[%s1640 + $0x24] sm:$0xf]
      %v1651 = vld [vmem:[%s1640 + $0x28] sm:$0xf]
      %v1652 = vld [vmem:[%s1640 + $0x2c] sm:$0xf]
      %v1653 = vld [vmem:[%s1640 + $0x30] sm:$0xf]
      %v1654 = vld [vmem:[%s1640 + $0x34] sm:$0xf]
      %v1655 = vld [vmem:[%s1640 + $0x38] sm:$0xf]
      %v1656 = vld [vmem:[%s1640 + $0x3c] sm:$0xf]
      %v1665 = vunpack.c.l.b16 %v1632
      %v1666 = vunpack.c.l.b16 %v1633
      %v1667 = vunpack.c.l.b16 %v1634
      %v1668 = vunpack.c.l.b16 %v1635
      %v1669 = vunpack.c.l.b16 %v1636
      %v1670 = vunpack.c.l.b16 %v1637
      %v1671 = vunpack.c.l.b16 %v1638
      %v1672 = vunpack.c.l.b16 %v1639
      %v1673 = vpack.c.b16 %v1666, %v1665
      %v1674 = vpack.c.b16 %v1668, %v1667
      %v1675 = vpack.c.b16 %v1670, %v1669
      %v1676 = vpack.c.b16 %v1672, %v1671
      %v1697 = vunpack.c.l.b16 %v1641
      %v1698 = vunpack.c.l.b16 %v1642
      %v1699 = vunpack.c.l.b16 %v1643
      %v1700 = vunpack.c.l.b16 %v1644
      %v1701 = vunpack.c.l.b16 %v1645
      %v1702 = vunpack.c.l.b16 %v1646
      %v1703 = vunpack.c.l.b16 %v1647
      %v1704 = vunpack.c.l.b16 %v1648
      %v1705 = vunpack.c.l.b16 %v1649
      %v1706 = vunpack.c.l.b16 %v1650
      %v1707 = vunpack.c.l.b16 %v1651
      %v1708 = vunpack.c.l.b16 %v1652
      %v1709 = vunpack.c.l.b16 %v1653
      %v1710 = vunpack.c.l.b16 %v1654
      %v1711 = vunpack.c.l.b16 %v1655
      %v1712 = vunpack.c.l.b16 %v1656
      %v1713 = vpack.c.b16 %v1698, %v1697
      %v1714 = vpack.c.b16 %v1700, %v1699
      %v1715 = vpack.c.b16 %v1702, %v1701
      %v1716 = vpack.c.b16 %v1704, %v1703
      %v1717 = vpack.c.b16 %v1706, %v1705
      %v1718 = vpack.c.b16 %v1708, %v1707
      %v1719 = vpack.c.b16 %v1710, %v1709
      %v1720 = vpack.c.b16 %v1712, %v1711
      %1729 = vmatprep.subr.bf16.mxu0 0
      %1730 = vmatpush1.bf16.msra.mxu0 %v1720
      %1731 = vmatprep.subr.bf16.mxu0 0
      %1732 = vmatpush1.bf16.msra.mxu0 %v1719
      %1733 = vmatprep.subr.bf16.mxu0 0
      %1734 = vmatpush1.bf16.msra.mxu0 %v1718
      %1735 = vmatprep.subr.bf16.mxu0 0
      %1736 = vmatpush1.bf16.msra.mxu0 %v1717
      %1737 = vmatprep.subr.bf16.mxu0 0
      %1738 = vmatpush1.bf16.msra.mxu0 %v1716
      %1739 = vmatprep.subr.bf16.mxu0 0
      %1740 = vmatpush1.bf16.msra.mxu0 %v1715
      %1741 = vmatprep.subr.bf16.mxu0 0
      %1742 = vmatpush1.bf16.msra.mxu0 %v1714
      %1743 = vmatprep.subr.bf16.mxu0 0
      %1744 = vmatpush1.bf16.msra.mxu0 %v1713
      %1745 = vmatprep.subr.bf16.mxu0 0
      %1746 = vmatpush2.bf16.msra.mxu0 0
      %1747 = vmatprep.subr.bf16.mxu0 0
      %1748 = vmatpush2.bf16.msra.mxu0 0
      %1749 = vmatprep.subr.bf16.mxu0 0
      %1750 = vmatpush2.bf16.msra.mxu0 0
      %1751 = vmatprep.subr.bf16.mxu0 0
      %1752 = vmatpush2.bf16.msra.mxu0 0
      %1753 = vmatprep.subr.bf16.mxu0 0
      %1754 = vmatpush2.bf16.msra.mxu0 0
      %1755 = vmatprep.subr.bf16.mxu0 0
      %1756 = vmatpush2.bf16.msra.mxu0 0
      %1757 = vmatprep.subr.bf16.mxu0 0
      %1758 = vmatpush2.bf16.msra.mxu0 0
      %1759 = vmatprep.subr.bf16.mxu0 0
      %1760 = vmatpush2.bf16.msra.mxu0 0
      %1761 = vmatprep.mubr.bf16.mxu0 0
      %1762 = vmatmul.mubr.bf16.gmra.mxu0 %v1673
      %v1763 = vpop.f32.mrf.mxu0
      %v1764 = vadd.f32 0.0, %v1763
      %v1765 = vpop.f32.mrf.mxu0
      %v1766 = vpop.f32.mrf.mxu0
      %v1767 = vadd.f32 0.0, %v1766
      %v1768 = vpop.f32.mrf.mxu0
      %1769 = vmatprep.mubr.bf16.mxu0 0
      %1770 = vmatmul.mubr.bf16.gmra.mxu0 %v1674
      %v1771 = vpop.f32.mrf.mxu0
      %v1772 = vadd.f32 0.0, %v1771
      %v1773 = vpop.f32.mrf.mxu0
      %v1774 = vpop.f32.mrf.mxu0
      %v1775 = vadd.f32 0.0, %v1774
      %v1776 = vpop.f32.mrf.mxu0
      %1777 = vmatprep.mubr.bf16.mxu0 0
      %1778 = vmatmul.mubr.bf16.gmra.mxu0 %v1675
      %v1779 = vpop.f32.mrf.mxu0
      %v1780 = vadd.f32 0.0, %v1779
      %v1781 = vpop.f32.mrf.mxu0
      %v1782 = vpop.f32.mrf.mxu0
      %v1783 = vadd.f32 0.0, %v1782
      %v1784 = vpop.f32.mrf.mxu0
      %1785 = vmatprep.mubr.bf16.mxu0 0
      %1786 = vmatmul.mubr.bf16.gmra.mxu0 %v1676
      %v1787 = vpop.f32.mrf.mxu0
      %v1788 = vadd.f32 0.0, %v1787
      %v1789 = vpop.f32.mrf.mxu0
      %v1790 = vpop.f32.mrf.mxu0
      %v1791 = vadd.f32 0.0, %v1790
      %v1792 = vpop.f32.mrf.mxu0
      %1793 = vdwg.mxu0
      %v1794 = vld [vmem:[#allocation2] sm:$0xff]
      %v1795 = vld [vmem:[#allocation2 + $0x8] sm:$0xff]
      %v1796 = vld [vmem:[#allocation2 + $0x10] sm:$0xff]
      %v1797 = vld [vmem:[#allocation2 + $0x18] sm:$0xff]
      %v1798 = vld [vmem:[#allocation2 + $0x20] sm:$0xff]
      %v1799 = vld [vmem:[#allocation2 + $0x28] sm:$0xff]
      %v1800 = vld [vmem:[#allocation2 + $0x30] sm:$0xff]
      %v1801 = vld [vmem:[#allocation2 + $0x38] sm:$0xff]
      %v1802 = vadd.f32 %v1794, %v1764
      %v1803 = vadd.f32 %v1795, %v1767
      %v1804 = vadd.f32 %v1796, %v1772
      %v1805 = vadd.f32 %v1797, %v1775
      %v1806 = vadd.f32 %v1798, %v1780
      %v1807 = vadd.f32 %v1799, %v1783
      %v1808 = vadd.f32 %v1800, %v1788
      %v1809 = vadd.f32 %v1801, %v1791
      %1810 = vst [vmem:[#allocation2] sm:$0xff] %v1802
      %1811 = vst [vmem:[#allocation2 + $0x8] sm:$0xff] %v1803
      %1812 = vst [vmem:[#allocation2 + $0x10] sm:$0xff] %v1804
      %1813 = vst [vmem:[#allocation2 + $0x18] sm:$0xff] %v1805
      %1814 = vst [vmem:[#allocation2 + $0x20] sm:$0xff] %v1806
      %1815 = vst [vmem:[#allocation2 + $0x28] sm:$0xff] %v1807
      %1816 = vst [vmem:[#allocation2 + $0x30] sm:$0xff] %v1808
      %1817 = vst [vmem:[#allocation2 + $0x38] sm:$0xff] %v1809
      %v1818 = vld [vmem:[%s1631] sm:$0xf]
      %v1819 = vld [vmem:[%s1631 + $0x4] sm:$0x1]
      %v1820 = vld [vmem:[%s1631 + $0x8] sm:$0xf]
      %v1821 = vld [vmem:[%s1631 + $0xc] sm:$0x1]
      %v1822 = vld [vmem:[%s1631 + $0x10] sm:$0xf]
      %v1823 = vld [vmem:[%s1631 + $0x14] sm:$0x1]
      %v1824 = vld [vmem:[%s1631 + $0x18] sm:$0xf]
      %v1825 = vld [vmem:[%s1631 + $0x1c] sm:$0x1]
      %v1826 = vld [vmem:[%s1631 + $0x20] sm:$0xf]
      %v1827 = vld [vmem:[%s1631 + $0x24] sm:$0x1]
      %v1828 = vld [vmem:[%s1631 + $0x28] sm:$0xf]
      %v1829 = vld [vmem:[%s1631 + $0x2c] sm:$0x1]
      %v1830 = vld [vmem:[%s1631 + $0x30] sm:$0xf]
      %v1831 = vld [vmem:[%s1631 + $0x34] sm:$0x1]
      %v1832 = vld [vmem:[%s1631 + $0x38] sm:$0xf]
      %v1833 = vld [vmem:[%s1631 + $0x3c] sm:$0x1]
      %v1835 = vshrl.u32 %v1818, 16
      %v1837 = vrot.slane %v1835, 4
      %v1838 = vshll.u32 %v1818, 16
      %v1840 = vrot.slane %v1838, 5
      %v1841 = vor.u32 %v1837, %v1840
      %v1842 = vrot.slane %v1841, 4
      %v1844 = vshll.u32 %v1819, 16
      %v1846 = vrot.slane %v1844, 5
      %v1847 = vsel %vm386, %v1842, %v1846
      %v1849 = vshrl.u32 %v1820, 16
      %v1851 = vrot.slane %v1849, 4
      %v1852 = vshll.u32 %v1820, 16
      %v1854 = vrot.slane %v1852, 5
      %v1855 = vor.u32 %v1851, %v1854
      %v1856 = vrot.slane %v1855, 4
      %v1858 = vshll.u32 %v1821, 16
      %v1860 = vrot.slane %v1858, 5
      %v1861 = vsel %vm386, %v1856, %v1860
      %v1863 = vshrl.u32 %v1822, 16
      %v1865 = vrot.slane %v1863, 4
      %v1866 = vshll.u32 %v1822, 16
      %v1868 = vrot.slane %v1866, 5
      %v1869 = vor.u32 %v1865, %v1868
      %v1870 = vrot.slane %v1869, 4
      %v1872 = vshll.u32 %v1823, 16
      %v1874 = vrot.slane %v1872, 5
      %v1875 = vsel %vm386, %v1870, %v1874
      %v1877 = vshrl.u32 %v1824, 16
      %v1879 = vrot.slane %v1877, 4
      %v1880 = vshll.u32 %v1824, 16
      %v1882 = vrot.slane %v1880, 5
      %v1883 = vor.u32 %v1879, %v1882
      %v1884 = vrot.slane %v1883, 4
      %v1886 = vshll.u32 %v1825, 16
      %v1888 = vrot.slane %v1886, 5
      %v1889 = vsel %vm386, %v1884, %v1888
      %v1891 = vshrl.u32 %v1826, 16
      %v1893 = vrot.slane %v1891, 4
      %v1894 = vshll.u32 %v1826, 16
      %v1896 = vrot.slane %v1894, 5
      %v1897 = vor.u32 %v1893, %v1896
      %v1898 = vrot.slane %v1897, 4
      %v1900 = vshll.u32 %v1827, 16
      %v1902 = vrot.slane %v1900, 5
      %v1903 = vsel %vm386, %v1898, %v1902
      %v1905 = vshrl.u32 %v1828, 16
      %v1907 = vrot.slane %v1905, 4
      %v1908 = vshll.u32 %v1828, 16
      %v1910 = vrot.slane %v1908, 5
      %v1911 = vor.u32 %v1907, %v1910
      %v1912 = vrot.slane %v1911, 4
      %v1914 = vshll.u32 %v1829, 16
      %v1916 = vrot.slane %v1914, 5
      %v1917 = vsel %vm386, %v1912, %v1916
      %v1919 = vshrl.u32 %v1830, 16
      %v1921 = vrot.slane %v1919, 4
      %v1922 = vshll.u32 %v1830, 16
      %v1924 = vrot.slane %v1922, 5
      %v1925 = vor.u32 %v1921, %v1924
      %v1926 = vrot.slane %v1925, 4
      %v1928 = vshll.u32 %v1831, 16
      %v1930 = vrot.slane %v1928, 5
      %v1931 = vsel %vm386, %v1926, %v1930
      %v1933 = vshrl.u32 %v1832, 16
      %v1935 = vrot.slane %v1933, 4
      %v1936 = vshll.u32 %v1832, 16
      %v1938 = vrot.slane %v1936, 5
      %v1939 = vor.u32 %v1935, %v1938
      %v1940 = vrot.slane %v1939, 4
      %v1942 = vshll.u32 %v1833, 16
      %v1944 = vrot.slane %v1942, 5
      %v1945 = vsel %vm386, %v1940, %v1944
      %s1946 = scalar_lea.vmem %s1, 448
      %v1947 = vld [vmem:[%s1946] sm:$0xf]
      %v1948 = vld [vmem:[%s1946 + $0x4] sm:$0xf]
      %v1949 = vld [vmem:[%s1946 + $0x8] sm:$0xf]
      %v1950 = vld [vmem:[%s1946 + $0xc] sm:$0xf]
      %v1951 = vld [vmem:[%s1946 + $0x10] sm:$0xf]
      %v1952 = vld [vmem:[%s1946 + $0x14] sm:$0xf]
      %v1953 = vld [vmem:[%s1946 + $0x18] sm:$0xf]
      %v1954 = vld [vmem:[%s1946 + $0x1c] sm:$0xf]
      %v1955 = vld [vmem:[%s1946 + $0x20] sm:$0xf]
      %v1956 = vld [vmem:[%s1946 + $0x24] sm:$0xf]
      %v1957 = vld [vmem:[%s1946 + $0x28] sm:$0xf]
      %v1958 = vld [vmem:[%s1946 + $0x2c] sm:$0xf]
      %v1959 = vld [vmem:[%s1946 + $0x30] sm:$0xf]
      %v1960 = vld [vmem:[%s1946 + $0x34] sm:$0xf]
      %v1961 = vld [vmem:[%s1946 + $0x38] sm:$0xf]
      %v1962 = vld [vmem:[%s1946 + $0x3c] sm:$0xf]
      %v1963 = vunpack.c.l.b16 %v1847
      %v1964 = vunpack.c.l.b16 %v1861
      %v1965 = vunpack.c.l.b16 %v1875
      %v1966 = vunpack.c.l.b16 %v1889
      %v1967 = vunpack.c.l.b16 %v1903
      %v1968 = vunpack.c.l.b16 %v1917
      %v1969 = vunpack.c.l.b16 %v1931
      %v1970 = vunpack.c.l.b16 %v1945
      %v1971 = vpack.c.b16 %v1964, %v1963
      %v1972 = vpack.c.b16 %v1966, %v1965
      %v1973 = vpack.c.b16 %v1968, %v1967
      %v1974 = vpack.c.b16 %v1970, %v1969
      %v1995 = vunpack.c.l.b16 %v1947
      %v1996 = vunpack.c.l.b16 %v1948
      %v1997 = vunpack.c.l.b16 %v1949
      %v1998 = vunpack.c.l.b16 %v1950
      %v1999 = vunpack.c.l.b16 %v1951
      %v2000 = vunpack.c.l.b16 %v1952
      %v2001 = vunpack.c.l.b16 %v1953
      %v2002 = vunpack.c.l.b16 %v1954
      %v2003 = vunpack.c.l.b16 %v1955
      %v2004 = vunpack.c.l.b16 %v1956
      %v2005 = vunpack.c.l.b16 %v1957
      %v2006 = vunpack.c.l.b16 %v1958
      %v2007 = vunpack.c.l.b16 %v1959
      %v2008 = vunpack.c.l.b16 %v1960
      %v2009 = vunpack.c.l.b16 %v1961
      %v2010 = vunpack.c.l.b16 %v1962
      %v2011 = vpack.c.b16 %v1996, %v1995
      %v2012 = vpack.c.b16 %v1998, %v1997
      %v2013 = vpack.c.b16 %v2000, %v1999
      %v2014 = vpack.c.b16 %v2002, %v2001
      %v2015 = vpack.c.b16 %v2004, %v2003
      %v2016 = vpack.c.b16 %v2006, %v2005
      %v2017 = vpack.c.b16 %v2008, %v2007
      %v2018 = vpack.c.b16 %v2010, %v2009
      %2027 = vmatprep.subr.bf16.mxu0 0
      %2028 = vmatpush1.bf16.msra.mxu0 %v2018
      %2029 = vmatprep.subr.bf16.mxu0 0
      %2030 = vmatpush1.bf16.msra.mxu0 %v2017
      %2031 = vmatprep.subr.bf16.mxu0 0
      %2032 = vmatpush1.bf16.msra.mxu0 %v2016
      %2033 = vmatprep.subr.bf16.mxu0 0
      %2034 = vmatpush1.bf16.msra.mxu0 %v2015
      %2035 = vmatprep.subr.bf16.mxu0 0
      %2036 = vmatpush1.bf16.msra.mxu0 %v2014
      %2037 = vmatprep.subr.bf16.mxu0 0
      %2038 = vmatpush1.bf16.msra.mxu0 %v2013
      %2039 = vmatprep.subr.bf16.mxu0 0
      %2040 = vmatpush1.bf16.msra.mxu0 %v2012
      %2041 = vmatprep.subr.bf16.mxu0 0
      %2042 = vmatpush1.bf16.msra.mxu0 %v2011
      %2043 = vmatprep.subr.bf16.mxu0 0
      %2044 = vmatpush2.bf16.msra.mxu0 0
      %2045 = vmatprep.subr.bf16.mxu0 0
      %2046 = vmatpush2.bf16.msra.mxu0 0
      %2047 = vmatprep.subr.bf16.mxu0 0
      %2048 = vmatpush2.bf16.msra.mxu0 0
      %2049 = vmatprep.subr.bf16.mxu0 0
      %2050 = vmatpush2.bf16.msra.mxu0 0
      %2051 = vmatprep.subr.bf16.mxu0 0
      %2052 = vmatpush2.bf16.msra.mxu0 0
      %2053 = vmatprep.subr.bf16.mxu0 0
      %2054 = vmatpush2.bf16.msra.mxu0 0
      %2055 = vmatprep.subr.bf16.mxu0 0
      %2056 = vmatpush2.bf16.msra.mxu0 0
      %2057 = vmatprep.subr.bf16.mxu0 0
      %2058 = vmatpush2.bf16.msra.mxu0 0
      %2059 = vmatprep.mubr.bf16.mxu0 0
      %2060 = vmatmul.mubr.bf16.gmra.mxu0 %v1971
      %v2061 = vpop.f32.mrf.mxu0
      %v2062 = vadd.f32 0.0, %v2061
      %v2063 = vpop.f32.mrf.mxu0
      %v2064 = vpop.f32.mrf.mxu0
      %v2065 = vadd.f32 0.0, %v2064
      %v2066 = vpop.f32.mrf.mxu0
      %2067 = vmatprep.mubr.bf16.mxu0 0
      %2068 = vmatmul.mubr.bf16.gmra.mxu0 %v1972
      %v2069 = vpop.f32.mrf.mxu0
      %v2070 = vadd.f32 0.0, %v2069
      %v2071 = vpop.f32.mrf.mxu0
      %v2072 = vpop.f32.mrf.mxu0
      %v2073 = vadd.f32 0.0, %v2072
      %v2074 = vpop.f32.mrf.mxu0
      %2075 = vmatprep.mubr.bf16.mxu0 0
      %2076 = vmatmul.mubr.bf16.gmra.mxu0 %v1973
      %v2077 = vpop.f32.mrf.mxu0
      %v2078 = vadd.f32 0.0, %v2077
      %v2079 = vpop.f32.mrf.mxu0
      %v2080 = vpop.f32.mrf.mxu0
      %v2081 = vadd.f32 0.0, %v2080
      %v2082 = vpop.f32.mrf.mxu0
      %2083 = vmatprep.mubr.bf16.mxu0 0
      %2084 = vmatmul.mubr.bf16.gmra.mxu0 %v1974
      %v2085 = vpop.f32.mrf.mxu0
      %v2086 = vadd.f32 0.0, %v2085
      %v2087 = vpop.f32.mrf.mxu0
      %v2088 = vpop.f32.mrf.mxu0
      %v2089 = vadd.f32 0.0, %v2088
      %v2090 = vpop.f32.mrf.mxu0
      %2091 = vdwg.mxu0
      %v2092 = vld [vmem:[#allocation2] sm:$0xff]
      %v2093 = vld [vmem:[#allocation2 + $0x8] sm:$0xff]
      %v2094 = vld [vmem:[#allocation2 + $0x10] sm:$0xff]
      %v2095 = vld [vmem:[#allocation2 + $0x18] sm:$0xff]
      %v2096 = vld [vmem:[#allocation2 + $0x20] sm:$0xff]
      %v2097 = vld [vmem:[#allocation2 + $0x28] sm:$0xff]
      %v2098 = vld [vmem:[#allocation2 + $0x30] sm:$0xff]
      %v2099 = vld [vmem:[#allocation2 + $0x38] sm:$0xff]
      %v2100 = vadd.f32 %v2092, %v2062
      %v2101 = vadd.f32 %v2093, %v2065
      %v2102 = vadd.f32 %v2094, %v2070
      %v2103 = vadd.f32 %v2095, %v2073
      %v2104 = vadd.f32 %v2096, %v2078
      %v2105 = vadd.f32 %v2097, %v2081
      %v2106 = vadd.f32 %v2098, %v2086
      %v2107 = vadd.f32 %v2099, %v2089
      %2108 = vst [vmem:[#allocation2] sm:$0xff] %v2100
      %2109 = vst [vmem:[#allocation2 + $0x8] sm:$0xff] %v2101
      %2110 = vst [vmem:[#allocation2 + $0x10] sm:$0xff] %v2102
      %2111 = vst [vmem:[#allocation2 + $0x18] sm:$0xff] %v2103
      %2112 = vst [vmem:[#allocation2 + $0x20] sm:$0xff] %v2104
      %2113 = vst [vmem:[#allocation2 + $0x28] sm:$0xff] %v2105
      %2114 = vst [vmem:[#allocation2 + $0x30] sm:$0xff] %v2106
      %2115 = vst [vmem:[#allocation2 + $0x38] sm:$0xff] %v2107
      %v2116 = vld [vmem:[%s1631] sm:$0xe]
      %v2117 = vld [vmem:[%s1631 + $0x4] sm:$0x1]
      %v2118 = vld [vmem:[%s1631 + $0x8] sm:$0xe]
      %v2119 = vld [vmem:[%s1631 + $0xc] sm:$0x1]
      %v2120 = vld [vmem:[%s1631 + $0x10] sm:$0xe]
      %v2121 = vld [vmem:[%s1631 + $0x14] sm:$0x1]
      %v2122 = vld [vmem:[%s1631 + $0x18] sm:$0xe]
      %v2123 = vld [vmem:[%s1631 + $0x1c] sm:$0x1]
      %v2124 = vld [vmem:[%s1631 + $0x20] sm:$0xe]
      %v2125 = vld [vmem:[%s1631 + $0x24] sm:$0x1]
      %v2126 = vld [vmem:[%s1631 + $0x28] sm:$0xe]
      %v2127 = vld [vmem:[%s1631 + $0x2c] sm:$0x1]
      %v2128 = vld [vmem:[%s1631 + $0x30] sm:$0xe]
      %v2129 = vld [vmem:[%s1631 + $0x34] sm:$0x1]
      %v2130 = vld [vmem:[%s1631 + $0x38] sm:$0xe]
      %v2131 = vld [vmem:[%s1631 + $0x3c] sm:$0x1]
      %v2148 = vrot.slane %v2116, 5
      %v2149 = vrot.slane %v2148, 4
      %v2150 = vrot.slane %v2117, 5
      %v2151 = vsel %vm703, %v2149, %v2150
      %v2152 = vrot.slane %v2118, 5
      %v2153 = vrot.slane %v2152, 4
      %v2154 = vrot.slane %v2119, 5
      %v2155 = vsel %vm703, %v2153, %v2154
      %v2156 = vrot.slane %v2120, 5
      %v2157 = vrot.slane %v2156, 4
      %v2158 = vrot.slane %v2121, 5
      %v2159 = vsel %vm703, %v2157, %v2158
      %v2160 = vrot.slane %v2122, 5
      %v2161 = vrot.slane %v2160, 4
      %v2162 = vrot.slane %v2123, 5
      %v2163 = vsel %vm703, %v2161, %v2162
      %v2164 = vrot.slane %v2124, 5
      %v2165 = vrot.slane %v2164, 4
      %v2166 = vrot.slane %v2125, 5
      %v2167 = vsel %vm703, %v2165, %v2166
      %v2168 = vrot.slane %v2126, 5
      %v2169 = vrot.slane %v2168, 4
      %v2170 = vrot.slane %v2127, 5
      %v2171 = vsel %vm703, %v2169, %v2170
      %v2172 = vrot.slane %v2128, 5
      %v2173 = vrot.slane %v2172, 4
      %v2174 = vrot.slane %v2129, 5
      %v2175 = vsel %vm703, %v2173, %v2174
      %v2176 = vrot.slane %v2130, 5
      %v2177 = vrot.slane %v2176, 4
      %v2178 = vrot.slane %v2131, 5
      %v2179 = vsel %vm703, %v2177, %v2178
      %s2180 = scalar_lea.vmem %s1, 512
      %v2181 = vld [vmem:[%s2180] sm:$0xf]
      %v2182 = vld [vmem:[%s2180 + $0x4] sm:$0xf]
      %v2183 = vld [vmem:[%s2180 + $0x8] sm:$0xf]
      %v2184 = vld [vmem:[%s2180 + $0xc] sm:$0xf]
      %v2185 = vld [vmem:[%s2180 + $0x10] sm:$0xf]
      %v2186 = vld [vmem:[%s2180 + $0x14] sm:$0xf]
      %v2187 = vld [vmem:[%s2180 + $0x18] sm:$0xf]
      %v2188 = vld [vmem:[%s2180 + $0x1c] sm:$0xf]
      %v2189 = vld [vmem:[%s2180 + $0x20] sm:$0xf]
      %v2190 = vld [vmem:[%s2180 + $0x24] sm:$0xf]
      %v2191 = vld [vmem:[%s2180 + $0x28] sm:$0xf]
      %v2192 = vld [vmem:[%s2180 + $0x2c] sm:$0xf]
      %v2193 = vld [vmem:[%s2180 + $0x30] sm:$0xf]
      %v2194 = vld [vmem:[%s2180 + $0x34] sm:$0xf]
      %v2195 = vld [vmem:[%s2180 + $0x38] sm:$0xf]
      %v2196 = vld [vmem:[%s2180 + $0x3c] sm:$0xf]
      %v2197 = vunpack.c.l.b16 %v2151
      %v2198 = vunpack.c.l.b16 %v2155
      %v2199 = vunpack.c.l.b16 %v2159
      %v2200 = vunpack.c.l.b16 %v2163
      %v2201 = vunpack.c.l.b16 %v2167
      %v2202 = vunpack.c.l.b16 %v2171
      %v2203 = vunpack.c.l.b16 %v2175
      %v2204 = vunpack.c.l.b16 %v2179
      %v2205 = vpack.c.b16 %v2198, %v2197
      %v2206 = vpack.c.b16 %v2200, %v2199
      %v2207 = vpack.c.b16 %v2202, %v2201
      %v2208 = vpack.c.b16 %v2204, %v2203
      %v2229 = vunpack.c.l.b16 %v2181
      %v2230 = vunpack.c.l.b16 %v2182
      %v2231 = vunpack.c.l.b16 %v2183
      %v2232 = vunpack.c.l.b16 %v2184
      %v2233 = vunpack.c.l.b16 %v2185
      %v2234 = vunpack.c.l.b16 %v2186
      %v2235 = vunpack.c.l.b16 %v2187
      %v2236 = vunpack.c.l.b16 %v2188
      %v2237 = vunpack.c.l.b16 %v2189
      %v2238 = vunpack.c.l.b16 %v2190
      %v2239 = vunpack.c.l.b16 %v2191
      %v2240 = vunpack.c.l.b16 %v2192
      %v2241 = vunpack.c.l.b16 %v2193
      %v2242 = vunpack.c.l.b16 %v2194
      %v2243 = vunpack.c.l.b16 %v2195
      %v2244 = vunpack.c.l.b16 %v2196
      %v2245 = vpack.c.b16 %v2230, %v2229
      %v2246 = vpack.c.b16 %v2232, %v2231
      %v2247 = vpack.c.b16 %v2234, %v2233
      %v2248 = vpack.c.b16 %v2236, %v2235
      %v2249 = vpack.c.b16 %v2238, %v2237
      %v2250 = vpack.c.b16 %v2240, %v2239
      %v2251 = vpack.c.b16 %v2242, %v2241
      %v2252 = vpack.c.b16 %v2244, %v2243
      %2261 = vmatprep.subr.bf16.mxu0 0
      %2262 = vmatpush1.bf16.msra.mxu0 %v2252
      %2263 = vmatprep.subr.bf16.mxu0 0
      %2264 = vmatpush1.bf16.msra.mxu0 %v2251
      %2265 = vmatprep.subr.bf16.mxu0 0
      %2266 = vmatpush1.bf16.msra.mxu0 %v2250
      %2267 = vmatprep.subr.bf16.mxu0 0
      %2268 = vmatpush1.bf16.msra.mxu0 %v2249
      %2269 = vmatprep.subr.bf16.mxu0 0
      %2270 = vmatpush1.bf16.msra.mxu0 %v2248
      %2271 = vmatprep.subr.bf16.mxu0 0
      %2272 = vmatpush1.bf16.msra.mxu0 %v2247
      %2273 = vmatprep.subr.bf16.mxu0 0
      %2274 = vmatpush1.bf16.msra.mxu0 %v2246
      %2275 = vmatprep.subr.bf16.mxu0 0
      %2276 = vmatpush1.bf16.msra.mxu0 %v2245
      %2277 = vmatprep.subr.bf16.mxu0 0
      %2278 = vmatpush2.bf16.msra.mxu0 0
      %2279 = vmatprep.subr.bf16.mxu0 0
      %2280 = vmatpush2.bf16.msra.mxu0 0
      %2281 = vmatprep.subr.bf16.mxu0 0
      %2282 = vmatpush2.bf16.msra.mxu0 0
      %2283 = vmatprep.subr.bf16.mxu0 0
      %2284 = vmatpush2.bf16.msra.mxu0 0
      %2285 = vmatprep.subr.bf16.mxu0 0
      %2286 = vmatpush2.bf16.msra.mxu0 0
      %2287 = vmatprep.subr.bf16.mxu0 0
      %2288 = vmatpush2.bf16.msra.mxu0 0
      %2289 = vmatprep.subr.bf16.mxu0 0
      %2290 = vmatpush2.bf16.msra.mxu0 0
      %2291 = vmatprep.subr.bf16.mxu0 0
      %2292 = vmatpush2.bf16.msra.mxu0 0
      %2293 = vmatprep.mubr.bf16.mxu0 0
      %2294 = vmatmul.mubr.bf16.gmra.mxu0 %v2205
      %v2295 = vpop.f32.mrf.mxu0
      %v2296 = vadd.f32 0.0, %v2295
      %v2297 = vpop.f32.mrf.mxu0
      %v2298 = vpop.f32.mrf.mxu0
      %v2299 = vadd.f32 0.0, %v2298
      %v2300 = vpop.f32.mrf.mxu0
      %2301 = vmatprep.mubr.bf16.mxu0 0
      %2302 = vmatmul.mubr.bf16.gmra.mxu0 %v2206
      %v2303 = vpop.f32.mrf.mxu0
      %v2304 = vadd.f32 0.0, %v2303
      %v2305 = vpop.f32.mrf.mxu0
      %v2306 = vpop.f32.mrf.mxu0
      %v2307 = vadd.f32 0.0, %v2306
      %v2308 = vpop.f32.mrf.mxu0
      %2309 = vmatprep.mubr.bf16.mxu0 0
      %2310 = vmatmul.mubr.bf16.gmra.mxu0 %v2207
      %v2311 = vpop.f32.mrf.mxu0
      %v2312 = vadd.f32 0.0, %v2311
      %v2313 = vpop.f32.mrf.mxu0
      %v2314 = vpop.f32.mrf.mxu0
      %v2315 = vadd.f32 0.0, %v2314
      %v2316 = vpop.f32.mrf.mxu0
      %2317 = vmatprep.mubr.bf16.mxu0 0
      %2318 = vmatmul.mubr.bf16.gmra.mxu0 %v2208
      %v2319 = vpop.f32.mrf.mxu0
      %v2320 = vadd.f32 0.0, %v2319
      %v2321 = vpop.f32.mrf.mxu0
      %v2322 = vpop.f32.mrf.mxu0
      %v2323 = vadd.f32 0.0, %v2322
      %v2324 = vpop.f32.mrf.mxu0
      %2325 = vdwg.mxu0
      %v2326 = vld [vmem:[#allocation2] sm:$0xff]
      %v2327 = vld [vmem:[#allocation2 + $0x8] sm:$0xff]
      %v2328 = vld [vmem:[#allocation2 + $0x10] sm:$0xff]
      %v2329 = vld [vmem:[#allocation2 + $0x18] sm:$0xff]
      %v2330 = vld [vmem:[#allocation2 + $0x20] sm:$0xff]
      %v2331 = vld [vmem:[#allocation2 + $0x28] sm:$0xff]
      %v2332 = vld [vmem:[#allocation2 + $0x30] sm:$0xff]
      %v2333 = vld [vmem:[#allocation2 + $0x38] sm:$0xff]
      %v2334 = vadd.f32 %v2326, %v2296
      %v2335 = vadd.f32 %v2327, %v2299
      %v2336 = vadd.f32 %v2328, %v2304
      %v2337 = vadd.f32 %v2329, %v2307
      %v2338 = vadd.f32 %v2330, %v2312
      %v2339 = vadd.f32 %v2331, %v2315
      %v2340 = vadd.f32 %v2332, %v2320
      %v2341 = vadd.f32 %v2333, %v2323
      %2342 = vst [vmem:[#allocation2] sm:$0xff] %v2334
      %2343 = vst [vmem:[#allocation2 + $0x8] sm:$0xff] %v2335
      %2344 = vst [vmem:[#allocation2 + $0x10] sm:$0xff] %v2336
      %2345 = vst [vmem:[#allocation2 + $0x18] sm:$0xff] %v2337
      %2346 = vst [vmem:[#allocation2 + $0x20] sm:$0xff] %v2338
      %2347 = vst [vmem:[#allocation2 + $0x28] sm:$0xff] %v2339
      %2348 = vst [vmem:[#allocation2 + $0x30] sm:$0xff] %v2340
      %2349 = vst [vmem:[#allocation2 + $0x38] sm:$0xff] %v2341
      %v2350 = vld [vmem:[#allocation2] sm:$0xff]
      %v2351 = vld [vmem:[#allocation2 + $0x8] sm:$0xff]
      %v2352 = vld [vmem:[#allocation2 + $0x10] sm:$0xff]
      %v2353 = vld [vmem:[#allocation2 + $0x18] sm:$0xff]
      %v2354 = vld [vmem:[#allocation2 + $0x20] sm:$0xff]
      %v2355 = vld [vmem:[#allocation2 + $0x28] sm:$0xff]
      %v2356 = vld [vmem:[#allocation2 + $0x30] sm:$0xff]
      %v2357 = vld [vmem:[#allocation2 + $0x38] sm:$0xff]
      %v2358 = vld [vmem:[%s2] sm:$0x1]
      %v2360 = vlaneseq
      %v2361 = vshrl.u32 %v2360, 7
      %v2362 = vsub.s32 0, %v2361
      %v2363 = vrot.slane %v2358, %v2362
      %v2365 = vadd.f32 %v2350, %v2363
      %v2366 = vadd.f32 %v2351, %v2363
      %v2367 = vadd.f32 %v2352, %v2363
      %v2368 = vadd.f32 %v2353, %v2363
      %v2369 = vadd.f32 %v2354, %v2363
      %v2370 = vadd.f32 %v2355, %v2363
      %v2371 = vadd.f32 %v2356, %v2363
      %v2372 = vadd.f32 %v2357, %v2363
      %v2373 = vmax.f32 %v2365, 0.0
      %v2374 = vmax.f32 %v2366, 0.0
      %v2375 = vmax.f32 %v2367, 0.0
      %v2376 = vmax.f32 %v2368, 0.0
      %v2377 = vmax.f32 %v2369, 0.0
      %v2378 = vmax.f32 %v2370, 0.0
      %v2379 = vmax.f32 %v2371, 0.0
      %v2380 = vmax.f32 %v2372, 0.0
      %v2381 = vpack.c.bf16 %v2373, %v2373
      %v2382 = vpack.c.bf16 %v2374, %v2374
      %v2383 = vpack.c.bf16 %v2375, %v2375
      %v2384 = vpack.c.bf16 %v2376, %v2376
      %v2385 = vpack.c.bf16 %v2377, %v2377
      %v2386 = vpack.c.bf16 %v2378, %v2378
      %v2387 = vpack.c.bf16 %v2379, %v2379
      %v2388 = vpack.c.bf16 %v2380, %v2380
      %2389 = vst [vmem:[%s192] sm:$0xf] %v2381
      %2390 = vst [vmem:[%s192 + $0x4] sm:$0xf] %v2382
      %2391 = vst [vmem:[%s192 + $0x8] sm:$0xf] %v2383
      %2392 = vst [vmem:[%s192 + $0xc] sm:$0xf] %v2384
      %2393 = vst [vmem:[%s192 + $0x10] sm:$0xf] %v2385
      %2394 = vst [vmem:[%s192 + $0x14] sm:$0xf] %v2386
      %2395 = vst [vmem:[%s192 + $0x18] sm:$0xf] %v2387
      %2396 = vst [vmem:[%s192 + $0x1c] sm:$0xf] %v2388
      %s2397 = smul.u32 8, %s19
      %p2398 = scmp.lt.s32.totalorder %s18, 1
      %s2399 = scalar_select %p2398, %s18, 1
      %p2400 = scmp.lt.s32.totalorder %s2397, 7
      %s2401 = scalar_select %p2400, %s2397, 7
      %s2402 = smul.addr %s2399, 8
      %s2403 = sadd.s32 %s2401, %s2402
      %s2404 = smul.addr %s2403, 4
      %s2405 = scalar_lea.vmem %s3, %s2404
      // Predicated region
      $region33: #{_lambda_.6} parent=31 // pred_check
        %p2406 = pneg %p114
      $region34: #{_lambda_.6} parent=31 // pred_check_branch
        %2408 = sbr.rel (%p2406) target = $region36
      $region35: #{_lambda_.6} parent=31 // pred_region
        %s2409 = smul.u32 8, %s19
      $region36: #{_lambda_.6} parent=31 // pred_fallthru
        _
    $region32: #{_lambda_.6} parent=5 // pred_fallthru
      _
    %p2410 = scmp.le.s32.totalorder 2, %s9
    // Predicated region
    $region37: #{_lambda_.6} parent=5 // pred_check
      %p2411 = pneg %p2410
    $region38: #{_lambda_.6} parent=5 // pred_check_branch
      %2413 = sbr.rel (%p2411) target = $region40
    $region39: #{_lambda_.6} parent=5 // pred_region
      %s2414 = ssub.s32 %s9, 2
      // Predicated region
      $region41: #{_lambda_.6} parent=39 // pred_check
        %p2415 = pneg %p120
      $region42: #{_lambda_.6} parent=39 // pred_check_branch
        %2417 = sbr.rel (%p2415) target = $region44
      $region43: #{_lambda_.6} parent=39 // pred_region
        %s2418 = smul.u32 8, %s21
        %p2419 = scmp.lt.s32.totalorder %s20, 1
        %s2420 = scalar_select %p2419, %s20, 1
        %p2421 = scmp.lt.s32.totalorder %s2418, 7
        %s2422 = scalar_select %p2421, %s2418, 7
        %s2423 = smul.addr %s2420, 8
        %s2424 = sadd.s32 %s2422, %s2423
        %s2425 = smul.addr %s2424, 4
        %s2426 = scalar_lea.vmem %s3, %s2425
      $region44: #{_lambda_.6} parent=39 // pred_fallthru
        _
    $region40: #{_lambda_.6} parent=5 // pred_fallthru
      _
  $region6: #{_lambda_.6} parent=0 // loop_footer
    %s13 = sadd.s32 1, %s9
  $region7: #{_lambda_.6} parent=0 // loop_footer_branch
    %8 = sbr.rel target = $region3
  $region8: #{_lambda_.6} parent=0 // loop_exit
    _

// kernel: _lambda_.7
$region0: #{_lambda_.7}
  #allocation0 [shape = 'u32[]', space=smem, size = 0x4, offset = 0x4, fixed_abs, tag = 'smem constant byte address 0x4 - core index']
  #allocation1 [shape = 'u32[144,128]{1,0:T(1,128)}', space=vmem, size = 0x12000, scoped, tag = 'internal scratch']
  #allocation2 [shape = 'f32[64,128]{1,0:T(8,128)}', space=vmem, size = 0x8000, scoped, tag = 'scratch operand']
  %s0 = inlined_call_operand.vmem [shape: bf16[2,10,10,128], index: 0, kind: input, shape index: {}]
  %s1 = inlined_call_operand.vmem [shape: bf16[9,128,128], index: 1, kind: input, shape index: {}]
  %s2 = inlined_call_operand.vmem [shape: f32[1,128], index: 2, kind: input, shape index: {}]
  %s3 = inlined_call_operand.vmem [shape: bf16[2,8,8,128], index: 3, kind: input, shape index: {}]
  %s4 = inlined_call_operand.vmem [shape: bf16[2,8,8,128], index: 4, kind: output, shape index: {}]
  %s5 = sld [smem:[#allocation0]]
  $region49: #{_lambda_.7} parent=0
    _
  %s7 = ssub.s32 1, %s5
  %s8 = scalar_select 0, %s7, %s5
  loop: start=0, step=1, limit=4
  $region2: #{_lambda_.7} parent=0 // loop_pre_header
    _
  $region3: #{_lambda_.7} parent=0 // loop_header
    %s10 = sphi 0, %s14
    %p11 = scmp.ge.s32.totalorder %s10, 4
    %s17 = sphi 0, %s29
    %s18 = sphi 0, %s25
    %s19 = sphi 0, %s17
    %s20 = sphi 0, %s18
    %s21 = sphi 0, %s19
    %s22 = sphi 0, %s20
    %s32 = sphi 0, %s34
    %s35 = sphi 0, %s32
    %s36 = sphi 0, %s35
    %s52 = sphi 0, %s36
    %s56 = sphi 0, %s56
    %s58 = sphi 0, %s56
    %s59 = sphi 0, %s58
    %s73 = sphi 0, %s59
    %s77 = sphi 0, %s77
    %s79 = sphi 0, %s77
    %s80 = sphi 0, %s79
    %s94 = sphi 0, %s80
    %s102 = sphi 0, %s104
    %s105 = sphi 0, %s102
    %s106 = sphi 0, %s105
    %s122 = sphi 0, %s106
    %s130 = sphi 0, %s132
    %s133 = sphi 0, %s130
    %s134 = sphi 0, %s133
    %s150 = sphi 0, %s134
  $region4: #{_lambda_.7} parent=0 // loop_header_branch
    %13 = sbr.rel (%p11) target = $region8
  $region5: #{_lambda_.7} parent=0 // loop_body
    %s15 = ssub.s32 %s10, 1
    %s16 = ssub.s32 %s10, 2
    %s23 = sadd.s32 1, %s18
    %p24 = scmp.ge.s32.totalorder %s23, 1
    %s25 = scalar_select %p24, 0, %s23
    %s26 = sadd.s32 1, %s17
    %s27 = scalar_select %p24, %s26, %s17
    %p28 = scmp.ge.s32.totalorder %s27, 2
    %s29 = scalar_select %p28, 0, %s27
    %s30 = ssub.s32 %s17, %s29
    %p31 = scmp.eq.s32.totalorder %s30, 0
    %s33 = sadd.s32 %s32, 1
    %s34 = scalar_select %p31, %s32, %s33
    %p37 = pneg %p31
    %p38 = scmp.eq.s32.totalorder %s10, 1
    %p39 = por %p37, %p38
    %p40 = scmp.ne.s32.totalorder %s32, %s35
    %p41 = scmp.eq.s32.totalorder %s10, 0
    %p42 = por %p40, %p41
    %p43 = scmp.ne.s32.totalorder %s32, %s35
    %p44 = scmp.eq.s32.totalorder %s15, 1
    %p45 = por %p43, %p44
    %p46 = scmp.ne.s32.totalorder %s35, %s36
    %p47 = scmp.eq.s32.totalorder %s15, 0
    %p48 = por %p46, %p47
    %p49 = scmp.ne.s32.totalorder %s35, %s36
    %p50 = scmp.eq.s32.totalorder %s16, 1
    %p51 = por %p49, %p50
    %p53 = scmp.ne.s32.totalorder %s36, %s52
    %p54 = scmp.eq.s32.totalorder %s16, 0
    %p55 = por %p53, %p54
    %s57 = sadd.s32 %s56, 1
    %p60 = scmp.eq.s32.totalorder %s10, 1
    %p61 = scmp.ne.s32.totalorder %s56, %s58
    %p62 = scmp.eq.s32.totalorder %s10, 0
    %p63 = por %p61, %p62
    %p64 = scmp.ne.s32.totalorder %s56, %s58
    %p65 = scmp.eq.s32.totalorder %s15, 1
    %p66 = por %p64, %p65
    %p67 = scmp.ne.s32.totalorder %s58, %s59
    %p68 = scmp.eq.s32.totalorder %s15, 0
    %p69 = por %p67, %p68
    %p70 = scmp.ne.s32.totalorder %s58, %s59
    %p71 = scmp.eq.s32.totalorder %s16, 1
    %p72 = por %p70, %p71
    %p74 = scmp.ne.s32.totalorder %s59, %s73
    %p75 = scmp.eq.s32.totalorder %s16, 0
    %p76 = por %p74, %p75
    %s78 = sadd.s32 %s77, 1
    %p81 = scmp.eq.s32.totalorder %s10, 1
    %p82 = scmp.ne.s32.totalorder %s77, %s79
    %p83 = scmp.eq.s32.totalorder %s10, 0
    %p84 = por %p82, %p83
    %p85 = scmp.ne.s32.totalorder %s77, %s79
    %p86 = scmp.eq.s32.totalorder %s15, 1
    %p87 = por %p85, %p86
    %p88 = scmp.ne.s32.totalorder %s79, %s80
    %p89 = scmp.eq.s32.totalorder %s15, 0
    %p90 = por %p88, %p89
    %p91 = scmp.ne.s32.totalorder %s79, %s80
    %p92 = scmp.eq.s32.totalorder %s16, 1
    %p93 = por %p91, %p92
    %p95 = scmp.ne.s32.totalorder %s80, %s94
    %p96 = scmp.eq.s32.totalorder %s16, 0
    %p97 = por %p95, %p96
    %s98 = ssub.s32 %s17, %s29
    %s99 = ssub.s32 %s18, %s25
    %s100 = sor.u32 %s98, %s99
    %p101 = scmp.eq.s32.totalorder %s100, 0
    %s103 = sadd.s32 %s102, 1
    %s104 = scalar_select %p101, %s102, %s103
    %p107 = pneg %p101
    %p108 = scmp.eq.s32.totalorder %s10, 1
    %p109 = por %p107, %p108
    %p110 = scmp.ne.s32.totalorder %s102, %s105
    %p111 = scmp.eq.s32.totalorder %s10, 0
    %p112 = por %p110, %p111
    %p113 = scmp.ne.s32.totalorder %s102, %s105
    %p114 = scmp.eq.s32.totalorder %s15, 1
    %p115 = por %p113, %p114
    %p116 = scmp.ne.s32.totalorder %s105, %s106
    %p117 = scmp.eq.s32.totalorder %s15, 0
    %p118 = por %p116, %p117
    %p119 = scmp.ne.s32.totalorder %s105, %s106
    %p120 = scmp.eq.s32.totalorder %s16, 1
    %p121 = por %p119, %p120
    %p123 = scmp.ne.s32.totalorder %s106, %s122
    %p124 = scmp.eq.s32.totalorder %s16, 0
    %p125 = por %p123, %p124
    %s126 = ssub.s32 %s17, %s29
    %s127 = ssub.s32 %s18, %s25
    %s128 = sor.u32 %s126, %s127
    %p129 = scmp.eq.s32.totalorder %s128, 0
    %s131 = sadd.s32 %s130, 1
    %s132 = scalar_select %p129, %s130, %s131
    %p135 = pneg %p129
    %p136 = scmp.eq.s32.totalorder %s10, 1
    %p137 = por %p135, %p136
    %p138 = scmp.ne.s32.totalorder %s130, %s133
    %p139 = scmp.eq.s32.totalorder %s10, 0
    %p140 = por %p138, %p139
    %p141 = scmp.ne.s32.totalorder %s130, %s133
    %p142 = scmp.eq.s32.totalorder %s15, 1
    %p143 = por %p141, %p142
    %p144 = scmp.ne.s32.totalorder %s133, %s134
    %p145 = scmp.eq.s32.totalorder %s15, 0
    %p146 = por %p144, %p145
    %p147 = scmp.ne.s32.totalorder %s133, %s134
    %p148 = scmp.eq.s32.totalorder %s16, 1
    %p149 = por %p147, %p148
    %p151 = scmp.ne.s32.totalorder %s134, %s150
    %p152 = scmp.eq.s32.totalorder %s16, 0
    %p153 = por %p151, %p152
    %p154 = scmp.le.s32.totalorder 1, %s10
    %p155 = scmp.lt.s32.totalorder %s10, 3
    %p156 = pnand %p154, %p155
    %p157 = pneg %p156
    // Predicated region
    $region9: #{_lambda_.7} parent=5 // pred_check
      _
    $region10: #{_lambda_.7} parent=5 // pred_check_branch
      %159 = sbr.rel (%p156) target = $region12
    $region11: #{_lambda_.7} parent=5 // pred_region
      %s160 = ssub.s32 %s10, 1
      // Predicated region
      $region13: #{_lambda_.7} parent=11 // pred_check
        %p161 = pneg %p69
      $region14: #{_lambda_.7} parent=11 // pred_check_branch
        %163 = sbr.rel (%p161) target = $region16
      $region15: #{_lambda_.7} parent=11 // pred_region
        _
      $region16: #{_lambda_.7} parent=11 // pred_fallthru
        _
      // Predicated region
      $region17: #{_lambda_.7} parent=11 // pred_check
        %p164 = pneg %p90
      $region18: #{_lambda_.7} parent=11 // pred_check_branch
        %166 = sbr.rel (%p164) target = $region20
      $region19: #{_lambda_.7} parent=11 // pred_region
        _
      $region20: #{_lambda_.7} parent=11 // pred_fallthru
        _
    $region12: #{_lambda_.7} parent=5 // pred_fallthru
      _
    %p167 = scmp.lt.s32.totalorder %s10, 2
    // Predicated region
    $region21: #{_lambda_.7} parent=5 // pred_check
      %p168 = pneg %p167
    $region22: #{_lambda_.7} parent=5 // pred_check_branch
      %170 = sbr.rel (%p168) target = $region24
    $region23: #{_lambda_.7} parent=5 // pred_region
      // Predicated region
      $region25: #{_lambda_.7} parent=23 // pred_check
        %p171 = pneg %p42
      $region26: #{_lambda_.7} parent=23 // pred_check_branch
        %173 = sbr.rel (%p171) target = $region28
      $region27: #{_lambda_.7} parent=23 // pred_region
        %p174 = scmp.lt.s32.totalorder %s17, 1
        %s175 = scalar_select %p174, %s17, 1
        %s176 = smul.addr %s175, 20
        %s177 = smul.addr %s176, 4
        %s178 = scalar_lea.vmem %s0, %s177
      $region28: #{_lambda_.7} parent=23 // pred_fallthru
        _
      // Predicated region
      $region29: #{_lambda_.7} parent=23 // pred_check
        %p179 = pneg %p112
      $region30: #{_lambda_.7} parent=23 // pred_check_branch
        %181 = sbr.rel (%p179) target = $region32
      $region31: #{_lambda_.7} parent=23 // pred_region
        %s182 = smul.u32 8, %s18
        %p183 = scmp.lt.s32.totalorder %s17, 1
        %s184 = scalar_select %p183, %s17, 1
        %p185 = scmp.lt.s32.totalorder %s182, 7
        %s186 = scalar_select %p185, %s182, 7
        %s187 = smul.addr %s184, 8
        %s188 = sadd.s32 %s186, %s187
        %s189 = smul.addr %s188, 4
        %s190 = scalar_lea.vmem %s3, %s189
        %s191 = smul.u32 8, %s18
      $region32: #{_lambda_.7} parent=23 // pred_fallthru
        _
    $region24: #{_lambda_.7} parent=5 // pred_fallthru
      _
    %p192 = scmp.le.s32.totalorder 1, %s10
    %p193 = scmp.lt.s32.totalorder %s10, 3
    %p194 = pnand %p192, %p193
    %p195 = pneg %p194
    // Predicated region
    $region33: #{_lambda_.7} parent=5 // pred_check
      _
    $region34: #{_lambda_.7} parent=5 // pred_check_branch
      %197 = sbr.rel (%p194) target = $region36
    $region35: #{_lambda_.7} parent=5 // pred_region
      %s198 = ssub.s32 %s10, 1
      %p199 = scmp.lt.s32.totalorder %s19, 1
      %s200 = scalar_select %p199, %s19, 1
      %s201 = smul.addr %s200, 20
      %s202 = smul.addr %s201, 4
      %s203 = scalar_lea.vmem %s0, %s202
      %p204 = pneg %p48
      %p205 = pneg %p45
      %p206 = pneg %p69
      %p207 = pneg %p66
      %p208 = pneg %p90
      %p209 = pneg %p87
      %s210 = smul.u32 8, %s20
      %p211 = scmp.lt.s32.totalorder %s19, 1
      %s212 = scalar_select %p211, %s19, 1
      %p213 = scmp.lt.s32.totalorder %s210, 7
      %s214 = scalar_select %p213, %s210, 7
      %s215 = smul.addr %s212, 8
      %s216 = sadd.s32 %s214, %s215
      %s217 = smul.addr %s216, 4
      %s218 = scalar_lea.vmem %s3, %s217
      %p219 = pneg %p118
      %p220 = pneg %p115
      %p221 = pneg %p146
      %p222 = pneg %p143
      %s223 = smul.u32 8, %s20
      %p224 = scmp.lt.s32.totalorder %s19, 1
      %s225 = scalar_select %p224, %s19, 1
      %p226 = scmp.lt.s32.totalorder %s223, 7
      %s227 = scalar_select %p226, %s223, 7
      %s228 = smul.addr %s225, 8
      %s229 = sadd.s32 %s227, %s228
      %s230 = smul.addr %s229, 4
      %s231 = scalar_lea.vmem %s4, %s230
      %p232 = scmp.lt.s32.totalorder %s19, 1
      %s233 = scalar_select %p232, %s19, 1
      %s234 = smul.addr %s233, 20
      %s235 = smul.addr %s234, 4
      %s236 = scalar_lea.vmem %s0, %s235
      %s237 = smul.u32 8, %s20
      %p238 = scmp.lt.s32.totalorder %s19, 1
      %s239 = scalar_select %p238, %s19, 1
      %p240 = scmp.lt.s32.totalorder %s237, 7
      %s241 = scalar_select %p240, %s237, 7
      %s242 = smul.addr %s239, 8
      %s243 = sadd.s32 %s241, %s242
      %s244 = smul.addr %s243, 4
      %s245 = scalar_lea.vmem %s3, %s244
      %s246 = smul.u32 8, %s20
      %s247 = smul.u32 8, %s20
      %p248 = scmp.lt.s32.totalorder %s19, 1
      %s249 = scalar_select %p248, %s19, 1
      %p250 = scmp.lt.s32.totalorder %s247, 7
      %s251 = scalar_select %p250, %s247, 7
      %s252 = smul.addr %s249, 8
      %s253 = sadd.s32 %s251, %s252
      %s254 = smul.addr %s253, 4
      %s255 = scalar_lea.vmem %s4, %s254
      %s256 = smul.u32 8, %s20
      %s258 = smul.u32 %s20, 8
      %s259 = smul.u32 %s258, 2
      %s260 = smul.addr %s259, 4
      %s261 = scalar_lea.vmem %s236, %s260
      %v262 = vld [vmem:[%s261] sm:$0xf]
      %v263 = vld [vmem:[%s261 + $0x8] sm:$0xf]
      %v264 = vld [vmem:[%s261 + $0x10] sm:$0xf]
      %v265 = vld [vmem:[%s261 + $0x18] sm:$0xf]
      %v266 = vld [vmem:[%s261 + $0x20] sm:$0xf]
      %v267 = vld [vmem:[%s261 + $0x28] sm:$0xf]
      %v268 = vld [vmem:[%s261 + $0x30] sm:$0xf]
      %v269 = vld [vmem:[%s261 + $0x38] sm:$0xf]
      %v270 = vld [vmem:[%s1] sm:$0xf]
      %v271 = vld [vmem:[%s1 + $0x4] sm:$0xf]
      %v272 = vld [vmem:[%s1 + $0x8] sm:$0xf]
      %v273 = vld [vmem:[%s1 + $0xc] sm:$0xf]
      %v274 = vld [vmem:[%s1 + $0x10] sm:$0xf]
      %v275 = vld [vmem:[%s1 + $0x14] sm:$0xf]
      %v276 = vld [vmem:[%s1 + $0x18] sm:$0xf]
      %v277 = vld [vmem:[%s1 + $0x1c] sm:$0xf]
      %v278 = vld [vmem:[%s1 + $0x20] sm:$0xf]
      %v279 = vld [vmem:[%s1 + $0x24] sm:$0xf]
      %v280 = vld [vmem:[%s1 + $0x28] sm:$0xf]
      %v281 = vld [vmem:[%s1 + $0x2c] sm:$0xf]
      %v282 = vld [vmem:[%s1 + $0x30] sm:$0xf]
      %v283 = vld [vmem:[%s1 + $0x34] sm:$0xf]
      %v284 = vld [vmem:[%s1 + $0x38] sm:$0xf]
      %v285 = vld [vmem:[%s1 + $0x3c] sm:$0xf]
      %v294 = vunpack.c.l.b16 %v262
      %v295 = vunpack.c.l.b16 %v263
      %v296 = vunpack.c.l.b16 %v264
      %v297 = vunpack.c.l.b16 %v265
      %v298 = vunpack.c.l.b16 %v266
      %v299 = vunpack.c.l.b16 %v267
      %v300 = vunpack.c.l.b16 %v268
      %v301 = vunpack.c.l.b16 %v269
      %v302 = vpack.c.b16 %v295, %v294
      %v303 = vpack.c.b16 %v297, %v296
      %v304 = vpack.c.b16 %v299, %v298
      %v305 = vpack.c.b16 %v301, %v300
      %v326 = vunpack.c.l.b16 %v270
      %v327 = vunpack.c.l.b16 %v271
      %v328 = vunpack.c.l.b16 %v272
      %v329 = vunpack.c.l.b16 %v273
      %v330 = vunpack.c.l.b16 %v274
      %v331 = vunpack.c.l.b16 %v275
      %v332 = vunpack.c.l.b16 %v276
      %v333 = vunpack.c.l.b16 %v277
      %v334 = vunpack.c.l.b16 %v278
      %v335 = vunpack.c.l.b16 %v279
      %v336 = vunpack.c.l.b16 %v280
      %v337 = vunpack.c.l.b16 %v281
      %v338 = vunpack.c.l.b16 %v282
      %v339 = vunpack.c.l.b16 %v283
      %v340 = vunpack.c.l.b16 %v284
      %v341 = vunpack.c.l.b16 %v285
      %v342 = vpack.c.b16 %v327, %v326
      %v343 = vpack.c.b16 %v329, %v328
      %v344 = vpack.c.b16 %v331, %v330
      %v345 = vpack.c.b16 %v333, %v332
      %v346 = vpack.c.b16 %v335, %v334
      %v347 = vpack.c.b16 %v337, %v336
      %v348 = vpack.c.b16 %v339, %v338
      %v349 = vpack.c.b16 %v341, %v340
      %358 = vmatprep.subr.bf16.mxu0 0
      %359 = vmatpush1.bf16.msra.mxu0 %v349
      %360 = vmatprep.subr.bf16.mxu0 0
      %361 = vmatpush1.bf16.msra.mxu0 %v348
      %362 = vmatprep.subr.bf16.mxu0 0
      %363 = vmatpush1.bf16.msra.mxu0 %v347
      %364 = vmatprep.subr.bf16.mxu0 0
      %365 = vmatpush1.bf16.msra.mxu0 %v346
      %366 = vmatprep.subr.bf16.mxu0 0
      %367 = vmatpush1.bf16.msra.mxu0 %v345
      %368 = vmatprep.subr.bf16.mxu0 0
      %369 = vmatpush1.bf16.msra.mxu0 %v344
      %370 = vmatprep.subr.bf16.mxu0 0
      %371 = vmatpush1.bf16.msra.mxu0 %v343
      %372 = vmatprep.subr.bf16.mxu0 0
      %373 = vmatpush1.bf16.msra.mxu0 %v342
      %374 = vmatprep.subr.bf16.mxu0 0
      %375 = vmatpush2.bf16.msra.mxu0 0
      %376 = vmatprep.subr.bf16.mxu0 0
      %377 = vmatpush2.bf16.msra.mxu0 0
      %378 = vmatprep.subr.bf16.mxu0 0
      %379 = vmatpush2.bf16.msra.mxu0 0
      %380 = vmatprep.subr.bf16.mxu0 0
      %381 = vmatpush2.bf16.msra.mxu0 0
      %382 = vmatprep.subr.bf16.mxu0 0
      %383 = vmatpush2.bf16.msra.mxu0 0
      %384 = vmatprep.subr.bf16.mxu0 0
      %385 = vmatpush2.bf16.msra.mxu0 0
      %386 = vmatprep.subr.bf16.mxu0 0
      %387 = vmatpush2.bf16.msra.mxu0 0
      %388 = vmatprep.subr.bf16.mxu0 0
      %389 = vmatpush2.bf16.msra.mxu0 0
      %390 = vmatprep.mubr.bf16.mxu0 0
      %391 = vmatmul.mubr.bf16.gmra.mxu0 %v302
      %v392 = vpop.f32.mrf.mxu0
      %v393 = vadd.f32 0.0, %v392
      %v394 = vpop.f32.mrf.mxu0
      %v395 = vpop.f32.mrf.mxu0
      %v396 = vadd.f32 0.0, %v395
      %v397 = vpop.f32.mrf.mxu0
      %398 = vmatprep.mubr.bf16.mxu0 0
      %399 = vmatmul.mubr.bf16.gmra.mxu0 %v303
      %v400 = vpop.f32.mrf.mxu0
      %v401 = vadd.f32 0.0, %v400
      %v402 = vpop.f32.mrf.mxu0
      %v403 = vpop.f32.mrf.mxu0
      %v404 = vadd.f32 0.0, %v403
      %v405 = vpop.f32.mrf.mxu0
      %406 = vmatprep.mubr.bf16.mxu0 0
      %407 = vmatmul.mubr.bf16.gmra.mxu0 %v304
      %v408 = vpop.f32.mrf.mxu0
      %v409 = vadd.f32 0.0, %v408
      %v410 = vpop.f32.mrf.mxu0
      %v411 = vpop.f32.mrf.mxu0
      %v412 = vadd.f32 0.0, %v411
      %v413 = vpop.f32.mrf.mxu0
      %414 = vmatprep.mubr.bf16.mxu0 0
      %415 = vmatmul.mubr.bf16.gmra.mxu0 %v305
      %v416 = vpop.f32.mrf.mxu0
      %v417 = vadd.f32 0.0, %v416
      %v418 = vpop.f32.mrf.mxu0
      %v419 = vpop.f32.mrf.mxu0
      %v420 = vadd.f32 0.0, %v419
      %v421 = vpop.f32.mrf.mxu0
      %422 = vdwg.mxu0
      %423 = vst [vmem:[#allocation2] sm:$0xff] %v393
      %424 = vst [vmem:[#allocation2 + $0x8] sm:$0xff] %v396
      %425 = vst [vmem:[#allocation2 + $0x10] sm:$0xff] %v401
      %426 = vst [vmem:[#allocation2 + $0x18] sm:$0xff] %v404
      %427 = vst [vmem:[#allocation2 + $0x20] sm:$0xff] %v409
      %428 = vst [vmem:[#allocation2 + $0x28] sm:$0xff] %v412
      %429 = vst [vmem:[#allocation2 + $0x30] sm:$0xff] %v417
      %430 = vst [vmem:[#allocation2 + $0x38] sm:$0xff] %v420
      %v431 = vld [vmem:[%s261] sm:$0xf]
      %v432 = vld [vmem:[%s261 + $0x4] sm:$0x1]
      %v433 = vld [vmem:[%s261 + $0x8] sm:$0xf]
      %v434 = vld [vmem:[%s261 + $0xc] sm:$0x1]
      %v435 = vld [vmem:[%s261 + $0x10] sm:$0xf]
      %v436 = vld [vmem:[%s261 + $0x14] sm:$0x1]
      %v437 = vld [vmem:[%s261 + $0x18] sm:$0xf]
      %v438 = vld [vmem:[%s261 + $0x1c] sm:$0x1]
      %v439 = vld [vmem:[%s261 + $0x20] sm:$0xf]
      %v440 = vld [vmem:[%s261 + $0x24] sm:$0x1]
      %v441 = vld [vmem:[%s261 + $0x28] sm:$0xf]
      %v442 = vld [vmem:[%s261 + $0x2c] sm:$0x1]
      %v443 = vld [vmem:[%s261 + $0x30] sm:$0xf]
      %v444 = vld [vmem:[%s261 + $0x34] sm:$0x1]
      %v445 = vld [vmem:[%s261 + $0x38] sm:$0xf]
      %v446 = vld [vmem:[%s261 + $0x3c] sm:$0x1]
      %vm447 = vsmask.f32 3328
      %vm448 = vsmask.f32 7440
      %vm449 = vmor %vm447, %vm448
      %v451 = vshrl.u32 %v431, 16
      %v453 = vrot.slane %v451, 4
      %v454 = vshll.u32 %v431, 16
      %v456 = vrot.slane %v454, 5
      %v457 = vor.u32 %v453, %v456
      %v458 = vrot.slane %v457, 4
      %v460 = vshll.u32 %v432, 16
      %v462 = vrot.slane %v460, 5
      %v463 = vsel %vm449, %v458, %v462
      %v465 = vshrl.u32 %v433, 16
      %v467 = vrot.slane %v465, 4
      %v468 = vshll.u32 %v433, 16
      %v470 = vrot.slane %v468, 5
      %v471 = vor.u32 %v467, %v470
      %v472 = vrot.slane %v471, 4
      %v474 = vshll.u32 %v434, 16
      %v476 = vrot.slane %v474, 5
      %v477 = vsel %vm449, %v472, %v476
      %v479 = vshrl.u32 %v435, 16
      %v481 = vrot.slane %v479, 4
      %v482 = vshll.u32 %v435, 16
      %v484 = vrot.slane %v482, 5
      %v485 = vor.u32 %v481, %v484
      %v486 = vrot.slane %v485, 4
      %v488 = vshll.u32 %v436, 16
      %v490 = vrot.slane %v488, 5
      %v491 = vsel %vm449, %v486, %v490
      %v493 = vshrl.u32 %v437, 16
      %v495 = vrot.slane %v493, 4
      %v496 = vshll.u32 %v437, 16
      %v498 = vrot.slane %v496, 5
      %v499 = vor.u32 %v495, %v498
      %v500 = vrot.slane %v499, 4
      %v502 = vshll.u32 %v438, 16
      %v504 = vrot.slane %v502, 5
      %v505 = vsel %vm449, %v500, %v504
      %v507 = vshrl.u32 %v439, 16
      %v509 = vrot.slane %v507, 4
      %v510 = vshll.u32 %v439, 16
      %v512 = vrot.slane %v510, 5
      %v513 = vor.u32 %v509, %v512
      %v514 = vrot.slane %v513, 4
      %v516 = vshll.u32 %v440, 16
      %v518 = vrot.slane %v516, 5
      %v519 = vsel %vm449, %v514, %v518
      %v521 = vshrl.u32 %v441, 16
      %v523 = vrot.slane %v521, 4
      %v524 = vshll.u32 %v441, 16
      %v526 = vrot.slane %v524, 5
      %v527 = vor.u32 %v523, %v526
      %v528 = vrot.slane %v527, 4
      %v530 = vshll.u32 %v442, 16
      %v532 = vrot.slane %v530, 5
      %v533 = vsel %vm449, %v528, %v532
      %v535 = vshrl.u32 %v443, 16
      %v537 = vrot.slane %v535, 4
      %v538 = vshll.u32 %v443, 16
      %v540 = vrot.slane %v538, 5
      %v541 = vor.u32 %v537, %v540
      %v542 = vrot.slane %v541, 4
      %v544 = vshll.u32 %v444, 16
      %v546 = vrot.slane %v544, 5
      %v547 = vsel %vm449, %v542, %v546
      %v549 = vshrl.u32 %v445, 16
      %v551 = vrot.slane %v549, 4
      %v552 = vshll.u32 %v445, 16
      %v554 = vrot.slane %v552, 5
      %v555 = vor.u32 %v551, %v554
      %v556 = vrot.slane %v555, 4
      %v558 = vshll.u32 %v446, 16
      %v560 = vrot.slane %v558, 5
      %v561 = vsel %vm449, %v556, %v560
      %s562 = scalar_lea.vmem %s1, 64
      %v563 = vld [vmem:[%s562] sm:$0xf]
      %v564 = vld [vmem:[%s562 + $0x4] sm:$0xf]
      %v565 = vld [vmem:[%s562 + $0x8] sm:$0xf]
      %v566 = vld [vmem:[%s562 + $0xc] sm:$0xf]
      %v567 = vld [vmem:[%s562 + $0x10] sm:$0xf]
      %v568 = vld [vmem:[%s562 + $0x14] sm:$0xf]
      %v569 = vld [vmem:[%s562 + $0x18] sm:$0xf]
      %v570 = vld [vmem:[%s562 + $0x1c] sm:$0xf]
      %v571 = vld [vmem:[%s562 + $0x20] sm:$0xf]
      %v572 = vld [vmem:[%s562 + $0x24] sm:$0xf]
      %v573 = vld [vmem:[%s562 + $0x28] sm:$0xf]
      %v574 = vld [vmem:[%s562 + $0x2c] sm:$0xf]
      %v575 = vld [vmem:[%s562 + $0x30] sm:$0xf]
      %v576 = vld [vmem:[%s562 + $0x34] sm:$0xf]
      %v577 = vld [vmem:[%s562 + $0x38] sm:$0xf]
      %v578 = vld [vmem:[%s562 + $0x3c] sm:$0xf]
      %v579 = vunpack.c.l.b16 %v463
      %v580 = vunpack.c.l.b16 %v477
      %v581 = vunpack.c.l.b16 %v491
      %v582 = vunpack.c.l.b16 %v505
      %v583 = vunpack.c.l.b16 %v519
      %v584 = vunpack.c.l.b16 %v533
      %v585 = vunpack.c.l.b16 %v547
      %v586 = vunpack.c.l.b16 %v561
      %v587 = vpack.c.b16 %v580, %v579
      %v588 = vpack.c.b16 %v582, %v581
      %v589 = vpack.c.b16 %v584, %v583
      %v590 = vpack.c.b16 %v586, %v585
      %v611 = vunpack.c.l.b16 %v563
      %v612 = vunpack.c.l.b16 %v564
      %v613 = vunpack.c.l.b16 %v565
      %v614 = vunpack.c.l.b16 %v566
      %v615 = vunpack.c.l.b16 %v567
      %v616 = vunpack.c.l.b16 %v568
      %v617 = vunpack.c.l.b16 %v569
      %v618 = vunpack.c.l.b16 %v570
      %v619 = vunpack.c.l.b16 %v571
      %v620 = vunpack.c.l.b16 %v572
      %v621 = vunpack.c.l.b16 %v573
      %v622 = vunpack.c.l.b16 %v574
      %v623 = vunpack.c.l.b16 %v575
      %v624 = vunpack.c.l.b16 %v576
      %v625 = vunpack.c.l.b16 %v577
      %v626 = vunpack.c.l.b16 %v578
      %v627 = vpack.c.b16 %v612, %v611
      %v628 = vpack.c.b16 %v614, %v613
      %v629 = vpack.c.b16 %v616, %v615
      %v630 = vpack.c.b16 %v618, %v617
      %v631 = vpack.c.b16 %v620, %v619
      %v632 = vpack.c.b16 %v622, %v621
      %v633 = vpack.c.b16 %v624, %v623
      %v634 = vpack.c.b16 %v626, %v625
      %643 = vmatprep.subr.bf16.mxu0 0
      %644 = vmatpush1.bf16.msra.mxu0 %v634
      %645 = vmatprep.subr.bf16.mxu0 0
      %646 = vmatpush1.bf16.msra.mxu0 %v633
      %647 = vmatprep.subr.bf16.mxu0 0
      %648 = vmatpush1.bf16.msra.mxu0 %v632
      %649 = vmatprep.subr.bf16.mxu0 0
      %650 = vmatpush1.bf16.msra.mxu0 %v631
      %651 = vmatprep.subr.bf16.mxu0 0
      %652 = vmatpush1.bf16.msra.mxu0 %v630
      %653 = vmatprep.subr.bf16.mxu0 0
      %654 = vmatpush1.bf16.msra.mxu0 %v629
      %655 = vmatprep.subr.bf16.mxu0 0
      %656 = vmatpush1.bf16.msra.mxu0 %v628
      %657 = vmatprep.subr.bf16.mxu0 0
      %658 = vmatpush1.bf16.msra.mxu0 %v627
      %659 = vmatprep.subr.bf16.mxu0 0
      %660 = vmatpush2.bf16.msra.mxu0 0
      %661 = vmatprep.subr.bf16.mxu0 0
      %662 = vmatpush2.bf16.msra.mxu0 0
      %663 = vmatprep.subr.bf16.mxu0 0
      %664 = vmatpush2.bf16.msra.mxu0 0
      %665 = vmatprep.subr.bf16.mxu0 0
      %666 = vmatpush2.bf16.msra.mxu0 0
      %667 = vmatprep.subr.bf16.mxu0 0
      %668 = vmatpush2.bf16.msra.mxu0 0
      %669 = vmatprep.subr.bf16.mxu0 0
      %670 = vmatpush2.bf16.msra.mxu0 0
      %671 = vmatprep.subr.bf16.mxu0 0
      %672 = vmatpush2.bf16.msra.mxu0 0
      %673 = vmatprep.subr.bf16.mxu0 0
      %674 = vmatpush2.bf16.msra.mxu0 0
      %675 = vmatprep.mubr.bf16.mxu0 0
      %676 = vmatmul.mubr.bf16.gmra.mxu0 %v587
      %v677 = vpop.f32.mrf.mxu0
      %v678 = vadd.f32 0.0, %v677
      %v679 = vpop.f32.mrf.mxu0
      %v680 = vpop.f32.mrf.mxu0
      %v681 = vadd.f32 0.0, %v680
      %v682 = vpop.f32.mrf.mxu0
      %683 = vmatprep.mubr.bf16.mxu0 0
      %684 = vmatmul.mubr.bf16.gmra.mxu0 %v588
      %v685 = vpop.f32.mrf.mxu0
      %v686 = vadd.f32 0.0, %v685
      %v687 = vpop.f32.mrf.mxu0
      %v688 = vpop.f32.mrf.mxu0
      %v689 = vadd.f32 0.0, %v688
      %v690 = vpop.f32.mrf.mxu0
      %691 = vmatprep.mubr.bf16.mxu0 0
      %692 = vmatmul.mubr.bf16.gmra.mxu0 %v589
      %v693 = vpop.f32.mrf.mxu0
      %v694 = vadd.f32 0.0, %v693
      %v695 = vpop.f32.mrf.mxu0
      %v696 = vpop.f32.mrf.mxu0
      %v697 = vadd.f32 0.0, %v696
      %v698 = vpop.f32.mrf.mxu0
      %699 = vmatprep.mubr.bf16.mxu0 0
      %700 = vmatmul.mubr.bf16.gmra.mxu0 %v590
      %v701 = vpop.f32.mrf.mxu0
      %v702 = vadd.f32 0.0, %v701
      %v703 = vpop.f32.mrf.mxu0
      %v704 = vpop.f32.mrf.mxu0
      %v705 = vadd.f32 0.0, %v704
      %v706 = vpop.f32.mrf.mxu0
      %707 = vdwg.mxu0
      %v708 = vld [vmem:[#allocation2] sm:$0xff]
      %v709 = vld [vmem:[#allocation2 + $0x8] sm:$0xff]
      %v710 = vld [vmem:[#allocation2 + $0x10] sm:$0xff]
      %v711 = vld [vmem:[#allocation2 + $0x18] sm:$0xff]
      %v712 = vld [vmem:[#allocation2 + $0x20] sm:$0xff]
      %v713 = vld [vmem:[#allocation2 + $0x28] sm:$0xff]
      %v714 = vld [vmem:[#allocation2 + $0x30] sm:$0xff]
      %v715 = vld [vmem:[#allocation2 + $0x38] sm:$0xff]
      %v716 = vadd.f32 %v708, %v678
      %v717 = vadd.f32 %v709, %v681
      %v718 = vadd.f32 %v710, %v686
      %v719 = vadd.f32 %v711, %v689
      %v720 = vadd.f32 %v712, %v694
      %v721 = vadd.f32 %v713, %v697
      %v722 = vadd.f32 %v714, %v702
      %v723 = vadd.f32 %v715, %v705
      %724 = vst [vmem:[#allocation2] sm:$0xff] %v716
      %725 = vst [vmem:[#allocation2 + $0x8] sm:$0xff] %v717
      %726 = vst [vmem:[#allocation2 + $0x10] sm:$0xff] %v718
      %727 = vst [vmem:[#allocation2 + $0x18] sm:$0xff] %v719
      %728 = vst [vmem:[#allocation2 + $0x20] sm:$0xff] %v720
      %729 = vst [vmem:[#allocation2 + $0x28] sm:$0xff] %v721
      %730 = vst [vmem:[#allocation2 + $0x30] sm:$0xff] %v722
      %731 = vst [vmem:[#allocation2 + $0x38] sm:$0xff] %v723
      %v732 = vld [vmem:[%s261] sm:$0xe]
      %v733 = vld [vmem:[%s261 + $0x4] sm:$0x1]
      %v734 = vld [vmem:[%s261 + $0x8] sm:$0xe]
      %v735 = vld [vmem:[%s261 + $0xc] sm:$0x1]
      %v736 = vld [vmem:[%s261 + $0x10] sm:$0xe]
      %v737 = vld [vmem:[%s261 + $0x14] sm:$0x1]
      %v738 = vld [vmem:[%s261 + $0x18] sm:$0xe]
      %v739 = vld [vmem:[%s261 + $0x1c] sm:$0x1]
      %v740 = vld [vmem:[%s261 + $0x20] sm:$0xe]
      %v741 = vld [vmem:[%s261 + $0x24] sm:$0x1]
      %v742 = vld [vmem:[%s261 + $0x28] sm:$0xe]
      %v743 = vld [vmem:[%s261 + $0x2c] sm:$0x1]
      %v744 = vld [vmem:[%s261 + $0x30] sm:$0xe]
      %v745 = vld [vmem:[%s261 + $0x34] sm:$0x1]
      %v746 = vld [vmem:[%s261 + $0x38] sm:$0xe]
      %v747 = vld [vmem:[%s261 + $0x3c] sm:$0x1]
      %vm764 = vcmask 1042432
      %vm765 = vcmask 1046532
      %vm766 = vmor %vm764, %vm765
      %v767 = vrot.slane %v732, 5
      %v768 = vrot.slane %v767, 4
      %v769 = vrot.slane %v733, 5
      %v770 = vsel %vm766, %v768, %v769
      %v771 = vrot.slane %v734, 5
      %v772 = vrot.slane %v771, 4
      %v773 = vrot.slane %v735, 5
      %v774 = vsel %vm766, %v772, %v773
      %v775 = vrot.slane %v736, 5
      %v776 = vrot.slane %v775, 4
      %v777 = vrot.slane %v737, 5
      %v778 = vsel %vm766, %v776, %v777
      %v779 = vrot.slane %v738, 5
      %v780 = vrot.slane %v779, 4
      %v781 = vrot.slane %v739, 5
      %v782 = vsel %vm766, %v780, %v781
      %v783 = vrot.slane %v740, 5
      %v784 = vrot.slane %v783, 4
      %v785 = vrot.slane %v741, 5
      %v786 = vsel %vm766, %v784, %v785
      %v787 = vrot.slane %v742, 5
      %v788 = vrot.slane %v787, 4
      %v789 = vrot.slane %v743, 5
      %v790 = vsel %vm766, %v788, %v789
      %v791 = vrot.slane %v744, 5
      %v792 = vrot.slane %v791, 4
      %v793 = vrot.slane %v745, 5
      %v794 = vsel %vm766, %v792, %v793
      %v795 = vrot.slane %v746, 5
      %v796 = vrot.slane %v795, 4
      %v797 = vrot.slane %v747, 5
      %v798 = vsel %vm766, %v796, %v797
      %s799 = scalar_lea.vmem %s1, 128
      %v800 = vld [vmem:[%s799] sm:$0xf]
      %v801 = vld [vmem:[%s799 + $0x4] sm:$0xf]
      %v802 = vld [vmem:[%s799 + $0x8] sm:$0xf]
      %v803 = vld [vmem:[%s799 + $0xc] sm:$0xf]
      %v804 = vld [vmem:[%s799 + $0x10] sm:$0xf]
      %v805 = vld [vmem:[%s799 + $0x14] sm:$0xf]
      %v806 = vld [vmem:[%s799 + $0x18] sm:$0xf]
      %v807 = vld [vmem:[%s799 + $0x1c] sm:$0xf]
      %v808 = vld [vmem:[%s799 + $0x20] sm:$0xf]
      %v809 = vld [vmem:[%s799 + $0x24] sm:$0xf]
      %v810 = vld [vmem:[%s799 + $0x28] sm:$0xf]
      %v811 = vld [vmem:[%s799 + $0x2c] sm:$0xf]
      %v812 = vld [vmem:[%s799 + $0x30] sm:$0xf]
      %v813 = vld [vmem:[%s799 + $0x34] sm:$0xf]
      %v814 = vld [vmem:[%s799 + $0x38] sm:$0xf]
      %v815 = vld [vmem:[%s799 + $0x3c] sm:$0xf]
      %v816 = vunpack.c.l.b16 %v770
      %v817 = vunpack.c.l.b16 %v774
      %v818 = vunpack.c.l.b16 %v778
      %v819 = vunpack.c.l.b16 %v782
      %v820 = vunpack.c.l.b16 %v786
      %v821 = vunpack.c.l.b16 %v790
      %v822 = vunpack.c.l.b16 %v794
      %v823 = vunpack.c.l.b16 %v798
      %v824 = vpack.c.b16 %v817, %v816
      %v825 = vpack.c.b16 %v819, %v818
      %v826 = vpack.c.b16 %v821, %v820
      %v827 = vpack.c.b16 %v823, %v822
      %v848 = vunpack.c.l.b16 %v800
      %v849 = vunpack.c.l.b16 %v801
      %v850 = vunpack.c.l.b16 %v802
      %v851 = vunpack.c.l.b16 %v803
      %v852 = vunpack.c.l.b16 %v804
      %v853 = vunpack.c.l.b16 %v805
      %v854 = vunpack.c.l.b16 %v806
      %v855 = vunpack.c.l.b16 %v807
      %v856 = vunpack.c.l.b16 %v808
      %v857 = vunpack.c.l.b16 %v809
      %v858 = vunpack.c.l.b16 %v810
      %v859 = vunpack.c.l.b16 %v811
      %v860 = vunpack.c.l.b16 %v812
      %v861 = vunpack.c.l.b16 %v813
      %v862 = vunpack.c.l.b16 %v814
      %v863 = vunpack.c.l.b16 %v815
      %v864 = vpack.c.b16 %v849, %v848
      %v865 = vpack.c.b16 %v851, %v850
      %v866 = vpack.c.b16 %v853, %v852
      %v867 = vpack.c.b16 %v855, %v854
      %v868 = vpack.c.b16 %v857, %v856
      %v869 = vpack.c.b16 %v859, %v858
      %v870 = vpack.c.b16 %v861, %v860
      %v871 = vpack.c.b16 %v863, %v862
      %880 = vmatprep.subr.bf16.mxu0 0
      %881 = vmatpush1.bf16.msra.mxu0 %v871
      %882 = vmatprep.subr.bf16.mxu0 0
      %883 = vmatpush1.bf16.msra.mxu0 %v870
      %884 = vmatprep.subr.bf16.mxu0 0
      %885 = vmatpush1.bf16.msra.mxu0 %v869
      %886 = vmatprep.subr.bf16.mxu0 0
      %887 = vmatpush1.bf16.msra.mxu0 %v868
      %888 = vmatprep.subr.bf16.mxu0 0
      %889 = vmatpush1.bf16.msra.mxu0 %v867
      %890 = vmatprep.subr.bf16.mxu0 0
      %891 = vmatpush1.bf16.msra.mxu0 %v866
      %892 = vmatprep.subr.bf16.mxu0 0
      %893 = vmatpush1.bf16.msra.mxu0 %v865
      %894 = vmatprep.subr.bf16.mxu0 0
      %895 = vmatpush1.bf16.msra.mxu0 %v864
      %896 = vmatprep.subr.bf16.mxu0 0
      %897 = vmatpush2.bf16.msra.mxu0 0
      %898 = vmatprep.subr.bf16.mxu0 0
      %899 = vmatpush2.bf16.msra.mxu0 0
      %900 = vmatprep.subr.bf16.mxu0 0
      %901 = vmatpush2.bf16.msra.mxu0 0
      %902 = vmatprep.subr.bf16.mxu0 0
      %903 = vmatpush2.bf16.msra.mxu0 0
      %904 = vmatprep.subr.bf16.mxu0 0
      %905 = vmatpush2.bf16.msra.mxu0 0
      %906 = vmatprep.subr.bf16.mxu0 0
      %907 = vmatpush2.bf16.msra.mxu0 0
      %908 = vmatprep.subr.bf16.mxu0 0
      %909 = vmatpush2.bf16.msra.mxu0 0
      %910 = vmatprep.subr.bf16.mxu0 0
      %911 = vmatpush2.bf16.msra.mxu0 0
      %912 = vmatprep.mubr.bf16.mxu0 0
      %913 = vmatmul.mubr.bf16.gmra.mxu0 %v824
      %v914 = vpop.f32.mrf.mxu0
      %v915 = vadd.f32 0.0, %v914
      %v916 = vpop.f32.mrf.mxu0
      %v917 = vpop.f32.mrf.mxu0
      %v918 = vadd.f32 0.0, %v917
      %v919 = vpop.f32.mrf.mxu0
      %920 = vmatprep.mubr.bf16.mxu0 0
      %921 = vmatmul.mubr.bf16.gmra.mxu0 %v825
      %v922 = vpop.f32.mrf.mxu0
      %v923 = vadd.f32 0.0, %v922
      %v924 = vpop.f32.mrf.mxu0
      %v925 = vpop.f32.mrf.mxu0
      %v926 = vadd.f32 0.0, %v925
      %v927 = vpop.f32.mrf.mxu0
      %928 = vmatprep.mubr.bf16.mxu0 0
      %929 = vmatmul.mubr.bf16.gmra.mxu0 %v826
      %v930 = vpop.f32.mrf.mxu0
      %v931 = vadd.f32 0.0, %v930
      %v932 = vpop.f32.mrf.mxu0
      %v933 = vpop.f32.mrf.mxu0
      %v934 = vadd.f32 0.0, %v933
      %v935 = vpop.f32.mrf.mxu0
      %936 = vmatprep.mubr.bf16.mxu0 0
      %937 = vmatmul.mubr.bf16.gmra.mxu0 %v827
      %v938 = vpop.f32.mrf.mxu0
      %v939 = vadd.f32 0.0, %v938
      %v940 = vpop.f32.mrf.mxu0
      %v941 = vpop.f32.mrf.mxu0
      %v942 = vadd.f32 0.0, %v941
      %v943 = vpop.f32.mrf.mxu0
      %944 = vdwg.mxu0
      %v945 = vld [vmem:[#allocation2] sm:$0xff]
      %v946 = vld [vmem:[#allocation2 + $0x8] sm:$0xff]
      %v947 = vld [vmem:[#allocation2 + $0x10] sm:$0xff]
      %v948 = vld [vmem:[#allocation2 + $0x18] sm:$0xff]
      %v949 = vld [vmem:[#allocation2 + $0x20] sm:$0xff]
      %v950 = vld [vmem:[#allocation2 + $0x28] sm:$0xff]
      %v951 = vld [vmem:[#allocation2 + $0x30] sm:$0xff]
      %v952 = vld [vmem:[#allocation2 + $0x38] sm:$0xff]
      %v953 = vadd.f32 %v945, %v915
      %v954 = vadd.f32 %v946, %v918
      %v955 = vadd.f32 %v947, %v923
      %v956 = vadd.f32 %v948, %v926
      %v957 = vadd.f32 %v949, %v931
      %v958 = vadd.f32 %v950, %v934
      %v959 = vadd.f32 %v951, %v939
      %v960 = vadd.f32 %v952, %v942
      %961 = vst [vmem:[#allocation2] sm:$0xff] %v953
      %962 = vst [vmem:[#allocation2 + $0x8] sm:$0xff] %v954
      %963 = vst [vmem:[#allocation2 + $0x10] sm:$0xff] %v955
      %964 = vst [vmem:[#allocation2 + $0x18] sm:$0xff] %v956
      %965 = vst [vmem:[#allocation2 + $0x20] sm:$0xff] %v957
      %966 = vst [vmem:[#allocation2 + $0x28] sm:$0xff] %v958
      %967 = vst [vmem:[#allocation2 + $0x30] sm:$0xff] %v959
      %968 = vst [vmem:[#allocation2 + $0x38] sm:$0xff] %v960
      %s969 = sadd.s32 %s258, 1
      %s970 = smul.u32 %s969, 2
      %s971 = smul.addr %s970, 4
      %s972 = scalar_lea.vmem %s236, %s971
      %v973 = vld [vmem:[%s972] sm:$0xf]
      %v974 = vld [vmem:[%s972 + $0x8] sm:$0xf]
      %v975 = vld [vmem:[%s972 + $0x10] sm:$0xf]
      %v976 = vld [vmem:[%s972 + $0x18] sm:$0xf]
      %v977 = vld [vmem:[%s972 + $0x20] sm:$0xf]
      %v978 = vld [vmem:[%s972 + $0x28] sm:$0xf]
      %v979 = vld [vmem:[%s972 + $0x30] sm:$0xf]
      %v980 = vld [vmem:[%s972 + $0x38] sm:$0xf]
      %s981 = scalar_lea.vmem %s1, 192
      %v982 = vld [vmem:[%s981] sm:$0xf]
      %v983 = vld [vmem:[%s981 + $0x4] sm:$0xf]
      %v984 = vld [vmem:[%s981 + $0x8] sm:$0xf]
      %v985 = vld [vmem:[%s981 + $0xc] sm:$0xf]
      %v986 = vld [vmem:[%s981 + $0x10] sm:$0xf]
      %v987 = vld [vmem:[%s981 + $0x14] sm:$0xf]
      %v988 = vld [vmem:[%s981 + $0x18] sm:$0xf]
      %v989 = vld [vmem:[%s981 + $0x1c] sm:$0xf]
      %v990 = vld [vmem:[%s981 + $0x20] sm:$0xf]
      %v991 = vld [vmem:[%s981 + $0x24] sm:$0xf]
      %v992 = vld [vmem:[%s981 + $0x28] sm:$0xf]
      %v993 = vld [vmem:[%s981 + $0x2c] sm:$0xf]
      %v994 = vld [vmem:[%s981 + $0x30] sm:$0xf]
      %v995 = vld [vmem:[%s981 + $0x34] sm:$0xf]
      %v996 = vld [vmem:[%s981 + $0x38] sm:$0xf]
      %v997 = vld [vmem:[%s981 + $0x3c] sm:$0xf]
      %v1006 = vunpack.c.l.b16 %v973
      %v1007 = vunpack.c.l.b16 %v974
      %v1008 = vunpack.c.l.b16 %v975
      %v1009 = vunpack.c.l.b16 %v976
      %v1010 = vunpack.c.l.b16 %v977
      %v1011 = vunpack.c.l.b16 %v978
      %v1012 = vunpack.c.l.b16 %v979
      %v1013 = vunpack.c.l.b16 %v980
      %v1014 = vpack.c.b16 %v1007, %v1006
      %v1015 = vpack.c.b16 %v1009, %v1008
      %v1016 = vpack.c.b16 %v1011, %v1010
      %v1017 = vpack.c.b16 %v1013, %v1012
      %v1038 = vunpack.c.l.b16 %v982
      %v1039 = vunpack.c.l.b16 %v983
      %v1040 = vunpack.c.l.b16 %v984
      %v1041 = vunpack.c.l.b16 %v985
      %v1042 = vunpack.c.l.b16 %v986
      %v1043 = vunpack.c.l.b16 %v987
      %v1044 = vunpack.c.l.b16 %v988
      %v1045 = vunpack.c.l.b16 %v989
      %v1046 = vunpack.c.l.b16 %v990
      %v1047 = vunpack.c.l.b16 %v991
      %v1048 = vunpack.c.l.b16 %v992
      %v1049 = vunpack.c.l.b16 %v993
      %v1050 = vunpack.c.l.b16 %v994
      %v1051 = vunpack.c.l.b16 %v995
      %v1052 = vunpack.c.l.b16 %v996
      %v1053 = vunpack.c.l.b16 %v997
      %v1054 = vpack.c.b16 %v1039, %v1038
      %v1055 = vpack.c.b16 %v1041, %v1040
      %v1056 = vpack.c.b16 %v1043, %v1042
      %v1057 = vpack.c.b16 %v1045, %v1044
      %v1058 = vpack.c.b16 %v1047, %v1046
      %v1059 = vpack.c.b16 %v1049, %v1048
      %v1060 = vpack.c.b16 %v1051, %v1050
      %v1061 = vpack.c.b16 %v1053, %v1052
      %1070 = vmatprep.subr.bf16.mxu0 0
      %1071 = vmatpush1.bf16.msra.mxu0 %v1061
      %1072 = vmatprep.subr.bf16.mxu0 0
      %1073 = vmatpush1.bf16.msra.mxu0 %v1060
      %1074 = vmatprep.subr.bf16.mxu0 0
      %1075 = vmatpush1.bf16.msra.mxu0 %v1059
      %1076 = vmatprep.subr.bf16.mxu0 0
      %1077 = vmatpush1.bf16.msra.mxu0 %v1058
      %1078 = vmatprep.subr.bf16.mxu0 0
      %1079 = vmatpush1.bf16.msra.mxu0 %v1057
      %1080 = vmatprep.subr.bf16.mxu0 0
      %1081 = vmatpush1.bf16.msra.mxu0 %v1056
      %1082 = vmatprep.subr.bf16.mxu0 0
      %1083 = vmatpush1.bf16.msra.mxu0 %v1055
      %1084 = vmatprep.subr.bf16.mxu0 0
      %1085 = vmatpush1.bf16.msra.mxu0 %v1054
      %1086 = vmatprep.subr.bf16.mxu0 0
      %1087 = vmatpush2.bf16.msra.mxu0 0
      %1088 = vmatprep.subr.bf16.mxu0 0
      %1089 = vmatpush2.bf16.msra.mxu0 0
      %1090 = vmatprep.subr.bf16.mxu0 0
      %1091 = vmatpush2.bf16.msra.mxu0 0
      %1092 = vmatprep.subr.bf16.mxu0 0
      %1093 = vmatpush2.bf16.msra.mxu0 0
      %1094 = vmatprep.subr.bf16.mxu0 0
      %1095 = vmatpush2.bf16.msra.mxu0 0
      %1096 = vmatprep.subr.bf16.mxu0 0
      %1097 = vmatpush2.bf16.msra.mxu0 0
      %1098 = vmatprep.subr.bf16.mxu0 0
      %1099 = vmatpush2.bf16.msra.mxu0 0
      %1100 = vmatprep.subr.bf16.mxu0 0
      %1101 = vmatpush2.bf16.msra.mxu0 0
      %1102 = vmatprep.mubr.bf16.mxu0 0
      %1103 = vmatmul.mubr.bf16.gmra.mxu0 %v1014
      %v1104 = vpop.f32.mrf.mxu0
      %v1105 = vadd.f32 0.0, %v1104
      %v1106 = vpop.f32.mrf.mxu0
      %v1107 = vpop.f32.mrf.mxu0
      %v1108 = vadd.f32 0.0, %v1107
      %v1109 = vpop.f32.mrf.mxu0
      %1110 = vmatprep.mubr.bf16.mxu0 0
      %1111 = vmatmul.mubr.bf16.gmra.mxu0 %v1015
      %v1112 = vpop.f32.mrf.mxu0
      %v1113 = vadd.f32 0.0, %v1112
      %v1114 = vpop.f32.mrf.mxu0
      %v1115 = vpop.f32.mrf.mxu0
      %v1116 = vadd.f32 0.0, %v1115
      %v1117 = vpop.f32.mrf.mxu0
      %1118 = vmatprep.mubr.bf16.mxu0 0
      %1119 = vmatmul.mubr.bf16.gmra.mxu0 %v1016
      %v1120 = vpop.f32.mrf.mxu0
      %v1121 = vadd.f32 0.0, %v1120
      %v1122 = vpop.f32.mrf.mxu0
      %v1123 = vpop.f32.mrf.mxu0
      %v1124 = vadd.f32 0.0, %v1123
      %v1125 = vpop.f32.mrf.mxu0
      %1126 = vmatprep.mubr.bf16.mxu0 0
      %1127 = vmatmul.mubr.bf16.gmra.mxu0 %v1017
      %v1128 = vpop.f32.mrf.mxu0
      %v1129 = vadd.f32 0.0, %v1128
      %v1130 = vpop.f32.mrf.mxu0
      %v1131 = vpop.f32.mrf.mxu0
      %v1132 = vadd.f32 0.0, %v1131
      %v1133 = vpop.f32.mrf.mxu0
      %1134 = vdwg.mxu0
      %v1135 = vld [vmem:[#allocation2] sm:$0xff]
      %v1136 = vld [vmem:[#allocation2 + $0x8] sm:$0xff]
      %v1137 = vld [vmem:[#allocation2 + $0x10] sm:$0xff]
      %v1138 = vld [vmem:[#allocation2 + $0x18] sm:$0xff]
      %v1139 = vld [vmem:[#allocation2 + $0x20] sm:$0xff]
      %v1140 = vld [vmem:[#allocation2 + $0x28] sm:$0xff]
      %v1141 = vld [vmem:[#allocation2 + $0x30] sm:$0xff]
      %v1142 = vld [vmem:[#allocation2 + $0x38] sm:$0xff]
      %v1143 = vadd.f32 %v1135, %v1105
      %v1144 = vadd.f32 %v1136, %v1108
      %v1145 = vadd.f32 %v1137, %v1113
      %v1146 = vadd.f32 %v1138, %v1116
      %v1147 = vadd.f32 %v1139, %v1121
      %v1148 = vadd.f32 %v1140, %v1124
      %v1149 = vadd.f32 %v1141, %v1129
      %v1150 = vadd.f32 %v1142, %v1132
      %1151 = vst [vmem:[#allocation2] sm:$0xff] %v1143
      %1152 = vst [vmem:[#allocation2 + $0x8] sm:$0xff] %v1144
      %1153 = vst [vmem:[#allocation2 + $0x10] sm:$0xff] %v1145
      %1154 = vst [vmem:[#allocation2 + $0x18] sm:$0xff] %v1146
      %1155 = vst [vmem:[#allocation2 + $0x20] sm:$0xff] %v1147
      %1156 = vst [vmem:[#allocation2 + $0x28] sm:$0xff] %v1148
      %1157 = vst [vmem:[#allocation2 + $0x30] sm:$0xff] %v1149
      %1158 = vst [vmem:[#allocation2 + $0x38] sm:$0xff] %v1150
      %v1159 = vld [vmem:[%s972] sm:$0xf]
      %v1160 = vld [vmem:[%s972 + $0x4] sm:$0x1]
      %v1161 = vld [vmem:[%s972 + $0x8] sm:$0xf]
      %v1162 = vld [vmem:[%s972 + $0xc] sm:$0x1]
      %v1163 = vld [vmem:[%s972 + $0x10] sm:$0xf]
      %v1164 = vld [vmem:[%s972 + $0x14] sm:$0x1]
      %v1165 = vld [vmem:[%s972 + $0x18] sm:$0xf]
      %v1166 = vld [vmem:[%s972 + $0x1c] sm:$0x1]
      %v1167 = vld [vmem:[%s972 + $0x20] sm:$0xf]
      %v1168 = vld [vmem:[%s972 + $0x24] sm:$0x1]
      %v1169 = vld [vmem:[%s972 + $0x28] sm:$0xf]
      %v1170 = vld [vmem:[%s972 + $0x2c] sm:$0x1]
      %v1171 = vld [vmem:[%s972 + $0x30] sm:$0xf]
      %v1172 = vld [vmem:[%s972 + $0x34] sm:$0x1]
      %v1173 = vld [vmem:[%s972 + $0x38] sm:$0xf]
      %v1174 = vld [vmem:[%s972 + $0x3c] sm:$0x1]
      %v1176 = vshrl.u32 %v1159, 16
      %v1178 = vrot.slane %v1176, 4
      %v1179 = vshll.u32 %v1159, 16
      %v1181 = vrot.slane %v1179, 5
      %v1182 = vor.u32 %v1178, %v1181
      %v1183 = vrot.slane %v1182, 4
      %v1185 = vshll.u32 %v1160, 16
      %v1187 = vrot.slane %v1185, 5
      %v1188 = vsel %vm449, %v1183, %v1187
      %v1190 = vshrl.u32 %v1161, 16
      %v1192 = vrot.slane %v1190, 4
      %v1193 = vshll.u32 %v1161, 16
      %v1195 = vrot.slane %v1193, 5
      %v1196 = vor.u32 %v1192, %v1195
      %v1197 = vrot.slane %v1196, 4
      %v1199 = vshll.u32 %v1162, 16
      %v1201 = vrot.slane %v1199, 5
      %v1202 = vsel %vm449, %v1197, %v1201
      %v1204 = vshrl.u32 %v1163, 16
      %v1206 = vrot.slane %v1204, 4
      %v1207 = vshll.u32 %v1163, 16
      %v1209 = vrot.slane %v1207, 5
      %v1210 = vor.u32 %v1206, %v1209
      %v1211 = vrot.slane %v1210, 4
      %v1213 = vshll.u32 %v1164, 16
      %v1215 = vrot.slane %v1213, 5
      %v1216 = vsel %vm449, %v1211, %v1215
      %v1218 = vshrl.u32 %v1165, 16
      %v1220 = vrot.slane %v1218, 4
      %v1221 = vshll.u32 %v1165, 16
      %v1223 = vrot.slane %v1221, 5
      %v1224 = vor.u32 %v1220, %v1223
      %v1225 = vrot.slane %v1224, 4
      %v1227 = vshll.u32 %v1166, 16
      %v1229 = vrot.slane %v1227, 5
      %v1230 = vsel %vm449, %v1225, %v1229
      %v1232 = vshrl.u32 %v1167, 16
      %v1234 = vrot.slane %v1232, 4
      %v1235 = vshll.u32 %v1167, 16
      %v1237 = vrot.slane %v1235, 5
      %v1238 = vor.u32 %v1234, %v1237
      %v1239 = vrot.slane %v1238, 4
      %v1241 = vshll.u32 %v1168, 16
      %v1243 = vrot.slane %v1241, 5
      %v1244 = vsel %vm449, %v1239, %v1243
      %v1246 = vshrl.u32 %v1169, 16
      %v1248 = vrot.slane %v1246, 4
      %v1249 = vshll.u32 %v1169, 16
      %v1251 = vrot.slane %v1249, 5
      %v1252 = vor.u32 %v1248, %v1251
      %v1253 = vrot.slane %v1252, 4
      %v1255 = vshll.u32 %v1170, 16
      %v1257 = vrot.slane %v1255, 5
      %v1258 = vsel %vm449, %v1253, %v1257
      %v1260 = vshrl.u32 %v1171, 16
      %v1262 = vrot.slane %v1260, 4
      %v1263 = vshll.u32 %v1171, 16
      %v1265 = vrot.slane %v1263, 5
      %v1266 = vor.u32 %v1262, %v1265
      %v1267 = vrot.slane %v1266, 4
      %v1269 = vshll.u32 %v1172, 16
      %v1271 = vrot.slane %v1269, 5
      %v1272 = vsel %vm449, %v1267, %v1271
      %v1274 = vshrl.u32 %v1173, 16
      %v1276 = vrot.slane %v1274, 4
      %v1277 = vshll.u32 %v1173, 16
      %v1279 = vrot.slane %v1277, 5
      %v1280 = vor.u32 %v1276, %v1279
      %v1281 = vrot.slane %v1280, 4
      %v1283 = vshll.u32 %v1174, 16
      %v1285 = vrot.slane %v1283, 5
      %v1286 = vsel %vm449, %v1281, %v1285
      %s1287 = scalar_lea.vmem %s1, 256
      %v1288 = vld [vmem:[%s1287] sm:$0xf]
      %v1289 = vld [vmem:[%s1287 + $0x4] sm:$0xf]
      %v1290 = vld [vmem:[%s1287 + $0x8] sm:$0xf]
      %v1291 = vld [vmem:[%s1287 + $0xc] sm:$0xf]
      %v1292 = vld [vmem:[%s1287 + $0x10] sm:$0xf]
      %v1293 = vld [vmem:[%s1287 + $0x14] sm:$0xf]
      %v1294 = vld [vmem:[%s1287 + $0x18] sm:$0xf]
      %v1295 = vld [vmem:[%s1287 + $0x1c] sm:$0xf]
      %v1296 = vld [vmem:[%s1287 + $0x20] sm:$0xf]
      %v1297 = vld [vmem:[%s1287 + $0x24] sm:$0xf]
      %v1298 = vld [vmem:[%s1287 + $0x28] sm:$0xf]
      %v1299 = vld [vmem:[%s1287 + $0x2c] sm:$0xf]
      %v1300 = vld [vmem:[%s1287 + $0x30] sm:$0xf]
      %v1301 = vld [vmem:[%s1287 + $0x34] sm:$0xf]
      %v1302 = vld [vmem:[%s1287 + $0x38] sm:$0xf]
      %v1303 = vld [vmem:[%s1287 + $0x3c] sm:$0xf]
      %v1304 = vunpack.c.l.b16 %v1188
      %v1305 = vunpack.c.l.b16 %v1202
      %v1306 = vunpack.c.l.b16 %v1216
      %v1307 = vunpack.c.l.b16 %v1230
      %v1308 = vunpack.c.l.b16 %v1244
      %v1309 = vunpack.c.l.b16 %v1258
      %v1310 = vunpack.c.l.b16 %v1272
      %v1311 = vunpack.c.l.b16 %v1286
      %v1312 = vpack.c.b16 %v1305, %v1304
      %v1313 = vpack.c.b16 %v1307, %v1306
      %v1314 = vpack.c.b16 %v1309, %v1308
      %v1315 = vpack.c.b16 %v1311, %v1310
      %v1336 = vunpack.c.l.b16 %v1288
      %v1337 = vunpack.c.l.b16 %v1289
      %v1338 = vunpack.c.l.b16 %v1290
      %v1339 = vunpack.c.l.b16 %v1291
      %v1340 = vunpack.c.l.b16 %v1292
      %v1341 = vunpack.c.l.b16 %v1293
      %v1342 = vunpack.c.l.b16 %v1294
      %v1343 = vunpack.c.l.b16 %v1295
      %v1344 = vunpack.c.l.b16 %v1296
      %v1345 = vunpack.c.l.b16 %v1297
      %v1346 = vunpack.c.l.b16 %v1298
      %v1347 = vunpack.c.l.b16 %v1299
      %v1348 = vunpack.c.l.b16 %v1300
      %v1349 = vunpack.c.l.b16 %v1301
      %v1350 = vunpack.c.l.b16 %v1302
      %v1351 = vunpack.c.l.b16 %v1303
      %v1352 = vpack.c.b16 %v1337, %v1336
      %v1353 = vpack.c.b16 %v1339, %v1338
      %v1354 = vpack.c.b16 %v1341, %v1340
      %v1355 = vpack.c.b16 %v1343, %v1342
      %v1356 = vpack.c.b16 %v1345, %v1344
      %v1357 = vpack.c.b16 %v1347, %v1346
      %v1358 = vpack.c.b16 %v1349, %v1348
      %v1359 = vpack.c.b16 %v1351, %v1350
      %1368 = vmatprep.subr.bf16.mxu0 0
      %1369 = vmatpush1.bf16.msra.mxu0 %v1359
      %1370 = vmatprep.subr.bf16.mxu0 0
      %1371 = vmatpush1.bf16.msra.mxu0 %v1358
      %1372 = vmatprep.subr.bf16.mxu0 0
      %1373 = vmatpush1.bf16.msra.mxu0 %v1357
      %1374 = vmatprep.subr.bf16.mxu0 0
      %1375 = vmatpush1.bf16.msra.mxu0 %v1356
      %1376 = vmatprep.subr.bf16.mxu0 0
      %1377 = vmatpush1.bf16.msra.mxu0 %v1355
      %1378 = vmatprep.subr.bf16.mxu0 0
      %1379 = vmatpush1.bf16.msra.mxu0 %v1354
      %1380 = vmatprep.subr.bf16.mxu0 0
      %1381 = vmatpush1.bf16.msra.mxu0 %v1353
      %1382 = vmatprep.subr.bf16.mxu0 0
      %1383 = vmatpush1.bf16.msra.mxu0 %v1352
      %1384 = vmatprep.subr.bf16.mxu0 0
      %1385 = vmatpush2.bf16.msra.mxu0 0
      %1386 = vmatprep.subr.bf16.mxu0 0
      %1387 = vmatpush2.bf16.msra.mxu0 0
      %1388 = vmatprep.subr.bf16.mxu0 0
      %1389 = vmatpush2.bf16.msra.mxu0 0
      %1390 = vmatprep.subr.bf16.mxu0 0
      %1391 = vmatpush2.bf16.msra.mxu0 0
      %1392 = vmatprep.subr.bf16.mxu0 0
      %1393 = vmatpush2.bf16.msra.mxu0 0
      %1394 = vmatprep.subr.bf16.mxu0 0
      %1395 = vmatpush2.bf16.msra.mxu0 0
      %1396 = vmatprep.subr.bf16.mxu0 0
      %1397 = vmatpush2.bf16.msra.mxu0 0
      %1398 = vmatprep.subr.bf16.mxu0 0
      %1399 = vmatpush2.bf16.msra.mxu0 0
      %1400 = vmatprep.mubr.bf16.mxu0 0
      %1401 = vmatmul.mubr.bf16.gmra.mxu0 %v1312
      %v1402 = vpop.f32.mrf.mxu0
      %v1403 = vadd.f32 0.0, %v1402
      %v1404 = vpop.f32.mrf.mxu0
      %v1405 = vpop.f32.mrf.mxu0
      %v1406 = vadd.f32 0.0, %v1405
      %v1407 = vpop.f32.mrf.mxu0
      %1408 = vmatprep.mubr.bf16.mxu0 0
      %1409 = vmatmul.mubr.bf16.gmra.mxu0 %v1313
      %v1410 = vpop.f32.mrf.mxu0
      %v1411 = vadd.f32 0.0, %v1410
      %v1412 = vpop.f32.mrf.mxu0
      %v1413 = vpop.f32.mrf.mxu0
      %v1414 = vadd.f32 0.0, %v1413
      %v1415 = vpop.f32.mrf.mxu0
      %1416 = vmatprep.mubr.bf16.mxu0 0
      %1417 = vmatmul.mubr.bf16.gmra.mxu0 %v1314
      %v1418 = vpop.f32.mrf.mxu0
      %v1419 = vadd.f32 0.0, %v1418
      %v1420 = vpop.f32.mrf.mxu0
      %v1421 = vpop.f32.mrf.mxu0
      %v1422 = vadd.f32 0.0, %v1421
      %v1423 = vpop.f32.mrf.mxu0
      %1424 = vmatprep.mubr.bf16.mxu0 0
      %1425 = vmatmul.mubr.bf16.gmra.mxu0 %v1315
      %v1426 = vpop.f32.mrf.mxu0
      %v1427 = vadd.f32 0.0, %v1426
      %v1428 = vpop.f32.mrf.mxu0
      %v1429 = vpop.f32.mrf.mxu0
      %v1430 = vadd.f32 0.0, %v1429
      %v1431 = vpop.f32.mrf.mxu0
      %1432 = vdwg.mxu0
      %v1433 = vld [vmem:[#allocation2] sm:$0xff]
      %v1434 = vld [vmem:[#allocation2 + $0x8] sm:$0xff]
      %v1435 = vld [vmem:[#allocation2 + $0x10] sm:$0xff]
      %v1436 = vld [vmem:[#allocation2 + $0x18] sm:$0xff]
      %v1437 = vld [vmem:[#allocation2 + $0x20] sm:$0xff]
      %v1438 = vld [vmem:[#allocation2 + $0x28] sm:$0xff]
      %v1439 = vld [vmem:[#allocation2 + $0x30] sm:$0xff]
      %v1440 = vld [vmem:[#allocation2 + $0x38] sm:$0xff]
      %v1441 = vadd.f32 %v1433, %v1403
      %v1442 = vadd.f32 %v1434, %v1406
      %v1443 = vadd.f32 %v1435, %v1411
      %v1444 = vadd.f32 %v1436, %v1414
      %v1445 = vadd.f32 %v1437, %v1419
      %v1446 = vadd.f32 %v1438, %v1422
      %v1447 = vadd.f32 %v1439, %v1427
      %v1448 = vadd.f32 %v1440, %v1430
      %1449 = vst [vmem:[#allocation2] sm:$0xff] %v1441
      %1450 = vst [vmem:[#allocation2 + $0x8] sm:$0xff] %v1442
      %1451 = vst [vmem:[#allocation2 + $0x10] sm:$0xff] %v1443
      %1452 = vst [vmem:[#allocation2 + $0x18] sm:$0xff] %v1444
      %1453 = vst [vmem:[#allocation2 + $0x20] sm:$0xff] %v1445
      %1454 = vst [vmem:[#allocation2 + $0x28] sm:$0xff] %v1446
      %1455 = vst [vmem:[#allocation2 + $0x30] sm:$0xff] %v1447
      %1456 = vst [vmem:[#allocation2 + $0x38] sm:$0xff] %v1448
      %v1457 = vld [vmem:[%s972] sm:$0xe]
      %v1458 = vld [vmem:[%s972 + $0x4] sm:$0x1]
      %v1459 = vld [vmem:[%s972 + $0x8] sm:$0xe]
      %v1460 = vld [vmem:[%s972 + $0xc] sm:$0x1]
      %v1461 = vld [vmem:[%s972 + $0x10] sm:$0xe]
      %v1462 = vld [vmem:[%s972 + $0x14] sm:$0x1]
      %v1463 = vld [vmem:[%s972 + $0x18] sm:$0xe]
      %v1464 = vld [vmem:[%s972 + $0x1c] sm:$0x1]
      %v1465 = vld [vmem:[%s972 + $0x20] sm:$0xe]
      %v1466 = vld [vmem:[%s972 + $0x24] sm:$0x1]
      %v1467 = vld [vmem:[%s972 + $0x28] sm:$0xe]
      %v1468 = vld [vmem:[%s972 + $0x2c] sm:$0x1]
      %v1469 = vld [vmem:[%s972 + $0x30] sm:$0xe]
      %v1470 = vld [vmem:[%s972 + $0x34] sm:$0x1]
      %v1471 = vld [vmem:[%s972 + $0x38] sm:$0xe]
      %v1472 = vld [vmem:[%s972 + $0x3c] sm:$0x1]
      %v1489 = vrot.slane %v1457, 5
      %v1490 = vrot.slane %v1489, 4
      %v1491 = vrot.slane %v1458, 5
      %v1492 = vsel %vm766, %v1490, %v1491
      %v1493 = vrot.slane %v1459, 5
      %v1494 = vrot.slane %v1493, 4
      %v1495 = vrot.slane %v1460, 5
      %v1496 = vsel %vm766, %v1494, %v1495
      %v1497 = vrot.slane %v1461, 5
      %v1498 = vrot.slane %v1497, 4
      %v1499 = vrot.slane %v1462, 5
      %v1500 = vsel %vm766, %v1498, %v1499
      %v1501 = vrot.slane %v1463, 5
      %v1502 = vrot.slane %v1501, 4
      %v1503 = vrot.slane %v1464, 5
      %v1504 = vsel %vm766, %v1502, %v1503
      %v1505 = vrot.slane %v1465, 5
      %v1506 = vrot.slane %v1505, 4
      %v1507 = vrot.slane %v1466, 5
      %v1508 = vsel %vm766, %v1506, %v1507
      %v1509 = vrot.slane %v1467, 5
      %v1510 = vrot.slane %v1509, 4
      %v1511 = vrot.slane %v1468, 5
      %v1512 = vsel %vm766, %v1510, %v1511
      %v1513 = vrot.slane %v1469, 5
      %v1514 = vrot.slane %v1513, 4
      %v1515 = vrot.slane %v1470, 5
      %v1516 = vsel %vm766, %v1514, %v1515
      %v1517 = vrot.slane %v1471, 5
      %v1518 = vrot.slane %v1517, 4
      %v1519 = vrot.slane %v1472, 5
      %v1520 = vsel %vm766, %v1518, %v1519
      %s1521 = scalar_lea.vmem %s1, 320
      %v1522 = vld [vmem:[%s1521] sm:$0xf]
      %v1523 = vld [vmem:[%s1521 + $0x4] sm:$0xf]
      %v1524 = vld [vmem:[%s1521 + $0x8] sm:$0xf]
      %v1525 = vld [vmem:[%s1521 + $0xc] sm:$0xf]
      %v1526 = vld [vmem:[%s1521 + $0x10] sm:$0xf]
      %v1527 = vld [vmem:[%s1521 + $0x14] sm:$0xf]
      %v1528 = vld [vmem:[%s1521 + $0x18] sm:$0xf]
      %v1529 = vld [vmem:[%s1521 + $0x1c] sm:$0xf]
      %v1530 = vld [vmem:[%s1521 + $0x20] sm:$0xf]
      %v1531 = vld [vmem:[%s1521 + $0x24] sm:$0xf]
      %v1532 = vld [vmem:[%s1521 + $0x28] sm:$0xf]
      %v1533 = vld [vmem:[%s1521 + $0x2c] sm:$0xf]
      %v1534 = vld [vmem:[%s1521 + $0x30] sm:$0xf]
      %v1535 = vld [vmem:[%s1521 + $0x34] sm:$0xf]
      %v1536 = vld [vmem:[%s1521 + $0x38] sm:$0xf]
      %v1537 = vld [vmem:[%s1521 + $0x3c] sm:$0xf]
      %v1538 = vunpack.c.l.b16 %v1492
      %v1539 = vunpack.c.l.b16 %v1496
      %v1540 = vunpack.c.l.b16 %v1500
      %v1541 = vunpack.c.l.b16 %v1504
      %v1542 = vunpack.c.l.b16 %v1508
      %v1543 = vunpack.c.l.b16 %v1512
      %v1544 = vunpack.c.l.b16 %v1516
      %v1545 = vunpack.c.l.b16 %v1520
      %v1546 = vpack.c.b16 %v1539, %v1538
      %v1547 = vpack.c.b16 %v1541, %v1540
      %v1548 = vpack.c.b16 %v1543, %v1542
      %v1549 = vpack.c.b16 %v1545, %v1544
      %v1570 = vunpack.c.l.b16 %v1522
      %v1571 = vunpack.c.l.b16 %v1523
      %v1572 = vunpack.c.l.b16 %v1524
      %v1573 = vunpack.c.l.b16 %v1525
      %v1574 = vunpack.c.l.b16 %v1526
      %v1575 = vunpack.c.l.b16 %v1527
      %v1576 = vunpack.c.l.b16 %v1528
      %v1577 = vunpack.c.l.b16 %v1529
      %v1578 = vunpack.c.l.b16 %v1530
      %v1579 = vunpack.c.l.b16 %v1531
      %v1580 = vunpack.c.l.b16 %v1532
      %v1581 = vunpack.c.l.b16 %v1533
      %v1582 = vunpack.c.l.b16 %v1534
      %v1583 = vunpack.c.l.b16 %v1535
      %v1584 = vunpack.c.l.b16 %v1536
      %v1585 = vunpack.c.l.b16 %v1537
      %v1586 = vpack.c.b16 %v1571, %v1570
      %v1587 = vpack.c.b16 %v1573, %v1572
      %v1588 = vpack.c.b16 %v1575, %v1574
      %v1589 = vpack.c.b16 %v1577, %v1576
      %v1590 = vpack.c.b16 %v1579, %v1578
      %v1591 = vpack.c.b16 %v1581, %v1580
      %v1592 = vpack.c.b16 %v1583, %v1582
      %v1593 = vpack.c.b16 %v1585, %v1584
      %1602 = vmatprep.subr.bf16.mxu0 0
      %1603 = vmatpush1.bf16.msra.mxu0 %v1593
      %1604 = vmatprep.subr.bf16.mxu0 0
      %1605 = vmatpush1.bf16.msra.mxu0 %v1592
      %1606 = vmatprep.subr.bf16.mxu0 0
      %1607 = vmatpush1.bf16.msra.mxu0 %v1591
      %1608 = vmatprep.subr.bf16.mxu0 0
      %1609 = vmatpush1.bf16.msra.mxu0 %v1590
      %1610 = vmatprep.subr.bf16.mxu0 0
      %1611 = vmatpush1.bf16.msra.mxu0 %v1589
      %1612 = vmatprep.subr.bf16.mxu0 0
      %1613 = vmatpush1.bf16.msra.mxu0 %v1588
      %1614 = vmatprep.subr.bf16.mxu0 0
      %1615 = vmatpush1.bf16.msra.mxu0 %v1587
      %1616 = vmatprep.subr.bf16.mxu0 0
      %1617 = vmatpush1.bf16.msra.mxu0 %v1586
      %1618 = vmatprep.subr.bf16.mxu0 0
      %1619 = vmatpush2.bf16.msra.mxu0 0
      %1620 = vmatprep.subr.bf16.mxu0 0
      %1621 = vmatpush2.bf16.msra.mxu0 0
      %1622 = vmatprep.subr.bf16.mxu0 0
      %1623 = vmatpush2.bf16.msra.mxu0 0
      %1624 = vmatprep.subr.bf16.mxu0 0
      %1625 = vmatpush2.bf16.msra.mxu0 0
      %1626 = vmatprep.subr.bf16.mxu0 0
      %1627 = vmatpush2.bf16.msra.mxu0 0
      %1628 = vmatprep.subr.bf16.mxu0 0
      %1629 = vmatpush2.bf16.msra.mxu0 0
      %1630 = vmatprep.subr.bf16.mxu0 0
      %1631 = vmatpush2.bf16.msra.mxu0 0
      %1632 = vmatprep.subr.bf16.mxu0 0
      %1633 = vmatpush2.bf16.msra.mxu0 0
      %1634 = vmatprep.mubr.bf16.mxu0 0
      %1635 = vmatmul.mubr.bf16.gmra.mxu0 %v1546
      %v1636 = vpop.f32.mrf.mxu0
      %v1637 = vadd.f32 0.0, %v1636
      %v1638 = vpop.f32.mrf.mxu0
      %v1639 = vpop.f32.mrf.mxu0
      %v1640 = vadd.f32 0.0, %v1639
      %v1641 = vpop.f32.mrf.mxu0
      %1642 = vmatprep.mubr.bf16.mxu0 0
      %1643 = vmatmul.mubr.bf16.gmra.mxu0 %v1547
      %v1644 = vpop.f32.mrf.mxu0
      %v1645 = vadd.f32 0.0, %v1644
      %v1646 = vpop.f32.mrf.mxu0
      %v1647 = vpop.f32.mrf.mxu0
      %v1648 = vadd.f32 0.0, %v1647
      %v1649 = vpop.f32.mrf.mxu0
      %1650 = vmatprep.mubr.bf16.mxu0 0
      %1651 = vmatmul.mubr.bf16.gmra.mxu0 %v1548
      %v1652 = vpop.f32.mrf.mxu0
      %v1653 = vadd.f32 0.0, %v1652
      %v1654 = vpop.f32.mrf.mxu0
      %v1655 = vpop.f32.mrf.mxu0
      %v1656 = vadd.f32 0.0, %v1655
      %v1657 = vpop.f32.mrf.mxu0
      %1658 = vmatprep.mubr.bf16.mxu0 0
      %1659 = vmatmul.mubr.bf16.gmra.mxu0 %v1549
      %v1660 = vpop.f32.mrf.mxu0
      %v1661 = vadd.f32 0.0, %v1660
      %v1662 = vpop.f32.mrf.mxu0
      %v1663 = vpop.f32.mrf.mxu0
      %v1664 = vadd.f32 0.0, %v1663
      %v1665 = vpop.f32.mrf.mxu0
      %1666 = vdwg.mxu0
      %v1667 = vld [vmem:[#allocation2] sm:$0xff]
      %v1668 = vld [vmem:[#allocation2 + $0x8] sm:$0xff]
      %v1669 = vld [vmem:[#allocation2 + $0x10] sm:$0xff]
      %v1670 = vld [vmem:[#allocation2 + $0x18] sm:$0xff]
      %v1671 = vld [vmem:[#allocation2 + $0x20] sm:$0xff]
      %v1672 = vld [vmem:[#allocation2 + $0x28] sm:$0xff]
      %v1673 = vld [vmem:[#allocation2 + $0x30] sm:$0xff]
      %v1674 = vld [vmem:[#allocation2 + $0x38] sm:$0xff]
      %v1675 = vadd.f32 %v1667, %v1637
      %v1676 = vadd.f32 %v1668, %v1640
      %v1677 = vadd.f32 %v1669, %v1645
      %v1678 = vadd.f32 %v1670, %v1648
      %v1679 = vadd.f32 %v1671, %v1653
      %v1680 = vadd.f32 %v1672, %v1656
      %v1681 = vadd.f32 %v1673, %v1661
      %v1682 = vadd.f32 %v1674, %v1664
      %1683 = vst [vmem:[#allocation2] sm:$0xff] %v1675
      %1684 = vst [vmem:[#allocation2 + $0x8] sm:$0xff] %v1676
      %1685 = vst [vmem:[#allocation2 + $0x10] sm:$0xff] %v1677
      %1686 = vst [vmem:[#allocation2 + $0x18] sm:$0xff] %v1678
      %1687 = vst [vmem:[#allocation2 + $0x20] sm:$0xff] %v1679
      %1688 = vst [vmem:[#allocation2 + $0x28] sm:$0xff] %v1680
      %1689 = vst [vmem:[#allocation2 + $0x30] sm:$0xff] %v1681
      %1690 = vst [vmem:[#allocation2 + $0x38] sm:$0xff] %v1682
      %s1691 = sadd.s32 %s258, 2
      %s1692 = smul.u32 %s1691, 2
      %s1693 = smul.addr %s1692, 4
      %s1694 = scalar_lea.vmem %s236, %s1693
      %v1695 = vld [vmem:[%s1694] sm:$0xf]
      %v1696 = vld [vmem:[%s1694 + $0x8] sm:$0xf]
      %v1697 = vld [vmem:[%s1694 + $0x10] sm:$0xf]
      %v1698 = vld [vmem:[%s1694 + $0x18] sm:$0xf]
      %v1699 = vld [vmem:[%s1694 + $0x20] sm:$0xf]
      %v1700 = vld [vmem:[%s1694 + $0x28] sm:$0xf]
      %v1701 = vld [vmem:[%s1694 + $0x30] sm:$0xf]
      %v1702 = vld [vmem:[%s1694 + $0x38] sm:$0xf]
      %s1703 = scalar_lea.vmem %s1, 384
      %v1704 = vld [vmem:[%s1703] sm:$0xf]
      %v1705 = vld [vmem:[%s1703 + $0x4] sm:$0xf]
      %v1706 = vld [vmem:[%s1703 + $0x8] sm:$0xf]
      %v1707 = vld [vmem:[%s1703 + $0xc] sm:$0xf]
      %v1708 = vld [vmem:[%s1703 + $0x10] sm:$0xf]
      %v1709 = vld [vmem:[%s1703 + $0x14] sm:$0xf]
      %v1710 = vld [vmem:[%s1703 + $0x18] sm:$0xf]
      %v1711 = vld [vmem:[%s1703 + $0x1c] sm:$0xf]
      %v1712 = vld [vmem:[%s1703 + $0x20] sm:$0xf]
      %v1713 = vld [vmem:[%s1703 + $0x24] sm:$0xf]
      %v1714 = vld [vmem:[%s1703 + $0x28] sm:$0xf]
      %v1715 = vld [vmem:[%s1703 + $0x2c] sm:$0xf]
      %v1716 = vld [vmem:[%s1703 + $0x30] sm:$0xf]
      %v1717 = vld [vmem:[%s1703 + $0x34] sm:$0xf]
      %v1718 = vld [vmem:[%s1703 + $0x38] sm:$0xf]
      %v1719 = vld [vmem:[%s1703 + $0x3c] sm:$0xf]
      %v1728 = vunpack.c.l.b16 %v1695
      %v1729 = vunpack.c.l.b16 %v1696
      %v1730 = vunpack.c.l.b16 %v1697
      %v1731 = vunpack.c.l.b16 %v1698
      %v1732 = vunpack.c.l.b16 %v1699
      %v1733 = vunpack.c.l.b16 %v1700
      %v1734 = vunpack.c.l.b16 %v1701
      %v1735 = vunpack.c.l.b16 %v1702
      %v1736 = vpack.c.b16 %v1729, %v1728
      %v1737 = vpack.c.b16 %v1731, %v1730
      %v1738 = vpack.c.b16 %v1733, %v1732
      %v1739 = vpack.c.b16 %v1735, %v1734
      %v1760 = vunpack.c.l.b16 %v1704
      %v1761 = vunpack.c.l.b16 %v1705
      %v1762 = vunpack.c.l.b16 %v1706
      %v1763 = vunpack.c.l.b16 %v1707
      %v1764 = vunpack.c.l.b16 %v1708
      %v1765 = vunpack.c.l.b16 %v1709
      %v1766 = vunpack.c.l.b16 %v1710
      %v1767 = vunpack.c.l.b16 %v1711
      %v1768 = vunpack.c.l.b16 %v1712
      %v1769 = vunpack.c.l.b16 %v1713
      %v1770 = vunpack.c.l.b16 %v1714
      %v1771 = vunpack.c.l.b16 %v1715
      %v1772 = vunpack.c.l.b16 %v1716
      %v1773 = vunpack.c.l.b16 %v1717
      %v1774 = vunpack.c.l.b16 %v1718
      %v1775 = vunpack.c.l.b16 %v1719
      %v1776 = vpack.c.b16 %v1761, %v1760
      %v1777 = vpack.c.b16 %v1763, %v1762
      %v1778 = vpack.c.b16 %v1765, %v1764
      %v1779 = vpack.c.b16 %v1767, %v1766
      %v1780 = vpack.c.b16 %v1769, %v1768
      %v1781 = vpack.c.b16 %v1771, %v1770
      %v1782 = vpack.c.b16 %v1773, %v1772
      %v1783 = vpack.c.b16 %v1775, %v1774
      %1792 = vmatprep.subr.bf16.mxu0 0
      %1793 = vmatpush1.bf16.msra.mxu0 %v1783
      %1794 = vmatprep.subr.bf16.mxu0 0
      %1795 = vmatpush1.bf16.msra.mxu0 %v1782
      %1796 = vmatprep.subr.bf16.mxu0 0
      %1797 = vmatpush1.bf16.msra.mxu0 %v1781
      %1798 = vmatprep.subr.bf16.mxu0 0
      %1799 = vmatpush1.bf16.msra.mxu0 %v1780
      %1800 = vmatprep.subr.bf16.mxu0 0
      %1801 = vmatpush1.bf16.msra.mxu0 %v1779
      %1802 = vmatprep.subr.bf16.mxu0 0
      %1803 = vmatpush1.bf16.msra.mxu0 %v1778
      %1804 = vmatprep.subr.bf16.mxu0 0
      %1805 = vmatpush1.bf16.msra.mxu0 %v1777
      %1806 = vmatprep.subr.bf16.mxu0 0
      %1807 = vmatpush1.bf16.msra.mxu0 %v1776
      %1808 = vmatprep.subr.bf16.mxu0 0
      %1809 = vmatpush2.bf16.msra.mxu0 0
      %1810 = vmatprep.subr.bf16.mxu0 0
      %1811 = vmatpush2.bf16.msra.mxu0 0
      %1812 = vmatprep.subr.bf16.mxu0 0
      %1813 = vmatpush2.bf16.msra.mxu0 0
      %1814 = vmatprep.subr.bf16.mxu0 0
      %1815 = vmatpush2.bf16.msra.mxu0 0
      %1816 = vmatprep.subr.bf16.mxu0 0
      %1817 = vmatpush2.bf16.msra.mxu0 0
      %1818 = vmatprep.subr.bf16.mxu0 0
      %1819 = vmatpush2.bf16.msra.mxu0 0
      %1820 = vmatprep.subr.bf16.mxu0 0
      %1821 = vmatpush2.bf16.msra.mxu0 0
      %1822 = vmatprep.subr.bf16.mxu0 0
      %1823 = vmatpush2.bf16.msra.mxu0 0
      %1824 = vmatprep.mubr.bf16.mxu0 0
      %1825 = vmatmul.mubr.bf16.gmra.mxu0 %v1736
      %v1826 = vpop.f32.mrf.mxu0
      %v1827 = vadd.f32 0.0, %v1826
      %v1828 = vpop.f32.mrf.mxu0
      %v1829 = vpop.f32.mrf.mxu0
      %v1830 = vadd.f32 0.0, %v1829
      %v1831 = vpop.f32.mrf.mxu0
      %1832 = vmatprep.mubr.bf16.mxu0 0
      %1833 = vmatmul.mubr.bf16.gmra.mxu0 %v1737
      %v1834 = vpop.f32.mrf.mxu0
      %v1835 = vadd.f32 0.0, %v1834
      %v1836 = vpop.f32.mrf.mxu0
      %v1837 = vpop.f32.mrf.mxu0
      %v1838 = vadd.f32 0.0, %v1837
      %v1839 = vpop.f32.mrf.mxu0
      %1840 = vmatprep.mubr.bf16.mxu0 0
      %1841 = vmatmul.mubr.bf16.gmra.mxu0 %v1738
      %v1842 = vpop.f32.mrf.mxu0
      %v1843 = vadd.f32 0.0, %v1842
      %v1844 = vpop.f32.mrf.mxu0
      %v1845 = vpop.f32.mrf.mxu0
      %v1846 = vadd.f32 0.0, %v1845
      %v1847 = vpop.f32.mrf.mxu0
      %1848 = vmatprep.mubr.bf16.mxu0 0
      %1849 = vmatmul.mubr.bf16.gmra.mxu0 %v1739
      %v1850 = vpop.f32.mrf.mxu0
      %v1851 = vadd.f32 0.0, %v1850
      %v1852 = vpop.f32.mrf.mxu0
      %v1853 = vpop.f32.mrf.mxu0
      %v1854 = vadd.f32 0.0, %v1853
      %v1855 = vpop.f32.mrf.mxu0
      %1856 = vdwg.mxu0
      %v1857 = vld [vmem:[#allocation2] sm:$0xff]
      %v1858 = vld [vmem:[#allocation2 + $0x8] sm:$0xff]
      %v1859 = vld [vmem:[#allocation2 + $0x10] sm:$0xff]
      %v1860 = vld [vmem:[#allocation2 + $0x18] sm:$0xff]
      %v1861 = vld [vmem:[#allocation2 + $0x20] sm:$0xff]
      %v1862 = vld [vmem:[#allocation2 + $0x28] sm:$0xff]
      %v1863 = vld [vmem:[#allocation2 + $0x30] sm:$0xff]
      %v1864 = vld [vmem:[#allocation2 + $0x38] sm:$0xff]
      %v1865 = vadd.f32 %v1857, %v1827
      %v1866 = vadd.f32 %v1858, %v1830
      %v1867 = vadd.f32 %v1859, %v1835
      %v1868 = vadd.f32 %v1860, %v1838
      %v1869 = vadd.f32 %v1861, %v1843
      %v1870 = vadd.f32 %v1862, %v1846
      %v1871 = vadd.f32 %v1863, %v1851
      %v1872 = vadd.f32 %v1864, %v1854
      %1873 = vst [vmem:[#allocation2] sm:$0xff] %v1865
      %1874 = vst [vmem:[#allocation2 + $0x8] sm:$0xff] %v1866
      %1875 = vst [vmem:[#allocation2 + $0x10] sm:$0xff] %v1867
      %1876 = vst [vmem:[#allocation2 + $0x18] sm:$0xff] %v1868
      %1877 = vst [vmem:[#allocation2 + $0x20] sm:$0xff] %v1869
      %1878 = vst [vmem:[#allocation2 + $0x28] sm:$0xff] %v1870
      %1879 = vst [vmem:[#allocation2 + $0x30] sm:$0xff] %v1871
      %1880 = vst [vmem:[#allocation2 + $0x38] sm:$0xff] %v1872
      %v1881 = vld [vmem:[%s1694] sm:$0xf]
      %v1882 = vld [vmem:[%s1694 + $0x4] sm:$0x1]
      %v1883 = vld [vmem:[%s1694 + $0x8] sm:$0xf]
      %v1884 = vld [vmem:[%s1694 + $0xc] sm:$0x1]
      %v1885 = vld [vmem:[%s1694 + $0x10] sm:$0xf]
      %v1886 = vld [vmem:[%s1694 + $0x14] sm:$0x1]
      %v1887 = vld [vmem:[%s1694 + $0x18] sm:$0xf]
      %v1888 = vld [vmem:[%s1694 + $0x1c] sm:$0x1]
      %v1889 = vld [vmem:[%s1694 + $0x20] sm:$0xf]
      %v1890 = vld [vmem:[%s1694 + $0x24] sm:$0x1]
      %v1891 = vld [vmem:[%s1694 + $0x28] sm:$0xf]
      %v1892 = vld [vmem:[%s1694 + $0x2c] sm:$0x1]
      %v1893 = vld [vmem:[%s1694 + $0x30] sm:$0xf]
      %v1894 = vld [vmem:[%s1694 + $0x34] sm:$0x1]
      %v1895 = vld [vmem:[%s1694 + $0x38] sm:$0xf]
      %v1896 = vld [vmem:[%s1694 + $0x3c] sm:$0x1]
      %v1898 = vshrl.u32 %v1881, 16
      %v1900 = vrot.slane %v1898, 4
      %v1901 = vshll.u32 %v1881, 16
      %v1903 = vrot.slane %v1901, 5
      %v1904 = vor.u32 %v1900, %v1903
      %v1905 = vrot.slane %v1904, 4
      %v1907 = vshll.u32 %v1882, 16
      %v1909 = vrot.slane %v1907, 5
      %v1910 = vsel %vm449, %v1905, %v1909
      %v1912 = vshrl.u32 %v1883, 16
      %v1914 = vrot.slane %v1912, 4
      %v1915 = vshll.u32 %v1883, 16
      %v1917 = vrot.slane %v1915, 5
      %v1918 = vor.u32 %v1914, %v1917
      %v1919 = vrot.slane %v1918, 4
      %v1921 = vshll.u32 %v1884, 16
      %v1923 = vrot.slane %v1921, 5
      %v1924 = vsel %vm449, %v1919, %v1923
      %v1926 = vshrl.u32 %v1885, 16
      %v1928 = vrot.slane %v1926, 4
      %v1929 = vshll.u32 %v1885, 16
      %v1931 = vrot.slane %v1929, 5
      %v1932 = vor.u32 %v1928, %v1931
      %v1933 = vrot.slane %v1932, 4
      %v1935 = vshll.u32 %v1886, 16
      %v1937 = vrot.slane %v1935, 5
      %v1938 = vsel %vm449, %v1933, %v1937
      %v1940 = vshrl.u32 %v1887, 16
      %v1942 = vrot.slane %v1940, 4
      %v1943 = vshll.u32 %v1887, 16
      %v1945 = vrot.slane %v1943, 5
      %v1946 = vor.u32 %v1942, %v1945
      %v1947 = vrot.slane %v1946, 4
      %v1949 = vshll.u32 %v1888, 16
      %v1951 = vrot.slane %v1949, 5
      %v1952 = vsel %vm449, %v1947, %v1951
      %v1954 = vshrl.u32 %v1889, 16
      %v1956 = vrot.slane %v1954, 4
      %v1957 = vshll.u32 %v1889, 16
      %v1959 = vrot.slane %v1957, 5
      %v1960 = vor.u32 %v1956, %v1959
      %v1961 = vrot.slane %v1960, 4
      %v1963 = vshll.u32 %v1890, 16
      %v1965 = vrot.slane %v1963, 5
      %v1966 = vsel %vm449, %v1961, %v1965
      %v1968 = vshrl.u32 %v1891, 16
      %v1970 = vrot.slane %v1968, 4
      %v1971 = vshll.u32 %v1891, 16
      %v1973 = vrot.slane %v1971, 5
      %v1974 = vor.u32 %v1970, %v1973
      %v1975 = vrot.slane %v1974, 4
      %v1977 = vshll.u32 %v1892, 16
      %v1979 = vrot.slane %v1977, 5
      %v1980 = vsel %vm449, %v1975, %v1979
      %v1982 = vshrl.u32 %v1893, 16
      %v1984 = vrot.slane %v1982, 4
      %v1985 = vshll.u32 %v1893, 16
      %v1987 = vrot.slane %v1985, 5
      %v1988 = vor.u32 %v1984, %v1987
      %v1989 = vrot.slane %v1988, 4
      %v1991 = vshll.u32 %v1894, 16
      %v1993 = vrot.slane %v1991, 5
      %v1994 = vsel %vm449, %v1989, %v1993
      %v1996 = vshrl.u32 %v1895, 16
      %v1998 = vrot.slane %v1996, 4
      %v1999 = vshll.u32 %v1895, 16
      %v2001 = vrot.slane %v1999, 5
      %v2002 = vor.u32 %v1998, %v2001
      %v2003 = vrot.slane %v2002, 4
      %v2005 = vshll.u32 %v1896, 16
      %v2007 = vrot.slane %v2005, 5
      %v2008 = vsel %vm449, %v2003, %v2007
      %s2009 = scalar_lea.vmem %s1, 448
      %v2010 = vld [vmem:[%s2009] sm:$0xf]
      %v2011 = vld [vmem:[%s2009 + $0x4] sm:$0xf]
      %v2012 = vld [vmem:[%s2009 + $0x8] sm:$0xf]
      %v2013 = vld [vmem:[%s2009 + $0xc] sm:$0xf]
      %v2014 = vld [vmem:[%s2009 + $0x10] sm:$0xf]
      %v2015 = vld [vmem:[%s2009 + $0x14] sm:$0xf]
      %v2016 = vld [vmem:[%s2009 + $0x18] sm:$0xf]
      %v2017 = vld [vmem:[%s2009 + $0x1c] sm:$0xf]
      %v2018 = vld [vmem:[%s2009 + $0x20] sm:$0xf]
      %v2019 = vld [vmem:[%s2009 + $0x24] sm:$0xf]
      %v2020 = vld [vmem:[%s2009 + $0x28] sm:$0xf]
      %v2021 = vld [vmem:[%s2009 + $0x2c] sm:$0xf]
      %v2022 = vld [vmem:[%s2009 + $0x30] sm:$0xf]
      %v2023 = vld [vmem:[%s2009 + $0x34] sm:$0xf]
      %v2024 = vld [vmem:[%s2009 + $0x38] sm:$0xf]
      %v2025 = vld [vmem:[%s2009 + $0x3c] sm:$0xf]
      %v2026 = vunpack.c.l.b16 %v1910
      %v2027 = vunpack.c.l.b16 %v1924
      %v2028 = vunpack.c.l.b16 %v1938
      %v2029 = vunpack.c.l.b16 %v1952
      %v2030 = vunpack.c.l.b16 %v1966
      %v2031 = vunpack.c.l.b16 %v1980
      %v2032 = vunpack.c.l.b16 %v1994
      %v2033 = vunpack.c.l.b16 %v2008
      %v2034 = vpack.c.b16 %v2027, %v2026
      %v2035 = vpack.c.b16 %v2029, %v2028
      %v2036 = vpack.c.b16 %v2031, %v2030
      %v2037 = vpack.c.b16 %v2033, %v2032
      %v2058 = vunpack.c.l.b16 %v2010
      %v2059 = vunpack.c.l.b16 %v2011
      %v2060 = vunpack.c.l.b16 %v2012
      %v2061 = vunpack.c.l.b16 %v2013
      %v2062 = vunpack.c.l.b16 %v2014
      %v2063 = vunpack.c.l.b16 %v2015
      %v2064 = vunpack.c.l.b16 %v2016
      %v2065 = vunpack.c.l.b16 %v2017
      %v2066 = vunpack.c.l.b16 %v2018
      %v2067 = vunpack.c.l.b16 %v2019
      %v2068 = vunpack.c.l.b16 %v2020
      %v2069 = vunpack.c.l.b16 %v2021
      %v2070 = vunpack.c.l.b16 %v2022
      %v2071 = vunpack.c.l.b16 %v2023
      %v2072 = vunpack.c.l.b16 %v2024
      %v2073 = vunpack.c.l.b16 %v2025
      %v2074 = vpack.c.b16 %v2059, %v2058
      %v2075 = vpack.c.b16 %v2061, %v2060
      %v2076 = vpack.c.b16 %v2063, %v2062
      %v2077 = vpack.c.b16 %v2065, %v2064
      %v2078 = vpack.c.b16 %v2067, %v2066
      %v2079 = vpack.c.b16 %v2069, %v2068
      %v2080 = vpack.c.b16 %v2071, %v2070
      %v2081 = vpack.c.b16 %v2073, %v2072
      %2090 = vmatprep.subr.bf16.mxu0 0
      %2091 = vmatpush1.bf16.msra.mxu0 %v2081
      %2092 = vmatprep.subr.bf16.mxu0 0
      %2093 = vmatpush1.bf16.msra.mxu0 %v2080
      %2094 = vmatprep.subr.bf16.mxu0 0
      %2095 = vmatpush1.bf16.msra.mxu0 %v2079
      %2096 = vmatprep.subr.bf16.mxu0 0
      %2097 = vmatpush1.bf16.msra.mxu0 %v2078
      %2098 = vmatprep.subr.bf16.mxu0 0
      %2099 = vmatpush1.bf16.msra.mxu0 %v2077
      %2100 = vmatprep.subr.bf16.mxu0 0
      %2101 = vmatpush1.bf16.msra.mxu0 %v2076
      %2102 = vmatprep.subr.bf16.mxu0 0
      %2103 = vmatpush1.bf16.msra.mxu0 %v2075
      %2104 = vmatprep.subr.bf16.mxu0 0
      %2105 = vmatpush1.bf16.msra.mxu0 %v2074
      %2106 = vmatprep.subr.bf16.mxu0 0
      %2107 = vmatpush2.bf16.msra.mxu0 0
      %2108 = vmatprep.subr.bf16.mxu0 0
      %2109 = vmatpush2.bf16.msra.mxu0 0
      %2110 = vmatprep.subr.bf16.mxu0 0
      %2111 = vmatpush2.bf16.msra.mxu0 0
      %2112 = vmatprep.subr.bf16.mxu0 0
      %2113 = vmatpush2.bf16.msra.mxu0 0
      %2114 = vmatprep.subr.bf16.mxu0 0
      %2115 = vmatpush2.bf16.msra.mxu0 0
      %2116 = vmatprep.subr.bf16.mxu0 0
      %2117 = vmatpush2.bf16.msra.mxu0 0
      %2118 = vmatprep.subr.bf16.mxu0 0
      %2119 = vmatpush2.bf16.msra.mxu0 0
      %2120 = vmatprep.subr.bf16.mxu0 0
      %2121 = vmatpush2.bf16.msra.mxu0 0
      %2122 = vmatprep.mubr.bf16.mxu0 0
      %2123 = vmatmul.mubr.bf16.gmra.mxu0 %v2034
      %v2124 = vpop.f32.mrf.mxu0
      %v2125 = vadd.f32 0.0, %v2124
      %v2126 = vpop.f32.mrf.mxu0
      %v2127 = vpop.f32.mrf.mxu0
      %v2128 = vadd.f32 0.0, %v2127
      %v2129 = vpop.f32.mrf.mxu0
      %2130 = vmatprep.mubr.bf16.mxu0 0
      %2131 = vmatmul.mubr.bf16.gmra.mxu0 %v2035
      %v2132 = vpop.f32.mrf.mxu0
      %v2133 = vadd.f32 0.0, %v2132
      %v2134 = vpop.f32.mrf.mxu0
      %v2135 = vpop.f32.mrf.mxu0
      %v2136 = vadd.f32 0.0, %v2135
      %v2137 = vpop.f32.mrf.mxu0
      %2138 = vmatprep.mubr.bf16.mxu0 0
      %2139 = vmatmul.mubr.bf16.gmra.mxu0 %v2036
      %v2140 = vpop.f32.mrf.mxu0
      %v2141 = vadd.f32 0.0, %v2140
      %v2142 = vpop.f32.mrf.mxu0
      %v2143 = vpop.f32.mrf.mxu0
      %v2144 = vadd.f32 0.0, %v2143
      %v2145 = vpop.f32.mrf.mxu0
      %2146 = vmatprep.mubr.bf16.mxu0 0
      %2147 = vmatmul.mubr.bf16.gmra.mxu0 %v2037
      %v2148 = vpop.f32.mrf.mxu0
      %v2149 = vadd.f32 0.0, %v2148
      %v2150 = vpop.f32.mrf.mxu0
      %v2151 = vpop.f32.mrf.mxu0
      %v2152 = vadd.f32 0.0, %v2151
      %v2153 = vpop.f32.mrf.mxu0
      %2154 = vdwg.mxu0
      %v2155 = vld [vmem:[#allocation2] sm:$0xff]
      %v2156 = vld [vmem:[#allocation2 + $0x8] sm:$0xff]
      %v2157 = vld [vmem:[#allocation2 + $0x10] sm:$0xff]
      %v2158 = vld [vmem:[#allocation2 + $0x18] sm:$0xff]
      %v2159 = vld [vmem:[#allocation2 + $0x20] sm:$0xff]
      %v2160 = vld [vmem:[#allocation2 + $0x28] sm:$0xff]
      %v2161 = vld [vmem:[#allocation2 + $0x30] sm:$0xff]
      %v2162 = vld [vmem:[#allocation2 + $0x38] sm:$0xff]
      %v2163 = vadd.f32 %v2155, %v2125
      %v2164 = vadd.f32 %v2156, %v2128
      %v2165 = vadd.f32 %v2157, %v2133
      %v2166 = vadd.f32 %v2158, %v2136
      %v2167 = vadd.f32 %v2159, %v2141
      %v2168 = vadd.f32 %v2160, %v2144
      %v2169 = vadd.f32 %v2161, %v2149
      %v2170 = vadd.f32 %v2162, %v2152
      %2171 = vst [vmem:[#allocation2] sm:$0xff] %v2163
      %2172 = vst [vmem:[#allocation2 + $0x8] sm:$0xff] %v2164
      %2173 = vst [vmem:[#allocation2 + $0x10] sm:$0xff] %v2165
      %2174 = vst [vmem:[#allocation2 + $0x18] sm:$0xff] %v2166
      %2175 = vst [vmem:[#allocation2 + $0x20] sm:$0xff] %v2167
      %2176 = vst [vmem:[#allocation2 + $0x28] sm:$0xff] %v2168
      %2177 = vst [vmem:[#allocation2 + $0x30] sm:$0xff] %v2169
      %2178 = vst [vmem:[#allocation2 + $0x38] sm:$0xff] %v2170
      %v2179 = vld [vmem:[%s1694] sm:$0xe]
      %v2180 = vld [vmem:[%s1694 + $0x4] sm:$0x1]
      %v2181 = vld [vmem:[%s1694 + $0x8] sm:$0xe]
      %v2182 = vld [vmem:[%s1694 + $0xc] sm:$0x1]
      %v2183 = vld [vmem:[%s1694 + $0x10] sm:$0xe]
      %v2184 = vld [vmem:[%s1694 + $0x14] sm:$0x1]
      %v2185 = vld [vmem:[%s1694 + $0x18] sm:$0xe]
      %v2186 = vld [vmem:[%s1694 + $0x1c] sm:$0x1]
      %v2187 = vld [vmem:[%s1694 + $0x20] sm:$0xe]
      %v2188 = vld [vmem:[%s1694 + $0x24] sm:$0x1]
      %v2189 = vld [vmem:[%s1694 + $0x28] sm:$0xe]
      %v2190 = vld [vmem:[%s1694 + $0x2c] sm:$0x1]
      %v2191 = vld [vmem:[%s1694 + $0x30] sm:$0xe]
      %v2192 = vld [vmem:[%s1694 + $0x34] sm:$0x1]
      %v2193 = vld [vmem:[%s1694 + $0x38] sm:$0xe]
      %v2194 = vld [vmem:[%s1694 + $0x3c] sm:$0x1]
      %v2211 = vrot.slane %v2179, 5
      %v2212 = vrot.slane %v2211, 4
      %v2213 = vrot.slane %v2180, 5
      %v2214 = vsel %vm766, %v2212, %v2213
      %v2215 = vrot.slane %v2181, 5
      %v2216 = vrot.slane %v2215, 4
      %v2217 = vrot.slane %v2182, 5
      %v2218 = vsel %vm766, %v2216, %v2217
      %v2219 = vrot.slane %v2183, 5
      %v2220 = vrot.slane %v2219, 4
      %v2221 = vrot.slane %v2184, 5
      %v2222 = vsel %vm766, %v2220, %v2221
      %v2223 = vrot.slane %v2185, 5
      %v2224 = vrot.slane %v2223, 4
      %v2225 = vrot.slane %v2186, 5
      %v2226 = vsel %vm766, %v2224, %v2225
      %v2227 = vrot.slane %v2187, 5
      %v2228 = vrot.slane %v2227, 4
      %v2229 = vrot.slane %v2188, 5
      %v2230 = vsel %vm766, %v2228, %v2229
      %v2231 = vrot.slane %v2189, 5
      %v2232 = vrot.slane %v2231, 4
      %v2233 = vrot.slane %v2190, 5
      %v2234 = vsel %vm766, %v2232, %v2233
      %v2235 = vrot.slane %v2191, 5
      %v2236 = vrot.slane %v2235, 4
      %v2237 = vrot.slane %v2192, 5
      %v2238 = vsel %vm766, %v2236, %v2237
      %v2239 = vrot.slane %v2193, 5
      %v2240 = vrot.slane %v2239, 4
      %v2241 = vrot.slane %v2194, 5
      %v2242 = vsel %vm766, %v2240, %v2241
      %s2243 = scalar_lea.vmem %s1, 512
      %v2244 = vld [vmem:[%s2243] sm:$0xf]
      %v2245 = vld [vmem:[%s2243 + $0x4] sm:$0xf]
      %v2246 = vld [vmem:[%s2243 + $0x8] sm:$0xf]
      %v2247 = vld [vmem:[%s2243 + $0xc] sm:$0xf]
      %v2248 = vld [vmem:[%s2243 + $0x10] sm:$0xf]
      %v2249 = vld [vmem:[%s2243 + $0x14] sm:$0xf]
      %v2250 = vld [vmem:[%s2243 + $0x18] sm:$0xf]
      %v2251 = vld [vmem:[%s2243 + $0x1c] sm:$0xf]
      %v2252 = vld [vmem:[%s2243 + $0x20] sm:$0xf]
      %v2253 = vld [vmem:[%s2243 + $0x24] sm:$0xf]
      %v2254 = vld [vmem:[%s2243 + $0x28] sm:$0xf]
      %v2255 = vld [vmem:[%s2243 + $0x2c] sm:$0xf]
      %v2256 = vld [vmem:[%s2243 + $0x30] sm:$0xf]
      %v2257 = vld [vmem:[%s2243 + $0x34] sm:$0xf]
      %v2258 = vld [vmem:[%s2243 + $0x38] sm:$0xf]
      %v2259 = vld [vmem:[%s2243 + $0x3c] sm:$0xf]
      %v2260 = vunpack.c.l.b16 %v2214
      %v2261 = vunpack.c.l.b16 %v2218
      %v2262 = vunpack.c.l.b16 %v2222
      %v2263 = vunpack.c.l.b16 %v2226
      %v2264 = vunpack.c.l.b16 %v2230
      %v2265 = vunpack.c.l.b16 %v2234
      %v2266 = vunpack.c.l.b16 %v2238
      %v2267 = vunpack.c.l.b16 %v2242
      %v2268 = vpack.c.b16 %v2261, %v2260
      %v2269 = vpack.c.b16 %v2263, %v2262
      %v2270 = vpack.c.b16 %v2265, %v2264
      %v2271 = vpack.c.b16 %v2267, %v2266
      %v2292 = vunpack.c.l.b16 %v2244
      %v2293 = vunpack.c.l.b16 %v2245
      %v2294 = vunpack.c.l.b16 %v2246
      %v2295 = vunpack.c.l.b16 %v2247
      %v2296 = vunpack.c.l.b16 %v2248
      %v2297 = vunpack.c.l.b16 %v2249
      %v2298 = vunpack.c.l.b16 %v2250
      %v2299 = vunpack.c.l.b16 %v2251
      %v2300 = vunpack.c.l.b16 %v2252
      %v2301 = vunpack.c.l.b16 %v2253
      %v2302 = vunpack.c.l.b16 %v2254
      %v2303 = vunpack.c.l.b16 %v2255
      %v2304 = vunpack.c.l.b16 %v2256
      %v2305 = vunpack.c.l.b16 %v2257
      %v2306 = vunpack.c.l.b16 %v2258
      %v2307 = vunpack.c.l.b16 %v2259
      %v2308 = vpack.c.b16 %v2293, %v2292
      %v2309 = vpack.c.b16 %v2295, %v2294
      %v2310 = vpack.c.b16 %v2297, %v2296
      %v2311 = vpack.c.b16 %v2299, %v2298
      %v2312 = vpack.c.b16 %v2301, %v2300
      %v2313 = vpack.c.b16 %v2303, %v2302
      %v2314 = vpack.c.b16 %v2305, %v2304
      %v2315 = vpack.c.b16 %v2307, %v2306
      %2324 = vmatprep.subr.bf16.mxu0 0
      %2325 = vmatpush1.bf16.msra.mxu0 %v2315
      %2326 = vmatprep.subr.bf16.mxu0 0
      %2327 = vmatpush1.bf16.msra.mxu0 %v2314
      %2328 = vmatprep.subr.bf16.mxu0 0
      %2329 = vmatpush1.bf16.msra.mxu0 %v2313
      %2330 = vmatprep.subr.bf16.mxu0 0
      %2331 = vmatpush1.bf16.msra.mxu0 %v2312
      %2332 = vmatprep.subr.bf16.mxu0 0
      %2333 = vmatpush1.bf16.msra.mxu0 %v2311
      %2334 = vmatprep.subr.bf16.mxu0 0
      %2335 = vmatpush1.bf16.msra.mxu0 %v2310
      %2336 = vmatprep.subr.bf16.mxu0 0
      %2337 = vmatpush1.bf16.msra.mxu0 %v2309
      %2338 = vmatprep.subr.bf16.mxu0 0
      %2339 = vmatpush1.bf16.msra.mxu0 %v2308
      %2340 = vmatprep.subr.bf16.mxu0 0
      %2341 = vmatpush2.bf16.msra.mxu0 0
      %2342 = vmatprep.subr.bf16.mxu0 0
      %2343 = vmatpush2.bf16.msra.mxu0 0
      %2344 = vmatprep.subr.bf16.mxu0 0
      %2345 = vmatpush2.bf16.msra.mxu0 0
      %2346 = vmatprep.subr.bf16.mxu0 0
      %2347 = vmatpush2.bf16.msra.mxu0 0
      %2348 = vmatprep.subr.bf16.mxu0 0
      %2349 = vmatpush2.bf16.msra.mxu0 0
      %2350 = vmatprep.subr.bf16.mxu0 0
      %2351 = vmatpush2.bf16.msra.mxu0 0
      %2352 = vmatprep.subr.bf16.mxu0 0
      %2353 = vmatpush2.bf16.msra.mxu0 0
      %2354 = vmatprep.subr.bf16.mxu0 0
      %2355 = vmatpush2.bf16.msra.mxu0 0
      %2356 = vmatprep.mubr.bf16.mxu0 0
      %2357 = vmatmul.mubr.bf16.gmra.mxu0 %v2268
      %v2358 = vpop.f32.mrf.mxu0
      %v2359 = vadd.f32 0.0, %v2358
      %v2360 = vpop.f32.mrf.mxu0
      %v2361 = vpop.f32.mrf.mxu0
      %v2362 = vadd.f32 0.0, %v2361
      %v2363 = vpop.f32.mrf.mxu0
      %2364 = vmatprep.mubr.bf16.mxu0 0
      %2365 = vmatmul.mubr.bf16.gmra.mxu0 %v2269
      %v2366 = vpop.f32.mrf.mxu0
      %v2367 = vadd.f32 0.0, %v2366
      %v2368 = vpop.f32.mrf.mxu0
      %v2369 = vpop.f32.mrf.mxu0
      %v2370 = vadd.f32 0.0, %v2369
      %v2371 = vpop.f32.mrf.mxu0
      %2372 = vmatprep.mubr.bf16.mxu0 0
      %2373 = vmatmul.mubr.bf16.gmra.mxu0 %v2270
      %v2374 = vpop.f32.mrf.mxu0
      %v2375 = vadd.f32 0.0, %v2374
      %v2376 = vpop.f32.mrf.mxu0
      %v2377 = vpop.f32.mrf.mxu0
      %v2378 = vadd.f32 0.0, %v2377
      %v2379 = vpop.f32.mrf.mxu0
      %2380 = vmatprep.mubr.bf16.mxu0 0
      %2381 = vmatmul.mubr.bf16.gmra.mxu0 %v2271
      %v2382 = vpop.f32.mrf.mxu0
      %v2383 = vadd.f32 0.0, %v2382
      %v2384 = vpop.f32.mrf.mxu0
      %v2385 = vpop.f32.mrf.mxu0
      %v2386 = vadd.f32 0.0, %v2385
      %v2387 = vpop.f32.mrf.mxu0
      %2388 = vdwg.mxu0
      %v2389 = vld [vmem:[#allocation2] sm:$0xff]
      %v2390 = vld [vmem:[#allocation2 + $0x8] sm:$0xff]
      %v2391 = vld [vmem:[#allocation2 + $0x10] sm:$0xff]
      %v2392 = vld [vmem:[#allocation2 + $0x18] sm:$0xff]
      %v2393 = vld [vmem:[#allocation2 + $0x20] sm:$0xff]
      %v2394 = vld [vmem:[#allocation2 + $0x28] sm:$0xff]
      %v2395 = vld [vmem:[#allocation2 + $0x30] sm:$0xff]
      %v2396 = vld [vmem:[#allocation2 + $0x38] sm:$0xff]
      %v2397 = vadd.f32 %v2389, %v2359
      %v2398 = vadd.f32 %v2390, %v2362
      %v2399 = vadd.f32 %v2391, %v2367
      %v2400 = vadd.f32 %v2392, %v2370
      %v2401 = vadd.f32 %v2393, %v2375
      %v2402 = vadd.f32 %v2394, %v2378
      %v2403 = vadd.f32 %v2395, %v2383
      %v2404 = vadd.f32 %v2396, %v2386
      %2405 = vst [vmem:[#allocation2] sm:$0xff] %v2397
      %2406 = vst [vmem:[#allocation2 + $0x8] sm:$0xff] %v2398
      %2407 = vst [vmem:[#allocation2 + $0x10] sm:$0xff] %v2399
      %2408 = vst [vmem:[#allocation2 + $0x18] sm:$0xff] %v2400
      %2409 = vst [vmem:[#allocation2 + $0x20] sm:$0xff] %v2401
      %2410 = vst [vmem:[#allocation2 + $0x28] sm:$0xff] %v2402
      %2411 = vst [vmem:[#allocation2 + $0x30] sm:$0xff] %v2403
      %2412 = vst [vmem:[#allocation2 + $0x38] sm:$0xff] %v2404
      %v2413 = vld [vmem:[#allocation2] sm:$0xff]
      %v2414 = vld [vmem:[#allocation2 + $0x8] sm:$0xff]
      %v2415 = vld [vmem:[#allocation2 + $0x10] sm:$0xff]
      %v2416 = vld [vmem:[#allocation2 + $0x18] sm:$0xff]
      %v2417 = vld [vmem:[#allocation2 + $0x20] sm:$0xff]
      %v2418 = vld [vmem:[#allocation2 + $0x28] sm:$0xff]
      %v2419 = vld [vmem:[#allocation2 + $0x30] sm:$0xff]
      %v2420 = vld [vmem:[#allocation2 + $0x38] sm:$0xff]
      %v2421 = vld [vmem:[%s2] sm:$0x1]
      %v2423 = vlaneseq
      %v2424 = vshrl.u32 %v2423, 7
      %v2425 = vsub.s32 0, %v2424
      %v2426 = vrot.slane %v2421, %v2425
      %v2428 = vadd.f32 %v2413, %v2426
      %v2429 = vadd.f32 %v2414, %v2426
      %v2430 = vadd.f32 %v2415, %v2426
      %v2431 = vadd.f32 %v2416, %v2426
      %v2432 = vadd.f32 %v2417, %v2426
      %v2433 = vadd.f32 %v2418, %v2426
      %v2434 = vadd.f32 %v2419, %v2426
      %v2435 = vadd.f32 %v2420, %v2426
      %v2436 = vld [vmem:[%s245] sm:$0xf]
      %v2437 = vld [vmem:[%s245 + $0x4] sm:$0xf]
      %v2438 = vld [vmem:[%s245 + $0x8] sm:$0xf]
      %v2439 = vld [vmem:[%s245 + $0xc] sm:$0xf]
      %v2440 = vld [vmem:[%s245 + $0x10] sm:$0xf]
      %v2441 = vld [vmem:[%s245 + $0x14] sm:$0xf]
      %v2442 = vld [vmem:[%s245 + $0x18] sm:$0xf]
      %v2443 = vld [vmem:[%s245 + $0x1c] sm:$0xf]
      %v2444 = vunpack.c.l.bf16 %v2436
      %v2445 = vunpack.c.l.bf16 %v2437
      %v2446 = vunpack.c.l.bf16 %v2438
      %v2447 = vunpack.c.l.bf16 %v2439
      %v2448 = vunpack.c.l.bf16 %v2440
      %v2449 = vunpack.c.l.bf16 %v2441
      %v2450 = vunpack.c.l.bf16 %v2442
      %v2451 = vunpack.c.l.bf16 %v2443
      %v2452 = vadd.f32 %v2428, %v2444
      %v2453 = vadd.f32 %v2429, %v2445
      %v2454 = vadd.f32 %v2430, %v2446
      %v2455 = vadd.f32 %v2431, %v2447
      %v2456 = vadd.f32 %v2432, %v2448
      %v2457 = vadd.f32 %v2433, %v2449
      %v2458 = vadd.f32 %v2434, %v2450
      %v2459 = vadd.f32 %v2435, %v2451
      %v2460 = vmax.f32 %v2452, 0.0
      %v2461 = vmax.f32 %v2453, 0.0
      %v2462 = vmax.f32 %v2454, 0.0
      %v2463 = vmax.f32 %v2455, 0.0
      %v2464 = vmax.f32 %v2456, 0.0
      %v2465 = vmax.f32 %v2457, 0.0
      %v2466 = vmax.f32 %v2458, 0.0
      %v2467 = vmax.f32 %v2459, 0.0
      %v2468 = vpack.c.bf16 %v2460, %v2460
      %v2469 = vpack.c.bf16 %v2461, %v2461
      %v2470 = vpack.c.bf16 %v2462, %v2462
      %v2471 = vpack.c.bf16 %v2463, %v2463
      %v2472 = vpack.c.bf16 %v2464, %v2464
      %v2473 = vpack.c.bf16 %v2465, %v2465
      %v2474 = vpack.c.bf16 %v2466, %v2466
      %v2475 = vpack.c.bf16 %v2467, %v2467
      %2476 = vst [vmem:[%s255] sm:$0xf] %v2468
      %2477 = vst [vmem:[%s255 + $0x4] sm:$0xf] %v2469
      %2478 = vst [vmem:[%s255 + $0x8] sm:$0xf] %v2470
      %2479 = vst [vmem:[%s255 + $0xc] sm:$0xf] %v2471
      %2480 = vst [vmem:[%s255 + $0x10] sm:$0xf] %v2472
      %2481 = vst [vmem:[%s255 + $0x14] sm:$0xf] %v2473
      %2482 = vst [vmem:[%s255 + $0x18] sm:$0xf] %v2474
      %2483 = vst [vmem:[%s255 + $0x1c] sm:$0xf] %v2475
      %s2484 = smul.u32 8, %s20
      %p2485 = scmp.lt.s32.totalorder %s19, 1
      %s2486 = scalar_select %p2485, %s19, 1
      %p2487 = scmp.lt.s32.totalorder %s2484, 7
      %s2488 = scalar_select %p2487, %s2484, 7
      %s2489 = smul.addr %s2486, 8
      %s2490 = sadd.s32 %s2488, %s2489
      %s2491 = smul.addr %s2490, 4
      %s2492 = scalar_lea.vmem %s4, %s2491
      // Predicated region
      $region37: #{_lambda_.7} parent=35 // pred_check
        %p2493 = pneg %p143
      $region38: #{_lambda_.7} parent=35 // pred_check_branch
        %2495 = sbr.rel (%p2493) target = $region40
      $region39: #{_lambda_.7} parent=35 // pred_region
        %s2496 = smul.u32 8, %s20
      $region40: #{_lambda_.7} parent=35 // pred_fallthru
        _
    $region36: #{_lambda_.7} parent=5 // pred_fallthru
      _
    %p2497 = scmp.le.s32.totalorder 2, %s10
    // Predicated region
    $region41: #{_lambda_.7} parent=5 // pred_check
      %p2498 = pneg %p2497
    $region42: #{_lambda_.7} parent=5 // pred_check_branch
      %2500 = sbr.rel (%p2498) target = $region44
    $region43: #{_lambda_.7} parent=5 // pred_region
      %s2501 = ssub.s32 %s10, 2
      // Predicated region
      $region45: #{_lambda_.7} parent=43 // pred_check
        %p2502 = pneg %p149
      $region46: #{_lambda_.7} parent=43 // pred_check_branch
        %2504 = sbr.rel (%p2502) target = $region48
      $region47: #{_lambda_.7} parent=43 // pred_region
        %s2505 = smul.u32 8, %s22
        %p2506 = scmp.lt.s32.totalorder %s21, 1
        %s2507 = scalar_select %p2506, %s21, 1
        %p2508 = scmp.lt.s32.totalorder %s2505, 7
        %s2509 = scalar_select %p2508, %s2505, 7
        %s2510 = smul.addr %s2507, 8
        %s2511 = sadd.s32 %s2509, %s2510
        %s2512 = smul.addr %s2511, 4
        %s2513 = scalar_lea.vmem %s4, %s2512
      $region48: #{_lambda_.7} parent=43 // pred_fallthru
        _
    $region44: #{_lambda_.7} parent=5 // pred_fallthru
      _
  $region6: #{_lambda_.7} parent=0 // loop_footer
    %s14 = sadd.s32 1, %s10
  $region7: #{_lambda_.7} parent=0 // loop_footer_branch
    %9 = sbr.rel target = $region3
  $region8: #{_lambda_.7} parent=0 // loop_exit
    _

</llo_original>
